<compile_context>
chip_gen: v6e
topology: v6e:2x2x1
jax: 0.10.0
libtpu: 0.0.40
codegen_flags: <defaults>
</compile_context>

<pallas_src>
import jax
import jax.numpy as jnp
import numpy as np
from jax.experimental import pallas as pl
from jax.experimental.pallas import tpu as pltpu


def _build_tap_masks(H, W, n_rows=16):
    """(n_rows, H*W) 0/1 matrix; row t=3*ki+kj marks the pixels conv tap (ki,kj) touches.

    With 1-pixel zero padding, tap (ki, kj) touches rows [max(0,ki-1), H+min(0,ki-1))
    and the analogous column range.  Rows 9..n_rows-1 are zero padding (clean sublane
    tiling for the MXU).
    """
    row_m = np.zeros((3, H), np.float32)
    row_m[0, : H - 1] = 1.0        # ki = 0: rows 0 .. H-2
    row_m[1, :] = 1.0              # ki = 1: all rows
    row_m[2, 1:] = 1.0             # ki = 2: rows 1 .. H-1
    col_m = np.zeros((3, W), np.float32)
    col_m[0, : W - 1] = 1.0
    col_m[1, :] = 1.0
    col_m[2, 1:] = 1.0
    masks = np.zeros((n_rows, H * W), np.float32)
    for ki in range(3):
        for kj in range(3):
            masks[3 * ki + kj] = np.outer(row_m[ki], col_m[kj]).reshape(-1)
    return masks


def _make_kernel(TB, C, M):
    """Fused (conv3x3 -> spatial mean -> Linear) for one batch tile of TB images."""

    def kernel(x_ref, mask_ref, w1_ref, wfc_ref, bfc_ref, out_ref, style_ref):
        # x_ref    : (TB*C, HW)  batch tile; channels on sublanes, flat spatial on lanes
        # mask_ref : (16, HW)    bf16 0/1 tap-window masks (rows 9..15 are zero padding)
        # w1_ref   : (9, C, M)   conv weight pre-scaled by 1/HW: w1[3*ki+kj, c, o]
        # wfc_ref  : (M, F)      FC weight (torch weight transposed)
        # bfc_ref  : (1, F)      effective FC bias (= bfc + b1 @ wfc)
        # out_ref  : (TB, F)
        # style_ref: (TB, M)     VMEM scratch holding the per-image conv means
        x = x_ref[...]
        if x.dtype != jnp.bfloat16:
            x = x.astype(jnp.bfloat16)          # bf16-native MXU; f32 accumulation below

        # Stage 1: all 9 tap-window per-channel sums for the whole tile, ONE MXU matmul.
        #   S[t, b*C + c] = sum_p mask[t, p] * x[b, c, p]
        s = jax.lax.dot_general(mask_ref[...], x, (((1,), (1,)), ((), ())),
                                preferred_element_type=jnp.float32)   # (16, TB*C) f32

        # Stage 2: fold the taps into the conv mean (w1 already carries the 1/HW).
        for b in range(TB):                      # static unroll; TB is small
            s_b = s[:, b * C:(b + 1) * C]        # (16, C): lane slice, 128-aligned, free
            acc = jnp.dot(s_b[0:1, :], w1_ref[0], preferred_element_type=jnp.float32)
            for t in range(1, 9):
                acc = acc + jnp.dot(s_b[t:t + 1, :], w1_ref[t],
                                    preferred_element_type=jnp.float32)
            style_ref[pl.ds(b, 1), :] = acc      # (1, M) row of the style scratch

        # Stage 3: one batched FC for the whole tile; lane-dense (TB, F) store.
        out_ref[...] = (jnp.dot(style_ref[...], wfc_ref[...],
                                preferred_element_type=jnp.float32) + bfc_ref[...])

    return kernel


def filter_predictor_forward(x_nchw, params, batch_tile=None):
    """Fused Pallas forward.  x_nchw: (B, vgg_channel, H, W) -> (B, M, M, 3, 3)."""
    w1, b1, wfc, bfc = (params[k] for k in ("w1", "b1", "wfc", "bfc"))
    B, C, H, W = x_nchw.shape
    HW = H * W
    M = b1.shape[-1]
    F = bfc.shape[-1]

    # Default: whole batch in one grid step (best for single-TC v5e/v6e); batch_tile=1
    # re-enables one-image-per-step for v7x's two TensorCores.
    TB = B if batch_tile is None else batch_tile
    assert B % TB == 0 and (TB == B or TB % 8 == 0), "batch tile must respect (8,128) blocking"

    # NCHW is contiguous as (B*C, H*W): free metadata reshape, no HBM copy, no upcast.
    x2 = x_nchw.reshape(B * C, HW)

    # Host-side constant folding (tiny, traced once under jit):
    mask = jnp.asarray(_build_tap_masks(H, W), dtype=jnp.bfloat16)     # (16, HW), exact 0/1
    w1_eff = (w1 * (1.0 / HW)).astype(jnp.float32)                     # fold spatial mean
    bfc_eff = (bfc + jnp.dot(b1, wfc)).astype(jnp.float32)             # fold conv bias thru FC

    flops = B * (2 * 16 * HW * C + 2 * 9 * C * M + 2 * M * F)
    bytes_accessed = (x2.size * x2.dtype.itemsize + mask.size * 2
                      + w1_eff.size * 4 + wfc.size * wfc.dtype.itemsize
                      + bfc_eff.size * 4 + B * F * 4)

    out = pl.pallas_call(
        _make_kernel(TB, C, M),
        out_shape=jax.ShapeDtypeStruct((B, F), jnp.float32),
        grid=(B // TB,),
        in_specs=[
            pl.BlockSpec((TB * C, HW), lambda i: (i, 0)),    # one batch tile per grid step
            pl.BlockSpec((16, HW), lambda i: (0, 0)),        # constants: constant index maps
            pl.BlockSpec((9, C, M), lambda i: (0, 0, 0)),    #   -> fetched once, stay
            pl.BlockSpec((M, F), lambda i: (0, 0)),          #      resident in VMEM across
            pl.BlockSpec((1, F), lambda i: (0, 0)),          #      the (serial) batch grid
        ],
        out_specs=pl.BlockSpec((TB, F), lambda i: (i, 0)),
        scratch_shapes=[pltpu.VMEM((TB, M), jnp.float32)],
        compiler_params=pltpu.CompilerParams(
            dimension_semantics=("parallel",)),              # megacore-friendly when TB < B
        cost_estimate=pl.CostEstimate(flops=flops, transcendentals=0,
                                      bytes_accessed=bytes_accessed),
    )(x2, mask, w1_eff, wfc, bfc_eff)

    # torch: filter.view(-1, M, M, 3, 3)  (row-major reshape, layout plumbing only).
    return out.reshape(B, M, M, 3, 3)


def filter_predictor_reference(x_nchw, params):
    """Pure-JAX literal reference (conv -> mean -> FC) for correctness checking."""
    w1, b1, wfc, bfc = (params[k] for k in ("w1", "b1", "wfc", "bfc"))
    B, C, H, W = x_nchw.shape
    M = b1.shape[-1]
    x = jnp.transpose(x_nchw, (0, 2, 3, 1)).astype(jnp.float32)         # NHWC
    w_hwio = w1.reshape(3, 3, C, M)                                     # (ki, kj, c, o)
    y = jax.lax.conv_general_dilated(
        x, w_hwio, (1, 1), "SAME",
        dimension_numbers=("NHWC", "HWIO", "NHWC"),
        precision=jax.lax.Precision.HIGHEST)
    y = y + b1.reshape(1, 1, 1, M)
    s = jnp.mean(y, axis=(1, 2))                                        # (B, M)
    f = jnp.dot(s, wfc, precision=jax.lax.Precision.HIGHEST) + bfc      # (B, 9*M*M)
    return f.reshape(B, M, M, 3, 3)


if __name__ == "__main__":
    key = jax.random.PRNGKey(0)
    kx, k1, kb1, k2, kb2 = jax.random.split(key, 5)

    # FilterPredictor_S(vgg_channel=512, inner_channel=32); small VGG-feature map 16x16.
    B, VGG_C, H, W = 2, 512, 16, 16
    INNER = 32
    F = 9 * INNER * INNER

    x = jax.random.normal(kx, (B, VGG_C, H, W), jnp.float32)
    params = {
        # down_sample conv: torch weight (INNER, VGG_C, 3, 3) stored as (9, VGG_C, INNER)
        # with w1[3*ki+kj, c, o] = weight[o, c, ki, kj]; bias as (1, INNER).
        "w1": 0.05 * jax.random.normal(k1, (9, VGG_C, INNER), jnp.float32),
        "b1": 0.1 * jax.random.normal(kb1, (1, INNER), jnp.float32),
        # FC: torch Linear(INNER, 9*INNER*INNER) weight (F, INNER) stored transposed.
        "wfc": 0.05 * jax.random.normal(k2, (INNER, F), jnp.float32),
        "bfc": 0.1 * jax.random.normal(kb2, (1, F), jnp.float32),
    }

    out = jax.jit(filter_predictor_forward)(x, params)
    out = jax.block_until_ready(out)

    ref = filter_predictor_reference(x, params)
    assert out.shape == (B, INNER, INNER, 3, 3), out.shape
    # bf16 stage-1 inputs (review item) leave ~1e-4-level absolute error vs the f32
    # HIGHEST-precision reference; 5e-3 tolerance has ample margin.
    np.testing.assert_allclose(np.asarray(out), np.asarray(ref), atol=5e-3, rtol=5e-3)
    print("KERNEL_OK")
</pallas_src>

<mosaic_0001>
module attributes {stable_mosaic.version = 11 : i64} {
  func.func @kernel(%arg0: i32, %arg1: memref<1024x256xf32, #tpu.memory_space<vmem>>, %arg2: memref<16x256xbf16, #tpu.memory_space<vmem>>, %arg3: memref<9x512x32xf32, #tpu.memory_space<vmem>>, %arg4: memref<32x9216xf32, #tpu.memory_space<vmem>>, %arg5: memref<1x9216xf32, #tpu.memory_space<vmem>>, %arg6: memref<2x9216xf32, #tpu.memory_space<vmem>>, %arg7: memref<2x32xf32, #tpu.memory_space<vmem>>) attributes {dimension_semantics = [#tpu.dimension_semantics<parallel>], iteration_bounds = array<i64: 1>, scalar_prefetch = 0 : i64, scratch_operands = 1 : i64, tpu.core_type = #tpu.core_type<tc>, window_params = [{transform_indices = @transform_0, window_bounds = array<i64: 1024, 256>}, {pipeline_mode = #tpu.pipeline_mode<synchronous>, transform_indices = @transform_1, window_bounds = array<i64: 16, 256>}, {pipeline_mode = #tpu.pipeline_mode<synchronous>, transform_indices = @transform_2, window_bounds = array<i64: 9, 512, 32>}, {pipeline_mode = #tpu.pipeline_mode<synchronous>, transform_indices = @transform_3, window_bounds = array<i64: 32, 9216>}, {pipeline_mode = #tpu.pipeline_mode<synchronous>, transform_indices = @transform_4, window_bounds = array<i64: 1, 9216>}, {transform_indices = @transform_5, window_bounds = array<i64: 2, 9216>}]} {
    %c0 = arith.constant 0 : index
    %c0_0 = arith.constant 0 : index
    %0 = vector.load %arg1[%c0, %c0_0] : memref<1024x256xf32, #tpu.memory_space<vmem>>, vector<1024x256xf32>
    %1 = arith.truncf %0 : vector<1024x256xf32> to vector<1024x256xbf16>
    %c0_1 = arith.constant 0 : index
    %c0_2 = arith.constant 0 : index
    %2 = vector.load %arg2[%c0_1, %c0_2] : memref<16x256xbf16, #tpu.memory_space<vmem>>, vector<16x256xbf16>
    %cst = arith.constant dense<0.000000e+00> : vector<16x1024xf32>
    %3 = tpu.matmul %2, %1, %cst {dimension_numbers = #tpu.dot_dimension_numbers<[1], [1], [0], [0], [0, 0, 1, 0], [], []>} : vector<16x256xbf16>, vector<1024x256xbf16>, vector<16x1024xf32> -> vector<16x1024xf32>
    %4 = vector.extract_strided_slice %3 {offsets = [0, 0], sizes = [16, 512], strides = [1, 1]} : vector<16x1024xf32> to vector<16x512xf32>
    %5 = vector.extract_strided_slice %4 {offsets = [0, 0], sizes = [1, 512], strides = [1, 1]} : vector<16x512xf32> to vector<1x512xf32>
    %c0_3 = arith.constant 0 : index
    %c0_4 = arith.constant 0 : index
    %c0_5 = arith.constant 0 : index
    %6 = vector.load %arg3[%c0_3, %c0_4, %c0_5] : memref<9x512x32xf32, #tpu.memory_space<vmem>>, vector<1x512x32xf32>
    %7 = vector.shape_cast %6 : vector<1x512x32xf32> to vector<512x32xf32>
    %cst_6 = arith.constant dense<0.000000e+00> : vector<1x32xf32>
    %8 = tpu.matmul %5, %7, %cst_6 {dimension_numbers = #tpu.dot_dimension_numbers<[1], [0], [0], [1], [0, 0, 1, 1], [], []>} : vector<1x512xf32>, vector<512x32xf32>, vector<1x32xf32> -> vector<1x32xf32>
    %9 = vector.extract_strided_slice %4 {offsets = [1, 0], sizes = [1, 512], strides = [1, 1]} : vector<16x512xf32> to vector<1x512xf32>
    %c1 = arith.constant 1 : index
    %c0_7 = arith.constant 0 : index
    %c0_8 = arith.constant 0 : index
    %10 = vector.load %arg3[%c1, %c0_7, %c0_8] : memref<9x512x32xf32, #tpu.memory_space<vmem>>, vector<1x512x32xf32>
    %11 = vector.shape_cast %10 : vector<1x512x32xf32> to vector<512x32xf32>
    %cst_9 = arith.constant dense<0.000000e+00> : vector<1x32xf32>
    %12 = tpu.matmul %9, %11, %cst_9 {dimension_numbers = #tpu.dot_dimension_numbers<[1], [0], [0], [1], [0, 0, 1, 1], [], []>} : vector<1x512xf32>, vector<512x32xf32>, vector<1x32xf32> -> vector<1x32xf32>
    %13 = arith.addf %8, %12 : vector<1x32xf32>
    %14 = vector.extract_strided_slice %4 {offsets = [2, 0], sizes = [1, 512], strides = [1, 1]} : vector<16x512xf32> to vector<1x512xf32>
    %c2 = arith.constant 2 : index
    %c0_10 = arith.constant 0 : index
    %c0_11 = arith.constant 0 : index
    %15 = vector.load %arg3[%c2, %c0_10, %c0_11] : memref<9x512x32xf32, #tpu.memory_space<vmem>>, vector<1x512x32xf32>
    %16 = vector.shape_cast %15 : vector<1x512x32xf32> to vector<512x32xf32>
    %cst_12 = arith.constant dense<0.000000e+00> : vector<1x32xf32>
    %17 = tpu.matmul %14, %16, %cst_12 {dimension_numbers = #tpu.dot_dimension_numbers<[1], [0], [0], [1], [0, 0, 1, 1], [], []>} : vector<1x512xf32>, vector<512x32xf32>, vector<1x32xf32> -> vector<1x32xf32>
    %18 = arith.addf %13, %17 : vector<1x32xf32>
    %19 = vector.extract_strided_slice %4 {offsets = [3, 0], sizes = [1, 512], strides = [1, 1]} : vector<16x512xf32> to vector<1x512xf32>
    %c3 = arith.constant 3 : index
    %c0_13 = arith.constant 0 : index
    %c0_14 = arith.constant 0 : index
    %20 = vector.load %arg3[%c3, %c0_13, %c0_14] : memref<9x512x32xf32, #tpu.memory_space<vmem>>, vector<1x512x32xf32>
    %21 = vector.shape_cast %20 : vector<1x512x32xf32> to vector<512x32xf32>
    %cst_15 = arith.constant dense<0.000000e+00> : vector<1x32xf32>
    %22 = tpu.matmul %19, %21, %cst_15 {dimension_numbers = #tpu.dot_dimension_numbers<[1], [0], [0], [1], [0, 0, 1, 1], [], []>} : vector<1x512xf32>, vector<512x32xf32>, vector<1x32xf32> -> vector<1x32xf32>
    %23 = arith.addf %18, %22 : vector<1x32xf32>
    %24 = vector.extract_strided_slice %4 {offsets = [4, 0], sizes = [1, 512], strides = [1, 1]} : vector<16x512xf32> to vector<1x512xf32>
    %c4 = arith.constant 4 : index
    %c0_16 = arith.constant 0 : index
    %c0_17 = arith.constant 0 : index
    %25 = vector.load %arg3[%c4, %c0_16, %c0_17] : memref<9x512x32xf32, #tpu.memory_space<vmem>>, vector<1x512x32xf32>
    %26 = vector.shape_cast %25 : vector<1x512x32xf32> to vector<512x32xf32>
    %cst_18 = arith.constant dense<0.000000e+00> : vector<1x32xf32>
    %27 = tpu.matmul %24, %26, %cst_18 {dimension_numbers = #tpu.dot_dimension_numbers<[1], [0], [0], [1], [0, 0, 1, 1], [], []>} : vector<1x512xf32>, vector<512x32xf32>, vector<1x32xf32> -> vector<1x32xf32>
    %28 = arith.addf %23, %27 : vector<1x32xf32>
    %29 = vector.extract_strided_slice %4 {offsets = [5, 0], sizes = [1, 512], strides = [1, 1]} : vector<16x512xf32> to vector<1x512xf32>
    %c5 = arith.constant 5 : index
    %c0_19 = arith.constant 0 : index
    %c0_20 = arith.constant 0 : index
    %30 = vector.load %arg3[%c5, %c0_19, %c0_20] : memref<9x512x32xf32, #tpu.memory_space<vmem>>, vector<1x512x32xf32>
    %31 = vector.shape_cast %30 : vector<1x512x32xf32> to vector<512x32xf32>
    %cst_21 = arith.constant dense<0.000000e+00> : vector<1x32xf32>
    %32 = tpu.matmul %29, %31, %cst_21 {dimension_numbers = #tpu.dot_dimension_numbers<[1], [0], [0], [1], [0, 0, 1, 1], [], []>} : vector<1x512xf32>, vector<512x32xf32>, vector<1x32xf32> -> vector<1x32xf32>
    %33 = arith.addf %28, %32 : vector<1x32xf32>
    %34 = vector.extract_strided_slice %4 {offsets = [6, 0], sizes = [1, 512], strides = [1, 1]} : vector<16x512xf32> to vector<1x512xf32>
    %c6 = arith.constant 6 : index
    %c0_22 = arith.constant 0 : index
    %c0_23 = arith.constant 0 : index
    %35 = vector.load %arg3[%c6, %c0_22, %c0_23] : memref<9x512x32xf32, #tpu.memory_space<vmem>>, vector<1x512x32xf32>
    %36 = vector.shape_cast %35 : vector<1x512x32xf32> to vector<512x32xf32>
    %cst_24 = arith.constant dense<0.000000e+00> : vector<1x32xf32>
    %37 = tpu.matmul %34, %36, %cst_24 {dimension_numbers = #tpu.dot_dimension_numbers<[1], [0], [0], [1], [0, 0, 1, 1], [], []>} : vector<1x512xf32>, vector<512x32xf32>, vector<1x32xf32> -> vector<1x32xf32>
    %38 = arith.addf %33, %37 : vector<1x32xf32>
    %39 = vector.extract_strided_slice %4 {offsets = [7, 0], sizes = [1, 512], strides = [1, 1]} : vector<16x512xf32> to vector<1x512xf32>
    %c7 = arith.constant 7 : index
    %c0_25 = arith.constant 0 : index
    %c0_26 = arith.constant 0 : index
    %40 = vector.load %arg3[%c7, %c0_25, %c0_26] : memref<9x512x32xf32, #tpu.memory_space<vmem>>, vector<1x512x32xf32>
    %41 = vector.shape_cast %40 : vector<1x512x32xf32> to vector<512x32xf32>
    %cst_27 = arith.constant dense<0.000000e+00> : vector<1x32xf32>
    %42 = tpu.matmul %39, %41, %cst_27 {dimension_numbers = #tpu.dot_dimension_numbers<[1], [0], [0], [1], [0, 0, 1, 1], [], []>} : vector<1x512xf32>, vector<512x32xf32>, vector<1x32xf32> -> vector<1x32xf32>
    %43 = arith.addf %38, %42 : vector<1x32xf32>
    %44 = vector.extract_strided_slice %4 {offsets = [8, 0], sizes = [1, 512], strides = [1, 1]} : vector<16x512xf32> to vector<1x512xf32>
    %c8 = arith.constant 8 : index
    %c0_28 = arith.constant 0 : index
    %c0_29 = arith.constant 0 : index
    %45 = vector.load %arg3[%c8, %c0_28, %c0_29] : memref<9x512x32xf32, #tpu.memory_space<vmem>>, vector<1x512x32xf32>
    %46 = vector.shape_cast %45 : vector<1x512x32xf32> to vector<512x32xf32>
    %cst_30 = arith.constant dense<0.000000e+00> : vector<1x32xf32>
    %47 = tpu.matmul %44, %46, %cst_30 {dimension_numbers = #tpu.dot_dimension_numbers<[1], [0], [0], [1], [0, 0, 1, 1], [], []>} : vector<1x512xf32>, vector<512x32xf32>, vector<1x32xf32> -> vector<1x32xf32>
    %48 = arith.addf %43, %47 : vector<1x32xf32>
    %c0_31 = arith.constant 0 : index
    %c0_32 = arith.constant 0 : index
    %49 = vector.load %arg7[%c0_31, %c0_32] : memref<2x32xf32, #tpu.memory_space<vmem>>, vector<1x32xf32>
    tpu.vector_store %arg7[%c0_31, %c0_32], %48 {strides = array<i32>} : memref<2x32xf32, #tpu.memory_space<vmem>>, vector<1x32xf32>,
    %50 = vector.extract_strided_slice %3 {offsets = [0, 512], sizes = [16, 512], strides = [1, 1]} : vector<16x1024xf32> to vector<16x512xf32>
    %51 = vector.extract_strided_slice %50 {offsets = [0, 0], sizes = [1, 512], strides = [1, 1]} : vector<16x512xf32> to vector<1x512xf32>
    %c0_33 = arith.constant 0 : index
    %c0_34 = arith.constant 0 : index
    %c0_35 = arith.constant 0 : index
    %52 = vector.load %arg3[%c0_33, %c0_34, %c0_35] : memref<9x512x32xf32, #tpu.memory_space<vmem>>, vector<1x512x32xf32>
    %53 = vector.shape_cast %52 : vector<1x512x32xf32> to vector<512x32xf32>
    %cst_36 = arith.constant dense<0.000000e+00> : vector<1x32xf32>
    %54 = tpu.matmul %51, %53, %cst_36 {dimension_numbers = #tpu.dot_dimension_numbers<[1], [0], [0], [1], [0, 0, 1, 1], [], []>} : vector<1x512xf32>, vector<512x32xf32>, vector<1x32xf32> -> vector<1x32xf32>
    %55 = vector.extract_strided_slice %50 {offsets = [1, 0], sizes = [1, 512], strides = [1, 1]} : vector<16x512xf32> to vector<1x512xf32>
    %c1_37 = arith.constant 1 : index
    %c0_38 = arith.constant 0 : index
    %c0_39 = arith.constant 0 : index
    %56 = vector.load %arg3[%c1_37, %c0_38, %c0_39] : memref<9x512x32xf32, #tpu.memory_space<vmem>>, vector<1x512x32xf32>
    %57 = vector.shape_cast %56 : vector<1x512x32xf32> to vector<512x32xf32>
    %cst_40 = arith.constant dense<0.000000e+00> : vector<1x32xf32>
    %58 = tpu.matmul %55, %57, %cst_40 {dimension_numbers = #tpu.dot_dimension_numbers<[1], [0], [0], [1], [0, 0, 1, 1], [], []>} : vector<1x512xf32>, vector<512x32xf32>, vector<1x32xf32> -> vector<1x32xf32>
    %59 = arith.addf %54, %58 : vector<1x32xf32>
    %60 = vector.extract_strided_slice %50 {offsets = [2, 0], sizes = [1, 512], strides = [1, 1]} : vector<16x512xf32> to vector<1x512xf32>
    %c2_41 = arith.constant 2 : index
    %c0_42 = arith.constant 0 : index
    %c0_43 = arith.constant 0 : index
    %61 = vector.load %arg3[%c2_41, %c0_42, %c0_43] : memref<9x512x32xf32, #tpu.memory_space<vmem>>, vector<1x512x32xf32>
    %62 = vector.shape_cast %61 : vector<1x512x32xf32> to vector<512x32xf32>
    %cst_44 = arith.constant dense<0.000000e+00> : vector<1x32xf32>
    %63 = tpu.matmul %60, %62, %cst_44 {dimension_numbers = #tpu.dot_dimension_numbers<[1], [0], [0], [1], [0, 0, 1, 1], [], []>} : vector<1x512xf32>, vector<512x32xf32>, vector<1x32xf32> -> vector<1x32xf32>
    %64 = arith.addf %59, %63 : vector<1x32xf32>
    %65 = vector.extract_strided_slice %50 {offsets = [3, 0], sizes = [1, 512], strides = [1, 1]} : vector<16x512xf32> to vector<1x512xf32>
    %c3_45 = arith.constant 3 : index
    %c0_46 = arith.constant 0 : index
    %c0_47 = arith.constant 0 : index
    %66 = vector.load %arg3[%c3_45, %c0_46, %c0_47] : memref<9x512x32xf32, #tpu.memory_space<vmem>>, vector<1x512x32xf32>
    %67 = vector.shape_cast %66 : vector<1x512x32xf32> to vector<512x32xf32>
    %cst_48 = arith.constant dense<0.000000e+00> : vector<1x32xf32>
    %68 = tpu.matmul %65, %67, %cst_48 {dimension_numbers = #tpu.dot_dimension_numbers<[1], [0], [0], [1], [0, 0, 1, 1], [], []>} : vector<1x512xf32>, vector<512x32xf32>, vector<1x32xf32> -> vector<1x32xf32>
    %69 = arith.addf %64, %68 : vector<1x32xf32>
    %70 = vector.extract_strided_slice %50 {offsets = [4, 0], sizes = [1, 512], strides = [1, 1]} : vector<16x512xf32> to vector<1x512xf32>
    %c4_49 = arith.constant 4 : index
    %c0_50 = arith.constant 0 : index
    %c0_51 = arith.constant 0 : index
    %71 = vector.load %arg3[%c4_49, %c0_50, %c0_51] : memref<9x512x32xf32, #tpu.memory_space<vmem>>, vector<1x512x32xf32>
    %72 = vector.shape_cast %71 : vector<1x512x32xf32> to vector<512x32xf32>
    %cst_52 = arith.constant dense<0.000000e+00> : vector<1x32xf32>
    %73 = tpu.matmul %70, %72, %cst_52 {dimension_numbers = #tpu.dot_dimension_numbers<[1], [0], [0], [1], [0, 0, 1, 1], [], []>} : vector<1x512xf32>, vector<512x32xf32>, vector<1x32xf32> -> vector<1x32xf32>
    %74 = arith.addf %69, %73 : vector<1x32xf32>
    %75 = vector.extract_strided_slice %50 {offsets = [5, 0], sizes = [1, 512], strides = [1, 1]} : vector<16x512xf32> to vector<1x512xf32>
    %c5_53 = arith.constant 5 : index
    %c0_54 = arith.constant 0 : index
    %c0_55 = arith.constant 0 : index
    %76 = vector.load %arg3[%c5_53, %c0_54, %c0_55] : memref<9x512x32xf32, #tpu.memory_space<vmem>>, vector<1x512x32xf32>
    %77 = vector.shape_cast %76 : vector<1x512x32xf32> to vector<512x32xf32>
    %cst_56 = arith.constant dense<0.000000e+00> : vector<1x32xf32>
    %78 = tpu.matmul %75, %77, %cst_56 {dimension_numbers = #tpu.dot_dimension_numbers<[1], [0], [0], [1], [0, 0, 1, 1], [], []>} : vector<1x512xf32>, vector<512x32xf32>, vector<1x32xf32> -> vector<1x32xf32>
    %79 = arith.addf %74, %78 : vector<1x32xf32>
    %80 = vector.extract_strided_slice %50 {offsets = [6, 0], sizes = [1, 512], strides = [1, 1]} : vector<16x512xf32> to vector<1x512xf32>
    %c6_57 = arith.constant 6 : index
    %c0_58 = arith.constant 0 : index
    %c0_59 = arith.constant 0 : index
    %81 = vector.load %arg3[%c6_57, %c0_58, %c0_59] : memref<9x512x32xf32, #tpu.memory_space<vmem>>, vector<1x512x32xf32>
    %82 = vector.shape_cast %81 : vector<1x512x32xf32> to vector<512x32xf32>
    %cst_60 = arith.constant dense<0.000000e+00> : vector<1x32xf32>
    %83 = tpu.matmul %80, %82, %cst_60 {dimension_numbers = #tpu.dot_dimension_numbers<[1], [0], [0], [1], [0, 0, 1, 1], [], []>} : vector<1x512xf32>, vector<512x32xf32>, vector<1x32xf32> -> vector<1x32xf32>
    %84 = arith.addf %79, %83 : vector<1x32xf32>
    %85 = vector.extract_strided_slice %50 {offsets = [7, 0], sizes = [1, 512], strides = [1, 1]} : vector<16x512xf32> to vector<1x512xf32>
    %c7_61 = arith.constant 7 : index
    %c0_62 = arith.constant 0 : index
    %c0_63 = arith.constant 0 : index
    %86 = vector.load %arg3[%c7_61, %c0_62, %c0_63] : memref<9x512x32xf32, #tpu.memory_space<vmem>>, vector<1x512x32xf32>
    %87 = vector.shape_cast %86 : vector<1x512x32xf32> to vector<512x32xf32>
    %cst_64 = arith.constant dense<0.000000e+00> : vector<1x32xf32>
    %88 = tpu.matmul %85, %87, %cst_64 {dimension_numbers = #tpu.dot_dimension_numbers<[1], [0], [0], [1], [0, 0, 1, 1], [], []>} : vector<1x512xf32>, vector<512x32xf32>, vector<1x32xf32> -> vector<1x32xf32>
    %89 = arith.addf %84, %88 : vector<1x32xf32>
    %90 = vector.extract_strided_slice %50 {offsets = [8, 0], sizes = [1, 512], strides = [1, 1]} : vector<16x512xf32> to vector<1x512xf32>
    %c8_65 = arith.constant 8 : index
    %c0_66 = arith.constant 0 : index
    %c0_67 = arith.constant 0 : index
    %91 = vector.load %arg3[%c8_65, %c0_66, %c0_67] : memref<9x512x32xf32, #tpu.memory_space<vmem>>, vector<1x512x32xf32>
    %92 = vector.shape_cast %91 : vector<1x512x32xf32> to vector<512x32xf32>
    %cst_68 = arith.constant dense<0.000000e+00> : vector<1x32xf32>
    %93 = tpu.matmul %90, %92, %cst_68 {dimension_numbers = #tpu.dot_dimension_numbers<[1], [0], [0], [1], [0, 0, 1, 1], [], []>} : vector<1x512xf32>, vector<512x32xf32>, vector<1x32xf32> -> vector<1x32xf32>
    %94 = arith.addf %89, %93 : vector<1x32xf32>
    %c1_69 = arith.constant 1 : index
    %c0_70 = arith.constant 0 : index
    %95 = vector.load %arg7[%c1_69, %c0_70] : memref<2x32xf32, #tpu.memory_space<vmem>>, vector<1x32xf32>
    tpu.vector_store %arg7[%c1_69, %c0_70], %94 {strides = array<i32>} : memref<2x32xf32, #tpu.memory_space<vmem>>, vector<1x32xf32>,
    %c0_71 = arith.constant 0 : index
    %c0_72 = arith.constant 0 : index
    %96 = vector.load %arg7[%c0_71, %c0_72] : memref<2x32xf32, #tpu.memory_space<vmem>>, vector<2x32xf32>
    %c0_73 = arith.constant 0 : index
    %c0_74 = arith.constant 0 : index
    %97 = vector.load %arg4[%c0_73, %c0_74] : memref<32x9216xf32, #tpu.memory_space<vmem>>, vector<32x9216xf32>
    %cst_75 = arith.constant dense<0.000000e+00> : vector<2x9216xf32>
    %98 = tpu.matmul %96, %97, %cst_75 {dimension_numbers = #tpu.dot_dimension_numbers<[1], [0], [0], [1], [0, 0, 1, 1], [], []>} : vector<2x32xf32>, vector<32x9216xf32>, vector<2x9216xf32> -> vector<2x9216xf32>
    %c0_76 = arith.constant 0 : index
    %c0_77 = arith.constant 0 : index
    %99 = vector.load %arg5[%c0_76, %c0_77] : memref<1x9216xf32, #tpu.memory_space<vmem>>, vector<1x9216xf32>
    %100 = vector.broadcast %99 : vector<1x9216xf32> to vector<2x9216xf32>
    %101 = arith.addf %98, %100 : vector<2x9216xf32>
    %c0_78 = arith.constant 0 : index
    %c0_79 = arith.constant 0 : index
    %102 = vector.load %arg6[%c0_78, %c0_79] : memref<2x9216xf32, #tpu.memory_space<vmem>>, vector<2x9216xf32>
    tpu.vector_store %arg6[%c0_78, %c0_79], %101 {strides = array<i32>} : memref<2x9216xf32, #tpu.memory_space<vmem>>, vector<2x9216xf32>,
    return
  }
  func.func @transform_0(%arg0: i32) -> (i32, i32) {
    %c0_i32 = arith.constant 0 : i32
    %c0_i32_0 = arith.constant 0 : i32
    return %arg0, %c0_i32 : i32, i32
  }
  func.func @transform_1(%arg0: i32) -> (i32, i32) {
    %c0_i32 = arith.constant 0 : i32
    %c0_i32_0 = arith.constant 0 : i32
    %c0_i32_1 = arith.constant 0 : i32
    return %c0_i32, %c0_i32_0 : i32, i32
  }
  func.func @transform_2(%arg0: i32) -> (i32, i32, i32) {
    %c0_i32 = arith.constant 0 : i32
    %c0_i32_0 = arith.constant 0 : i32
    %c0_i32_1 = arith.constant 0 : i32
    %c0_i32_2 = arith.constant 0 : i32
    return %c0_i32, %c0_i32_0, %c0_i32_1 : i32, i32, i32
  }
  func.func @transform_3(%arg0: i32) -> (i32, i32) {
    %c0_i32 = arith.constant 0 : i32
    %c0_i32_0 = arith.constant 0 : i32
    %c0_i32_1 = arith.constant 0 : i32
    return %c0_i32, %c0_i32_0 : i32, i32
  }
  func.func @transform_4(%arg0: i32) -> (i32, i32) {
    %c0_i32 = arith.constant 0 : i32
    %c0_i32_0 = arith.constant 0 : i32
    %c0_i32_1 = arith.constant 0 : i32
    return %c0_i32, %c0_i32_0 : i32, i32
  }
  func.func @transform_5(%arg0: i32) -> (i32, i32) {
    %c0_i32 = arith.constant 0 : i32
    %c0_i32_0 = arith.constant 0 : i32
    return %arg0, %c0_i32 : i32, i32
  }
}

</mosaic_0001>

<llo_original>
// kernel: filter_predictor_forward.1
$region0: #{filter_predictor_forward.1}
  #allocation0 [shape = 'u32[]', space=smem, size = 0x4, offset = 0x4, fixed_abs, tag = 'smem constant byte address 0x4 - core index']
  #allocation1 [shape = 'u32[144,128]{1,0:T(1,128)}', space=vmem, size = 0x12000, scoped, tag = 'internal scratch']
  #allocation2 [shape = 'f32[2,32]{1,0:T(2,128)}', space=vmem, size = 0x400, scoped, tag = 'scratch operand']
  %s0 = inlined_call_operand.vmem [shape: f32[1024,256], index: 0, kind: input, shape index: {}]
  %s1 = inlined_call_operand.vmem [shape: bf16[16,256], index: 1, kind: input, shape index: {}]
  %s2 = inlined_call_operand.vmem [shape: f32[9,512,32], index: 2, kind: input, shape index: {}]
  %s3 = inlined_call_operand.vmem [shape: f32[32,9216], index: 3, kind: input, shape index: {}]
  %s4 = inlined_call_operand.vmem [shape: f32[1,9216], index: 4, kind: input, shape index: {}]
  %s5 = inlined_call_operand.vmem [shape: f32[2,9216], index: 5, kind: output, shape index: {}]
  %s6 = sld [smem:[#allocation0]]
  $region30: #{filter_predictor_forward.1} parent=0
    _
  %s8 = ssub.s32 1, %s6
  %s9 = scalar_select 0, %s8, %s6
  // Predicated region
  $region2: #{filter_predictor_forward.1} parent=0 // pred_check
    _
  $region3: #{filter_predictor_forward.1} parent=0 // pred_check_branch
    %11 = sbr.rel (0) target = $region5
  $region4: #{filter_predictor_forward.1} parent=0 // pred_region
    _
  $region5: #{filter_predictor_forward.1} parent=0 // pred_fallthru
    _
  // Predicated region
  $region6: #{filter_predictor_forward.1} parent=0 // pred_check
    _
  $region7: #{filter_predictor_forward.1} parent=0 // pred_check_branch
    %13 = sbr.rel (0) target = $region9
  $region8: #{filter_predictor_forward.1} parent=0 // pred_region
    _
  $region9: #{filter_predictor_forward.1} parent=0 // pred_fallthru
    _
  // Predicated region
  $region10: #{filter_predictor_forward.1} parent=0 // pred_check
    _
  $region11: #{filter_predictor_forward.1} parent=0 // pred_check_branch
    %15 = sbr.rel (0) target = $region13
  $region12: #{filter_predictor_forward.1} parent=0 // pred_region
    _
  $region13: #{filter_predictor_forward.1} parent=0 // pred_fallthru
    _
  // Predicated region
  $region14: #{filter_predictor_forward.1} parent=0 // pred_check
    _
  $region15: #{filter_predictor_forward.1} parent=0 // pred_check_branch
    %17 = sbr.rel (0) target = $region17
  $region16: #{filter_predictor_forward.1} parent=0 // pred_region
    _
  $region17: #{filter_predictor_forward.1} parent=0 // pred_fallthru
    _
  // Predicated region
  $region18: #{filter_predictor_forward.1} parent=0 // pred_check
    _
  $region19: #{filter_predictor_forward.1} parent=0 // pred_check_branch
    %19 = sbr.rel (0) target = $region21
  $region20: #{filter_predictor_forward.1} parent=0 // pred_region
    _
  $region21: #{filter_predictor_forward.1} parent=0 // pred_fallthru
    _
  %v20 = vld [vmem:[%s0] sm:$0xff]
  %v21 = vld [vmem:[%s0 + $0x8] sm:$0xff]
  %v22 = vld [vmem:[%s0 + $0x10] sm:$0xff]
  %v23 = vld [vmem:[%s0 + $0x18] sm:$0xff]
  %v24 = vld [vmem:[%s0 + $0x20] sm:$0xff]
  %v25 = vld [vmem:[%s0 + $0x28] sm:$0xff]
  %v26 = vld [vmem:[%s0 + $0x30] sm:$0xff]
  %v27 = vld [vmem:[%s0 + $0x38] sm:$0xff]
  %v28 = vld [vmem:[%s0 + $0x40] sm:$0xff]
  %v29 = vld [vmem:[%s0 + $0x48] sm:$0xff]
  %v30 = vld [vmem:[%s0 + $0x50] sm:$0xff]
  %v31 = vld [vmem:[%s0 + $0x58] sm:$0xff]
  %v32 = vld [vmem:[%s0 + $0x60] sm:$0xff]
  %v33 = vld [vmem:[%s0 + $0x68] sm:$0xff]
  %v34 = vld [vmem:[%s0 + $0x70] sm:$0xff]
  %v35 = vld [vmem:[%s0 + $0x78] sm:$0xff]
  %v36 = vld [vmem:[%s0 + $0x80] sm:$0xff]
  %v37 = vld [vmem:[%s0 + $0x88] sm:$0xff]
  %v38 = vld [vmem:[%s0 + $0x90] sm:$0xff]
  %v39 = vld [vmem:[%s0 + $0x98] sm:$0xff]
  %v40 = vld [vmem:[%s0 + $0xa0] sm:$0xff]
  %v41 = vld [vmem:[%s0 + $0xa8] sm:$0xff]
  %v42 = vld [vmem:[%s0 + $0xb0] sm:$0xff]
  %v43 = vld [vmem:[%s0 + $0xb8] sm:$0xff]
  %v44 = vld [vmem:[%s0 + $0xc0] sm:$0xff]
  %v45 = vld [vmem:[%s0 + $0xc8] sm:$0xff]
  %v46 = vld [vmem:[%s0 + $0xd0] sm:$0xff]
  %v47 = vld [vmem:[%s0 + $0xd8] sm:$0xff]
  %v48 = vld [vmem:[%s0 + $0xe0] sm:$0xff]
  %v49 = vld [vmem:[%s0 + $0xe8] sm:$0xff]
  %v50 = vld [vmem:[%s0 + $0xf0] sm:$0xff]
  %v51 = vld [vmem:[%s0 + $0xf8] sm:$0xff]
  %v52 = vld [vmem:[%s0 + $0x100] sm:$0xff]
  %v53 = vld [vmem:[%s0 + $0x108] sm:$0xff]
  %v54 = vld [vmem:[%s0 + $0x110] sm:$0xff]
  %v55 = vld [vmem:[%s0 + $0x118] sm:$0xff]
  %v56 = vld [vmem:[%s0 + $0x120] sm:$0xff]
  %v57 = vld [vmem:[%s0 + $0x128] sm:$0xff]
  %v58 = vld [vmem:[%s0 + $0x130] sm:$0xff]
  %v59 = vld [vmem:[%s0 + $0x138] sm:$0xff]
  %v60 = vld [vmem:[%s0 + $0x140] sm:$0xff]
  %v61 = vld [vmem:[%s0 + $0x148] sm:$0xff]
  %v62 = vld [vmem:[%s0 + $0x150] sm:$0xff]
  %v63 = vld [vmem:[%s0 + $0x158] sm:$0xff]
  %v64 = vld [vmem:[%s0 + $0x160] sm:$0xff]
  %v65 = vld [vmem:[%s0 + $0x168] sm:$0xff]
  %v66 = vld [vmem:[%s0 + $0x170] sm:$0xff]
  %v67 = vld [vmem:[%s0 + $0x178] sm:$0xff]
  %v68 = vld [vmem:[%s0 + $0x180] sm:$0xff]
  %v69 = vld [vmem:[%s0 + $0x188] sm:$0xff]
  %v70 = vld [vmem:[%s0 + $0x190] sm:$0xff]
  %v71 = vld [vmem:[%s0 + $0x198] sm:$0xff]
  %v72 = vld [vmem:[%s0 + $0x1a0] sm:$0xff]
  %v73 = vld [vmem:[%s0 + $0x1a8] sm:$0xff]
  %v74 = vld [vmem:[%s0 + $0x1b0] sm:$0xff]
  %v75 = vld [vmem:[%s0 + $0x1b8] sm:$0xff]
  %v76 = vld [vmem:[%s0 + $0x1c0] sm:$0xff]
  %v77 = vld [vmem:[%s0 + $0x1c8] sm:$0xff]
  %v78 = vld [vmem:[%s0 + $0x1d0] sm:$0xff]
  %v79 = vld [vmem:[%s0 + $0x1d8] sm:$0xff]
  %v80 = vld [vmem:[%s0 + $0x1e0] sm:$0xff]
  %v81 = vld [vmem:[%s0 + $0x1e8] sm:$0xff]
  %v82 = vld [vmem:[%s0 + $0x1f0] sm:$0xff]
  %v83 = vld [vmem:[%s0 + $0x1f8] sm:$0xff]
  %v84 = vld [vmem:[%s0 + $0x200] sm:$0xff]
  %v85 = vld [vmem:[%s0 + $0x208] sm:$0xff]
  %v86 = vld [vmem:[%s0 + $0x210] sm:$0xff]
  %v87 = vld [vmem:[%s0 + $0x218] sm:$0xff]
  %v88 = vld [vmem:[%s0 + $0x220] sm:$0xff]
  %v89 = vld [vmem:[%s0 + $0x228] sm:$0xff]
  %v90 = vld [vmem:[%s0 + $0x230] sm:$0xff]
  %v91 = vld [vmem:[%s0 + $0x238] sm:$0xff]
  %v92 = vld [vmem:[%s0 + $0x240] sm:$0xff]
  %v93 = vld [vmem:[%s0 + $0x248] sm:$0xff]
  %v94 = vld [vmem:[%s0 + $0x250] sm:$0xff]
  %v95 = vld [vmem:[%s0 + $0x258] sm:$0xff]
  %v96 = vld [vmem:[%s0 + $0x260] sm:$0xff]
  %v97 = vld [vmem:[%s0 + $0x268] sm:$0xff]
  %v98 = vld [vmem:[%s0 + $0x270] sm:$0xff]
  %v99 = vld [vmem:[%s0 + $0x278] sm:$0xff]
  %v100 = vld [vmem:[%s0 + $0x280] sm:$0xff]
  %v101 = vld [vmem:[%s0 + $0x288] sm:$0xff]
  %v102 = vld [vmem:[%s0 + $0x290] sm:$0xff]
  %v103 = vld [vmem:[%s0 + $0x298] sm:$0xff]
  %v104 = vld [vmem:[%s0 + $0x2a0] sm:$0xff]
  %v105 = vld [vmem:[%s0 + $0x2a8] sm:$0xff]
  %v106 = vld [vmem:[%s0 + $0x2b0] sm:$0xff]
  %v107 = vld [vmem:[%s0 + $0x2b8] sm:$0xff]
  %v108 = vld [vmem:[%s0 + $0x2c0] sm:$0xff]
  %v109 = vld [vmem:[%s0 + $0x2c8] sm:$0xff]
  %v110 = vld [vmem:[%s0 + $0x2d0] sm:$0xff]
  %v111 = vld [vmem:[%s0 + $0x2d8] sm:$0xff]
  %v112 = vld [vmem:[%s0 + $0x2e0] sm:$0xff]
  %v113 = vld [vmem:[%s0 + $0x2e8] sm:$0xff]
  %v114 = vld [vmem:[%s0 + $0x2f0] sm:$0xff]
  %v115 = vld [vmem:[%s0 + $0x2f8] sm:$0xff]
  %v116 = vld [vmem:[%s0 + $0x300] sm:$0xff]
  %v117 = vld [vmem:[%s0 + $0x308] sm:$0xff]
  %v118 = vld [vmem:[%s0 + $0x310] sm:$0xff]
  %v119 = vld [vmem:[%s0 + $0x318] sm:$0xff]
  %v120 = vld [vmem:[%s0 + $0x320] sm:$0xff]
  %v121 = vld [vmem:[%s0 + $0x328] sm:$0xff]
  %v122 = vld [vmem:[%s0 + $0x330] sm:$0xff]
  %v123 = vld [vmem:[%s0 + $0x338] sm:$0xff]
  %v124 = vld [vmem:[%s0 + $0x340] sm:$0xff]
  %v125 = vld [vmem:[%s0 + $0x348] sm:$0xff]
  %v126 = vld [vmem:[%s0 + $0x350] sm:$0xff]
  %v127 = vld [vmem:[%s0 + $0x358] sm:$0xff]
  %v128 = vld [vmem:[%s0 + $0x360] sm:$0xff]
  %v129 = vld [vmem:[%s0 + $0x368] sm:$0xff]
  %v130 = vld [vmem:[%s0 + $0x370] sm:$0xff]
  %v131 = vld [vmem:[%s0 + $0x378] sm:$0xff]
  %v132 = vld [vmem:[%s0 + $0x380] sm:$0xff]
  %v133 = vld [vmem:[%s0 + $0x388] sm:$0xff]
  %v134 = vld [vmem:[%s0 + $0x390] sm:$0xff]
  %v135 = vld [vmem:[%s0 + $0x398] sm:$0xff]
  %v136 = vld [vmem:[%s0 + $0x3a0] sm:$0xff]
  %v137 = vld [vmem:[%s0 + $0x3a8] sm:$0xff]
  %v138 = vld [vmem:[%s0 + $0x3b0] sm:$0xff]
  %v139 = vld [vmem:[%s0 + $0x3b8] sm:$0xff]
  %v140 = vld [vmem:[%s0 + $0x3c0] sm:$0xff]
  %v141 = vld [vmem:[%s0 + $0x3c8] sm:$0xff]
  %v142 = vld [vmem:[%s0 + $0x3d0] sm:$0xff]
  %v143 = vld [vmem:[%s0 + $0x3d8] sm:$0xff]
  %v144 = vld [vmem:[%s0 + $0x3e0] sm:$0xff]
  %v145 = vld [vmem:[%s0 + $0x3e8] sm:$0xff]
  %v146 = vld [vmem:[%s0 + $0x3f0] sm:$0xff]
  %v147 = vld [vmem:[%s0 + $0x3f8] sm:$0xff]
  %v148 = vld [vmem:[%s0 + $0x400] sm:$0xff]
  %v149 = vld [vmem:[%s0 + $0x408] sm:$0xff]
  %v150 = vld [vmem:[%s0 + $0x410] sm:$0xff]
  %v151 = vld [vmem:[%s0 + $0x418] sm:$0xff]
  %v152 = vld [vmem:[%s0 + $0x420] sm:$0xff]
  %v153 = vld [vmem:[%s0 + $0x428] sm:$0xff]
  %v154 = vld [vmem:[%s0 + $0x430] sm:$0xff]
  %v155 = vld [vmem:[%s0 + $0x438] sm:$0xff]
  %v156 = vld [vmem:[%s0 + $0x440] sm:$0xff]
  %v157 = vld [vmem:[%s0 + $0x448] sm:$0xff]
  %v158 = vld [vmem:[%s0 + $0x450] sm:$0xff]
  %v159 = vld [vmem:[%s0 + $0x458] sm:$0xff]
  %v160 = vld [vmem:[%s0 + $0x460] sm:$0xff]
  %v161 = vld [vmem:[%s0 + $0x468] sm:$0xff]
  %v162 = vld [vmem:[%s0 + $0x470] sm:$0xff]
  %v163 = vld [vmem:[%s0 + $0x478] sm:$0xff]
  %v164 = vld [vmem:[%s0 + $0x480] sm:$0xff]
  %v165 = vld [vmem:[%s0 + $0x488] sm:$0xff]
  %v166 = vld [vmem:[%s0 + $0x490] sm:$0xff]
  %v167 = vld [vmem:[%s0 + $0x498] sm:$0xff]
  %v168 = vld [vmem:[%s0 + $0x4a0] sm:$0xff]
  %v169 = vld [vmem:[%s0 + $0x4a8] sm:$0xff]
  %v170 = vld [vmem:[%s0 + $0x4b0] sm:$0xff]
  %v171 = vld [vmem:[%s0 + $0x4b8] sm:$0xff]
  %v172 = vld [vmem:[%s0 + $0x4c0] sm:$0xff]
  %v173 = vld [vmem:[%s0 + $0x4c8] sm:$0xff]
  %v174 = vld [vmem:[%s0 + $0x4d0] sm:$0xff]
  %v175 = vld [vmem:[%s0 + $0x4d8] sm:$0xff]
  %v176 = vld [vmem:[%s0 + $0x4e0] sm:$0xff]
  %v177 = vld [vmem:[%s0 + $0x4e8] sm:$0xff]
  %v178 = vld [vmem:[%s0 + $0x4f0] sm:$0xff]
  %v179 = vld [vmem:[%s0 + $0x4f8] sm:$0xff]
  %v180 = vld [vmem:[%s0 + $0x500] sm:$0xff]
  %v181 = vld [vmem:[%s0 + $0x508] sm:$0xff]
  %v182 = vld [vmem:[%s0 + $0x510] sm:$0xff]
  %v183 = vld [vmem:[%s0 + $0x518] sm:$0xff]
  %v184 = vld [vmem:[%s0 + $0x520] sm:$0xff]
  %v185 = vld [vmem:[%s0 + $0x528] sm:$0xff]
  %v186 = vld [vmem:[%s0 + $0x530] sm:$0xff]
  %v187 = vld [vmem:[%s0 + $0x538] sm:$0xff]
  %v188 = vld [vmem:[%s0 + $0x540] sm:$0xff]
  %v189 = vld [vmem:[%s0 + $0x548] sm:$0xff]
  %v190 = vld [vmem:[%s0 + $0x550] sm:$0xff]
  %v191 = vld [vmem:[%s0 + $0x558] sm:$0xff]
  %v192 = vld [vmem:[%s0 + $0x560] sm:$0xff]
  %v193 = vld [vmem:[%s0 + $0x568] sm:$0xff]
  %v194 = vld [vmem:[%s0 + $0x570] sm:$0xff]
  %v195 = vld [vmem:[%s0 + $0x578] sm:$0xff]
  %v196 = vld [vmem:[%s0 + $0x580] sm:$0xff]
  %v197 = vld [vmem:[%s0 + $0x588] sm:$0xff]
  %v198 = vld [vmem:[%s0 + $0x590] sm:$0xff]
  %v199 = vld [vmem:[%s0 + $0x598] sm:$0xff]
  %v200 = vld [vmem:[%s0 + $0x5a0] sm:$0xff]
  %v201 = vld [vmem:[%s0 + $0x5a8] sm:$0xff]
  %v202 = vld [vmem:[%s0 + $0x5b0] sm:$0xff]
  %v203 = vld [vmem:[%s0 + $0x5b8] sm:$0xff]
  %v204 = vld [vmem:[%s0 + $0x5c0] sm:$0xff]
  %v205 = vld [vmem:[%s0 + $0x5c8] sm:$0xff]
  %v206 = vld [vmem:[%s0 + $0x5d0] sm:$0xff]
  %v207 = vld [vmem:[%s0 + $0x5d8] sm:$0xff]
  %v208 = vld [vmem:[%s0 + $0x5e0] sm:$0xff]
  %v209 = vld [vmem:[%s0 + $0x5e8] sm:$0xff]
  %v210 = vld [vmem:[%s0 + $0x5f0] sm:$0xff]
  %v211 = vld [vmem:[%s0 + $0x5f8] sm:$0xff]
  %v212 = vld [vmem:[%s0 + $0x600] sm:$0xff]
  %v213 = vld [vmem:[%s0 + $0x608] sm:$0xff]
  %v214 = vld [vmem:[%s0 + $0x610] sm:$0xff]
  %v215 = vld [vmem:[%s0 + $0x618] sm:$0xff]
  %v216 = vld [vmem:[%s0 + $0x620] sm:$0xff]
  %v217 = vld [vmem:[%s0 + $0x628] sm:$0xff]
  %v218 = vld [vmem:[%s0 + $0x630] sm:$0xff]
  %v219 = vld [vmem:[%s0 + $0x638] sm:$0xff]
  %v220 = vld [vmem:[%s0 + $0x640] sm:$0xff]
  %v221 = vld [vmem:[%s0 + $0x648] sm:$0xff]
  %v222 = vld [vmem:[%s0 + $0x650] sm:$0xff]
  %v223 = vld [vmem:[%s0 + $0x658] sm:$0xff]
  %v224 = vld [vmem:[%s0 + $0x660] sm:$0xff]
  %v225 = vld [vmem:[%s0 + $0x668] sm:$0xff]
  %v226 = vld [vmem:[%s0 + $0x670] sm:$0xff]
  %v227 = vld [vmem:[%s0 + $0x678] sm:$0xff]
  %v228 = vld [vmem:[%s0 + $0x680] sm:$0xff]
  %v229 = vld [vmem:[%s0 + $0x688] sm:$0xff]
  %v230 = vld [vmem:[%s0 + $0x690] sm:$0xff]
  %v231 = vld [vmem:[%s0 + $0x698] sm:$0xff]
  %v232 = vld [vmem:[%s0 + $0x6a0] sm:$0xff]
  %v233 = vld [vmem:[%s0 + $0x6a8] sm:$0xff]
  %v234 = vld [vmem:[%s0 + $0x6b0] sm:$0xff]
  %v235 = vld [vmem:[%s0 + $0x6b8] sm:$0xff]
  %v236 = vld [vmem:[%s0 + $0x6c0] sm:$0xff]
  %v237 = vld [vmem:[%s0 + $0x6c8] sm:$0xff]
  %v238 = vld [vmem:[%s0 + $0x6d0] sm:$0xff]
  %v239 = vld [vmem:[%s0 + $0x6d8] sm:$0xff]
  %v240 = vld [vmem:[%s0 + $0x6e0] sm:$0xff]
  %v241 = vld [vmem:[%s0 + $0x6e8] sm:$0xff]
  %v242 = vld [vmem:[%s0 + $0x6f0] sm:$0xff]
  %v243 = vld [vmem:[%s0 + $0x6f8] sm:$0xff]
  %v244 = vld [vmem:[%s0 + $0x700] sm:$0xff]
  %v245 = vld [vmem:[%s0 + $0x708] sm:$0xff]
  %v246 = vld [vmem:[%s0 + $0x710] sm:$0xff]
  %v247 = vld [vmem:[%s0 + $0x718] sm:$0xff]
  %v248 = vld [vmem:[%s0 + $0x720] sm:$0xff]
  %v249 = vld [vmem:[%s0 + $0x728] sm:$0xff]
  %v250 = vld [vmem:[%s0 + $0x730] sm:$0xff]
  %v251 = vld [vmem:[%s0 + $0x738] sm:$0xff]
  %v252 = vld [vmem:[%s0 + $0x740] sm:$0xff]
  %v253 = vld [vmem:[%s0 + $0x748] sm:$0xff]
  %v254 = vld [vmem:[%s0 + $0x750] sm:$0xff]
  %v255 = vld [vmem:[%s0 + $0x758] sm:$0xff]
  %v256 = vld [vmem:[%s0 + $0x760] sm:$0xff]
  %v257 = vld [vmem:[%s0 + $0x768] sm:$0xff]
  %v258 = vld [vmem:[%s0 + $0x770] sm:$0xff]
  %v259 = vld [vmem:[%s0 + $0x778] sm:$0xff]
  %v260 = vld [vmem:[%s0 + $0x780] sm:$0xff]
  %v261 = vld [vmem:[%s0 + $0x788] sm:$0xff]
  %v262 = vld [vmem:[%s0 + $0x790] sm:$0xff]
  %v263 = vld [vmem:[%s0 + $0x798] sm:$0xff]
  %v264 = vld [vmem:[%s0 + $0x7a0] sm:$0xff]
  %v265 = vld [vmem:[%s0 + $0x7a8] sm:$0xff]
  %v266 = vld [vmem:[%s0 + $0x7b0] sm:$0xff]
  %v267 = vld [vmem:[%s0 + $0x7b8] sm:$0xff]
  %v268 = vld [vmem:[%s0 + $0x7c0] sm:$0xff]
  %v269 = vld [vmem:[%s0 + $0x7c8] sm:$0xff]
  %v270 = vld [vmem:[%s0 + $0x7d0] sm:$0xff]
  %v271 = vld [vmem:[%s0 + $0x7d8] sm:$0xff]
  %v272 = vld [vmem:[%s0 + $0x7e0] sm:$0xff]
  %v273 = vld [vmem:[%s0 + $0x7e8] sm:$0xff]
  %v274 = vld [vmem:[%s0 + $0x7f0] sm:$0xff]
  %v275 = vld [vmem:[%s0 + $0x7f8] sm:$0xff]
  %v276 = vpack.c.bf16 %v22, %v20
  %v277 = vpack.c.bf16 %v23, %v21
  %v278 = vpack.c.bf16 %v26, %v24
  %v279 = vpack.c.bf16 %v27, %v25
  %v280 = vpack.c.bf16 %v30, %v28
  %v281 = vpack.c.bf16 %v31, %v29
  %v282 = vpack.c.bf16 %v34, %v32
  %v283 = vpack.c.bf16 %v35, %v33
  %v284 = vpack.c.bf16 %v38, %v36
  %v285 = vpack.c.bf16 %v39, %v37
  %v286 = vpack.c.bf16 %v42, %v40
  %v287 = vpack.c.bf16 %v43, %v41
  %v288 = vpack.c.bf16 %v46, %v44
  %v289 = vpack.c.bf16 %v47, %v45
  %v290 = vpack.c.bf16 %v50, %v48
  %v291 = vpack.c.bf16 %v51, %v49
  %v292 = vpack.c.bf16 %v54, %v52
  %v293 = vpack.c.bf16 %v55, %v53
  %v294 = vpack.c.bf16 %v58, %v56
  %v295 = vpack.c.bf16 %v59, %v57
  %v296 = vpack.c.bf16 %v62, %v60
  %v297 = vpack.c.bf16 %v63, %v61
  %v298 = vpack.c.bf16 %v66, %v64
  %v299 = vpack.c.bf16 %v67, %v65
  %v300 = vpack.c.bf16 %v70, %v68
  %v301 = vpack.c.bf16 %v71, %v69
  %v302 = vpack.c.bf16 %v74, %v72
  %v303 = vpack.c.bf16 %v75, %v73
  %v304 = vpack.c.bf16 %v78, %v76
  %v305 = vpack.c.bf16 %v79, %v77
  %v306 = vpack.c.bf16 %v82, %v80
  %v307 = vpack.c.bf16 %v83, %v81
  %v308 = vpack.c.bf16 %v86, %v84
  %v309 = vpack.c.bf16 %v87, %v85
  %v310 = vpack.c.bf16 %v90, %v88
  %v311 = vpack.c.bf16 %v91, %v89
  %v312 = vpack.c.bf16 %v94, %v92
  %v313 = vpack.c.bf16 %v95, %v93
  %v314 = vpack.c.bf16 %v98, %v96
  %v315 = vpack.c.bf16 %v99, %v97
  %v316 = vpack.c.bf16 %v102, %v100
  %v317 = vpack.c.bf16 %v103, %v101
  %v318 = vpack.c.bf16 %v106, %v104
  %v319 = vpack.c.bf16 %v107, %v105
  %v320 = vpack.c.bf16 %v110, %v108
  %v321 = vpack.c.bf16 %v111, %v109
  %v322 = vpack.c.bf16 %v114, %v112
  %v323 = vpack.c.bf16 %v115, %v113
  %v324 = vpack.c.bf16 %v118, %v116
  %v325 = vpack.c.bf16 %v119, %v117
  %v326 = vpack.c.bf16 %v122, %v120
  %v327 = vpack.c.bf16 %v123, %v121
  %v328 = vpack.c.bf16 %v126, %v124
  %v329 = vpack.c.bf16 %v127, %v125
  %v330 = vpack.c.bf16 %v130, %v128
  %v331 = vpack.c.bf16 %v131, %v129
  %v332 = vpack.c.bf16 %v134, %v132
  %v333 = vpack.c.bf16 %v135, %v133
  %v334 = vpack.c.bf16 %v138, %v136
  %v335 = vpack.c.bf16 %v139, %v137
  %v336 = vpack.c.bf16 %v142, %v140
  %v337 = vpack.c.bf16 %v143, %v141
  %v338 = vpack.c.bf16 %v146, %v144
  %v339 = vpack.c.bf16 %v147, %v145
  %v340 = vpack.c.bf16 %v150, %v148
  %v341 = vpack.c.bf16 %v151, %v149
  %v342 = vpack.c.bf16 %v154, %v152
  %v343 = vpack.c.bf16 %v155, %v153
  %v344 = vpack.c.bf16 %v158, %v156
  %v345 = vpack.c.bf16 %v159, %v157
  %v346 = vpack.c.bf16 %v162, %v160
  %v347 = vpack.c.bf16 %v163, %v161
  %v348 = vpack.c.bf16 %v166, %v164
  %v349 = vpack.c.bf16 %v167, %v165
  %v350 = vpack.c.bf16 %v170, %v168
  %v351 = vpack.c.bf16 %v171, %v169
  %v352 = vpack.c.bf16 %v174, %v172
  %v353 = vpack.c.bf16 %v175, %v173
  %v354 = vpack.c.bf16 %v178, %v176
  %v355 = vpack.c.bf16 %v179, %v177
  %v356 = vpack.c.bf16 %v182, %v180
  %v357 = vpack.c.bf16 %v183, %v181
  %v358 = vpack.c.bf16 %v186, %v184
  %v359 = vpack.c.bf16 %v187, %v185
  %v360 = vpack.c.bf16 %v190, %v188
  %v361 = vpack.c.bf16 %v191, %v189
  %v362 = vpack.c.bf16 %v194, %v192
  %v363 = vpack.c.bf16 %v195, %v193
  %v364 = vpack.c.bf16 %v198, %v196
  %v365 = vpack.c.bf16 %v199, %v197
  %v366 = vpack.c.bf16 %v202, %v200
  %v367 = vpack.c.bf16 %v203, %v201
  %v368 = vpack.c.bf16 %v206, %v204
  %v369 = vpack.c.bf16 %v207, %v205
  %v370 = vpack.c.bf16 %v210, %v208
  %v371 = vpack.c.bf16 %v211, %v209
  %v372 = vpack.c.bf16 %v214, %v212
  %v373 = vpack.c.bf16 %v215, %v213
  %v374 = vpack.c.bf16 %v218, %v216
  %v375 = vpack.c.bf16 %v219, %v217
  %v376 = vpack.c.bf16 %v222, %v220
  %v377 = vpack.c.bf16 %v223, %v221
  %v378 = vpack.c.bf16 %v226, %v224
  %v379 = vpack.c.bf16 %v227, %v225
  %v380 = vpack.c.bf16 %v230, %v228
  %v381 = vpack.c.bf16 %v231, %v229
  %v382 = vpack.c.bf16 %v234, %v232
  %v383 = vpack.c.bf16 %v235, %v233
  %v384 = vpack.c.bf16 %v238, %v236
  %v385 = vpack.c.bf16 %v239, %v237
  %v386 = vpack.c.bf16 %v242, %v240
  %v387 = vpack.c.bf16 %v243, %v241
  %v388 = vpack.c.bf16 %v246, %v244
  %v389 = vpack.c.bf16 %v247, %v245
  %v390 = vpack.c.bf16 %v250, %v248
  %v391 = vpack.c.bf16 %v251, %v249
  %v392 = vpack.c.bf16 %v254, %v252
  %v393 = vpack.c.bf16 %v255, %v253
  %v394 = vpack.c.bf16 %v258, %v256
  %v395 = vpack.c.bf16 %v259, %v257
  %v396 = vpack.c.bf16 %v262, %v260
  %v397 = vpack.c.bf16 %v263, %v261
  %v398 = vpack.c.bf16 %v266, %v264
  %v399 = vpack.c.bf16 %v267, %v265
  %v400 = vpack.c.bf16 %v270, %v268
  %v401 = vpack.c.bf16 %v271, %v269
  %v402 = vpack.c.bf16 %v274, %v272
  %v403 = vpack.c.bf16 %v275, %v273
  %v404 = vld [vmem:[%s1] sm:$0xff]
  %v405 = vld [vmem:[%s1 + $0x8] sm:$0xff]
  %v408 = vunpack.c.l.b16 %v404
  %v409 = vunpack.c.h.b16 %v404
  %v410 = vunpack.c.l.b16 %v405
  %v411 = vunpack.c.h.b16 %v405
  %v412 = vpack.c.b16 %v410, %v408
  %v413 = vpack.c.b16 %v411, %v409
  %416 = vmatprep.subr.bf16.mxu0 %v291
  %417 = vmatpush1.bf16.xpose.msra.mxu0 %v290
  %418 = vmatprep.subr.bf16.mxu0 %v289
  %419 = vmatpush1.bf16.xpose.msra.mxu0 %v288
  %420 = vmatprep.subr.bf16.mxu0 %v287
  %421 = vmatpush1.bf16.xpose.msra.mxu0 %v286
  %422 = vmatprep.subr.bf16.mxu0 %v285
  %423 = vmatpush1.bf16.xpose.msra.mxu0 %v284
  %424 = vmatprep.subr.bf16.mxu0 %v283
  %425 = vmatpush1.bf16.xpose.msra.mxu0 %v282
  %426 = vmatprep.subr.bf16.mxu0 %v281
  %427 = vmatpush1.bf16.xpose.msra.mxu0 %v280
  %428 = vmatprep.subr.bf16.mxu0 %v279
  %429 = vmatpush1.bf16.xpose.msra.mxu0 %v278
  %430 = vmatprep.subr.bf16.mxu0 %v277
  %431 = vmatpush1.bf16.xpose.msra.mxu0 %v276
  %432 = vmatprep.subr.bf16.mxu0 %v307
  %433 = vmatpush2.bf16.xpose.msra.mxu0 %v306
  %434 = vmatprep.subr.bf16.mxu0 %v305
  %435 = vmatpush2.bf16.xpose.msra.mxu0 %v304
  %436 = vmatprep.subr.bf16.mxu0 %v303
  %437 = vmatpush2.bf16.xpose.msra.mxu0 %v302
  %438 = vmatprep.subr.bf16.mxu0 %v301
  %439 = vmatpush2.bf16.xpose.msra.mxu0 %v300
  %440 = vmatprep.subr.bf16.mxu0 %v299
  %441 = vmatpush2.bf16.xpose.msra.mxu0 %v298
  %442 = vmatprep.subr.bf16.mxu0 %v297
  %443 = vmatpush2.bf16.xpose.msra.mxu0 %v296
  %444 = vmatprep.subr.bf16.mxu0 %v295
  %445 = vmatpush2.bf16.xpose.msra.mxu0 %v294
  %446 = vmatprep.subr.bf16.mxu0 %v293
  %447 = vmatpush2.bf16.xpose.msra.mxu0 %v292
  %448 = vmatprep.mubr.bf16.mxu0 %v413
  %449 = vmatmul.mubr.bf16.gmra.mxu0 %v412
  %v450 = vpop.f32.mrf.mxu0
  %v451 = vadd.f32 0.0, %v450
  %v452 = vpop.f32.mrf.mxu0
  %v453 = vadd.f32 0.0, %v452
  %v454 = vpop.f32.mrf.mxu0
  %v455 = vadd.f32 0.0, %v454
  %v456 = vpop.f32.mrf.mxu0
  %v457 = vadd.f32 0.0, %v456
  %458 = vdwg.mxu0
  %459 = vmatprep.subr.bf16.mxu0 %v323
  %460 = vmatpush1.bf16.xpose.msra.mxu0 %v322
  %461 = vmatprep.subr.bf16.mxu0 %v321
  %462 = vmatpush1.bf16.xpose.msra.mxu0 %v320
  %463 = vmatprep.subr.bf16.mxu0 %v319
  %464 = vmatpush1.bf16.xpose.msra.mxu0 %v318
  %465 = vmatprep.subr.bf16.mxu0 %v317
  %466 = vmatpush1.bf16.xpose.msra.mxu0 %v316
  %467 = vmatprep.subr.bf16.mxu0 %v315
  %468 = vmatpush1.bf16.xpose.msra.mxu0 %v314
  %469 = vmatprep.subr.bf16.mxu0 %v313
  %470 = vmatpush1.bf16.xpose.msra.mxu0 %v312
  %471 = vmatprep.subr.bf16.mxu0 %v311
  %472 = vmatpush1.bf16.xpose.msra.mxu0 %v310
  %473 = vmatprep.subr.bf16.mxu0 %v309
  %474 = vmatpush1.bf16.xpose.msra.mxu0 %v308
  %475 = vmatprep.subr.bf16.mxu0 %v339
  %476 = vmatpush2.bf16.xpose.msra.mxu0 %v338
  %477 = vmatprep.subr.bf16.mxu0 %v337
  %478 = vmatpush2.bf16.xpose.msra.mxu0 %v336
  %479 = vmatprep.subr.bf16.mxu0 %v335
  %480 = vmatpush2.bf16.xpose.msra.mxu0 %v334
  %481 = vmatprep.subr.bf16.mxu0 %v333
  %482 = vmatpush2.bf16.xpose.msra.mxu0 %v332
  %483 = vmatprep.subr.bf16.mxu0 %v331
  %484 = vmatpush2.bf16.xpose.msra.mxu0 %v330
  %485 = vmatprep.subr.bf16.mxu0 %v329
  %486 = vmatpush2.bf16.xpose.msra.mxu0 %v328
  %487 = vmatprep.subr.bf16.mxu0 %v327
  %488 = vmatpush2.bf16.xpose.msra.mxu0 %v326
  %489 = vmatprep.subr.bf16.mxu0 %v325
  %490 = vmatpush2.bf16.xpose.msra.mxu0 %v324
  %491 = vmatprep.mubr.bf16.mxu0 %v413
  %492 = vmatmul.mubr.bf16.gmra.mxu0 %v412
  %v493 = vpop.f32.mrf.mxu0
  %v494 = vadd.f32 0.0, %v493
  %v495 = vpop.f32.mrf.mxu0
  %v496 = vadd.f32 0.0, %v495
  %v497 = vpop.f32.mrf.mxu0
  %v498 = vadd.f32 0.0, %v497
  %v499 = vpop.f32.mrf.mxu0
  %v500 = vadd.f32 0.0, %v499
  %501 = vdwg.mxu0
  %502 = vmatprep.subr.bf16.mxu0 %v355
  %503 = vmatpush1.bf16.xpose.msra.mxu0 %v354
  %504 = vmatprep.subr.bf16.mxu0 %v353
  %505 = vmatpush1.bf16.xpose.msra.mxu0 %v352
  %506 = vmatprep.subr.bf16.mxu0 %v351
  %507 = vmatpush1.bf16.xpose.msra.mxu0 %v350
  %508 = vmatprep.subr.bf16.mxu0 %v349
  %509 = vmatpush1.bf16.xpose.msra.mxu0 %v348
  %510 = vmatprep.subr.bf16.mxu0 %v347
  %511 = vmatpush1.bf16.xpose.msra.mxu0 %v346
  %512 = vmatprep.subr.bf16.mxu0 %v345
  %513 = vmatpush1.bf16.xpose.msra.mxu0 %v344
  %514 = vmatprep.subr.bf16.mxu0 %v343
  %515 = vmatpush1.bf16.xpose.msra.mxu0 %v342
  %516 = vmatprep.subr.bf16.mxu0 %v341
  %517 = vmatpush1.bf16.xpose.msra.mxu0 %v340
  %518 = vmatprep.subr.bf16.mxu0 %v371
  %519 = vmatpush2.bf16.xpose.msra.mxu0 %v370
  %520 = vmatprep.subr.bf16.mxu0 %v369
  %521 = vmatpush2.bf16.xpose.msra.mxu0 %v368
  %522 = vmatprep.subr.bf16.mxu0 %v367
  %523 = vmatpush2.bf16.xpose.msra.mxu0 %v366
  %524 = vmatprep.subr.bf16.mxu0 %v365
  %525 = vmatpush2.bf16.xpose.msra.mxu0 %v364
  %526 = vmatprep.subr.bf16.mxu0 %v363
  %527 = vmatpush2.bf16.xpose.msra.mxu0 %v362
  %528 = vmatprep.subr.bf16.mxu0 %v361
  %529 = vmatpush2.bf16.xpose.msra.mxu0 %v360
  %530 = vmatprep.subr.bf16.mxu0 %v359
  %531 = vmatpush2.bf16.xpose.msra.mxu0 %v358
  %532 = vmatprep.subr.bf16.mxu0 %v357
  %533 = vmatpush2.bf16.xpose.msra.mxu0 %v356
  %534 = vmatprep.mubr.bf16.mxu0 %v413
  %535 = vmatmul.mubr.bf16.gmra.mxu0 %v412
  %v536 = vpop.f32.mrf.mxu0
  %v537 = vadd.f32 0.0, %v536
  %v538 = vpop.f32.mrf.mxu0
  %v539 = vadd.f32 0.0, %v538
  %v540 = vpop.f32.mrf.mxu0
  %v541 = vadd.f32 0.0, %v540
  %v542 = vpop.f32.mrf.mxu0
  %v543 = vadd.f32 0.0, %v542
  %544 = vdwg.mxu0
  %545 = vmatprep.subr.bf16.mxu0 %v387
  %546 = vmatpush1.bf16.xpose.msra.mxu0 %v386
  %547 = vmatprep.subr.bf16.mxu0 %v385
  %548 = vmatpush1.bf16.xpose.msra.mxu0 %v384
  %549 = vmatprep.subr.bf16.mxu0 %v383
  %550 = vmatpush1.bf16.xpose.msra.mxu0 %v382
  %551 = vmatprep.subr.bf16.mxu0 %v381
  %552 = vmatpush1.bf16.xpose.msra.mxu0 %v380
  %553 = vmatprep.subr.bf16.mxu0 %v379
  %554 = vmatpush1.bf16.xpose.msra.mxu0 %v378
  %555 = vmatprep.subr.bf16.mxu0 %v377
  %556 = vmatpush1.bf16.xpose.msra.mxu0 %v376
  %557 = vmatprep.subr.bf16.mxu0 %v375
  %558 = vmatpush1.bf16.xpose.msra.mxu0 %v374
  %559 = vmatprep.subr.bf16.mxu0 %v373
  %560 = vmatpush1.bf16.xpose.msra.mxu0 %v372
  %561 = vmatprep.subr.bf16.mxu0 %v403
  %562 = vmatpush2.bf16.xpose.msra.mxu0 %v402
  %563 = vmatprep.subr.bf16.mxu0 %v401
  %564 = vmatpush2.bf16.xpose.msra.mxu0 %v400
  %565 = vmatprep.subr.bf16.mxu0 %v399
  %566 = vmatpush2.bf16.xpose.msra.mxu0 %v398
  %567 = vmatprep.subr.bf16.mxu0 %v397
  %568 = vmatpush2.bf16.xpose.msra.mxu0 %v396
  %569 = vmatprep.subr.bf16.mxu0 %v395
  %570 = vmatpush2.bf16.xpose.msra.mxu0 %v394
  %571 = vmatprep.subr.bf16.mxu0 %v393
  %572 = vmatpush2.bf16.xpose.msra.mxu0 %v392
  %573 = vmatprep.subr.bf16.mxu0 %v391
  %574 = vmatpush2.bf16.xpose.msra.mxu0 %v390
  %575 = vmatprep.subr.bf16.mxu0 %v389
  %576 = vmatpush2.bf16.xpose.msra.mxu0 %v388
  %577 = vmatprep.mubr.bf16.mxu0 %v413
  %578 = vmatmul.mubr.bf16.gmra.mxu0 %v412
  %v579 = vpop.f32.mrf.mxu0
  %v580 = vadd.f32 0.0, %v579
  %v581 = vpop.f32.mrf.mxu0
  %v582 = vadd.f32 0.0, %v581
  %v583 = vpop.f32.mrf.mxu0
  %v584 = vadd.f32 0.0, %v583
  %v585 = vpop.f32.mrf.mxu0
  %v586 = vadd.f32 0.0, %v585
  %587 = vdwg.mxu0
  %v588 = vld [vmem:[%s2] sm:$0xff]
  %v589 = vld [vmem:[%s2 + $0x8] sm:$0xff]
  %v590 = vld [vmem:[%s2 + $0x10] sm:$0xff]
  %v591 = vld [vmem:[%s2 + $0x18] sm:$0xff]
  %v592 = vld [vmem:[%s2 + $0x20] sm:$0xff]
  %v593 = vld [vmem:[%s2 + $0x28] sm:$0xff]
  %v594 = vld [vmem:[%s2 + $0x30] sm:$0xff]
  %v595 = vld [vmem:[%s2 + $0x38] sm:$0xff]
  %v596 = vld [vmem:[%s2 + $0x40] sm:$0xff]
  %v597 = vld [vmem:[%s2 + $0x48] sm:$0xff]
  %v598 = vld [vmem:[%s2 + $0x50] sm:$0xff]
  %v599 = vld [vmem:[%s2 + $0x58] sm:$0xff]
  %v600 = vld [vmem:[%s2 + $0x60] sm:$0xff]
  %v601 = vld [vmem:[%s2 + $0x68] sm:$0xff]
  %v602 = vld [vmem:[%s2 + $0x70] sm:$0xff]
  %v603 = vld [vmem:[%s2 + $0x78] sm:$0xff]
  %v604 = vld [vmem:[%s2 + $0x80] sm:$0xff]
  %v605 = vld [vmem:[%s2 + $0x88] sm:$0xff]
  %v606 = vld [vmem:[%s2 + $0x90] sm:$0xff]
  %v607 = vld [vmem:[%s2 + $0x98] sm:$0xff]
  %v608 = vld [vmem:[%s2 + $0xa0] sm:$0xff]
  %v609 = vld [vmem:[%s2 + $0xa8] sm:$0xff]
  %v610 = vld [vmem:[%s2 + $0xb0] sm:$0xff]
  %v611 = vld [vmem:[%s2 + $0xb8] sm:$0xff]
  %v612 = vld [vmem:[%s2 + $0xc0] sm:$0xff]
  %v613 = vld [vmem:[%s2 + $0xc8] sm:$0xff]
  %v614 = vld [vmem:[%s2 + $0xd0] sm:$0xff]
  %v615 = vld [vmem:[%s2 + $0xd8] sm:$0xff]
  %v616 = vld [vmem:[%s2 + $0xe0] sm:$0xff]
  %v617 = vld [vmem:[%s2 + $0xe8] sm:$0xff]
  %v618 = vld [vmem:[%s2 + $0xf0] sm:$0xff]
  %v619 = vld [vmem:[%s2 + $0xf8] sm:$0xff]
  %v620 = vld [vmem:[%s2 + $0x100] sm:$0xff]
  %v621 = vld [vmem:[%s2 + $0x108] sm:$0xff]
  %v622 = vld [vmem:[%s2 + $0x110] sm:$0xff]
  %v623 = vld [vmem:[%s2 + $0x118] sm:$0xff]
  %v624 = vld [vmem:[%s2 + $0x120] sm:$0xff]
  %v625 = vld [vmem:[%s2 + $0x128] sm:$0xff]
  %v626 = vld [vmem:[%s2 + $0x130] sm:$0xff]
  %v627 = vld [vmem:[%s2 + $0x138] sm:$0xff]
  %v628 = vld [vmem:[%s2 + $0x140] sm:$0xff]
  %v629 = vld [vmem:[%s2 + $0x148] sm:$0xff]
  %v630 = vld [vmem:[%s2 + $0x150] sm:$0xff]
  %v631 = vld [vmem:[%s2 + $0x158] sm:$0xff]
  %v632 = vld [vmem:[%s2 + $0x160] sm:$0xff]
  %v633 = vld [vmem:[%s2 + $0x168] sm:$0xff]
  %v634 = vld [vmem:[%s2 + $0x170] sm:$0xff]
  %v635 = vld [vmem:[%s2 + $0x178] sm:$0xff]
  %v636 = vld [vmem:[%s2 + $0x180] sm:$0xff]
  %v637 = vld [vmem:[%s2 + $0x188] sm:$0xff]
  %v638 = vld [vmem:[%s2 + $0x190] sm:$0xff]
  %v639 = vld [vmem:[%s2 + $0x198] sm:$0xff]
  %v640 = vld [vmem:[%s2 + $0x1a0] sm:$0xff]
  %v641 = vld [vmem:[%s2 + $0x1a8] sm:$0xff]
  %v642 = vld [vmem:[%s2 + $0x1b0] sm:$0xff]
  %v643 = vld [vmem:[%s2 + $0x1b8] sm:$0xff]
  %v644 = vld [vmem:[%s2 + $0x1c0] sm:$0xff]
  %v645 = vld [vmem:[%s2 + $0x1c8] sm:$0xff]
  %v646 = vld [vmem:[%s2 + $0x1d0] sm:$0xff]
  %v647 = vld [vmem:[%s2 + $0x1d8] sm:$0xff]
  %v648 = vld [vmem:[%s2 + $0x1e0] sm:$0xff]
  %v649 = vld [vmem:[%s2 + $0x1e8] sm:$0xff]
  %v650 = vld [vmem:[%s2 + $0x1f0] sm:$0xff]
  %v651 = vld [vmem:[%s2 + $0x1f8] sm:$0xff]
  %s652 = scalar_lea.vmem %s2, 512
  %v653 = vld [vmem:[%s652] sm:$0xff]
  %v654 = vld [vmem:[%s652 + $0x8] sm:$0xff]
  %v655 = vld [vmem:[%s652 + $0x10] sm:$0xff]
  %v656 = vld [vmem:[%s652 + $0x18] sm:$0xff]
  %v657 = vld [vmem:[%s652 + $0x20] sm:$0xff]
  %v658 = vld [vmem:[%s652 + $0x28] sm:$0xff]
  %v659 = vld [vmem:[%s652 + $0x30] sm:$0xff]
  %v660 = vld [vmem:[%s652 + $0x38] sm:$0xff]
  %v661 = vld [vmem:[%s652 + $0x40] sm:$0xff]
  %v662 = vld [vmem:[%s652 + $0x48] sm:$0xff]
  %v663 = vld [vmem:[%s652 + $0x50] sm:$0xff]
  %v664 = vld [vmem:[%s652 + $0x58] sm:$0xff]
  %v665 = vld [vmem:[%s652 + $0x60] sm:$0xff]
  %v666 = vld [vmem:[%s652 + $0x68] sm:$0xff]
  %v667 = vld [vmem:[%s652 + $0x70] sm:$0xff]
  %v668 = vld [vmem:[%s652 + $0x78] sm:$0xff]
  %v669 = vld [vmem:[%s652 + $0x80] sm:$0xff]
  %v670 = vld [vmem:[%s652 + $0x88] sm:$0xff]
  %v671 = vld [vmem:[%s652 + $0x90] sm:$0xff]
  %v672 = vld [vmem:[%s652 + $0x98] sm:$0xff]
  %v673 = vld [vmem:[%s652 + $0xa0] sm:$0xff]
  %v674 = vld [vmem:[%s652 + $0xa8] sm:$0xff]
  %v675 = vld [vmem:[%s652 + $0xb0] sm:$0xff]
  %v676 = vld [vmem:[%s652 + $0xb8] sm:$0xff]
  %v677 = vld [vmem:[%s652 + $0xc0] sm:$0xff]
  %v678 = vld [vmem:[%s652 + $0xc8] sm:$0xff]
  %v679 = vld [vmem:[%s652 + $0xd0] sm:$0xff]
  %v680 = vld [vmem:[%s652 + $0xd8] sm:$0xff]
  %v681 = vld [vmem:[%s652 + $0xe0] sm:$0xff]
  %v682 = vld [vmem:[%s652 + $0xe8] sm:$0xff]
  %v683 = vld [vmem:[%s652 + $0xf0] sm:$0xff]
  %v684 = vld [vmem:[%s652 + $0xf8] sm:$0xff]
  %v685 = vld [vmem:[%s652 + $0x100] sm:$0xff]
  %v686 = vld [vmem:[%s652 + $0x108] sm:$0xff]
  %v687 = vld [vmem:[%s652 + $0x110] sm:$0xff]
  %v688 = vld [vmem:[%s652 + $0x118] sm:$0xff]
  %v689 = vld [vmem:[%s652 + $0x120] sm:$0xff]
  %v690 = vld [vmem:[%s652 + $0x128] sm:$0xff]
  %v691 = vld [vmem:[%s652 + $0x130] sm:$0xff]
  %v692 = vld [vmem:[%s652 + $0x138] sm:$0xff]
  %v693 = vld [vmem:[%s652 + $0x140] sm:$0xff]
  %v694 = vld [vmem:[%s652 + $0x148] sm:$0xff]
  %v695 = vld [vmem:[%s652 + $0x150] sm:$0xff]
  %v696 = vld [vmem:[%s652 + $0x158] sm:$0xff]
  %v697 = vld [vmem:[%s652 + $0x160] sm:$0xff]
  %v698 = vld [vmem:[%s652 + $0x168] sm:$0xff]
  %v699 = vld [vmem:[%s652 + $0x170] sm:$0xff]
  %v700 = vld [vmem:[%s652 + $0x178] sm:$0xff]
  %v701 = vld [vmem:[%s652 + $0x180] sm:$0xff]
  %v702 = vld [vmem:[%s652 + $0x188] sm:$0xff]
  %v703 = vld [vmem:[%s652 + $0x190] sm:$0xff]
  %v704 = vld [vmem:[%s652 + $0x198] sm:$0xff]
  %v705 = vld [vmem:[%s652 + $0x1a0] sm:$0xff]
  %v706 = vld [vmem:[%s652 + $0x1a8] sm:$0xff]
  %v707 = vld [vmem:[%s652 + $0x1b0] sm:$0xff]
  %v708 = vld [vmem:[%s652 + $0x1b8] sm:$0xff]
  %v709 = vld [vmem:[%s652 + $0x1c0] sm:$0xff]
  %v710 = vld [vmem:[%s652 + $0x1c8] sm:$0xff]
  %v711 = vld [vmem:[%s652 + $0x1d0] sm:$0xff]
  %v712 = vld [vmem:[%s652 + $0x1d8] sm:$0xff]
  %v713 = vld [vmem:[%s652 + $0x1e0] sm:$0xff]
  %v714 = vld [vmem:[%s652 + $0x1e8] sm:$0xff]
  %v715 = vld [vmem:[%s652 + $0x1f0] sm:$0xff]
  %v716 = vld [vmem:[%s652 + $0x1f8] sm:$0xff]
  %v721 = vrot.slane %v451, 1
  %v722 = vrot.slane %v453, 1
  %v723 = vrot.slane %v494, 1
  %v724 = vrot.slane %v496, 1
  %729 = vmatprep.subr.mxu0 0.0
  %730 = vmatpush1.msra.mxu0 %v668
  %731 = vmatprep.subr.mxu0 0.0
  %732 = vmatpush1.msra.mxu0 %v667
  %733 = vmatprep.subr.mxu0 0.0
  %734 = vmatpush1.msra.mxu0 %v666
  %735 = vmatprep.subr.mxu0 0.0
  %736 = vmatpush1.msra.mxu0 %v665
  %737 = vmatprep.subr.mxu0 0.0
  %738 = vmatpush1.msra.mxu0 %v664
  %739 = vmatprep.subr.mxu0 0.0
  %740 = vmatpush1.msra.mxu0 %v663
  %741 = vmatprep.subr.mxu0 0.0
  %742 = vmatpush1.msra.mxu0 %v662
  %743 = vmatprep.subr.mxu0 0.0
  %744 = vmatpush1.msra.mxu0 %v661
  %745 = vmatprep.subr.mxu0 0.0
  %746 = vmatpush1.msra.mxu0 %v660
  %747 = vmatprep.subr.mxu0 0.0
  %748 = vmatpush1.msra.mxu0 %v659
  %749 = vmatprep.subr.mxu0 0.0
  %750 = vmatpush1.msra.mxu0 %v658
  %751 = vmatprep.subr.mxu0 0.0
  %752 = vmatpush1.msra.mxu0 %v657
  %753 = vmatprep.subr.mxu0 0.0
  %754 = vmatpush1.msra.mxu0 %v656
  %755 = vmatprep.subr.mxu0 0.0
  %756 = vmatpush1.msra.mxu0 %v655
  %757 = vmatprep.subr.mxu0 0.0
  %758 = vmatpush1.msra.mxu0 %v654
  %759 = vmatprep.subr.mxu0 0.0
  %760 = vmatpush1.msra.mxu0 %v653
  %761 = vmatprep.subr.mxu0 0.0
  %762 = vmatpush2.msra.mxu0 %v684
  %763 = vmatprep.subr.mxu0 0.0
  %764 = vmatpush2.msra.mxu0 %v683
  %765 = vmatprep.subr.mxu0 0.0
  %766 = vmatpush2.msra.mxu0 %v682
  %767 = vmatprep.subr.mxu0 0.0
  %768 = vmatpush2.msra.mxu0 %v681
  %769 = vmatprep.subr.mxu0 0.0
  %770 = vmatpush2.msra.mxu0 %v680
  %771 = vmatprep.subr.mxu0 0.0
  %772 = vmatpush2.msra.mxu0 %v679
  %773 = vmatprep.subr.mxu0 0.0
  %774 = vmatpush2.msra.mxu0 %v678
  %775 = vmatprep.subr.mxu0 0.0
  %776 = vmatpush2.msra.mxu0 %v677
  %777 = vmatprep.subr.mxu0 0.0
  %778 = vmatpush2.msra.mxu0 %v676
  %779 = vmatprep.subr.mxu0 0.0
  %780 = vmatpush2.msra.mxu0 %v675
  %781 = vmatprep.subr.mxu0 0.0
  %782 = vmatpush2.msra.mxu0 %v674
  %783 = vmatprep.subr.mxu0 0.0
  %784 = vmatpush2.msra.mxu0 %v673
  %785 = vmatprep.subr.mxu0 0.0
  %786 = vmatpush2.msra.mxu0 %v672
  %787 = vmatprep.subr.mxu0 0.0
  %788 = vmatpush2.msra.mxu0 %v671
  %789 = vmatprep.subr.mxu0 0.0
  %790 = vmatpush2.msra.mxu0 %v670
  %791 = vmatprep.subr.mxu0 0.0
  %792 = vmatpush2.msra.mxu0 %v669
  %793 = vmatprep.mubr.f32.mxu0 %v722
  %794 = vmatmul.mubr.f32.gmra.mxu0 %v721
  %v795 = vpop.f32.mrf.mxu0
  %v796 = vadd.f32 0.0, %v795
  %v797 = vpop.f32.mrf.mxu0
  %798 = vdwg.mxu0
  %799 = vmatprep.subr.mxu0 0.0
  %800 = vmatpush1.msra.mxu0 %v700
  %801 = vmatprep.subr.mxu0 0.0
  %802 = vmatpush1.msra.mxu0 %v699
  %803 = vmatprep.subr.mxu0 0.0
  %804 = vmatpush1.msra.mxu0 %v698
  %805 = vmatprep.subr.mxu0 0.0
  %806 = vmatpush1.msra.mxu0 %v697
  %807 = vmatprep.subr.mxu0 0.0
  %808 = vmatpush1.msra.mxu0 %v696
  %809 = vmatprep.subr.mxu0 0.0
  %810 = vmatpush1.msra.mxu0 %v695
  %811 = vmatprep.subr.mxu0 0.0
  %812 = vmatpush1.msra.mxu0 %v694
  %813 = vmatprep.subr.mxu0 0.0
  %814 = vmatpush1.msra.mxu0 %v693
  %815 = vmatprep.subr.mxu0 0.0
  %816 = vmatpush1.msra.mxu0 %v692
  %817 = vmatprep.subr.mxu0 0.0
  %818 = vmatpush1.msra.mxu0 %v691
  %819 = vmatprep.subr.mxu0 0.0
  %820 = vmatpush1.msra.mxu0 %v690
  %821 = vmatprep.subr.mxu0 0.0
  %822 = vmatpush1.msra.mxu0 %v689
  %823 = vmatprep.subr.mxu0 0.0
  %824 = vmatpush1.msra.mxu0 %v688
  %825 = vmatprep.subr.mxu0 0.0
  %826 = vmatpush1.msra.mxu0 %v687
  %827 = vmatprep.subr.mxu0 0.0
  %828 = vmatpush1.msra.mxu0 %v686
  %829 = vmatprep.subr.mxu0 0.0
  %830 = vmatpush1.msra.mxu0 %v685
  %831 = vmatprep.subr.mxu0 0.0
  %832 = vmatpush2.msra.mxu0 %v716
  %833 = vmatprep.subr.mxu0 0.0
  %834 = vmatpush2.msra.mxu0 %v715
  %835 = vmatprep.subr.mxu0 0.0
  %836 = vmatpush2.msra.mxu0 %v714
  %837 = vmatprep.subr.mxu0 0.0
  %838 = vmatpush2.msra.mxu0 %v713
  %839 = vmatprep.subr.mxu0 0.0
  %840 = vmatpush2.msra.mxu0 %v712
  %841 = vmatprep.subr.mxu0 0.0
  %842 = vmatpush2.msra.mxu0 %v711
  %843 = vmatprep.subr.mxu0 0.0
  %844 = vmatpush2.msra.mxu0 %v710
  %845 = vmatprep.subr.mxu0 0.0
  %846 = vmatpush2.msra.mxu0 %v709
  %847 = vmatprep.subr.mxu0 0.0
  %848 = vmatpush2.msra.mxu0 %v708
  %849 = vmatprep.subr.mxu0 0.0
  %850 = vmatpush2.msra.mxu0 %v707
  %851 = vmatprep.subr.mxu0 0.0
  %852 = vmatpush2.msra.mxu0 %v706
  %853 = vmatprep.subr.mxu0 0.0
  %854 = vmatpush2.msra.mxu0 %v705
  %855 = vmatprep.subr.mxu0 0.0
  %856 = vmatpush2.msra.mxu0 %v704
  %857 = vmatprep.subr.mxu0 0.0
  %858 = vmatpush2.msra.mxu0 %v703
  %859 = vmatprep.subr.mxu0 0.0
  %860 = vmatpush2.msra.mxu0 %v702
  %861 = vmatprep.subr.mxu0 0.0
  %862 = vmatpush2.msra.mxu0 %v701
  %863 = vmatprep.mubr.f32.mxu0 %v724
  %864 = vmatmul.mubr.f32.gmra.mxu0 %v723
  %v865 = vpop.f32.mrf.mxu0
  %v866 = vadd.f32 %v796, %v865
  %v867 = vpop.f32.mrf.mxu0
  %868 = vdwg.mxu0
  %869 = vmatprep.subr.mxu0 0.0
  %870 = vmatpush1.msra.mxu0 %v603
  %871 = vmatprep.subr.mxu0 0.0
  %872 = vmatpush1.msra.mxu0 %v602
  %873 = vmatprep.subr.mxu0 0.0
  %874 = vmatpush1.msra.mxu0 %v601
  %875 = vmatprep.subr.mxu0 0.0
  %876 = vmatpush1.msra.mxu0 %v600
  %877 = vmatprep.subr.mxu0 0.0
  %878 = vmatpush1.msra.mxu0 %v599
  %879 = vmatprep.subr.mxu0 0.0
  %880 = vmatpush1.msra.mxu0 %v598
  %881 = vmatprep.subr.mxu0 0.0
  %882 = vmatpush1.msra.mxu0 %v597
  %883 = vmatprep.subr.mxu0 0.0
  %884 = vmatpush1.msra.mxu0 %v596
  %885 = vmatprep.subr.mxu0 0.0
  %886 = vmatpush1.msra.mxu0 %v595
  %887 = vmatprep.subr.mxu0 0.0
  %888 = vmatpush1.msra.mxu0 %v594
  %889 = vmatprep.subr.mxu0 0.0
  %890 = vmatpush1.msra.mxu0 %v593
  %891 = vmatprep.subr.mxu0 0.0
  %892 = vmatpush1.msra.mxu0 %v592
  %893 = vmatprep.subr.mxu0 0.0
  %894 = vmatpush1.msra.mxu0 %v591
  %895 = vmatprep.subr.mxu0 0.0
  %896 = vmatpush1.msra.mxu0 %v590
  %897 = vmatprep.subr.mxu0 0.0
  %898 = vmatpush1.msra.mxu0 %v589
  %899 = vmatprep.subr.mxu0 0.0
  %900 = vmatpush1.msra.mxu0 %v588
  %901 = vmatprep.subr.mxu0 0.0
  %902 = vmatpush2.msra.mxu0 %v619
  %903 = vmatprep.subr.mxu0 0.0
  %904 = vmatpush2.msra.mxu0 %v618
  %905 = vmatprep.subr.mxu0 0.0
  %906 = vmatpush2.msra.mxu0 %v617
  %907 = vmatprep.subr.mxu0 0.0
  %908 = vmatpush2.msra.mxu0 %v616
  %909 = vmatprep.subr.mxu0 0.0
  %910 = vmatpush2.msra.mxu0 %v615
  %911 = vmatprep.subr.mxu0 0.0
  %912 = vmatpush2.msra.mxu0 %v614
  %913 = vmatprep.subr.mxu0 0.0
  %914 = vmatpush2.msra.mxu0 %v613
  %915 = vmatprep.subr.mxu0 0.0
  %916 = vmatpush2.msra.mxu0 %v612
  %917 = vmatprep.subr.mxu0 0.0
  %918 = vmatpush2.msra.mxu0 %v611
  %919 = vmatprep.subr.mxu0 0.0
  %920 = vmatpush2.msra.mxu0 %v610
  %921 = vmatprep.subr.mxu0 0.0
  %922 = vmatpush2.msra.mxu0 %v609
  %923 = vmatprep.subr.mxu0 0.0
  %924 = vmatpush2.msra.mxu0 %v608
  %925 = vmatprep.subr.mxu0 0.0
  %926 = vmatpush2.msra.mxu0 %v607
  %927 = vmatprep.subr.mxu0 0.0
  %928 = vmatpush2.msra.mxu0 %v606
  %929 = vmatprep.subr.mxu0 0.0
  %930 = vmatpush2.msra.mxu0 %v605
  %931 = vmatprep.subr.mxu0 0.0
  %932 = vmatpush2.msra.mxu0 %v604
  %933 = vmatprep.mubr.f32.mxu0 %v453
  %934 = vmatmul.mubr.f32.gmra.mxu0 %v451
  %v935 = vpop.f32.mrf.mxu0
  %v936 = vadd.f32 %v866, %v935
  %v937 = vpop.f32.mrf.mxu0
  %938 = vdwg.mxu0
  %939 = vmatprep.subr.mxu0 0.0
  %940 = vmatpush1.msra.mxu0 %v635
  %941 = vmatprep.subr.mxu0 0.0
  %942 = vmatpush1.msra.mxu0 %v634
  %943 = vmatprep.subr.mxu0 0.0
  %944 = vmatpush1.msra.mxu0 %v633
  %945 = vmatprep.subr.mxu0 0.0
  %946 = vmatpush1.msra.mxu0 %v632
  %947 = vmatprep.subr.mxu0 0.0
  %948 = vmatpush1.msra.mxu0 %v631
  %949 = vmatprep.subr.mxu0 0.0
  %950 = vmatpush1.msra.mxu0 %v630
  %951 = vmatprep.subr.mxu0 0.0
  %952 = vmatpush1.msra.mxu0 %v629
  %953 = vmatprep.subr.mxu0 0.0
  %954 = vmatpush1.msra.mxu0 %v628
  %955 = vmatprep.subr.mxu0 0.0
  %956 = vmatpush1.msra.mxu0 %v627
  %957 = vmatprep.subr.mxu0 0.0
  %958 = vmatpush1.msra.mxu0 %v626
  %959 = vmatprep.subr.mxu0 0.0
  %960 = vmatpush1.msra.mxu0 %v625
  %961 = vmatprep.subr.mxu0 0.0
  %962 = vmatpush1.msra.mxu0 %v624
  %963 = vmatprep.subr.mxu0 0.0
  %964 = vmatpush1.msra.mxu0 %v623
  %965 = vmatprep.subr.mxu0 0.0
  %966 = vmatpush1.msra.mxu0 %v622
  %967 = vmatprep.subr.mxu0 0.0
  %968 = vmatpush1.msra.mxu0 %v621
  %969 = vmatprep.subr.mxu0 0.0
  %970 = vmatpush1.msra.mxu0 %v620
  %971 = vmatprep.subr.mxu0 0.0
  %972 = vmatpush2.msra.mxu0 %v651
  %973 = vmatprep.subr.mxu0 0.0
  %974 = vmatpush2.msra.mxu0 %v650
  %975 = vmatprep.subr.mxu0 0.0
  %976 = vmatpush2.msra.mxu0 %v649
  %977 = vmatprep.subr.mxu0 0.0
  %978 = vmatpush2.msra.mxu0 %v648
  %979 = vmatprep.subr.mxu0 0.0
  %980 = vmatpush2.msra.mxu0 %v647
  %981 = vmatprep.subr.mxu0 0.0
  %982 = vmatpush2.msra.mxu0 %v646
  %983 = vmatprep.subr.mxu0 0.0
  %984 = vmatpush2.msra.mxu0 %v645
  %985 = vmatprep.subr.mxu0 0.0
  %986 = vmatpush2.msra.mxu0 %v644
  %987 = vmatprep.subr.mxu0 0.0
  %988 = vmatpush2.msra.mxu0 %v643
  %989 = vmatprep.subr.mxu0 0.0
  %990 = vmatpush2.msra.mxu0 %v642
  %991 = vmatprep.subr.mxu0 0.0
  %992 = vmatpush2.msra.mxu0 %v641
  %993 = vmatprep.subr.mxu0 0.0
  %994 = vmatpush2.msra.mxu0 %v640
  %995 = vmatprep.subr.mxu0 0.0
  %996 = vmatpush2.msra.mxu0 %v639
  %997 = vmatprep.subr.mxu0 0.0
  %998 = vmatpush2.msra.mxu0 %v638
  %999 = vmatprep.subr.mxu0 0.0
  %1000 = vmatpush2.msra.mxu0 %v637
  %1001 = vmatprep.subr.mxu0 0.0
  %1002 = vmatpush2.msra.mxu0 %v636
  %1003 = vmatprep.mubr.f32.mxu0 %v496
  %1004 = vmatmul.mubr.f32.gmra.mxu0 %v494
  %v1005 = vpop.f32.mrf.mxu0
  %v1006 = vadd.f32 %v936, %v1005
  %v1007 = vpop.f32.mrf.mxu0
  %1008 = vdwg.mxu0
  %s1009 = scalar_lea.vmem %s2, 1024
  %v1010 = vld [vmem:[%s1009] sm:$0xff]
  %v1011 = vld [vmem:[%s1009 + $0x8] sm:$0xff]
  %v1012 = vld [vmem:[%s1009 + $0x10] sm:$0xff]
  %v1013 = vld [vmem:[%s1009 + $0x18] sm:$0xff]
  %v1014 = vld [vmem:[%s1009 + $0x20] sm:$0xff]
  %v1015 = vld [vmem:[%s1009 + $0x28] sm:$0xff]
  %v1016 = vld [vmem:[%s1009 + $0x30] sm:$0xff]
  %v1017 = vld [vmem:[%s1009 + $0x38] sm:$0xff]
  %v1018 = vld [vmem:[%s1009 + $0x40] sm:$0xff]
  %v1019 = vld [vmem:[%s1009 + $0x48] sm:$0xff]
  %v1020 = vld [vmem:[%s1009 + $0x50] sm:$0xff]
  %v1021 = vld [vmem:[%s1009 + $0x58] sm:$0xff]
  %v1022 = vld [vmem:[%s1009 + $0x60] sm:$0xff]
  %v1023 = vld [vmem:[%s1009 + $0x68] sm:$0xff]
  %v1024 = vld [vmem:[%s1009 + $0x70] sm:$0xff]
  %v1025 = vld [vmem:[%s1009 + $0x78] sm:$0xff]
  %v1026 = vld [vmem:[%s1009 + $0x80] sm:$0xff]
  %v1027 = vld [vmem:[%s1009 + $0x88] sm:$0xff]
  %v1028 = vld [vmem:[%s1009 + $0x90] sm:$0xff]
  %v1029 = vld [vmem:[%s1009 + $0x98] sm:$0xff]
  %v1030 = vld [vmem:[%s1009 + $0xa0] sm:$0xff]
  %v1031 = vld [vmem:[%s1009 + $0xa8] sm:$0xff]
  %v1032 = vld [vmem:[%s1009 + $0xb0] sm:$0xff]
  %v1033 = vld [vmem:[%s1009 + $0xb8] sm:$0xff]
  %v1034 = vld [vmem:[%s1009 + $0xc0] sm:$0xff]
  %v1035 = vld [vmem:[%s1009 + $0xc8] sm:$0xff]
  %v1036 = vld [vmem:[%s1009 + $0xd0] sm:$0xff]
  %v1037 = vld [vmem:[%s1009 + $0xd8] sm:$0xff]
  %v1038 = vld [vmem:[%s1009 + $0xe0] sm:$0xff]
  %v1039 = vld [vmem:[%s1009 + $0xe8] sm:$0xff]
  %v1040 = vld [vmem:[%s1009 + $0xf0] sm:$0xff]
  %v1041 = vld [vmem:[%s1009 + $0xf8] sm:$0xff]
  %v1042 = vld [vmem:[%s1009 + $0x100] sm:$0xff]
  %v1043 = vld [vmem:[%s1009 + $0x108] sm:$0xff]
  %v1044 = vld [vmem:[%s1009 + $0x110] sm:$0xff]
  %v1045 = vld [vmem:[%s1009 + $0x118] sm:$0xff]
  %v1046 = vld [vmem:[%s1009 + $0x120] sm:$0xff]
  %v1047 = vld [vmem:[%s1009 + $0x128] sm:$0xff]
  %v1048 = vld [vmem:[%s1009 + $0x130] sm:$0xff]
  %v1049 = vld [vmem:[%s1009 + $0x138] sm:$0xff]
  %v1050 = vld [vmem:[%s1009 + $0x140] sm:$0xff]
  %v1051 = vld [vmem:[%s1009 + $0x148] sm:$0xff]
  %v1052 = vld [vmem:[%s1009 + $0x150] sm:$0xff]
  %v1053 = vld [vmem:[%s1009 + $0x158] sm:$0xff]
  %v1054 = vld [vmem:[%s1009 + $0x160] sm:$0xff]
  %v1055 = vld [vmem:[%s1009 + $0x168] sm:$0xff]
  %v1056 = vld [vmem:[%s1009 + $0x170] sm:$0xff]
  %v1057 = vld [vmem:[%s1009 + $0x178] sm:$0xff]
  %v1058 = vld [vmem:[%s1009 + $0x180] sm:$0xff]
  %v1059 = vld [vmem:[%s1009 + $0x188] sm:$0xff]
  %v1060 = vld [vmem:[%s1009 + $0x190] sm:$0xff]
  %v1061 = vld [vmem:[%s1009 + $0x198] sm:$0xff]
  %v1062 = vld [vmem:[%s1009 + $0x1a0] sm:$0xff]
  %v1063 = vld [vmem:[%s1009 + $0x1a8] sm:$0xff]
  %v1064 = vld [vmem:[%s1009 + $0x1b0] sm:$0xff]
  %v1065 = vld [vmem:[%s1009 + $0x1b8] sm:$0xff]
  %v1066 = vld [vmem:[%s1009 + $0x1c0] sm:$0xff]
  %v1067 = vld [vmem:[%s1009 + $0x1c8] sm:$0xff]
  %v1068 = vld [vmem:[%s1009 + $0x1d0] sm:$0xff]
  %v1069 = vld [vmem:[%s1009 + $0x1d8] sm:$0xff]
  %v1070 = vld [vmem:[%s1009 + $0x1e0] sm:$0xff]
  %v1071 = vld [vmem:[%s1009 + $0x1e8] sm:$0xff]
  %v1072 = vld [vmem:[%s1009 + $0x1f0] sm:$0xff]
  %v1073 = vld [vmem:[%s1009 + $0x1f8] sm:$0xff]
  %v1074 = vrot.slane %v451, 2
  %v1075 = vrot.slane %v453, 2
  %v1076 = vrot.slane %v494, 2
  %v1077 = vrot.slane %v496, 2
  %1082 = vmatprep.subr.mxu0 0.0
  %1083 = vmatpush1.msra.mxu0 %v1025
  %1084 = vmatprep.subr.mxu0 0.0
  %1085 = vmatpush1.msra.mxu0 %v1024
  %1086 = vmatprep.subr.mxu0 0.0
  %1087 = vmatpush1.msra.mxu0 %v1023
  %1088 = vmatprep.subr.mxu0 0.0
  %1089 = vmatpush1.msra.mxu0 %v1022
  %1090 = vmatprep.subr.mxu0 0.0
  %1091 = vmatpush1.msra.mxu0 %v1021
  %1092 = vmatprep.subr.mxu0 0.0
  %1093 = vmatpush1.msra.mxu0 %v1020
  %1094 = vmatprep.subr.mxu0 0.0
  %1095 = vmatpush1.msra.mxu0 %v1019
  %1096 = vmatprep.subr.mxu0 0.0
  %1097 = vmatpush1.msra.mxu0 %v1018
  %1098 = vmatprep.subr.mxu0 0.0
  %1099 = vmatpush1.msra.mxu0 %v1017
  %1100 = vmatprep.subr.mxu0 0.0
  %1101 = vmatpush1.msra.mxu0 %v1016
  %1102 = vmatprep.subr.mxu0 0.0
  %1103 = vmatpush1.msra.mxu0 %v1015
  %1104 = vmatprep.subr.mxu0 0.0
  %1105 = vmatpush1.msra.mxu0 %v1014
  %1106 = vmatprep.subr.mxu0 0.0
  %1107 = vmatpush1.msra.mxu0 %v1013
  %1108 = vmatprep.subr.mxu0 0.0
  %1109 = vmatpush1.msra.mxu0 %v1012
  %1110 = vmatprep.subr.mxu0 0.0
  %1111 = vmatpush1.msra.mxu0 %v1011
  %1112 = vmatprep.subr.mxu0 0.0
  %1113 = vmatpush1.msra.mxu0 %v1010
  %1114 = vmatprep.subr.mxu0 0.0
  %1115 = vmatpush2.msra.mxu0 %v1041
  %1116 = vmatprep.subr.mxu0 0.0
  %1117 = vmatpush2.msra.mxu0 %v1040
  %1118 = vmatprep.subr.mxu0 0.0
  %1119 = vmatpush2.msra.mxu0 %v1039
  %1120 = vmatprep.subr.mxu0 0.0
  %1121 = vmatpush2.msra.mxu0 %v1038
  %1122 = vmatprep.subr.mxu0 0.0
  %1123 = vmatpush2.msra.mxu0 %v1037
  %1124 = vmatprep.subr.mxu0 0.0
  %1125 = vmatpush2.msra.mxu0 %v1036
  %1126 = vmatprep.subr.mxu0 0.0
  %1127 = vmatpush2.msra.mxu0 %v1035
  %1128 = vmatprep.subr.mxu0 0.0
  %1129 = vmatpush2.msra.mxu0 %v1034
  %1130 = vmatprep.subr.mxu0 0.0
  %1131 = vmatpush2.msra.mxu0 %v1033
  %1132 = vmatprep.subr.mxu0 0.0
  %1133 = vmatpush2.msra.mxu0 %v1032
  %1134 = vmatprep.subr.mxu0 0.0
  %1135 = vmatpush2.msra.mxu0 %v1031
  %1136 = vmatprep.subr.mxu0 0.0
  %1137 = vmatpush2.msra.mxu0 %v1030
  %1138 = vmatprep.subr.mxu0 0.0
  %1139 = vmatpush2.msra.mxu0 %v1029
  %1140 = vmatprep.subr.mxu0 0.0
  %1141 = vmatpush2.msra.mxu0 %v1028
  %1142 = vmatprep.subr.mxu0 0.0
  %1143 = vmatpush2.msra.mxu0 %v1027
  %1144 = vmatprep.subr.mxu0 0.0
  %1145 = vmatpush2.msra.mxu0 %v1026
  %1146 = vmatprep.mubr.f32.mxu0 %v1075
  %1147 = vmatmul.mubr.f32.gmra.mxu0 %v1074
  %v1148 = vpop.f32.mrf.mxu0
  %v1149 = vadd.f32 0.0, %v1148
  %v1150 = vpop.f32.mrf.mxu0
  %1151 = vdwg.mxu0
  %1152 = vmatprep.subr.mxu0 0.0
  %1153 = vmatpush1.msra.mxu0 %v1057
  %1154 = vmatprep.subr.mxu0 0.0
  %1155 = vmatpush1.msra.mxu0 %v1056
  %1156 = vmatprep.subr.mxu0 0.0
  %1157 = vmatpush1.msra.mxu0 %v1055
  %1158 = vmatprep.subr.mxu0 0.0
  %1159 = vmatpush1.msra.mxu0 %v1054
  %1160 = vmatprep.subr.mxu0 0.0
  %1161 = vmatpush1.msra.mxu0 %v1053
  %1162 = vmatprep.subr.mxu0 0.0
  %1163 = vmatpush1.msra.mxu0 %v1052
  %1164 = vmatprep.subr.mxu0 0.0
  %1165 = vmatpush1.msra.mxu0 %v1051
  %1166 = vmatprep.subr.mxu0 0.0
  %1167 = vmatpush1.msra.mxu0 %v1050
  %1168 = vmatprep.subr.mxu0 0.0
  %1169 = vmatpush1.msra.mxu0 %v1049
  %1170 = vmatprep.subr.mxu0 0.0
  %1171 = vmatpush1.msra.mxu0 %v1048
  %1172 = vmatprep.subr.mxu0 0.0
  %1173 = vmatpush1.msra.mxu0 %v1047
  %1174 = vmatprep.subr.mxu0 0.0
  %1175 = vmatpush1.msra.mxu0 %v1046
  %1176 = vmatprep.subr.mxu0 0.0
  %1177 = vmatpush1.msra.mxu0 %v1045
  %1178 = vmatprep.subr.mxu0 0.0
  %1179 = vmatpush1.msra.mxu0 %v1044
  %1180 = vmatprep.subr.mxu0 0.0
  %1181 = vmatpush1.msra.mxu0 %v1043
  %1182 = vmatprep.subr.mxu0 0.0
  %1183 = vmatpush1.msra.mxu0 %v1042
  %1184 = vmatprep.subr.mxu0 0.0
  %1185 = vmatpush2.msra.mxu0 %v1073
  %1186 = vmatprep.subr.mxu0 0.0
  %1187 = vmatpush2.msra.mxu0 %v1072
  %1188 = vmatprep.subr.mxu0 0.0
  %1189 = vmatpush2.msra.mxu0 %v1071
  %1190 = vmatprep.subr.mxu0 0.0
  %1191 = vmatpush2.msra.mxu0 %v1070
  %1192 = vmatprep.subr.mxu0 0.0
  %1193 = vmatpush2.msra.mxu0 %v1069
  %1194 = vmatprep.subr.mxu0 0.0
  %1195 = vmatpush2.msra.mxu0 %v1068
  %1196 = vmatprep.subr.mxu0 0.0
  %1197 = vmatpush2.msra.mxu0 %v1067
  %1198 = vmatprep.subr.mxu0 0.0
  %1199 = vmatpush2.msra.mxu0 %v1066
  %1200 = vmatprep.subr.mxu0 0.0
  %1201 = vmatpush2.msra.mxu0 %v1065
  %1202 = vmatprep.subr.mxu0 0.0
  %1203 = vmatpush2.msra.mxu0 %v1064
  %1204 = vmatprep.subr.mxu0 0.0
  %1205 = vmatpush2.msra.mxu0 %v1063
  %1206 = vmatprep.subr.mxu0 0.0
  %1207 = vmatpush2.msra.mxu0 %v1062
  %1208 = vmatprep.subr.mxu0 0.0
  %1209 = vmatpush2.msra.mxu0 %v1061
  %1210 = vmatprep.subr.mxu0 0.0
  %1211 = vmatpush2.msra.mxu0 %v1060
  %1212 = vmatprep.subr.mxu0 0.0
  %1213 = vmatpush2.msra.mxu0 %v1059
  %1214 = vmatprep.subr.mxu0 0.0
  %1215 = vmatpush2.msra.mxu0 %v1058
  %1216 = vmatprep.mubr.f32.mxu0 %v1077
  %1217 = vmatmul.mubr.f32.gmra.mxu0 %v1076
  %v1218 = vpop.f32.mrf.mxu0
  %v1219 = vadd.f32 %v1149, %v1218
  %v1220 = vpop.f32.mrf.mxu0
  %1221 = vdwg.mxu0
  %v1222 = vadd.f32 %v1006, %v1219
  %s1223 = scalar_lea.vmem %s2, 1536
  %v1224 = vld [vmem:[%s1223] sm:$0xff]
  %v1225 = vld [vmem:[%s1223 + $0x8] sm:$0xff]
  %v1226 = vld [vmem:[%s1223 + $0x10] sm:$0xff]
  %v1227 = vld [vmem:[%s1223 + $0x18] sm:$0xff]
  %v1228 = vld [vmem:[%s1223 + $0x20] sm:$0xff]
  %v1229 = vld [vmem:[%s1223 + $0x28] sm:$0xff]
  %v1230 = vld [vmem:[%s1223 + $0x30] sm:$0xff]
  %v1231 = vld [vmem:[%s1223 + $0x38] sm:$0xff]
  %v1232 = vld [vmem:[%s1223 + $0x40] sm:$0xff]
  %v1233 = vld [vmem:[%s1223 + $0x48] sm:$0xff]
  %v1234 = vld [vmem:[%s1223 + $0x50] sm:$0xff]
  %v1235 = vld [vmem:[%s1223 + $0x58] sm:$0xff]
  %v1236 = vld [vmem:[%s1223 + $0x60] sm:$0xff]
  %v1237 = vld [vmem:[%s1223 + $0x68] sm:$0xff]
  %v1238 = vld [vmem:[%s1223 + $0x70] sm:$0xff]
  %v1239 = vld [vmem:[%s1223 + $0x78] sm:$0xff]
  %v1240 = vld [vmem:[%s1223 + $0x80] sm:$0xff]
  %v1241 = vld [vmem:[%s1223 + $0x88] sm:$0xff]
  %v1242 = vld [vmem:[%s1223 + $0x90] sm:$0xff]
  %v1243 = vld [vmem:[%s1223 + $0x98] sm:$0xff]
  %v1244 = vld [vmem:[%s1223 + $0xa0] sm:$0xff]
  %v1245 = vld [vmem:[%s1223 + $0xa8] sm:$0xff]
  %v1246 = vld [vmem:[%s1223 + $0xb0] sm:$0xff]
  %v1247 = vld [vmem:[%s1223 + $0xb8] sm:$0xff]
  %v1248 = vld [vmem:[%s1223 + $0xc0] sm:$0xff]
  %v1249 = vld [vmem:[%s1223 + $0xc8] sm:$0xff]
  %v1250 = vld [vmem:[%s1223 + $0xd0] sm:$0xff]
  %v1251 = vld [vmem:[%s1223 + $0xd8] sm:$0xff]
  %v1252 = vld [vmem:[%s1223 + $0xe0] sm:$0xff]
  %v1253 = vld [vmem:[%s1223 + $0xe8] sm:$0xff]
  %v1254 = vld [vmem:[%s1223 + $0xf0] sm:$0xff]
  %v1255 = vld [vmem:[%s1223 + $0xf8] sm:$0xff]
  %v1256 = vld [vmem:[%s1223 + $0x100] sm:$0xff]
  %v1257 = vld [vmem:[%s1223 + $0x108] sm:$0xff]
  %v1258 = vld [vmem:[%s1223 + $0x110] sm:$0xff]
  %v1259 = vld [vmem:[%s1223 + $0x118] sm:$0xff]
  %v1260 = vld [vmem:[%s1223 + $0x120] sm:$0xff]
  %v1261 = vld [vmem:[%s1223 + $0x128] sm:$0xff]
  %v1262 = vld [vmem:[%s1223 + $0x130] sm:$0xff]
  %v1263 = vld [vmem:[%s1223 + $0x138] sm:$0xff]
  %v1264 = vld [vmem:[%s1223 + $0x140] sm:$0xff]
  %v1265 = vld [vmem:[%s1223 + $0x148] sm:$0xff]
  %v1266 = vld [vmem:[%s1223 + $0x150] sm:$0xff]
  %v1267 = vld [vmem:[%s1223 + $0x158] sm:$0xff]
  %v1268 = vld [vmem:[%s1223 + $0x160] sm:$0xff]
  %v1269 = vld [vmem:[%s1223 + $0x168] sm:$0xff]
  %v1270 = vld [vmem:[%s1223 + $0x170] sm:$0xff]
  %v1271 = vld [vmem:[%s1223 + $0x178] sm:$0xff]
  %v1272 = vld [vmem:[%s1223 + $0x180] sm:$0xff]
  %v1273 = vld [vmem:[%s1223 + $0x188] sm:$0xff]
  %v1274 = vld [vmem:[%s1223 + $0x190] sm:$0xff]
  %v1275 = vld [vmem:[%s1223 + $0x198] sm:$0xff]
  %v1276 = vld [vmem:[%s1223 + $0x1a0] sm:$0xff]
  %v1277 = vld [vmem:[%s1223 + $0x1a8] sm:$0xff]
  %v1278 = vld [vmem:[%s1223 + $0x1b0] sm:$0xff]
  %v1279 = vld [vmem:[%s1223 + $0x1b8] sm:$0xff]
  %v1280 = vld [vmem:[%s1223 + $0x1c0] sm:$0xff]
  %v1281 = vld [vmem:[%s1223 + $0x1c8] sm:$0xff]
  %v1282 = vld [vmem:[%s1223 + $0x1d0] sm:$0xff]
  %v1283 = vld [vmem:[%s1223 + $0x1d8] sm:$0xff]
  %v1284 = vld [vmem:[%s1223 + $0x1e0] sm:$0xff]
  %v1285 = vld [vmem:[%s1223 + $0x1e8] sm:$0xff]
  %v1286 = vld [vmem:[%s1223 + $0x1f0] sm:$0xff]
  %v1287 = vld [vmem:[%s1223 + $0x1f8] sm:$0xff]
  %v1288 = vrot.slane %v451, 3
  %v1289 = vrot.slane %v453, 3
  %v1290 = vrot.slane %v494, 3
  %v1291 = vrot.slane %v496, 3
  %1296 = vmatprep.subr.mxu0 0.0
  %1297 = vmatpush1.msra.mxu0 %v1239
  %1298 = vmatprep.subr.mxu0 0.0
  %1299 = vmatpush1.msra.mxu0 %v1238
  %1300 = vmatprep.subr.mxu0 0.0
  %1301 = vmatpush1.msra.mxu0 %v1237
  %1302 = vmatprep.subr.mxu0 0.0
  %1303 = vmatpush1.msra.mxu0 %v1236
  %1304 = vmatprep.subr.mxu0 0.0
  %1305 = vmatpush1.msra.mxu0 %v1235
  %1306 = vmatprep.subr.mxu0 0.0
  %1307 = vmatpush1.msra.mxu0 %v1234
  %1308 = vmatprep.subr.mxu0 0.0
  %1309 = vmatpush1.msra.mxu0 %v1233
  %1310 = vmatprep.subr.mxu0 0.0
  %1311 = vmatpush1.msra.mxu0 %v1232
  %1312 = vmatprep.subr.mxu0 0.0
  %1313 = vmatpush1.msra.mxu0 %v1231
  %1314 = vmatprep.subr.mxu0 0.0
  %1315 = vmatpush1.msra.mxu0 %v1230
  %1316 = vmatprep.subr.mxu0 0.0
  %1317 = vmatpush1.msra.mxu0 %v1229
  %1318 = vmatprep.subr.mxu0 0.0
  %1319 = vmatpush1.msra.mxu0 %v1228
  %1320 = vmatprep.subr.mxu0 0.0
  %1321 = vmatpush1.msra.mxu0 %v1227
  %1322 = vmatprep.subr.mxu0 0.0
  %1323 = vmatpush1.msra.mxu0 %v1226
  %1324 = vmatprep.subr.mxu0 0.0
  %1325 = vmatpush1.msra.mxu0 %v1225
  %1326 = vmatprep.subr.mxu0 0.0
  %1327 = vmatpush1.msra.mxu0 %v1224
  %1328 = vmatprep.subr.mxu0 0.0
  %1329 = vmatpush2.msra.mxu0 %v1255
  %1330 = vmatprep.subr.mxu0 0.0
  %1331 = vmatpush2.msra.mxu0 %v1254
  %1332 = vmatprep.subr.mxu0 0.0
  %1333 = vmatpush2.msra.mxu0 %v1253
  %1334 = vmatprep.subr.mxu0 0.0
  %1335 = vmatpush2.msra.mxu0 %v1252
  %1336 = vmatprep.subr.mxu0 0.0
  %1337 = vmatpush2.msra.mxu0 %v1251
  %1338 = vmatprep.subr.mxu0 0.0
  %1339 = vmatpush2.msra.mxu0 %v1250
  %1340 = vmatprep.subr.mxu0 0.0
  %1341 = vmatpush2.msra.mxu0 %v1249
  %1342 = vmatprep.subr.mxu0 0.0
  %1343 = vmatpush2.msra.mxu0 %v1248
  %1344 = vmatprep.subr.mxu0 0.0
  %1345 = vmatpush2.msra.mxu0 %v1247
  %1346 = vmatprep.subr.mxu0 0.0
  %1347 = vmatpush2.msra.mxu0 %v1246
  %1348 = vmatprep.subr.mxu0 0.0
  %1349 = vmatpush2.msra.mxu0 %v1245
  %1350 = vmatprep.subr.mxu0 0.0
  %1351 = vmatpush2.msra.mxu0 %v1244
  %1352 = vmatprep.subr.mxu0 0.0
  %1353 = vmatpush2.msra.mxu0 %v1243
  %1354 = vmatprep.subr.mxu0 0.0
  %1355 = vmatpush2.msra.mxu0 %v1242
  %1356 = vmatprep.subr.mxu0 0.0
  %1357 = vmatpush2.msra.mxu0 %v1241
  %1358 = vmatprep.subr.mxu0 0.0
  %1359 = vmatpush2.msra.mxu0 %v1240
  %1360 = vmatprep.mubr.f32.mxu0 %v1289
  %1361 = vmatmul.mubr.f32.gmra.mxu0 %v1288
  %v1362 = vpop.f32.mrf.mxu0
  %v1363 = vadd.f32 0.0, %v1362
  %v1364 = vpop.f32.mrf.mxu0
  %1365 = vdwg.mxu0
  %1366 = vmatprep.subr.mxu0 0.0
  %1367 = vmatpush1.msra.mxu0 %v1271
  %1368 = vmatprep.subr.mxu0 0.0
  %1369 = vmatpush1.msra.mxu0 %v1270
  %1370 = vmatprep.subr.mxu0 0.0
  %1371 = vmatpush1.msra.mxu0 %v1269
  %1372 = vmatprep.subr.mxu0 0.0
  %1373 = vmatpush1.msra.mxu0 %v1268
  %1374 = vmatprep.subr.mxu0 0.0
  %1375 = vmatpush1.msra.mxu0 %v1267
  %1376 = vmatprep.subr.mxu0 0.0
  %1377 = vmatpush1.msra.mxu0 %v1266
  %1378 = vmatprep.subr.mxu0 0.0
  %1379 = vmatpush1.msra.mxu0 %v1265
  %1380 = vmatprep.subr.mxu0 0.0
  %1381 = vmatpush1.msra.mxu0 %v1264
  %1382 = vmatprep.subr.mxu0 0.0
  %1383 = vmatpush1.msra.mxu0 %v1263
  %1384 = vmatprep.subr.mxu0 0.0
  %1385 = vmatpush1.msra.mxu0 %v1262
  %1386 = vmatprep.subr.mxu0 0.0
  %1387 = vmatpush1.msra.mxu0 %v1261
  %1388 = vmatprep.subr.mxu0 0.0
  %1389 = vmatpush1.msra.mxu0 %v1260
  %1390 = vmatprep.subr.mxu0 0.0
  %1391 = vmatpush1.msra.mxu0 %v1259
  %1392 = vmatprep.subr.mxu0 0.0
  %1393 = vmatpush1.msra.mxu0 %v1258
  %1394 = vmatprep.subr.mxu0 0.0
  %1395 = vmatpush1.msra.mxu0 %v1257
  %1396 = vmatprep.subr.mxu0 0.0
  %1397 = vmatpush1.msra.mxu0 %v1256
  %1398 = vmatprep.subr.mxu0 0.0
  %1399 = vmatpush2.msra.mxu0 %v1287
  %1400 = vmatprep.subr.mxu0 0.0
  %1401 = vmatpush2.msra.mxu0 %v1286
  %1402 = vmatprep.subr.mxu0 0.0
  %1403 = vmatpush2.msra.mxu0 %v1285
  %1404 = vmatprep.subr.mxu0 0.0
  %1405 = vmatpush2.msra.mxu0 %v1284
  %1406 = vmatprep.subr.mxu0 0.0
  %1407 = vmatpush2.msra.mxu0 %v1283
  %1408 = vmatprep.subr.mxu0 0.0
  %1409 = vmatpush2.msra.mxu0 %v1282
  %1410 = vmatprep.subr.mxu0 0.0
  %1411 = vmatpush2.msra.mxu0 %v1281
  %1412 = vmatprep.subr.mxu0 0.0
  %1413 = vmatpush2.msra.mxu0 %v1280
  %1414 = vmatprep.subr.mxu0 0.0
  %1415 = vmatpush2.msra.mxu0 %v1279
  %1416 = vmatprep.subr.mxu0 0.0
  %1417 = vmatpush2.msra.mxu0 %v1278
  %1418 = vmatprep.subr.mxu0 0.0
  %1419 = vmatpush2.msra.mxu0 %v1277
  %1420 = vmatprep.subr.mxu0 0.0
  %1421 = vmatpush2.msra.mxu0 %v1276
  %1422 = vmatprep.subr.mxu0 0.0
  %1423 = vmatpush2.msra.mxu0 %v1275
  %1424 = vmatprep.subr.mxu0 0.0
  %1425 = vmatpush2.msra.mxu0 %v1274
  %1426 = vmatprep.subr.mxu0 0.0
  %1427 = vmatpush2.msra.mxu0 %v1273
  %1428 = vmatprep.subr.mxu0 0.0
  %1429 = vmatpush2.msra.mxu0 %v1272
  %1430 = vmatprep.mubr.f32.mxu0 %v1291
  %1431 = vmatmul.mubr.f32.gmra.mxu0 %v1290
  %v1432 = vpop.f32.mrf.mxu0
  %v1433 = vadd.f32 %v1363, %v1432
  %v1434 = vpop.f32.mrf.mxu0
  %1435 = vdwg.mxu0
  %v1436 = vadd.f32 %v1222, %v1433
  %s1437 = scalar_lea.vmem %s2, 2048
  %v1438 = vld [vmem:[%s1437] sm:$0xff]
  %v1439 = vld [vmem:[%s1437 + $0x8] sm:$0xff]
  %v1440 = vld [vmem:[%s1437 + $0x10] sm:$0xff]
  %v1441 = vld [vmem:[%s1437 + $0x18] sm:$0xff]
  %v1442 = vld [vmem:[%s1437 + $0x20] sm:$0xff]
  %v1443 = vld [vmem:[%s1437 + $0x28] sm:$0xff]
  %v1444 = vld [vmem:[%s1437 + $0x30] sm:$0xff]
  %v1445 = vld [vmem:[%s1437 + $0x38] sm:$0xff]
  %v1446 = vld [vmem:[%s1437 + $0x40] sm:$0xff]
  %v1447 = vld [vmem:[%s1437 + $0x48] sm:$0xff]
  %v1448 = vld [vmem:[%s1437 + $0x50] sm:$0xff]
  %v1449 = vld [vmem:[%s1437 + $0x58] sm:$0xff]
  %v1450 = vld [vmem:[%s1437 + $0x60] sm:$0xff]
  %v1451 = vld [vmem:[%s1437 + $0x68] sm:$0xff]
  %v1452 = vld [vmem:[%s1437 + $0x70] sm:$0xff]
  %v1453 = vld [vmem:[%s1437 + $0x78] sm:$0xff]
  %v1454 = vld [vmem:[%s1437 + $0x80] sm:$0xff]
  %v1455 = vld [vmem:[%s1437 + $0x88] sm:$0xff]
  %v1456 = vld [vmem:[%s1437 + $0x90] sm:$0xff]
  %v1457 = vld [vmem:[%s1437 + $0x98] sm:$0xff]
  %v1458 = vld [vmem:[%s1437 + $0xa0] sm:$0xff]
  %v1459 = vld [vmem:[%s1437 + $0xa8] sm:$0xff]
  %v1460 = vld [vmem:[%s1437 + $0xb0] sm:$0xff]
  %v1461 = vld [vmem:[%s1437 + $0xb8] sm:$0xff]
  %v1462 = vld [vmem:[%s1437 + $0xc0] sm:$0xff]
  %v1463 = vld [vmem:[%s1437 + $0xc8] sm:$0xff]
  %v1464 = vld [vmem:[%s1437 + $0xd0] sm:$0xff]
  %v1465 = vld [vmem:[%s1437 + $0xd8] sm:$0xff]
  %v1466 = vld [vmem:[%s1437 + $0xe0] sm:$0xff]
  %v1467 = vld [vmem:[%s1437 + $0xe8] sm:$0xff]
  %v1468 = vld [vmem:[%s1437 + $0xf0] sm:$0xff]
  %v1469 = vld [vmem:[%s1437 + $0xf8] sm:$0xff]
  %v1470 = vld [vmem:[%s1437 + $0x100] sm:$0xff]
  %v1471 = vld [vmem:[%s1437 + $0x108] sm:$0xff]
  %v1472 = vld [vmem:[%s1437 + $0x110] sm:$0xff]
  %v1473 = vld [vmem:[%s1437 + $0x118] sm:$0xff]
  %v1474 = vld [vmem:[%s1437 + $0x120] sm:$0xff]
  %v1475 = vld [vmem:[%s1437 + $0x128] sm:$0xff]
  %v1476 = vld [vmem:[%s1437 + $0x130] sm:$0xff]
  %v1477 = vld [vmem:[%s1437 + $0x138] sm:$0xff]
  %v1478 = vld [vmem:[%s1437 + $0x140] sm:$0xff]
  %v1479 = vld [vmem:[%s1437 + $0x148] sm:$0xff]
  %v1480 = vld [vmem:[%s1437 + $0x150] sm:$0xff]
  %v1481 = vld [vmem:[%s1437 + $0x158] sm:$0xff]
  %v1482 = vld [vmem:[%s1437 + $0x160] sm:$0xff]
  %v1483 = vld [vmem:[%s1437 + $0x168] sm:$0xff]
  %v1484 = vld [vmem:[%s1437 + $0x170] sm:$0xff]
  %v1485 = vld [vmem:[%s1437 + $0x178] sm:$0xff]
  %v1486 = vld [vmem:[%s1437 + $0x180] sm:$0xff]
  %v1487 = vld [vmem:[%s1437 + $0x188] sm:$0xff]
  %v1488 = vld [vmem:[%s1437 + $0x190] sm:$0xff]
  %v1489 = vld [vmem:[%s1437 + $0x198] sm:$0xff]
  %v1490 = vld [vmem:[%s1437 + $0x1a0] sm:$0xff]
  %v1491 = vld [vmem:[%s1437 + $0x1a8] sm:$0xff]
  %v1492 = vld [vmem:[%s1437 + $0x1b0] sm:$0xff]
  %v1493 = vld [vmem:[%s1437 + $0x1b8] sm:$0xff]
  %v1494 = vld [vmem:[%s1437 + $0x1c0] sm:$0xff]
  %v1495 = vld [vmem:[%s1437 + $0x1c8] sm:$0xff]
  %v1496 = vld [vmem:[%s1437 + $0x1d0] sm:$0xff]
  %v1497 = vld [vmem:[%s1437 + $0x1d8] sm:$0xff]
  %v1498 = vld [vmem:[%s1437 + $0x1e0] sm:$0xff]
  %v1499 = vld [vmem:[%s1437 + $0x1e8] sm:$0xff]
  %v1500 = vld [vmem:[%s1437 + $0x1f0] sm:$0xff]
  %v1501 = vld [vmem:[%s1437 + $0x1f8] sm:$0xff]
  %v1502 = vrot.slane %v451, 4
  %v1503 = vrot.slane %v453, 4
  %v1504 = vrot.slane %v494, 4
  %v1505 = vrot.slane %v496, 4
  %1510 = vmatprep.subr.mxu0 0.0
  %1511 = vmatpush1.msra.mxu0 %v1453
  %1512 = vmatprep.subr.mxu0 0.0
  %1513 = vmatpush1.msra.mxu0 %v1452
  %1514 = vmatprep.subr.mxu0 0.0
  %1515 = vmatpush1.msra.mxu0 %v1451
  %1516 = vmatprep.subr.mxu0 0.0
  %1517 = vmatpush1.msra.mxu0 %v1450
  %1518 = vmatprep.subr.mxu0 0.0
  %1519 = vmatpush1.msra.mxu0 %v1449
  %1520 = vmatprep.subr.mxu0 0.0
  %1521 = vmatpush1.msra.mxu0 %v1448
  %1522 = vmatprep.subr.mxu0 0.0
  %1523 = vmatpush1.msra.mxu0 %v1447
  %1524 = vmatprep.subr.mxu0 0.0
  %1525 = vmatpush1.msra.mxu0 %v1446
  %1526 = vmatprep.subr.mxu0 0.0
  %1527 = vmatpush1.msra.mxu0 %v1445
  %1528 = vmatprep.subr.mxu0 0.0
  %1529 = vmatpush1.msra.mxu0 %v1444
  %1530 = vmatprep.subr.mxu0 0.0
  %1531 = vmatpush1.msra.mxu0 %v1443
  %1532 = vmatprep.subr.mxu0 0.0
  %1533 = vmatpush1.msra.mxu0 %v1442
  %1534 = vmatprep.subr.mxu0 0.0
  %1535 = vmatpush1.msra.mxu0 %v1441
  %1536 = vmatprep.subr.mxu0 0.0
  %1537 = vmatpush1.msra.mxu0 %v1440
  %1538 = vmatprep.subr.mxu0 0.0
  %1539 = vmatpush1.msra.mxu0 %v1439
  %1540 = vmatprep.subr.mxu0 0.0
  %1541 = vmatpush1.msra.mxu0 %v1438
  %1542 = vmatprep.subr.mxu0 0.0
  %1543 = vmatpush2.msra.mxu0 %v1469
  %1544 = vmatprep.subr.mxu0 0.0
  %1545 = vmatpush2.msra.mxu0 %v1468
  %1546 = vmatprep.subr.mxu0 0.0
  %1547 = vmatpush2.msra.mxu0 %v1467
  %1548 = vmatprep.subr.mxu0 0.0
  %1549 = vmatpush2.msra.mxu0 %v1466
  %1550 = vmatprep.subr.mxu0 0.0
  %1551 = vmatpush2.msra.mxu0 %v1465
  %1552 = vmatprep.subr.mxu0 0.0
  %1553 = vmatpush2.msra.mxu0 %v1464
  %1554 = vmatprep.subr.mxu0 0.0
  %1555 = vmatpush2.msra.mxu0 %v1463
  %1556 = vmatprep.subr.mxu0 0.0
  %1557 = vmatpush2.msra.mxu0 %v1462
  %1558 = vmatprep.subr.mxu0 0.0
  %1559 = vmatpush2.msra.mxu0 %v1461
  %1560 = vmatprep.subr.mxu0 0.0
  %1561 = vmatpush2.msra.mxu0 %v1460
  %1562 = vmatprep.subr.mxu0 0.0
  %1563 = vmatpush2.msra.mxu0 %v1459
  %1564 = vmatprep.subr.mxu0 0.0
  %1565 = vmatpush2.msra.mxu0 %v1458
  %1566 = vmatprep.subr.mxu0 0.0
  %1567 = vmatpush2.msra.mxu0 %v1457
  %1568 = vmatprep.subr.mxu0 0.0
  %1569 = vmatpush2.msra.mxu0 %v1456
  %1570 = vmatprep.subr.mxu0 0.0
  %1571 = vmatpush2.msra.mxu0 %v1455
  %1572 = vmatprep.subr.mxu0 0.0
  %1573 = vmatpush2.msra.mxu0 %v1454
  %1574 = vmatprep.mubr.f32.mxu0 %v1503
  %1575 = vmatmul.mubr.f32.gmra.mxu0 %v1502
  %v1576 = vpop.f32.mrf.mxu0
  %v1577 = vadd.f32 0.0, %v1576
  %v1578 = vpop.f32.mrf.mxu0
  %1579 = vdwg.mxu0
  %1580 = vmatprep.subr.mxu0 0.0
  %1581 = vmatpush1.msra.mxu0 %v1485
  %1582 = vmatprep.subr.mxu0 0.0
  %1583 = vmatpush1.msra.mxu0 %v1484
  %1584 = vmatprep.subr.mxu0 0.0
  %1585 = vmatpush1.msra.mxu0 %v1483
  %1586 = vmatprep.subr.mxu0 0.0
  %1587 = vmatpush1.msra.mxu0 %v1482
  %1588 = vmatprep.subr.mxu0 0.0
  %1589 = vmatpush1.msra.mxu0 %v1481
  %1590 = vmatprep.subr.mxu0 0.0
  %1591 = vmatpush1.msra.mxu0 %v1480
  %1592 = vmatprep.subr.mxu0 0.0
  %1593 = vmatpush1.msra.mxu0 %v1479
  %1594 = vmatprep.subr.mxu0 0.0
  %1595 = vmatpush1.msra.mxu0 %v1478
  %1596 = vmatprep.subr.mxu0 0.0
  %1597 = vmatpush1.msra.mxu0 %v1477
  %1598 = vmatprep.subr.mxu0 0.0
  %1599 = vmatpush1.msra.mxu0 %v1476
  %1600 = vmatprep.subr.mxu0 0.0
  %1601 = vmatpush1.msra.mxu0 %v1475
  %1602 = vmatprep.subr.mxu0 0.0
  %1603 = vmatpush1.msra.mxu0 %v1474
  %1604 = vmatprep.subr.mxu0 0.0
  %1605 = vmatpush1.msra.mxu0 %v1473
  %1606 = vmatprep.subr.mxu0 0.0
  %1607 = vmatpush1.msra.mxu0 %v1472
  %1608 = vmatprep.subr.mxu0 0.0
  %1609 = vmatpush1.msra.mxu0 %v1471
  %1610 = vmatprep.subr.mxu0 0.0
  %1611 = vmatpush1.msra.mxu0 %v1470
  %1612 = vmatprep.subr.mxu0 0.0
  %1613 = vmatpush2.msra.mxu0 %v1501
  %1614 = vmatprep.subr.mxu0 0.0
  %1615 = vmatpush2.msra.mxu0 %v1500
  %1616 = vmatprep.subr.mxu0 0.0
  %1617 = vmatpush2.msra.mxu0 %v1499
  %1618 = vmatprep.subr.mxu0 0.0
  %1619 = vmatpush2.msra.mxu0 %v1498
  %1620 = vmatprep.subr.mxu0 0.0
  %1621 = vmatpush2.msra.mxu0 %v1497
  %1622 = vmatprep.subr.mxu0 0.0
  %1623 = vmatpush2.msra.mxu0 %v1496
  %1624 = vmatprep.subr.mxu0 0.0
  %1625 = vmatpush2.msra.mxu0 %v1495
  %1626 = vmatprep.subr.mxu0 0.0
  %1627 = vmatpush2.msra.mxu0 %v1494
  %1628 = vmatprep.subr.mxu0 0.0
  %1629 = vmatpush2.msra.mxu0 %v1493
  %1630 = vmatprep.subr.mxu0 0.0
  %1631 = vmatpush2.msra.mxu0 %v1492
  %1632 = vmatprep.subr.mxu0 0.0
  %1633 = vmatpush2.msra.mxu0 %v1491
  %1634 = vmatprep.subr.mxu0 0.0
  %1635 = vmatpush2.msra.mxu0 %v1490
  %1636 = vmatprep.subr.mxu0 0.0
  %1637 = vmatpush2.msra.mxu0 %v1489
  %1638 = vmatprep.subr.mxu0 0.0
  %1639 = vmatpush2.msra.mxu0 %v1488
  %1640 = vmatprep.subr.mxu0 0.0
  %1641 = vmatpush2.msra.mxu0 %v1487
  %1642 = vmatprep.subr.mxu0 0.0
  %1643 = vmatpush2.msra.mxu0 %v1486
  %1644 = vmatprep.mubr.f32.mxu0 %v1505
  %1645 = vmatmul.mubr.f32.gmra.mxu0 %v1504
  %v1646 = vpop.f32.mrf.mxu0
  %v1647 = vadd.f32 %v1577, %v1646
  %v1648 = vpop.f32.mrf.mxu0
  %1649 = vdwg.mxu0
  %v1650 = vadd.f32 %v1436, %v1647
  %s1651 = scalar_lea.vmem %s2, 2560
  %v1652 = vld [vmem:[%s1651] sm:$0xff]
  %v1653 = vld [vmem:[%s1651 + $0x8] sm:$0xff]
  %v1654 = vld [vmem:[%s1651 + $0x10] sm:$0xff]
  %v1655 = vld [vmem:[%s1651 + $0x18] sm:$0xff]
  %v1656 = vld [vmem:[%s1651 + $0x20] sm:$0xff]
  %v1657 = vld [vmem:[%s1651 + $0x28] sm:$0xff]
  %v1658 = vld [vmem:[%s1651 + $0x30] sm:$0xff]
  %v1659 = vld [vmem:[%s1651 + $0x38] sm:$0xff]
  %v1660 = vld [vmem:[%s1651 + $0x40] sm:$0xff]
  %v1661 = vld [vmem:[%s1651 + $0x48] sm:$0xff]
  %v1662 = vld [vmem:[%s1651 + $0x50] sm:$0xff]
  %v1663 = vld [vmem:[%s1651 + $0x58] sm:$0xff]
  %v1664 = vld [vmem:[%s1651 + $0x60] sm:$0xff]
  %v1665 = vld [vmem:[%s1651 + $0x68] sm:$0xff]
  %v1666 = vld [vmem:[%s1651 + $0x70] sm:$0xff]
  %v1667 = vld [vmem:[%s1651 + $0x78] sm:$0xff]
  %v1668 = vld [vmem:[%s1651 + $0x80] sm:$0xff]
  %v1669 = vld [vmem:[%s1651 + $0x88] sm:$0xff]
  %v1670 = vld [vmem:[%s1651 + $0x90] sm:$0xff]
  %v1671 = vld [vmem:[%s1651 + $0x98] sm:$0xff]
  %v1672 = vld [vmem:[%s1651 + $0xa0] sm:$0xff]
  %v1673 = vld [vmem:[%s1651 + $0xa8] sm:$0xff]
  %v1674 = vld [vmem:[%s1651 + $0xb0] sm:$0xff]
  %v1675 = vld [vmem:[%s1651 + $0xb8] sm:$0xff]
  %v1676 = vld [vmem:[%s1651 + $0xc0] sm:$0xff]
  %v1677 = vld [vmem:[%s1651 + $0xc8] sm:$0xff]
  %v1678 = vld [vmem:[%s1651 + $0xd0] sm:$0xff]
  %v1679 = vld [vmem:[%s1651 + $0xd8] sm:$0xff]
  %v1680 = vld [vmem:[%s1651 + $0xe0] sm:$0xff]
  %v1681 = vld [vmem:[%s1651 + $0xe8] sm:$0xff]
  %v1682 = vld [vmem:[%s1651 + $0xf0] sm:$0xff]
  %v1683 = vld [vmem:[%s1651 + $0xf8] sm:$0xff]
  %v1684 = vld [vmem:[%s1651 + $0x100] sm:$0xff]
  %v1685 = vld [vmem:[%s1651 + $0x108] sm:$0xff]
  %v1686 = vld [vmem:[%s1651 + $0x110] sm:$0xff]
  %v1687 = vld [vmem:[%s1651 + $0x118] sm:$0xff]
  %v1688 = vld [vmem:[%s1651 + $0x120] sm:$0xff]
  %v1689 = vld [vmem:[%s1651 + $0x128] sm:$0xff]
  %v1690 = vld [vmem:[%s1651 + $0x130] sm:$0xff]
  %v1691 = vld [vmem:[%s1651 + $0x138] sm:$0xff]
  %v1692 = vld [vmem:[%s1651 + $0x140] sm:$0xff]
  %v1693 = vld [vmem:[%s1651 + $0x148] sm:$0xff]
  %v1694 = vld [vmem:[%s1651 + $0x150] sm:$0xff]
  %v1695 = vld [vmem:[%s1651 + $0x158] sm:$0xff]
  %v1696 = vld [vmem:[%s1651 + $0x160] sm:$0xff]
  %v1697 = vld [vmem:[%s1651 + $0x168] sm:$0xff]
  %v1698 = vld [vmem:[%s1651 + $0x170] sm:$0xff]
  %v1699 = vld [vmem:[%s1651 + $0x178] sm:$0xff]
  %v1700 = vld [vmem:[%s1651 + $0x180] sm:$0xff]
  %v1701 = vld [vmem:[%s1651 + $0x188] sm:$0xff]
  %v1702 = vld [vmem:[%s1651 + $0x190] sm:$0xff]
  %v1703 = vld [vmem:[%s1651 + $0x198] sm:$0xff]
  %v1704 = vld [vmem:[%s1651 + $0x1a0] sm:$0xff]
  %v1705 = vld [vmem:[%s1651 + $0x1a8] sm:$0xff]
  %v1706 = vld [vmem:[%s1651 + $0x1b0] sm:$0xff]
  %v1707 = vld [vmem:[%s1651 + $0x1b8] sm:$0xff]
  %v1708 = vld [vmem:[%s1651 + $0x1c0] sm:$0xff]
  %v1709 = vld [vmem:[%s1651 + $0x1c8] sm:$0xff]
  %v1710 = vld [vmem:[%s1651 + $0x1d0] sm:$0xff]
  %v1711 = vld [vmem:[%s1651 + $0x1d8] sm:$0xff]
  %v1712 = vld [vmem:[%s1651 + $0x1e0] sm:$0xff]
  %v1713 = vld [vmem:[%s1651 + $0x1e8] sm:$0xff]
  %v1714 = vld [vmem:[%s1651 + $0x1f0] sm:$0xff]
  %v1715 = vld [vmem:[%s1651 + $0x1f8] sm:$0xff]
  %v1716 = vrot.slane %v451, 5
  %v1717 = vrot.slane %v453, 5
  %v1718 = vrot.slane %v494, 5
  %v1719 = vrot.slane %v496, 5
  %1724 = vmatprep.subr.mxu0 0.0
  %1725 = vmatpush1.msra.mxu0 %v1667
  %1726 = vmatprep.subr.mxu0 0.0
  %1727 = vmatpush1.msra.mxu0 %v1666
  %1728 = vmatprep.subr.mxu0 0.0
  %1729 = vmatpush1.msra.mxu0 %v1665
  %1730 = vmatprep.subr.mxu0 0.0
  %1731 = vmatpush1.msra.mxu0 %v1664
  %1732 = vmatprep.subr.mxu0 0.0
  %1733 = vmatpush1.msra.mxu0 %v1663
  %1734 = vmatprep.subr.mxu0 0.0
  %1735 = vmatpush1.msra.mxu0 %v1662
  %1736 = vmatprep.subr.mxu0 0.0
  %1737 = vmatpush1.msra.mxu0 %v1661
  %1738 = vmatprep.subr.mxu0 0.0
  %1739 = vmatpush1.msra.mxu0 %v1660
  %1740 = vmatprep.subr.mxu0 0.0
  %1741 = vmatpush1.msra.mxu0 %v1659
  %1742 = vmatprep.subr.mxu0 0.0
  %1743 = vmatpush1.msra.mxu0 %v1658
  %1744 = vmatprep.subr.mxu0 0.0
  %1745 = vmatpush1.msra.mxu0 %v1657
  %1746 = vmatprep.subr.mxu0 0.0
  %1747 = vmatpush1.msra.mxu0 %v1656
  %1748 = vmatprep.subr.mxu0 0.0
  %1749 = vmatpush1.msra.mxu0 %v1655
  %1750 = vmatprep.subr.mxu0 0.0
  %1751 = vmatpush1.msra.mxu0 %v1654
  %1752 = vmatprep.subr.mxu0 0.0
  %1753 = vmatpush1.msra.mxu0 %v1653
  %1754 = vmatprep.subr.mxu0 0.0
  %1755 = vmatpush1.msra.mxu0 %v1652
  %1756 = vmatprep.subr.mxu0 0.0
  %1757 = vmatpush2.msra.mxu0 %v1683
  %1758 = vmatprep.subr.mxu0 0.0
  %1759 = vmatpush2.msra.mxu0 %v1682
  %1760 = vmatprep.subr.mxu0 0.0
  %1761 = vmatpush2.msra.mxu0 %v1681
  %1762 = vmatprep.subr.mxu0 0.0
  %1763 = vmatpush2.msra.mxu0 %v1680
  %1764 = vmatprep.subr.mxu0 0.0
  %1765 = vmatpush2.msra.mxu0 %v1679
  %1766 = vmatprep.subr.mxu0 0.0
  %1767 = vmatpush2.msra.mxu0 %v1678
  %1768 = vmatprep.subr.mxu0 0.0
  %1769 = vmatpush2.msra.mxu0 %v1677
  %1770 = vmatprep.subr.mxu0 0.0
  %1771 = vmatpush2.msra.mxu0 %v1676
  %1772 = vmatprep.subr.mxu0 0.0
  %1773 = vmatpush2.msra.mxu0 %v1675
  %1774 = vmatprep.subr.mxu0 0.0
  %1775 = vmatpush2.msra.mxu0 %v1674
  %1776 = vmatprep.subr.mxu0 0.0
  %1777 = vmatpush2.msra.mxu0 %v1673
  %1778 = vmatprep.subr.mxu0 0.0
  %1779 = vmatpush2.msra.mxu0 %v1672
  %1780 = vmatprep.subr.mxu0 0.0
  %1781 = vmatpush2.msra.mxu0 %v1671
  %1782 = vmatprep.subr.mxu0 0.0
  %1783 = vmatpush2.msra.mxu0 %v1670
  %1784 = vmatprep.subr.mxu0 0.0
  %1785 = vmatpush2.msra.mxu0 %v1669
  %1786 = vmatprep.subr.mxu0 0.0
  %1787 = vmatpush2.msra.mxu0 %v1668
  %1788 = vmatprep.mubr.f32.mxu0 %v1717
  %1789 = vmatmul.mubr.f32.gmra.mxu0 %v1716
  %v1790 = vpop.f32.mrf.mxu0
  %v1791 = vadd.f32 0.0, %v1790
  %v1792 = vpop.f32.mrf.mxu0
  %1793 = vdwg.mxu0
  %1794 = vmatprep.subr.mxu0 0.0
  %1795 = vmatpush1.msra.mxu0 %v1699
  %1796 = vmatprep.subr.mxu0 0.0
  %1797 = vmatpush1.msra.mxu0 %v1698
  %1798 = vmatprep.subr.mxu0 0.0
  %1799 = vmatpush1.msra.mxu0 %v1697
  %1800 = vmatprep.subr.mxu0 0.0
  %1801 = vmatpush1.msra.mxu0 %v1696
  %1802 = vmatprep.subr.mxu0 0.0
  %1803 = vmatpush1.msra.mxu0 %v1695
  %1804 = vmatprep.subr.mxu0 0.0
  %1805 = vmatpush1.msra.mxu0 %v1694
  %1806 = vmatprep.subr.mxu0 0.0
  %1807 = vmatpush1.msra.mxu0 %v1693
  %1808 = vmatprep.subr.mxu0 0.0
  %1809 = vmatpush1.msra.mxu0 %v1692
  %1810 = vmatprep.subr.mxu0 0.0
  %1811 = vmatpush1.msra.mxu0 %v1691
  %1812 = vmatprep.subr.mxu0 0.0
  %1813 = vmatpush1.msra.mxu0 %v1690
  %1814 = vmatprep.subr.mxu0 0.0
  %1815 = vmatpush1.msra.mxu0 %v1689
  %1816 = vmatprep.subr.mxu0 0.0
  %1817 = vmatpush1.msra.mxu0 %v1688
  %1818 = vmatprep.subr.mxu0 0.0
  %1819 = vmatpush1.msra.mxu0 %v1687
  %1820 = vmatprep.subr.mxu0 0.0
  %1821 = vmatpush1.msra.mxu0 %v1686
  %1822 = vmatprep.subr.mxu0 0.0
  %1823 = vmatpush1.msra.mxu0 %v1685
  %1824 = vmatprep.subr.mxu0 0.0
  %1825 = vmatpush1.msra.mxu0 %v1684
  %1826 = vmatprep.subr.mxu0 0.0
  %1827 = vmatpush2.msra.mxu0 %v1715
  %1828 = vmatprep.subr.mxu0 0.0
  %1829 = vmatpush2.msra.mxu0 %v1714
  %1830 = vmatprep.subr.mxu0 0.0
  %1831 = vmatpush2.msra.mxu0 %v1713
  %1832 = vmatprep.subr.mxu0 0.0
  %1833 = vmatpush2.msra.mxu0 %v1712
  %1834 = vmatprep.subr.mxu0 0.0
  %1835 = vmatpush2.msra.mxu0 %v1711
  %1836 = vmatprep.subr.mxu0 0.0
  %1837 = vmatpush2.msra.mxu0 %v1710
  %1838 = vmatprep.subr.mxu0 0.0
  %1839 = vmatpush2.msra.mxu0 %v1709
  %1840 = vmatprep.subr.mxu0 0.0
  %1841 = vmatpush2.msra.mxu0 %v1708
  %1842 = vmatprep.subr.mxu0 0.0
  %1843 = vmatpush2.msra.mxu0 %v1707
  %1844 = vmatprep.subr.mxu0 0.0
  %1845 = vmatpush2.msra.mxu0 %v1706
  %1846 = vmatprep.subr.mxu0 0.0
  %1847 = vmatpush2.msra.mxu0 %v1705
  %1848 = vmatprep.subr.mxu0 0.0
  %1849 = vmatpush2.msra.mxu0 %v1704
  %1850 = vmatprep.subr.mxu0 0.0
  %1851 = vmatpush2.msra.mxu0 %v1703
  %1852 = vmatprep.subr.mxu0 0.0
  %1853 = vmatpush2.msra.mxu0 %v1702
  %1854 = vmatprep.subr.mxu0 0.0
  %1855 = vmatpush2.msra.mxu0 %v1701
  %1856 = vmatprep.subr.mxu0 0.0
  %1857 = vmatpush2.msra.mxu0 %v1700
  %1858 = vmatprep.mubr.f32.mxu0 %v1719
  %1859 = vmatmul.mubr.f32.gmra.mxu0 %v1718
  %v1860 = vpop.f32.mrf.mxu0
  %v1861 = vadd.f32 %v1791, %v1860
  %v1862 = vpop.f32.mrf.mxu0
  %1863 = vdwg.mxu0
  %v1864 = vadd.f32 %v1650, %v1861
  %s1865 = scalar_lea.vmem %s2, 3072
  %v1866 = vld [vmem:[%s1865] sm:$0xff]
  %v1867 = vld [vmem:[%s1865 + $0x8] sm:$0xff]
  %v1868 = vld [vmem:[%s1865 + $0x10] sm:$0xff]
  %v1869 = vld [vmem:[%s1865 + $0x18] sm:$0xff]
  %v1870 = vld [vmem:[%s1865 + $0x20] sm:$0xff]
  %v1871 = vld [vmem:[%s1865 + $0x28] sm:$0xff]
  %v1872 = vld [vmem:[%s1865 + $0x30] sm:$0xff]
  %v1873 = vld [vmem:[%s1865 + $0x38] sm:$0xff]
  %v1874 = vld [vmem:[%s1865 + $0x40] sm:$0xff]
  %v1875 = vld [vmem:[%s1865 + $0x48] sm:$0xff]
  %v1876 = vld [vmem:[%s1865 + $0x50] sm:$0xff]
  %v1877 = vld [vmem:[%s1865 + $0x58] sm:$0xff]
  %v1878 = vld [vmem:[%s1865 + $0x60] sm:$0xff]
  %v1879 = vld [vmem:[%s1865 + $0x68] sm:$0xff]
  %v1880 = vld [vmem:[%s1865 + $0x70] sm:$0xff]
  %v1881 = vld [vmem:[%s1865 + $0x78] sm:$0xff]
  %v1882 = vld [vmem:[%s1865 + $0x80] sm:$0xff]
  %v1883 = vld [vmem:[%s1865 + $0x88] sm:$0xff]
  %v1884 = vld [vmem:[%s1865 + $0x90] sm:$0xff]
  %v1885 = vld [vmem:[%s1865 + $0x98] sm:$0xff]
  %v1886 = vld [vmem:[%s1865 + $0xa0] sm:$0xff]
  %v1887 = vld [vmem:[%s1865 + $0xa8] sm:$0xff]
  %v1888 = vld [vmem:[%s1865 + $0xb0] sm:$0xff]
  %v1889 = vld [vmem:[%s1865 + $0xb8] sm:$0xff]
  %v1890 = vld [vmem:[%s1865 + $0xc0] sm:$0xff]
  %v1891 = vld [vmem:[%s1865 + $0xc8] sm:$0xff]
  %v1892 = vld [vmem:[%s1865 + $0xd0] sm:$0xff]
  %v1893 = vld [vmem:[%s1865 + $0xd8] sm:$0xff]
  %v1894 = vld [vmem:[%s1865 + $0xe0] sm:$0xff]
  %v1895 = vld [vmem:[%s1865 + $0xe8] sm:$0xff]
  %v1896 = vld [vmem:[%s1865 + $0xf0] sm:$0xff]
  %v1897 = vld [vmem:[%s1865 + $0xf8] sm:$0xff]
  %v1898 = vld [vmem:[%s1865 + $0x100] sm:$0xff]
  %v1899 = vld [vmem:[%s1865 + $0x108] sm:$0xff]
  %v1900 = vld [vmem:[%s1865 + $0x110] sm:$0xff]
  %v1901 = vld [vmem:[%s1865 + $0x118] sm:$0xff]
  %v1902 = vld [vmem:[%s1865 + $0x120] sm:$0xff]
  %v1903 = vld [vmem:[%s1865 + $0x128] sm:$0xff]
  %v1904 = vld [vmem:[%s1865 + $0x130] sm:$0xff]
  %v1905 = vld [vmem:[%s1865 + $0x138] sm:$0xff]
  %v1906 = vld [vmem:[%s1865 + $0x140] sm:$0xff]
  %v1907 = vld [vmem:[%s1865 + $0x148] sm:$0xff]
  %v1908 = vld [vmem:[%s1865 + $0x150] sm:$0xff]
  %v1909 = vld [vmem:[%s1865 + $0x158] sm:$0xff]
  %v1910 = vld [vmem:[%s1865 + $0x160] sm:$0xff]
  %v1911 = vld [vmem:[%s1865 + $0x168] sm:$0xff]
  %v1912 = vld [vmem:[%s1865 + $0x170] sm:$0xff]
  %v1913 = vld [vmem:[%s1865 + $0x178] sm:$0xff]
  %v1914 = vld [vmem:[%s1865 + $0x180] sm:$0xff]
  %v1915 = vld [vmem:[%s1865 + $0x188] sm:$0xff]
  %v1916 = vld [vmem:[%s1865 + $0x190] sm:$0xff]
  %v1917 = vld [vmem:[%s1865 + $0x198] sm:$0xff]
  %v1918 = vld [vmem:[%s1865 + $0x1a0] sm:$0xff]
  %v1919 = vld [vmem:[%s1865 + $0x1a8] sm:$0xff]
  %v1920 = vld [vmem:[%s1865 + $0x1b0] sm:$0xff]
  %v1921 = vld [vmem:[%s1865 + $0x1b8] sm:$0xff]
  %v1922 = vld [vmem:[%s1865 + $0x1c0] sm:$0xff]
  %v1923 = vld [vmem:[%s1865 + $0x1c8] sm:$0xff]
  %v1924 = vld [vmem:[%s1865 + $0x1d0] sm:$0xff]
  %v1925 = vld [vmem:[%s1865 + $0x1d8] sm:$0xff]
  %v1926 = vld [vmem:[%s1865 + $0x1e0] sm:$0xff]
  %v1927 = vld [vmem:[%s1865 + $0x1e8] sm:$0xff]
  %v1928 = vld [vmem:[%s1865 + $0x1f0] sm:$0xff]
  %v1929 = vld [vmem:[%s1865 + $0x1f8] sm:$0xff]
  %v1930 = vrot.slane %v451, 6
  %v1931 = vrot.slane %v453, 6
  %v1932 = vrot.slane %v494, 6
  %v1933 = vrot.slane %v496, 6
  %1938 = vmatprep.subr.mxu0 0.0
  %1939 = vmatpush1.msra.mxu0 %v1881
  %1940 = vmatprep.subr.mxu0 0.0
  %1941 = vmatpush1.msra.mxu0 %v1880
  %1942 = vmatprep.subr.mxu0 0.0
  %1943 = vmatpush1.msra.mxu0 %v1879
  %1944 = vmatprep.subr.mxu0 0.0
  %1945 = vmatpush1.msra.mxu0 %v1878
  %1946 = vmatprep.subr.mxu0 0.0
  %1947 = vmatpush1.msra.mxu0 %v1877
  %1948 = vmatprep.subr.mxu0 0.0
  %1949 = vmatpush1.msra.mxu0 %v1876
  %1950 = vmatprep.subr.mxu0 0.0
  %1951 = vmatpush1.msra.mxu0 %v1875
  %1952 = vmatprep.subr.mxu0 0.0
  %1953 = vmatpush1.msra.mxu0 %v1874
  %1954 = vmatprep.subr.mxu0 0.0
  %1955 = vmatpush1.msra.mxu0 %v1873
  %1956 = vmatprep.subr.mxu0 0.0
  %1957 = vmatpush1.msra.mxu0 %v1872
  %1958 = vmatprep.subr.mxu0 0.0
  %1959 = vmatpush1.msra.mxu0 %v1871
  %1960 = vmatprep.subr.mxu0 0.0
  %1961 = vmatpush1.msra.mxu0 %v1870
  %1962 = vmatprep.subr.mxu0 0.0
  %1963 = vmatpush1.msra.mxu0 %v1869
  %1964 = vmatprep.subr.mxu0 0.0
  %1965 = vmatpush1.msra.mxu0 %v1868
  %1966 = vmatprep.subr.mxu0 0.0
  %1967 = vmatpush1.msra.mxu0 %v1867
  %1968 = vmatprep.subr.mxu0 0.0
  %1969 = vmatpush1.msra.mxu0 %v1866
  %1970 = vmatprep.subr.mxu0 0.0
  %1971 = vmatpush2.msra.mxu0 %v1897
  %1972 = vmatprep.subr.mxu0 0.0
  %1973 = vmatpush2.msra.mxu0 %v1896
  %1974 = vmatprep.subr.mxu0 0.0
  %1975 = vmatpush2.msra.mxu0 %v1895
  %1976 = vmatprep.subr.mxu0 0.0
  %1977 = vmatpush2.msra.mxu0 %v1894
  %1978 = vmatprep.subr.mxu0 0.0
  %1979 = vmatpush2.msra.mxu0 %v1893
  %1980 = vmatprep.subr.mxu0 0.0
  %1981 = vmatpush2.msra.mxu0 %v1892
  %1982 = vmatprep.subr.mxu0 0.0
  %1983 = vmatpush2.msra.mxu0 %v1891
  %1984 = vmatprep.subr.mxu0 0.0
  %1985 = vmatpush2.msra.mxu0 %v1890
  %1986 = vmatprep.subr.mxu0 0.0
  %1987 = vmatpush2.msra.mxu0 %v1889
  %1988 = vmatprep.subr.mxu0 0.0
  %1989 = vmatpush2.msra.mxu0 %v1888
  %1990 = vmatprep.subr.mxu0 0.0
  %1991 = vmatpush2.msra.mxu0 %v1887
  %1992 = vmatprep.subr.mxu0 0.0
  %1993 = vmatpush2.msra.mxu0 %v1886
  %1994 = vmatprep.subr.mxu0 0.0
  %1995 = vmatpush2.msra.mxu0 %v1885
  %1996 = vmatprep.subr.mxu0 0.0
  %1997 = vmatpush2.msra.mxu0 %v1884
  %1998 = vmatprep.subr.mxu0 0.0
  %1999 = vmatpush2.msra.mxu0 %v1883
  %2000 = vmatprep.subr.mxu0 0.0
  %2001 = vmatpush2.msra.mxu0 %v1882
  %2002 = vmatprep.mubr.f32.mxu0 %v1931
  %2003 = vmatmul.mubr.f32.gmra.mxu0 %v1930
  %v2004 = vpop.f32.mrf.mxu0
  %v2005 = vadd.f32 0.0, %v2004
  %v2006 = vpop.f32.mrf.mxu0
  %2007 = vdwg.mxu0
  %2008 = vmatprep.subr.mxu0 0.0
  %2009 = vmatpush1.msra.mxu0 %v1913
  %2010 = vmatprep.subr.mxu0 0.0
  %2011 = vmatpush1.msra.mxu0 %v1912
  %2012 = vmatprep.subr.mxu0 0.0
  %2013 = vmatpush1.msra.mxu0 %v1911
  %2014 = vmatprep.subr.mxu0 0.0
  %2015 = vmatpush1.msra.mxu0 %v1910
  %2016 = vmatprep.subr.mxu0 0.0
  %2017 = vmatpush1.msra.mxu0 %v1909
  %2018 = vmatprep.subr.mxu0 0.0
  %2019 = vmatpush1.msra.mxu0 %v1908
  %2020 = vmatprep.subr.mxu0 0.0
  %2021 = vmatpush1.msra.mxu0 %v1907
  %2022 = vmatprep.subr.mxu0 0.0
  %2023 = vmatpush1.msra.mxu0 %v1906
  %2024 = vmatprep.subr.mxu0 0.0
  %2025 = vmatpush1.msra.mxu0 %v1905
  %2026 = vmatprep.subr.mxu0 0.0
  %2027 = vmatpush1.msra.mxu0 %v1904
  %2028 = vmatprep.subr.mxu0 0.0
  %2029 = vmatpush1.msra.mxu0 %v1903
  %2030 = vmatprep.subr.mxu0 0.0
  %2031 = vmatpush1.msra.mxu0 %v1902
  %2032 = vmatprep.subr.mxu0 0.0
  %2033 = vmatpush1.msra.mxu0 %v1901
  %2034 = vmatprep.subr.mxu0 0.0
  %2035 = vmatpush1.msra.mxu0 %v1900
  %2036 = vmatprep.subr.mxu0 0.0
  %2037 = vmatpush1.msra.mxu0 %v1899
  %2038 = vmatprep.subr.mxu0 0.0
  %2039 = vmatpush1.msra.mxu0 %v1898
  %2040 = vmatprep.subr.mxu0 0.0
  %2041 = vmatpush2.msra.mxu0 %v1929
  %2042 = vmatprep.subr.mxu0 0.0
  %2043 = vmatpush2.msra.mxu0 %v1928
  %2044 = vmatprep.subr.mxu0 0.0
  %2045 = vmatpush2.msra.mxu0 %v1927
  %2046 = vmatprep.subr.mxu0 0.0
  %2047 = vmatpush2.msra.mxu0 %v1926
  %2048 = vmatprep.subr.mxu0 0.0
  %2049 = vmatpush2.msra.mxu0 %v1925
  %2050 = vmatprep.subr.mxu0 0.0
  %2051 = vmatpush2.msra.mxu0 %v1924
  %2052 = vmatprep.subr.mxu0 0.0
  %2053 = vmatpush2.msra.mxu0 %v1923
  %2054 = vmatprep.subr.mxu0 0.0
  %2055 = vmatpush2.msra.mxu0 %v1922
  %2056 = vmatprep.subr.mxu0 0.0
  %2057 = vmatpush2.msra.mxu0 %v1921
  %2058 = vmatprep.subr.mxu0 0.0
  %2059 = vmatpush2.msra.mxu0 %v1920
  %2060 = vmatprep.subr.mxu0 0.0
  %2061 = vmatpush2.msra.mxu0 %v1919
  %2062 = vmatprep.subr.mxu0 0.0
  %2063 = vmatpush2.msra.mxu0 %v1918
  %2064 = vmatprep.subr.mxu0 0.0
  %2065 = vmatpush2.msra.mxu0 %v1917
  %2066 = vmatprep.subr.mxu0 0.0
  %2067 = vmatpush2.msra.mxu0 %v1916
  %2068 = vmatprep.subr.mxu0 0.0
  %2069 = vmatpush2.msra.mxu0 %v1915
  %2070 = vmatprep.subr.mxu0 0.0
  %2071 = vmatpush2.msra.mxu0 %v1914
  %2072 = vmatprep.mubr.f32.mxu0 %v1933
  %2073 = vmatmul.mubr.f32.gmra.mxu0 %v1932
  %v2074 = vpop.f32.mrf.mxu0
  %v2075 = vadd.f32 %v2005, %v2074
  %v2076 = vpop.f32.mrf.mxu0
  %2077 = vdwg.mxu0
  %v2078 = vadd.f32 %v1864, %v2075
  %s2079 = scalar_lea.vmem %s2, 3584
  %v2080 = vld [vmem:[%s2079] sm:$0xff]
  %v2081 = vld [vmem:[%s2079 + $0x8] sm:$0xff]
  %v2082 = vld [vmem:[%s2079 + $0x10] sm:$0xff]
  %v2083 = vld [vmem:[%s2079 + $0x18] sm:$0xff]
  %v2084 = vld [vmem:[%s2079 + $0x20] sm:$0xff]
  %v2085 = vld [vmem:[%s2079 + $0x28] sm:$0xff]
  %v2086 = vld [vmem:[%s2079 + $0x30] sm:$0xff]
  %v2087 = vld [vmem:[%s2079 + $0x38] sm:$0xff]
  %v2088 = vld [vmem:[%s2079 + $0x40] sm:$0xff]
  %v2089 = vld [vmem:[%s2079 + $0x48] sm:$0xff]
  %v2090 = vld [vmem:[%s2079 + $0x50] sm:$0xff]
  %v2091 = vld [vmem:[%s2079 + $0x58] sm:$0xff]
  %v2092 = vld [vmem:[%s2079 + $0x60] sm:$0xff]
  %v2093 = vld [vmem:[%s2079 + $0x68] sm:$0xff]
  %v2094 = vld [vmem:[%s2079 + $0x70] sm:$0xff]
  %v2095 = vld [vmem:[%s2079 + $0x78] sm:$0xff]
  %v2096 = vld [vmem:[%s2079 + $0x80] sm:$0xff]
  %v2097 = vld [vmem:[%s2079 + $0x88] sm:$0xff]
  %v2098 = vld [vmem:[%s2079 + $0x90] sm:$0xff]
  %v2099 = vld [vmem:[%s2079 + $0x98] sm:$0xff]
  %v2100 = vld [vmem:[%s2079 + $0xa0] sm:$0xff]
  %v2101 = vld [vmem:[%s2079 + $0xa8] sm:$0xff]
  %v2102 = vld [vmem:[%s2079 + $0xb0] sm:$0xff]
  %v2103 = vld [vmem:[%s2079 + $0xb8] sm:$0xff]
  %v2104 = vld [vmem:[%s2079 + $0xc0] sm:$0xff]
  %v2105 = vld [vmem:[%s2079 + $0xc8] sm:$0xff]
  %v2106 = vld [vmem:[%s2079 + $0xd0] sm:$0xff]
  %v2107 = vld [vmem:[%s2079 + $0xd8] sm:$0xff]
  %v2108 = vld [vmem:[%s2079 + $0xe0] sm:$0xff]
  %v2109 = vld [vmem:[%s2079 + $0xe8] sm:$0xff]
  %v2110 = vld [vmem:[%s2079 + $0xf0] sm:$0xff]
  %v2111 = vld [vmem:[%s2079 + $0xf8] sm:$0xff]
  %v2112 = vld [vmem:[%s2079 + $0x100] sm:$0xff]
  %v2113 = vld [vmem:[%s2079 + $0x108] sm:$0xff]
  %v2114 = vld [vmem:[%s2079 + $0x110] sm:$0xff]
  %v2115 = vld [vmem:[%s2079 + $0x118] sm:$0xff]
  %v2116 = vld [vmem:[%s2079 + $0x120] sm:$0xff]
  %v2117 = vld [vmem:[%s2079 + $0x128] sm:$0xff]
  %v2118 = vld [vmem:[%s2079 + $0x130] sm:$0xff]
  %v2119 = vld [vmem:[%s2079 + $0x138] sm:$0xff]
  %v2120 = vld [vmem:[%s2079 + $0x140] sm:$0xff]
  %v2121 = vld [vmem:[%s2079 + $0x148] sm:$0xff]
  %v2122 = vld [vmem:[%s2079 + $0x150] sm:$0xff]
  %v2123 = vld [vmem:[%s2079 + $0x158] sm:$0xff]
  %v2124 = vld [vmem:[%s2079 + $0x160] sm:$0xff]
  %v2125 = vld [vmem:[%s2079 + $0x168] sm:$0xff]
  %v2126 = vld [vmem:[%s2079 + $0x170] sm:$0xff]
  %v2127 = vld [vmem:[%s2079 + $0x178] sm:$0xff]
  %v2128 = vld [vmem:[%s2079 + $0x180] sm:$0xff]
  %v2129 = vld [vmem:[%s2079 + $0x188] sm:$0xff]
  %v2130 = vld [vmem:[%s2079 + $0x190] sm:$0xff]
  %v2131 = vld [vmem:[%s2079 + $0x198] sm:$0xff]
  %v2132 = vld [vmem:[%s2079 + $0x1a0] sm:$0xff]
  %v2133 = vld [vmem:[%s2079 + $0x1a8] sm:$0xff]
  %v2134 = vld [vmem:[%s2079 + $0x1b0] sm:$0xff]
  %v2135 = vld [vmem:[%s2079 + $0x1b8] sm:$0xff]
  %v2136 = vld [vmem:[%s2079 + $0x1c0] sm:$0xff]
  %v2137 = vld [vmem:[%s2079 + $0x1c8] sm:$0xff]
  %v2138 = vld [vmem:[%s2079 + $0x1d0] sm:$0xff]
  %v2139 = vld [vmem:[%s2079 + $0x1d8] sm:$0xff]
  %v2140 = vld [vmem:[%s2079 + $0x1e0] sm:$0xff]
  %v2141 = vld [vmem:[%s2079 + $0x1e8] sm:$0xff]
  %v2142 = vld [vmem:[%s2079 + $0x1f0] sm:$0xff]
  %v2143 = vld [vmem:[%s2079 + $0x1f8] sm:$0xff]
  %v2144 = vrot.slane %v451, 7
  %v2145 = vrot.slane %v453, 7
  %v2146 = vrot.slane %v494, 7
  %v2147 = vrot.slane %v496, 7
  %2152 = vmatprep.subr.mxu0 0.0
  %2153 = vmatpush1.msra.mxu0 %v2095
  %2154 = vmatprep.subr.mxu0 0.0
  %2155 = vmatpush1.msra.mxu0 %v2094
  %2156 = vmatprep.subr.mxu0 0.0
  %2157 = vmatpush1.msra.mxu0 %v2093
  %2158 = vmatprep.subr.mxu0 0.0
  %2159 = vmatpush1.msra.mxu0 %v2092
  %2160 = vmatprep.subr.mxu0 0.0
  %2161 = vmatpush1.msra.mxu0 %v2091
  %2162 = vmatprep.subr.mxu0 0.0
  %2163 = vmatpush1.msra.mxu0 %v2090
  %2164 = vmatprep.subr.mxu0 0.0
  %2165 = vmatpush1.msra.mxu0 %v2089
  %2166 = vmatprep.subr.mxu0 0.0
  %2167 = vmatpush1.msra.mxu0 %v2088
  %2168 = vmatprep.subr.mxu0 0.0
  %2169 = vmatpush1.msra.mxu0 %v2087
  %2170 = vmatprep.subr.mxu0 0.0
  %2171 = vmatpush1.msra.mxu0 %v2086
  %2172 = vmatprep.subr.mxu0 0.0
  %2173 = vmatpush1.msra.mxu0 %v2085
  %2174 = vmatprep.subr.mxu0 0.0
  %2175 = vmatpush1.msra.mxu0 %v2084
  %2176 = vmatprep.subr.mxu0 0.0
  %2177 = vmatpush1.msra.mxu0 %v2083
  %2178 = vmatprep.subr.mxu0 0.0
  %2179 = vmatpush1.msra.mxu0 %v2082
  %2180 = vmatprep.subr.mxu0 0.0
  %2181 = vmatpush1.msra.mxu0 %v2081
  %2182 = vmatprep.subr.mxu0 0.0
  %2183 = vmatpush1.msra.mxu0 %v2080
  %2184 = vmatprep.subr.mxu0 0.0
  %2185 = vmatpush2.msra.mxu0 %v2111
  %2186 = vmatprep.subr.mxu0 0.0
  %2187 = vmatpush2.msra.mxu0 %v2110
  %2188 = vmatprep.subr.mxu0 0.0
  %2189 = vmatpush2.msra.mxu0 %v2109
  %2190 = vmatprep.subr.mxu0 0.0
  %2191 = vmatpush2.msra.mxu0 %v2108
  %2192 = vmatprep.subr.mxu0 0.0
  %2193 = vmatpush2.msra.mxu0 %v2107
  %2194 = vmatprep.subr.mxu0 0.0
  %2195 = vmatpush2.msra.mxu0 %v2106
  %2196 = vmatprep.subr.mxu0 0.0
  %2197 = vmatpush2.msra.mxu0 %v2105
  %2198 = vmatprep.subr.mxu0 0.0
  %2199 = vmatpush2.msra.mxu0 %v2104
  %2200 = vmatprep.subr.mxu0 0.0
  %2201 = vmatpush2.msra.mxu0 %v2103
  %2202 = vmatprep.subr.mxu0 0.0
  %2203 = vmatpush2.msra.mxu0 %v2102
  %2204 = vmatprep.subr.mxu0 0.0
  %2205 = vmatpush2.msra.mxu0 %v2101
  %2206 = vmatprep.subr.mxu0 0.0
  %2207 = vmatpush2.msra.mxu0 %v2100
  %2208 = vmatprep.subr.mxu0 0.0
  %2209 = vmatpush2.msra.mxu0 %v2099
  %2210 = vmatprep.subr.mxu0 0.0
  %2211 = vmatpush2.msra.mxu0 %v2098
  %2212 = vmatprep.subr.mxu0 0.0
  %2213 = vmatpush2.msra.mxu0 %v2097
  %2214 = vmatprep.subr.mxu0 0.0
  %2215 = vmatpush2.msra.mxu0 %v2096
  %2216 = vmatprep.mubr.f32.mxu0 %v2145
  %2217 = vmatmul.mubr.f32.gmra.mxu0 %v2144
  %v2218 = vpop.f32.mrf.mxu0
  %v2219 = vadd.f32 0.0, %v2218
  %v2220 = vpop.f32.mrf.mxu0
  %2221 = vdwg.mxu0
  %2222 = vmatprep.subr.mxu0 0.0
  %2223 = vmatpush1.msra.mxu0 %v2127
  %2224 = vmatprep.subr.mxu0 0.0
  %2225 = vmatpush1.msra.mxu0 %v2126
  %2226 = vmatprep.subr.mxu0 0.0
  %2227 = vmatpush1.msra.mxu0 %v2125
  %2228 = vmatprep.subr.mxu0 0.0
  %2229 = vmatpush1.msra.mxu0 %v2124
  %2230 = vmatprep.subr.mxu0 0.0
  %2231 = vmatpush1.msra.mxu0 %v2123
  %2232 = vmatprep.subr.mxu0 0.0
  %2233 = vmatpush1.msra.mxu0 %v2122
  %2234 = vmatprep.subr.mxu0 0.0
  %2235 = vmatpush1.msra.mxu0 %v2121
  %2236 = vmatprep.subr.mxu0 0.0
  %2237 = vmatpush1.msra.mxu0 %v2120
  %2238 = vmatprep.subr.mxu0 0.0
  %2239 = vmatpush1.msra.mxu0 %v2119
  %2240 = vmatprep.subr.mxu0 0.0
  %2241 = vmatpush1.msra.mxu0 %v2118
  %2242 = vmatprep.subr.mxu0 0.0
  %2243 = vmatpush1.msra.mxu0 %v2117
  %2244 = vmatprep.subr.mxu0 0.0
  %2245 = vmatpush1.msra.mxu0 %v2116
  %2246 = vmatprep.subr.mxu0 0.0
  %2247 = vmatpush1.msra.mxu0 %v2115
  %2248 = vmatprep.subr.mxu0 0.0
  %2249 = vmatpush1.msra.mxu0 %v2114
  %2250 = vmatprep.subr.mxu0 0.0
  %2251 = vmatpush1.msra.mxu0 %v2113
  %2252 = vmatprep.subr.mxu0 0.0
  %2253 = vmatpush1.msra.mxu0 %v2112
  %2254 = vmatprep.subr.mxu0 0.0
  %2255 = vmatpush2.msra.mxu0 %v2143
  %2256 = vmatprep.subr.mxu0 0.0
  %2257 = vmatpush2.msra.mxu0 %v2142
  %2258 = vmatprep.subr.mxu0 0.0
  %2259 = vmatpush2.msra.mxu0 %v2141
  %2260 = vmatprep.subr.mxu0 0.0
  %2261 = vmatpush2.msra.mxu0 %v2140
  %2262 = vmatprep.subr.mxu0 0.0
  %2263 = vmatpush2.msra.mxu0 %v2139
  %2264 = vmatprep.subr.mxu0 0.0
  %2265 = vmatpush2.msra.mxu0 %v2138
  %2266 = vmatprep.subr.mxu0 0.0
  %2267 = vmatpush2.msra.mxu0 %v2137
  %2268 = vmatprep.subr.mxu0 0.0
  %2269 = vmatpush2.msra.mxu0 %v2136
  %2270 = vmatprep.subr.mxu0 0.0
  %2271 = vmatpush2.msra.mxu0 %v2135
  %2272 = vmatprep.subr.mxu0 0.0
  %2273 = vmatpush2.msra.mxu0 %v2134
  %2274 = vmatprep.subr.mxu0 0.0
  %2275 = vmatpush2.msra.mxu0 %v2133
  %2276 = vmatprep.subr.mxu0 0.0
  %2277 = vmatpush2.msra.mxu0 %v2132
  %2278 = vmatprep.subr.mxu0 0.0
  %2279 = vmatpush2.msra.mxu0 %v2131
  %2280 = vmatprep.subr.mxu0 0.0
  %2281 = vmatpush2.msra.mxu0 %v2130
  %2282 = vmatprep.subr.mxu0 0.0
  %2283 = vmatpush2.msra.mxu0 %v2129
  %2284 = vmatprep.subr.mxu0 0.0
  %2285 = vmatpush2.msra.mxu0 %v2128
  %2286 = vmatprep.mubr.f32.mxu0 %v2147
  %2287 = vmatmul.mubr.f32.gmra.mxu0 %v2146
  %v2288 = vpop.f32.mrf.mxu0
  %v2289 = vadd.f32 %v2219, %v2288
  %v2290 = vpop.f32.mrf.mxu0
  %2291 = vdwg.mxu0
  %v2292 = vadd.f32 %v2078, %v2289
  %s2293 = scalar_lea.vmem %s2, 4096
  %v2294 = vld [vmem:[%s2293] sm:$0xff]
  %v2295 = vld [vmem:[%s2293 + $0x8] sm:$0xff]
  %v2296 = vld [vmem:[%s2293 + $0x10] sm:$0xff]
  %v2297 = vld [vmem:[%s2293 + $0x18] sm:$0xff]
  %v2298 = vld [vmem:[%s2293 + $0x20] sm:$0xff]
  %v2299 = vld [vmem:[%s2293 + $0x28] sm:$0xff]
  %v2300 = vld [vmem:[%s2293 + $0x30] sm:$0xff]
  %v2301 = vld [vmem:[%s2293 + $0x38] sm:$0xff]
  %v2302 = vld [vmem:[%s2293 + $0x40] sm:$0xff]
  %v2303 = vld [vmem:[%s2293 + $0x48] sm:$0xff]
  %v2304 = vld [vmem:[%s2293 + $0x50] sm:$0xff]
  %v2305 = vld [vmem:[%s2293 + $0x58] sm:$0xff]
  %v2306 = vld [vmem:[%s2293 + $0x60] sm:$0xff]
  %v2307 = vld [vmem:[%s2293 + $0x68] sm:$0xff]
  %v2308 = vld [vmem:[%s2293 + $0x70] sm:$0xff]
  %v2309 = vld [vmem:[%s2293 + $0x78] sm:$0xff]
  %v2310 = vld [vmem:[%s2293 + $0x80] sm:$0xff]
  %v2311 = vld [vmem:[%s2293 + $0x88] sm:$0xff]
  %v2312 = vld [vmem:[%s2293 + $0x90] sm:$0xff]
  %v2313 = vld [vmem:[%s2293 + $0x98] sm:$0xff]
  %v2314 = vld [vmem:[%s2293 + $0xa0] sm:$0xff]
  %v2315 = vld [vmem:[%s2293 + $0xa8] sm:$0xff]
  %v2316 = vld [vmem:[%s2293 + $0xb0] sm:$0xff]
  %v2317 = vld [vmem:[%s2293 + $0xb8] sm:$0xff]
  %v2318 = vld [vmem:[%s2293 + $0xc0] sm:$0xff]
  %v2319 = vld [vmem:[%s2293 + $0xc8] sm:$0xff]
  %v2320 = vld [vmem:[%s2293 + $0xd0] sm:$0xff]
  %v2321 = vld [vmem:[%s2293 + $0xd8] sm:$0xff]
  %v2322 = vld [vmem:[%s2293 + $0xe0] sm:$0xff]
  %v2323 = vld [vmem:[%s2293 + $0xe8] sm:$0xff]
  %v2324 = vld [vmem:[%s2293 + $0xf0] sm:$0xff]
  %v2325 = vld [vmem:[%s2293 + $0xf8] sm:$0xff]
  %v2326 = vld [vmem:[%s2293 + $0x100] sm:$0xff]
  %v2327 = vld [vmem:[%s2293 + $0x108] sm:$0xff]
  %v2328 = vld [vmem:[%s2293 + $0x110] sm:$0xff]
  %v2329 = vld [vmem:[%s2293 + $0x118] sm:$0xff]
  %v2330 = vld [vmem:[%s2293 + $0x120] sm:$0xff]
  %v2331 = vld [vmem:[%s2293 + $0x128] sm:$0xff]
  %v2332 = vld [vmem:[%s2293 + $0x130] sm:$0xff]
  %v2333 = vld [vmem:[%s2293 + $0x138] sm:$0xff]
  %v2334 = vld [vmem:[%s2293 + $0x140] sm:$0xff]
  %v2335 = vld [vmem:[%s2293 + $0x148] sm:$0xff]
  %v2336 = vld [vmem:[%s2293 + $0x150] sm:$0xff]
  %v2337 = vld [vmem:[%s2293 + $0x158] sm:$0xff]
  %v2338 = vld [vmem:[%s2293 + $0x160] sm:$0xff]
  %v2339 = vld [vmem:[%s2293 + $0x168] sm:$0xff]
  %v2340 = vld [vmem:[%s2293 + $0x170] sm:$0xff]
  %v2341 = vld [vmem:[%s2293 + $0x178] sm:$0xff]
  %v2342 = vld [vmem:[%s2293 + $0x180] sm:$0xff]
  %v2343 = vld [vmem:[%s2293 + $0x188] sm:$0xff]
  %v2344 = vld [vmem:[%s2293 + $0x190] sm:$0xff]
  %v2345 = vld [vmem:[%s2293 + $0x198] sm:$0xff]
  %v2346 = vld [vmem:[%s2293 + $0x1a0] sm:$0xff]
  %v2347 = vld [vmem:[%s2293 + $0x1a8] sm:$0xff]
  %v2348 = vld [vmem:[%s2293 + $0x1b0] sm:$0xff]
  %v2349 = vld [vmem:[%s2293 + $0x1b8] sm:$0xff]
  %v2350 = vld [vmem:[%s2293 + $0x1c0] sm:$0xff]
  %v2351 = vld [vmem:[%s2293 + $0x1c8] sm:$0xff]
  %v2352 = vld [vmem:[%s2293 + $0x1d0] sm:$0xff]
  %v2353 = vld [vmem:[%s2293 + $0x1d8] sm:$0xff]
  %v2354 = vld [vmem:[%s2293 + $0x1e0] sm:$0xff]
  %v2355 = vld [vmem:[%s2293 + $0x1e8] sm:$0xff]
  %v2356 = vld [vmem:[%s2293 + $0x1f0] sm:$0xff]
  %v2357 = vld [vmem:[%s2293 + $0x1f8] sm:$0xff]
  %2358 = vmatprep.subr.mxu0 0.0
  %2359 = vmatpush1.msra.mxu0 %v2309
  %2360 = vmatprep.subr.mxu0 0.0
  %2361 = vmatpush1.msra.mxu0 %v2308
  %2362 = vmatprep.subr.mxu0 0.0
  %2363 = vmatpush1.msra.mxu0 %v2307
  %2364 = vmatprep.subr.mxu0 0.0
  %2365 = vmatpush1.msra.mxu0 %v2306
  %2366 = vmatprep.subr.mxu0 0.0
  %2367 = vmatpush1.msra.mxu0 %v2305
  %2368 = vmatprep.subr.mxu0 0.0
  %2369 = vmatpush1.msra.mxu0 %v2304
  %2370 = vmatprep.subr.mxu0 0.0
  %2371 = vmatpush1.msra.mxu0 %v2303
  %2372 = vmatprep.subr.mxu0 0.0
  %2373 = vmatpush1.msra.mxu0 %v2302
  %2374 = vmatprep.subr.mxu0 0.0
  %2375 = vmatpush1.msra.mxu0 %v2301
  %2376 = vmatprep.subr.mxu0 0.0
  %2377 = vmatpush1.msra.mxu0 %v2300
  %2378 = vmatprep.subr.mxu0 0.0
  %2379 = vmatpush1.msra.mxu0 %v2299
  %2380 = vmatprep.subr.mxu0 0.0
  %2381 = vmatpush1.msra.mxu0 %v2298
  %2382 = vmatprep.subr.mxu0 0.0
  %2383 = vmatpush1.msra.mxu0 %v2297
  %2384 = vmatprep.subr.mxu0 0.0
  %2385 = vmatpush1.msra.mxu0 %v2296
  %2386 = vmatprep.subr.mxu0 0.0
  %2387 = vmatpush1.msra.mxu0 %v2295
  %2388 = vmatprep.subr.mxu0 0.0
  %2389 = vmatpush1.msra.mxu0 %v2294
  %2390 = vmatprep.subr.mxu0 0.0
  %2391 = vmatpush2.msra.mxu0 %v2325
  %2392 = vmatprep.subr.mxu0 0.0
  %2393 = vmatpush2.msra.mxu0 %v2324
  %2394 = vmatprep.subr.mxu0 0.0
  %2395 = vmatpush2.msra.mxu0 %v2323
  %2396 = vmatprep.subr.mxu0 0.0
  %2397 = vmatpush2.msra.mxu0 %v2322
  %2398 = vmatprep.subr.mxu0 0.0
  %2399 = vmatpush2.msra.mxu0 %v2321
  %2400 = vmatprep.subr.mxu0 0.0
  %2401 = vmatpush2.msra.mxu0 %v2320
  %2402 = vmatprep.subr.mxu0 0.0
  %2403 = vmatpush2.msra.mxu0 %v2319
  %2404 = vmatprep.subr.mxu0 0.0
  %2405 = vmatpush2.msra.mxu0 %v2318
  %2406 = vmatprep.subr.mxu0 0.0
  %2407 = vmatpush2.msra.mxu0 %v2317
  %2408 = vmatprep.subr.mxu0 0.0
  %2409 = vmatpush2.msra.mxu0 %v2316
  %2410 = vmatprep.subr.mxu0 0.0
  %2411 = vmatpush2.msra.mxu0 %v2315
  %2412 = vmatprep.subr.mxu0 0.0
  %2413 = vmatpush2.msra.mxu0 %v2314
  %2414 = vmatprep.subr.mxu0 0.0
  %2415 = vmatpush2.msra.mxu0 %v2313
  %2416 = vmatprep.subr.mxu0 0.0
  %2417 = vmatpush2.msra.mxu0 %v2312
  %2418 = vmatprep.subr.mxu0 0.0
  %2419 = vmatpush2.msra.mxu0 %v2311
  %2420 = vmatprep.subr.mxu0 0.0
  %2421 = vmatpush2.msra.mxu0 %v2310
  %2422 = vmatprep.mubr.f32.mxu0 %v457
  %2423 = vmatmul.mubr.f32.gmra.mxu0 %v455
  %v2424 = vpop.f32.mrf.mxu0
  %v2425 = vadd.f32 0.0, %v2424
  %v2426 = vpop.f32.mrf.mxu0
  %2427 = vdwg.mxu0
  %2428 = vmatprep.subr.mxu0 0.0
  %2429 = vmatpush1.msra.mxu0 %v2341
  %2430 = vmatprep.subr.mxu0 0.0
  %2431 = vmatpush1.msra.mxu0 %v2340
  %2432 = vmatprep.subr.mxu0 0.0
  %2433 = vmatpush1.msra.mxu0 %v2339
  %2434 = vmatprep.subr.mxu0 0.0
  %2435 = vmatpush1.msra.mxu0 %v2338
  %2436 = vmatprep.subr.mxu0 0.0
  %2437 = vmatpush1.msra.mxu0 %v2337
  %2438 = vmatprep.subr.mxu0 0.0
  %2439 = vmatpush1.msra.mxu0 %v2336
  %2440 = vmatprep.subr.mxu0 0.0
  %2441 = vmatpush1.msra.mxu0 %v2335
  %2442 = vmatprep.subr.mxu0 0.0
  %2443 = vmatpush1.msra.mxu0 %v2334
  %2444 = vmatprep.subr.mxu0 0.0
  %2445 = vmatpush1.msra.mxu0 %v2333
  %2446 = vmatprep.subr.mxu0 0.0
  %2447 = vmatpush1.msra.mxu0 %v2332
  %2448 = vmatprep.subr.mxu0 0.0
  %2449 = vmatpush1.msra.mxu0 %v2331
  %2450 = vmatprep.subr.mxu0 0.0
  %2451 = vmatpush1.msra.mxu0 %v2330
  %2452 = vmatprep.subr.mxu0 0.0
  %2453 = vmatpush1.msra.mxu0 %v2329
  %2454 = vmatprep.subr.mxu0 0.0
  %2455 = vmatpush1.msra.mxu0 %v2328
  %2456 = vmatprep.subr.mxu0 0.0
  %2457 = vmatpush1.msra.mxu0 %v2327
  %2458 = vmatprep.subr.mxu0 0.0
  %2459 = vmatpush1.msra.mxu0 %v2326
  %2460 = vmatprep.subr.mxu0 0.0
  %2461 = vmatpush2.msra.mxu0 %v2357
  %2462 = vmatprep.subr.mxu0 0.0
  %2463 = vmatpush2.msra.mxu0 %v2356
  %2464 = vmatprep.subr.mxu0 0.0
  %2465 = vmatpush2.msra.mxu0 %v2355
  %2466 = vmatprep.subr.mxu0 0.0
  %2467 = vmatpush2.msra.mxu0 %v2354
  %2468 = vmatprep.subr.mxu0 0.0
  %2469 = vmatpush2.msra.mxu0 %v2353
  %2470 = vmatprep.subr.mxu0 0.0
  %2471 = vmatpush2.msra.mxu0 %v2352
  %2472 = vmatprep.subr.mxu0 0.0
  %2473 = vmatpush2.msra.mxu0 %v2351
  %2474 = vmatprep.subr.mxu0 0.0
  %2475 = vmatpush2.msra.mxu0 %v2350
  %2476 = vmatprep.subr.mxu0 0.0
  %2477 = vmatpush2.msra.mxu0 %v2349
  %2478 = vmatprep.subr.mxu0 0.0
  %2479 = vmatpush2.msra.mxu0 %v2348
  %2480 = vmatprep.subr.mxu0 0.0
  %2481 = vmatpush2.msra.mxu0 %v2347
  %2482 = vmatprep.subr.mxu0 0.0
  %2483 = vmatpush2.msra.mxu0 %v2346
  %2484 = vmatprep.subr.mxu0 0.0
  %2485 = vmatpush2.msra.mxu0 %v2345
  %2486 = vmatprep.subr.mxu0 0.0
  %2487 = vmatpush2.msra.mxu0 %v2344
  %2488 = vmatprep.subr.mxu0 0.0
  %2489 = vmatpush2.msra.mxu0 %v2343
  %2490 = vmatprep.subr.mxu0 0.0
  %2491 = vmatpush2.msra.mxu0 %v2342
  %2492 = vmatprep.mubr.f32.mxu0 %v500
  %2493 = vmatmul.mubr.f32.gmra.mxu0 %v498
  %v2494 = vpop.f32.mrf.mxu0
  %v2495 = vadd.f32 %v2425, %v2494
  %v2496 = vpop.f32.mrf.mxu0
  %2497 = vdwg.mxu0
  %v2498 = vadd.f32 %v2292, %v2495
  %vm2499 = vcmask 253952
  %2500 = vst.msk [vmem:[#allocation2] sm:$0x1] %vm2499, %v2498
  %v2501 = vld [vmem:[%s2] sm:$0xff]
  %v2502 = vld [vmem:[%s2 + $0x8] sm:$0xff]
  %v2503 = vld [vmem:[%s2 + $0x10] sm:$0xff]
  %v2504 = vld [vmem:[%s2 + $0x18] sm:$0xff]
  %v2505 = vld [vmem:[%s2 + $0x20] sm:$0xff]
  %v2506 = vld [vmem:[%s2 + $0x28] sm:$0xff]
  %v2507 = vld [vmem:[%s2 + $0x30] sm:$0xff]
  %v2508 = vld [vmem:[%s2 + $0x38] sm:$0xff]
  %v2509 = vld [vmem:[%s2 + $0x40] sm:$0xff]
  %v2510 = vld [vmem:[%s2 + $0x48] sm:$0xff]
  %v2511 = vld [vmem:[%s2 + $0x50] sm:$0xff]
  %v2512 = vld [vmem:[%s2 + $0x58] sm:$0xff]
  %v2513 = vld [vmem:[%s2 + $0x60] sm:$0xff]
  %v2514 = vld [vmem:[%s2 + $0x68] sm:$0xff]
  %v2515 = vld [vmem:[%s2 + $0x70] sm:$0xff]
  %v2516 = vld [vmem:[%s2 + $0x78] sm:$0xff]
  %v2517 = vld [vmem:[%s2 + $0x80] sm:$0xff]
  %v2518 = vld [vmem:[%s2 + $0x88] sm:$0xff]
  %v2519 = vld [vmem:[%s2 + $0x90] sm:$0xff]
  %v2520 = vld [vmem:[%s2 + $0x98] sm:$0xff]
  %v2521 = vld [vmem:[%s2 + $0xa0] sm:$0xff]
  %v2522 = vld [vmem:[%s2 + $0xa8] sm:$0xff]
  %v2523 = vld [vmem:[%s2 + $0xb0] sm:$0xff]
  %v2524 = vld [vmem:[%s2 + $0xb8] sm:$0xff]
  %v2525 = vld [vmem:[%s2 + $0xc0] sm:$0xff]
  %v2526 = vld [vmem:[%s2 + $0xc8] sm:$0xff]
  %v2527 = vld [vmem:[%s2 + $0xd0] sm:$0xff]
  %v2528 = vld [vmem:[%s2 + $0xd8] sm:$0xff]
  %v2529 = vld [vmem:[%s2 + $0xe0] sm:$0xff]
  %v2530 = vld [vmem:[%s2 + $0xe8] sm:$0xff]
  %v2531 = vld [vmem:[%s2 + $0xf0] sm:$0xff]
  %v2532 = vld [vmem:[%s2 + $0xf8] sm:$0xff]
  %v2533 = vld [vmem:[%s2 + $0x100] sm:$0xff]
  %v2534 = vld [vmem:[%s2 + $0x108] sm:$0xff]
  %v2535 = vld [vmem:[%s2 + $0x110] sm:$0xff]
  %v2536 = vld [vmem:[%s2 + $0x118] sm:$0xff]
  %v2537 = vld [vmem:[%s2 + $0x120] sm:$0xff]
  %v2538 = vld [vmem:[%s2 + $0x128] sm:$0xff]
  %v2539 = vld [vmem:[%s2 + $0x130] sm:$0xff]
  %v2540 = vld [vmem:[%s2 + $0x138] sm:$0xff]
  %v2541 = vld [vmem:[%s2 + $0x140] sm:$0xff]
  %v2542 = vld [vmem:[%s2 + $0x148] sm:$0xff]
  %v2543 = vld [vmem:[%s2 + $0x150] sm:$0xff]
  %v2544 = vld [vmem:[%s2 + $0x158] sm:$0xff]
  %v2545 = vld [vmem:[%s2 + $0x160] sm:$0xff]
  %v2546 = vld [vmem:[%s2 + $0x168] sm:$0xff]
  %v2547 = vld [vmem:[%s2 + $0x170] sm:$0xff]
  %v2548 = vld [vmem:[%s2 + $0x178] sm:$0xff]
  %v2549 = vld [vmem:[%s2 + $0x180] sm:$0xff]
  %v2550 = vld [vmem:[%s2 + $0x188] sm:$0xff]
  %v2551 = vld [vmem:[%s2 + $0x190] sm:$0xff]
  %v2552 = vld [vmem:[%s2 + $0x198] sm:$0xff]
  %v2553 = vld [vmem:[%s2 + $0x1a0] sm:$0xff]
  %v2554 = vld [vmem:[%s2 + $0x1a8] sm:$0xff]
  %v2555 = vld [vmem:[%s2 + $0x1b0] sm:$0xff]
  %v2556 = vld [vmem:[%s2 + $0x1b8] sm:$0xff]
  %v2557 = vld [vmem:[%s2 + $0x1c0] sm:$0xff]
  %v2558 = vld [vmem:[%s2 + $0x1c8] sm:$0xff]
  %v2559 = vld [vmem:[%s2 + $0x1d0] sm:$0xff]
  %v2560 = vld [vmem:[%s2 + $0x1d8] sm:$0xff]
  %v2561 = vld [vmem:[%s2 + $0x1e0] sm:$0xff]
  %v2562 = vld [vmem:[%s2 + $0x1e8] sm:$0xff]
  %v2563 = vld [vmem:[%s2 + $0x1f0] sm:$0xff]
  %v2564 = vld [vmem:[%s2 + $0x1f8] sm:$0xff]
  %v2565 = vld [vmem:[%s652] sm:$0xff]
  %v2566 = vld [vmem:[%s652 + $0x8] sm:$0xff]
  %v2567 = vld [vmem:[%s652 + $0x10] sm:$0xff]
  %v2568 = vld [vmem:[%s652 + $0x18] sm:$0xff]
  %v2569 = vld [vmem:[%s652 + $0x20] sm:$0xff]
  %v2570 = vld [vmem:[%s652 + $0x28] sm:$0xff]
  %v2571 = vld [vmem:[%s652 + $0x30] sm:$0xff]
  %v2572 = vld [vmem:[%s652 + $0x38] sm:$0xff]
  %v2573 = vld [vmem:[%s652 + $0x40] sm:$0xff]
  %v2574 = vld [vmem:[%s652 + $0x48] sm:$0xff]
  %v2575 = vld [vmem:[%s652 + $0x50] sm:$0xff]
  %v2576 = vld [vmem:[%s652 + $0x58] sm:$0xff]
  %v2577 = vld [vmem:[%s652 + $0x60] sm:$0xff]
  %v2578 = vld [vmem:[%s652 + $0x68] sm:$0xff]
  %v2579 = vld [vmem:[%s652 + $0x70] sm:$0xff]
  %v2580 = vld [vmem:[%s652 + $0x78] sm:$0xff]
  %v2581 = vld [vmem:[%s652 + $0x80] sm:$0xff]
  %v2582 = vld [vmem:[%s652 + $0x88] sm:$0xff]
  %v2583 = vld [vmem:[%s652 + $0x90] sm:$0xff]
  %v2584 = vld [vmem:[%s652 + $0x98] sm:$0xff]
  %v2585 = vld [vmem:[%s652 + $0xa0] sm:$0xff]
  %v2586 = vld [vmem:[%s652 + $0xa8] sm:$0xff]
  %v2587 = vld [vmem:[%s652 + $0xb0] sm:$0xff]
  %v2588 = vld [vmem:[%s652 + $0xb8] sm:$0xff]
  %v2589 = vld [vmem:[%s652 + $0xc0] sm:$0xff]
  %v2590 = vld [vmem:[%s652 + $0xc8] sm:$0xff]
  %v2591 = vld [vmem:[%s652 + $0xd0] sm:$0xff]
  %v2592 = vld [vmem:[%s652 + $0xd8] sm:$0xff]
  %v2593 = vld [vmem:[%s652 + $0xe0] sm:$0xff]
  %v2594 = vld [vmem:[%s652 + $0xe8] sm:$0xff]
  %v2595 = vld [vmem:[%s652 + $0xf0] sm:$0xff]
  %v2596 = vld [vmem:[%s652 + $0xf8] sm:$0xff]
  %v2597 = vld [vmem:[%s652 + $0x100] sm:$0xff]
  %v2598 = vld [vmem:[%s652 + $0x108] sm:$0xff]
  %v2599 = vld [vmem:[%s652 + $0x110] sm:$0xff]
  %v2600 = vld [vmem:[%s652 + $0x118] sm:$0xff]
  %v2601 = vld [vmem:[%s652 + $0x120] sm:$0xff]
  %v2602 = vld [vmem:[%s652 + $0x128] sm:$0xff]
  %v2603 = vld [vmem:[%s652 + $0x130] sm:$0xff]
  %v2604 = vld [vmem:[%s652 + $0x138] sm:$0xff]
  %v2605 = vld [vmem:[%s652 + $0x140] sm:$0xff]
  %v2606 = vld [vmem:[%s652 + $0x148] sm:$0xff]
  %v2607 = vld [vmem:[%s652 + $0x150] sm:$0xff]
  %v2608 = vld [vmem:[%s652 + $0x158] sm:$0xff]
  %v2609 = vld [vmem:[%s652 + $0x160] sm:$0xff]
  %v2610 = vld [vmem:[%s652 + $0x168] sm:$0xff]
  %v2611 = vld [vmem:[%s652 + $0x170] sm:$0xff]
  %v2612 = vld [vmem:[%s652 + $0x178] sm:$0xff]
  %v2613 = vld [vmem:[%s652 + $0x180] sm:$0xff]
  %v2614 = vld [vmem:[%s652 + $0x188] sm:$0xff]
  %v2615 = vld [vmem:[%s652 + $0x190] sm:$0xff]
  %v2616 = vld [vmem:[%s652 + $0x198] sm:$0xff]
  %v2617 = vld [vmem:[%s652 + $0x1a0] sm:$0xff]
  %v2618 = vld [vmem:[%s652 + $0x1a8] sm:$0xff]
  %v2619 = vld [vmem:[%s652 + $0x1b0] sm:$0xff]
  %v2620 = vld [vmem:[%s652 + $0x1b8] sm:$0xff]
  %v2621 = vld [vmem:[%s652 + $0x1c0] sm:$0xff]
  %v2622 = vld [vmem:[%s652 + $0x1c8] sm:$0xff]
  %v2623 = vld [vmem:[%s652 + $0x1d0] sm:$0xff]
  %v2624 = vld [vmem:[%s652 + $0x1d8] sm:$0xff]
  %v2625 = vld [vmem:[%s652 + $0x1e0] sm:$0xff]
  %v2626 = vld [vmem:[%s652 + $0x1e8] sm:$0xff]
  %v2627 = vld [vmem:[%s652 + $0x1f0] sm:$0xff]
  %v2628 = vld [vmem:[%s652 + $0x1f8] sm:$0xff]
  %v2633 = vrot.slane %v537, 1
  %v2634 = vrot.slane %v539, 1
  %v2635 = vrot.slane %v580, 1
  %v2636 = vrot.slane %v582, 1
  %2641 = vmatprep.subr.mxu0 0.0
  %2642 = vmatpush1.msra.mxu0 %v2580
  %2643 = vmatprep.subr.mxu0 0.0
  %2644 = vmatpush1.msra.mxu0 %v2579
  %2645 = vmatprep.subr.mxu0 0.0
  %2646 = vmatpush1.msra.mxu0 %v2578
  %2647 = vmatprep.subr.mxu0 0.0
  %2648 = vmatpush1.msra.mxu0 %v2577
  %2649 = vmatprep.subr.mxu0 0.0
  %2650 = vmatpush1.msra.mxu0 %v2576
  %2651 = vmatprep.subr.mxu0 0.0
  %2652 = vmatpush1.msra.mxu0 %v2575
  %2653 = vmatprep.subr.mxu0 0.0
  %2654 = vmatpush1.msra.mxu0 %v2574
  %2655 = vmatprep.subr.mxu0 0.0
  %2656 = vmatpush1.msra.mxu0 %v2573
  %2657 = vmatprep.subr.mxu0 0.0
  %2658 = vmatpush1.msra.mxu0 %v2572
  %2659 = vmatprep.subr.mxu0 0.0
  %2660 = vmatpush1.msra.mxu0 %v2571
  %2661 = vmatprep.subr.mxu0 0.0
  %2662 = vmatpush1.msra.mxu0 %v2570
  %2663 = vmatprep.subr.mxu0 0.0
  %2664 = vmatpush1.msra.mxu0 %v2569
  %2665 = vmatprep.subr.mxu0 0.0
  %2666 = vmatpush1.msra.mxu0 %v2568
  %2667 = vmatprep.subr.mxu0 0.0
  %2668 = vmatpush1.msra.mxu0 %v2567
  %2669 = vmatprep.subr.mxu0 0.0
  %2670 = vmatpush1.msra.mxu0 %v2566
  %2671 = vmatprep.subr.mxu0 0.0
  %2672 = vmatpush1.msra.mxu0 %v2565
  %2673 = vmatprep.subr.mxu0 0.0
  %2674 = vmatpush2.msra.mxu0 %v2596
  %2675 = vmatprep.subr.mxu0 0.0
  %2676 = vmatpush2.msra.mxu0 %v2595
  %2677 = vmatprep.subr.mxu0 0.0
  %2678 = vmatpush2.msra.mxu0 %v2594
  %2679 = vmatprep.subr.mxu0 0.0
  %2680 = vmatpush2.msra.mxu0 %v2593
  %2681 = vmatprep.subr.mxu0 0.0
  %2682 = vmatpush2.msra.mxu0 %v2592
  %2683 = vmatprep.subr.mxu0 0.0
  %2684 = vmatpush2.msra.mxu0 %v2591
  %2685 = vmatprep.subr.mxu0 0.0
  %2686 = vmatpush2.msra.mxu0 %v2590
  %2687 = vmatprep.subr.mxu0 0.0
  %2688 = vmatpush2.msra.mxu0 %v2589
  %2689 = vmatprep.subr.mxu0 0.0
  %2690 = vmatpush2.msra.mxu0 %v2588
  %2691 = vmatprep.subr.mxu0 0.0
  %2692 = vmatpush2.msra.mxu0 %v2587
  %2693 = vmatprep.subr.mxu0 0.0
  %2694 = vmatpush2.msra.mxu0 %v2586
  %2695 = vmatprep.subr.mxu0 0.0
  %2696 = vmatpush2.msra.mxu0 %v2585
  %2697 = vmatprep.subr.mxu0 0.0
  %2698 = vmatpush2.msra.mxu0 %v2584
  %2699 = vmatprep.subr.mxu0 0.0
  %2700 = vmatpush2.msra.mxu0 %v2583
  %2701 = vmatprep.subr.mxu0 0.0
  %2702 = vmatpush2.msra.mxu0 %v2582
  %2703 = vmatprep.subr.mxu0 0.0
  %2704 = vmatpush2.msra.mxu0 %v2581
  %2705 = vmatprep.mubr.f32.mxu0 %v2634
  %2706 = vmatmul.mubr.f32.gmra.mxu0 %v2633
  %v2707 = vpop.f32.mrf.mxu0
  %v2708 = vadd.f32 0.0, %v2707
  %v2709 = vpop.f32.mrf.mxu0
  %2710 = vdwg.mxu0
  %2711 = vmatprep.subr.mxu0 0.0
  %2712 = vmatpush1.msra.mxu0 %v2612
  %2713 = vmatprep.subr.mxu0 0.0
  %2714 = vmatpush1.msra.mxu0 %v2611
  %2715 = vmatprep.subr.mxu0 0.0
  %2716 = vmatpush1.msra.mxu0 %v2610
  %2717 = vmatprep.subr.mxu0 0.0
  %2718 = vmatpush1.msra.mxu0 %v2609
  %2719 = vmatprep.subr.mxu0 0.0
  %2720 = vmatpush1.msra.mxu0 %v2608
  %2721 = vmatprep.subr.mxu0 0.0
  %2722 = vmatpush1.msra.mxu0 %v2607
  %2723 = vmatprep.subr.mxu0 0.0
  %2724 = vmatpush1.msra.mxu0 %v2606
  %2725 = vmatprep.subr.mxu0 0.0
  %2726 = vmatpush1.msra.mxu0 %v2605
  %2727 = vmatprep.subr.mxu0 0.0
  %2728 = vmatpush1.msra.mxu0 %v2604
  %2729 = vmatprep.subr.mxu0 0.0
  %2730 = vmatpush1.msra.mxu0 %v2603
  %2731 = vmatprep.subr.mxu0 0.0
  %2732 = vmatpush1.msra.mxu0 %v2602
  %2733 = vmatprep.subr.mxu0 0.0
  %2734 = vmatpush1.msra.mxu0 %v2601
  %2735 = vmatprep.subr.mxu0 0.0
  %2736 = vmatpush1.msra.mxu0 %v2600
  %2737 = vmatprep.subr.mxu0 0.0
  %2738 = vmatpush1.msra.mxu0 %v2599
  %2739 = vmatprep.subr.mxu0 0.0
  %2740 = vmatpush1.msra.mxu0 %v2598
  %2741 = vmatprep.subr.mxu0 0.0
  %2742 = vmatpush1.msra.mxu0 %v2597
  %2743 = vmatprep.subr.mxu0 0.0
  %2744 = vmatpush2.msra.mxu0 %v2628
  %2745 = vmatprep.subr.mxu0 0.0
  %2746 = vmatpush2.msra.mxu0 %v2627
  %2747 = vmatprep.subr.mxu0 0.0
  %2748 = vmatpush2.msra.mxu0 %v2626
  %2749 = vmatprep.subr.mxu0 0.0
  %2750 = vmatpush2.msra.mxu0 %v2625
  %2751 = vmatprep.subr.mxu0 0.0
  %2752 = vmatpush2.msra.mxu0 %v2624
  %2753 = vmatprep.subr.mxu0 0.0
  %2754 = vmatpush2.msra.mxu0 %v2623
  %2755 = vmatprep.subr.mxu0 0.0
  %2756 = vmatpush2.msra.mxu0 %v2622
  %2757 = vmatprep.subr.mxu0 0.0
  %2758 = vmatpush2.msra.mxu0 %v2621
  %2759 = vmatprep.subr.mxu0 0.0
  %2760 = vmatpush2.msra.mxu0 %v2620
  %2761 = vmatprep.subr.mxu0 0.0
  %2762 = vmatpush2.msra.mxu0 %v2619
  %2763 = vmatprep.subr.mxu0 0.0
  %2764 = vmatpush2.msra.mxu0 %v2618
  %2765 = vmatprep.subr.mxu0 0.0
  %2766 = vmatpush2.msra.mxu0 %v2617
  %2767 = vmatprep.subr.mxu0 0.0
  %2768 = vmatpush2.msra.mxu0 %v2616
  %2769 = vmatprep.subr.mxu0 0.0
  %2770 = vmatpush2.msra.mxu0 %v2615
  %2771 = vmatprep.subr.mxu0 0.0
  %2772 = vmatpush2.msra.mxu0 %v2614
  %2773 = vmatprep.subr.mxu0 0.0
  %2774 = vmatpush2.msra.mxu0 %v2613
  %2775 = vmatprep.mubr.f32.mxu0 %v2636
  %2776 = vmatmul.mubr.f32.gmra.mxu0 %v2635
  %v2777 = vpop.f32.mrf.mxu0
  %v2778 = vadd.f32 %v2708, %v2777
  %v2779 = vpop.f32.mrf.mxu0
  %2780 = vdwg.mxu0
  %2781 = vmatprep.subr.mxu0 0.0
  %2782 = vmatpush1.msra.mxu0 %v2516
  %2783 = vmatprep.subr.mxu0 0.0
  %2784 = vmatpush1.msra.mxu0 %v2515
  %2785 = vmatprep.subr.mxu0 0.0
  %2786 = vmatpush1.msra.mxu0 %v2514
  %2787 = vmatprep.subr.mxu0 0.0
  %2788 = vmatpush1.msra.mxu0 %v2513
  %2789 = vmatprep.subr.mxu0 0.0
  %2790 = vmatpush1.msra.mxu0 %v2512
  %2791 = vmatprep.subr.mxu0 0.0
  %2792 = vmatpush1.msra.mxu0 %v2511
  %2793 = vmatprep.subr.mxu0 0.0
  %2794 = vmatpush1.msra.mxu0 %v2510
  %2795 = vmatprep.subr.mxu0 0.0
  %2796 = vmatpush1.msra.mxu0 %v2509
  %2797 = vmatprep.subr.mxu0 0.0
  %2798 = vmatpush1.msra.mxu0 %v2508
  %2799 = vmatprep.subr.mxu0 0.0
  %2800 = vmatpush1.msra.mxu0 %v2507
  %2801 = vmatprep.subr.mxu0 0.0
  %2802 = vmatpush1.msra.mxu0 %v2506
  %2803 = vmatprep.subr.mxu0 0.0
  %2804 = vmatpush1.msra.mxu0 %v2505
  %2805 = vmatprep.subr.mxu0 0.0
  %2806 = vmatpush1.msra.mxu0 %v2504
  %2807 = vmatprep.subr.mxu0 0.0
  %2808 = vmatpush1.msra.mxu0 %v2503
  %2809 = vmatprep.subr.mxu0 0.0
  %2810 = vmatpush1.msra.mxu0 %v2502
  %2811 = vmatprep.subr.mxu0 0.0
  %2812 = vmatpush1.msra.mxu0 %v2501
  %2813 = vmatprep.subr.mxu0 0.0
  %2814 = vmatpush2.msra.mxu0 %v2532
  %2815 = vmatprep.subr.mxu0 0.0
  %2816 = vmatpush2.msra.mxu0 %v2531
  %2817 = vmatprep.subr.mxu0 0.0
  %2818 = vmatpush2.msra.mxu0 %v2530
  %2819 = vmatprep.subr.mxu0 0.0
  %2820 = vmatpush2.msra.mxu0 %v2529
  %2821 = vmatprep.subr.mxu0 0.0
  %2822 = vmatpush2.msra.mxu0 %v2528
  %2823 = vmatprep.subr.mxu0 0.0
  %2824 = vmatpush2.msra.mxu0 %v2527
  %2825 = vmatprep.subr.mxu0 0.0
  %2826 = vmatpush2.msra.mxu0 %v2526
  %2827 = vmatprep.subr.mxu0 0.0
  %2828 = vmatpush2.msra.mxu0 %v2525
  %2829 = vmatprep.subr.mxu0 0.0
  %2830 = vmatpush2.msra.mxu0 %v2524
  %2831 = vmatprep.subr.mxu0 0.0
  %2832 = vmatpush2.msra.mxu0 %v2523
  %2833 = vmatprep.subr.mxu0 0.0
  %2834 = vmatpush2.msra.mxu0 %v2522
  %2835 = vmatprep.subr.mxu0 0.0
  %2836 = vmatpush2.msra.mxu0 %v2521
  %2837 = vmatprep.subr.mxu0 0.0
  %2838 = vmatpush2.msra.mxu0 %v2520
  %2839 = vmatprep.subr.mxu0 0.0
  %2840 = vmatpush2.msra.mxu0 %v2519
  %2841 = vmatprep.subr.mxu0 0.0
  %2842 = vmatpush2.msra.mxu0 %v2518
  %2843 = vmatprep.subr.mxu0 0.0
  %2844 = vmatpush2.msra.mxu0 %v2517
  %2845 = vmatprep.mubr.f32.mxu0 %v539
  %2846 = vmatmul.mubr.f32.gmra.mxu0 %v537
  %v2847 = vpop.f32.mrf.mxu0
  %v2848 = vadd.f32 %v2778, %v2847
  %v2849 = vpop.f32.mrf.mxu0
  %2850 = vdwg.mxu0
  %2851 = vmatprep.subr.mxu0 0.0
  %2852 = vmatpush1.msra.mxu0 %v2548
  %2853 = vmatprep.subr.mxu0 0.0
  %2854 = vmatpush1.msra.mxu0 %v2547
  %2855 = vmatprep.subr.mxu0 0.0
  %2856 = vmatpush1.msra.mxu0 %v2546
  %2857 = vmatprep.subr.mxu0 0.0
  %2858 = vmatpush1.msra.mxu0 %v2545
  %2859 = vmatprep.subr.mxu0 0.0
  %2860 = vmatpush1.msra.mxu0 %v2544
  %2861 = vmatprep.subr.mxu0 0.0
  %2862 = vmatpush1.msra.mxu0 %v2543
  %2863 = vmatprep.subr.mxu0 0.0
  %2864 = vmatpush1.msra.mxu0 %v2542
  %2865 = vmatprep.subr.mxu0 0.0
  %2866 = vmatpush1.msra.mxu0 %v2541
  %2867 = vmatprep.subr.mxu0 0.0
  %2868 = vmatpush1.msra.mxu0 %v2540
  %2869 = vmatprep.subr.mxu0 0.0
  %2870 = vmatpush1.msra.mxu0 %v2539
  %2871 = vmatprep.subr.mxu0 0.0
  %2872 = vmatpush1.msra.mxu0 %v2538
  %2873 = vmatprep.subr.mxu0 0.0
  %2874 = vmatpush1.msra.mxu0 %v2537
  %2875 = vmatprep.subr.mxu0 0.0
  %2876 = vmatpush1.msra.mxu0 %v2536
  %2877 = vmatprep.subr.mxu0 0.0
  %2878 = vmatpush1.msra.mxu0 %v2535
  %2879 = vmatprep.subr.mxu0 0.0
  %2880 = vmatpush1.msra.mxu0 %v2534
  %2881 = vmatprep.subr.mxu0 0.0
  %2882 = vmatpush1.msra.mxu0 %v2533
  %2883 = vmatprep.subr.mxu0 0.0
  %2884 = vmatpush2.msra.mxu0 %v2564
  %2885 = vmatprep.subr.mxu0 0.0
  %2886 = vmatpush2.msra.mxu0 %v2563
  %2887 = vmatprep.subr.mxu0 0.0
  %2888 = vmatpush2.msra.mxu0 %v2562
  %2889 = vmatprep.subr.mxu0 0.0
  %2890 = vmatpush2.msra.mxu0 %v2561
  %2891 = vmatprep.subr.mxu0 0.0
  %2892 = vmatpush2.msra.mxu0 %v2560
  %2893 = vmatprep.subr.mxu0 0.0
  %2894 = vmatpush2.msra.mxu0 %v2559
  %2895 = vmatprep.subr.mxu0 0.0
  %2896 = vmatpush2.msra.mxu0 %v2558
  %2897 = vmatprep.subr.mxu0 0.0
  %2898 = vmatpush2.msra.mxu0 %v2557
  %2899 = vmatprep.subr.mxu0 0.0
  %2900 = vmatpush2.msra.mxu0 %v2556
  %2901 = vmatprep.subr.mxu0 0.0
  %2902 = vmatpush2.msra.mxu0 %v2555
  %2903 = vmatprep.subr.mxu0 0.0
  %2904 = vmatpush2.msra.mxu0 %v2554
  %2905 = vmatprep.subr.mxu0 0.0
  %2906 = vmatpush2.msra.mxu0 %v2553
  %2907 = vmatprep.subr.mxu0 0.0
  %2908 = vmatpush2.msra.mxu0 %v2552
  %2909 = vmatprep.subr.mxu0 0.0
  %2910 = vmatpush2.msra.mxu0 %v2551
  %2911 = vmatprep.subr.mxu0 0.0
  %2912 = vmatpush2.msra.mxu0 %v2550
  %2913 = vmatprep.subr.mxu0 0.0
  %2914 = vmatpush2.msra.mxu0 %v2549
  %2915 = vmatprep.mubr.f32.mxu0 %v582
  %2916 = vmatmul.mubr.f32.gmra.mxu0 %v580
  %v2917 = vpop.f32.mrf.mxu0
  %v2918 = vadd.f32 %v2848, %v2917
  %v2919 = vpop.f32.mrf.mxu0
  %2920 = vdwg.mxu0
  %v2921 = vld [vmem:[%s1009] sm:$0xff]
  %v2922 = vld [vmem:[%s1009 + $0x8] sm:$0xff]
  %v2923 = vld [vmem:[%s1009 + $0x10] sm:$0xff]
  %v2924 = vld [vmem:[%s1009 + $0x18] sm:$0xff]
  %v2925 = vld [vmem:[%s1009 + $0x20] sm:$0xff]
  %v2926 = vld [vmem:[%s1009 + $0x28] sm:$0xff]
  %v2927 = vld [vmem:[%s1009 + $0x30] sm:$0xff]
  %v2928 = vld [vmem:[%s1009 + $0x38] sm:$0xff]
  %v2929 = vld [vmem:[%s1009 + $0x40] sm:$0xff]
  %v2930 = vld [vmem:[%s1009 + $0x48] sm:$0xff]
  %v2931 = vld [vmem:[%s1009 + $0x50] sm:$0xff]
  %v2932 = vld [vmem:[%s1009 + $0x58] sm:$0xff]
  %v2933 = vld [vmem:[%s1009 + $0x60] sm:$0xff]
  %v2934 = vld [vmem:[%s1009 + $0x68] sm:$0xff]
  %v2935 = vld [vmem:[%s1009 + $0x70] sm:$0xff]
  %v2936 = vld [vmem:[%s1009 + $0x78] sm:$0xff]
  %v2937 = vld [vmem:[%s1009 + $0x80] sm:$0xff]
  %v2938 = vld [vmem:[%s1009 + $0x88] sm:$0xff]
  %v2939 = vld [vmem:[%s1009 + $0x90] sm:$0xff]
  %v2940 = vld [vmem:[%s1009 + $0x98] sm:$0xff]
  %v2941 = vld [vmem:[%s1009 + $0xa0] sm:$0xff]
  %v2942 = vld [vmem:[%s1009 + $0xa8] sm:$0xff]
  %v2943 = vld [vmem:[%s1009 + $0xb0] sm:$0xff]
  %v2944 = vld [vmem:[%s1009 + $0xb8] sm:$0xff]
  %v2945 = vld [vmem:[%s1009 + $0xc0] sm:$0xff]
  %v2946 = vld [vmem:[%s1009 + $0xc8] sm:$0xff]
  %v2947 = vld [vmem:[%s1009 + $0xd0] sm:$0xff]
  %v2948 = vld [vmem:[%s1009 + $0xd8] sm:$0xff]
  %v2949 = vld [vmem:[%s1009 + $0xe0] sm:$0xff]
  %v2950 = vld [vmem:[%s1009 + $0xe8] sm:$0xff]
  %v2951 = vld [vmem:[%s1009 + $0xf0] sm:$0xff]
  %v2952 = vld [vmem:[%s1009 + $0xf8] sm:$0xff]
  %v2953 = vld [vmem:[%s1009 + $0x100] sm:$0xff]
  %v2954 = vld [vmem:[%s1009 + $0x108] sm:$0xff]
  %v2955 = vld [vmem:[%s1009 + $0x110] sm:$0xff]
  %v2956 = vld [vmem:[%s1009 + $0x118] sm:$0xff]
  %v2957 = vld [vmem:[%s1009 + $0x120] sm:$0xff]
  %v2958 = vld [vmem:[%s1009 + $0x128] sm:$0xff]
  %v2959 = vld [vmem:[%s1009 + $0x130] sm:$0xff]
  %v2960 = vld [vmem:[%s1009 + $0x138] sm:$0xff]
  %v2961 = vld [vmem:[%s1009 + $0x140] sm:$0xff]
  %v2962 = vld [vmem:[%s1009 + $0x148] sm:$0xff]
  %v2963 = vld [vmem:[%s1009 + $0x150] sm:$0xff]
  %v2964 = vld [vmem:[%s1009 + $0x158] sm:$0xff]
  %v2965 = vld [vmem:[%s1009 + $0x160] sm:$0xff]
  %v2966 = vld [vmem:[%s1009 + $0x168] sm:$0xff]
  %v2967 = vld [vmem:[%s1009 + $0x170] sm:$0xff]
  %v2968 = vld [vmem:[%s1009 + $0x178] sm:$0xff]
  %v2969 = vld [vmem:[%s1009 + $0x180] sm:$0xff]
  %v2970 = vld [vmem:[%s1009 + $0x188] sm:$0xff]
  %v2971 = vld [vmem:[%s1009 + $0x190] sm:$0xff]
  %v2972 = vld [vmem:[%s1009 + $0x198] sm:$0xff]
  %v2973 = vld [vmem:[%s1009 + $0x1a0] sm:$0xff]
  %v2974 = vld [vmem:[%s1009 + $0x1a8] sm:$0xff]
  %v2975 = vld [vmem:[%s1009 + $0x1b0] sm:$0xff]
  %v2976 = vld [vmem:[%s1009 + $0x1b8] sm:$0xff]
  %v2977 = vld [vmem:[%s1009 + $0x1c0] sm:$0xff]
  %v2978 = vld [vmem:[%s1009 + $0x1c8] sm:$0xff]
  %v2979 = vld [vmem:[%s1009 + $0x1d0] sm:$0xff]
  %v2980 = vld [vmem:[%s1009 + $0x1d8] sm:$0xff]
  %v2981 = vld [vmem:[%s1009 + $0x1e0] sm:$0xff]
  %v2982 = vld [vmem:[%s1009 + $0x1e8] sm:$0xff]
  %v2983 = vld [vmem:[%s1009 + $0x1f0] sm:$0xff]
  %v2984 = vld [vmem:[%s1009 + $0x1f8] sm:$0xff]
  %v2985 = vrot.slane %v537, 2
  %v2986 = vrot.slane %v539, 2
  %v2987 = vrot.slane %v580, 2
  %v2988 = vrot.slane %v582, 2
  %2993 = vmatprep.subr.mxu0 0.0
  %2994 = vmatpush1.msra.mxu0 %v2936
  %2995 = vmatprep.subr.mxu0 0.0
  %2996 = vmatpush1.msra.mxu0 %v2935
  %2997 = vmatprep.subr.mxu0 0.0
  %2998 = vmatpush1.msra.mxu0 %v2934
  %2999 = vmatprep.subr.mxu0 0.0
  %3000 = vmatpush1.msra.mxu0 %v2933
  %3001 = vmatprep.subr.mxu0 0.0
  %3002 = vmatpush1.msra.mxu0 %v2932
  %3003 = vmatprep.subr.mxu0 0.0
  %3004 = vmatpush1.msra.mxu0 %v2931
  %3005 = vmatprep.subr.mxu0 0.0
  %3006 = vmatpush1.msra.mxu0 %v2930
  %3007 = vmatprep.subr.mxu0 0.0
  %3008 = vmatpush1.msra.mxu0 %v2929
  %3009 = vmatprep.subr.mxu0 0.0
  %3010 = vmatpush1.msra.mxu0 %v2928
  %3011 = vmatprep.subr.mxu0 0.0
  %3012 = vmatpush1.msra.mxu0 %v2927
  %3013 = vmatprep.subr.mxu0 0.0
  %3014 = vmatpush1.msra.mxu0 %v2926
  %3015 = vmatprep.subr.mxu0 0.0
  %3016 = vmatpush1.msra.mxu0 %v2925
  %3017 = vmatprep.subr.mxu0 0.0
  %3018 = vmatpush1.msra.mxu0 %v2924
  %3019 = vmatprep.subr.mxu0 0.0
  %3020 = vmatpush1.msra.mxu0 %v2923
  %3021 = vmatprep.subr.mxu0 0.0
  %3022 = vmatpush1.msra.mxu0 %v2922
  %3023 = vmatprep.subr.mxu0 0.0
  %3024 = vmatpush1.msra.mxu0 %v2921
  %3025 = vmatprep.subr.mxu0 0.0
  %3026 = vmatpush2.msra.mxu0 %v2952
  %3027 = vmatprep.subr.mxu0 0.0
  %3028 = vmatpush2.msra.mxu0 %v2951
  %3029 = vmatprep.subr.mxu0 0.0
  %3030 = vmatpush2.msra.mxu0 %v2950
  %3031 = vmatprep.subr.mxu0 0.0
  %3032 = vmatpush2.msra.mxu0 %v2949
  %3033 = vmatprep.subr.mxu0 0.0
  %3034 = vmatpush2.msra.mxu0 %v2948
  %3035 = vmatprep.subr.mxu0 0.0
  %3036 = vmatpush2.msra.mxu0 %v2947
  %3037 = vmatprep.subr.mxu0 0.0
  %3038 = vmatpush2.msra.mxu0 %v2946
  %3039 = vmatprep.subr.mxu0 0.0
  %3040 = vmatpush2.msra.mxu0 %v2945
  %3041 = vmatprep.subr.mxu0 0.0
  %3042 = vmatpush2.msra.mxu0 %v2944
  %3043 = vmatprep.subr.mxu0 0.0
  %3044 = vmatpush2.msra.mxu0 %v2943
  %3045 = vmatprep.subr.mxu0 0.0
  %3046 = vmatpush2.msra.mxu0 %v2942
  %3047 = vmatprep.subr.mxu0 0.0
  %3048 = vmatpush2.msra.mxu0 %v2941
  %3049 = vmatprep.subr.mxu0 0.0
  %3050 = vmatpush2.msra.mxu0 %v2940
  %3051 = vmatprep.subr.mxu0 0.0
  %3052 = vmatpush2.msra.mxu0 %v2939
  %3053 = vmatprep.subr.mxu0 0.0
  %3054 = vmatpush2.msra.mxu0 %v2938
  %3055 = vmatprep.subr.mxu0 0.0
  %3056 = vmatpush2.msra.mxu0 %v2937
  %3057 = vmatprep.mubr.f32.mxu0 %v2986
  %3058 = vmatmul.mubr.f32.gmra.mxu0 %v2985
  %v3059 = vpop.f32.mrf.mxu0
  %v3060 = vadd.f32 0.0, %v3059
  %v3061 = vpop.f32.mrf.mxu0
  %3062 = vdwg.mxu0
  %3063 = vmatprep.subr.mxu0 0.0
  %3064 = vmatpush1.msra.mxu0 %v2968
  %3065 = vmatprep.subr.mxu0 0.0
  %3066 = vmatpush1.msra.mxu0 %v2967
  %3067 = vmatprep.subr.mxu0 0.0
  %3068 = vmatpush1.msra.mxu0 %v2966
  %3069 = vmatprep.subr.mxu0 0.0
  %3070 = vmatpush1.msra.mxu0 %v2965
  %3071 = vmatprep.subr.mxu0 0.0
  %3072 = vmatpush1.msra.mxu0 %v2964
  %3073 = vmatprep.subr.mxu0 0.0
  %3074 = vmatpush1.msra.mxu0 %v2963
  %3075 = vmatprep.subr.mxu0 0.0
  %3076 = vmatpush1.msra.mxu0 %v2962
  %3077 = vmatprep.subr.mxu0 0.0
  %3078 = vmatpush1.msra.mxu0 %v2961
  %3079 = vmatprep.subr.mxu0 0.0
  %3080 = vmatpush1.msra.mxu0 %v2960
  %3081 = vmatprep.subr.mxu0 0.0
  %3082 = vmatpush1.msra.mxu0 %v2959
  %3083 = vmatprep.subr.mxu0 0.0
  %3084 = vmatpush1.msra.mxu0 %v2958
  %3085 = vmatprep.subr.mxu0 0.0
  %3086 = vmatpush1.msra.mxu0 %v2957
  %3087 = vmatprep.subr.mxu0 0.0
  %3088 = vmatpush1.msra.mxu0 %v2956
  %3089 = vmatprep.subr.mxu0 0.0
  %3090 = vmatpush1.msra.mxu0 %v2955
  %3091 = vmatprep.subr.mxu0 0.0
  %3092 = vmatpush1.msra.mxu0 %v2954
  %3093 = vmatprep.subr.mxu0 0.0
  %3094 = vmatpush1.msra.mxu0 %v2953
  %3095 = vmatprep.subr.mxu0 0.0
  %3096 = vmatpush2.msra.mxu0 %v2984
  %3097 = vmatprep.subr.mxu0 0.0
  %3098 = vmatpush2.msra.mxu0 %v2983
  %3099 = vmatprep.subr.mxu0 0.0
  %3100 = vmatpush2.msra.mxu0 %v2982
  %3101 = vmatprep.subr.mxu0 0.0
  %3102 = vmatpush2.msra.mxu0 %v2981
  %3103 = vmatprep.subr.mxu0 0.0
  %3104 = vmatpush2.msra.mxu0 %v2980
  %3105 = vmatprep.subr.mxu0 0.0
  %3106 = vmatpush2.msra.mxu0 %v2979
  %3107 = vmatprep.subr.mxu0 0.0
  %3108 = vmatpush2.msra.mxu0 %v2978
  %3109 = vmatprep.subr.mxu0 0.0
  %3110 = vmatpush2.msra.mxu0 %v2977
  %3111 = vmatprep.subr.mxu0 0.0
  %3112 = vmatpush2.msra.mxu0 %v2976
  %3113 = vmatprep.subr.mxu0 0.0
  %3114 = vmatpush2.msra.mxu0 %v2975
  %3115 = vmatprep.subr.mxu0 0.0
  %3116 = vmatpush2.msra.mxu0 %v2974
  %3117 = vmatprep.subr.mxu0 0.0
  %3118 = vmatpush2.msra.mxu0 %v2973
  %3119 = vmatprep.subr.mxu0 0.0
  %3120 = vmatpush2.msra.mxu0 %v2972
  %3121 = vmatprep.subr.mxu0 0.0
  %3122 = vmatpush2.msra.mxu0 %v2971
  %3123 = vmatprep.subr.mxu0 0.0
  %3124 = vmatpush2.msra.mxu0 %v2970
  %3125 = vmatprep.subr.mxu0 0.0
  %3126 = vmatpush2.msra.mxu0 %v2969
  %3127 = vmatprep.mubr.f32.mxu0 %v2988
  %3128 = vmatmul.mubr.f32.gmra.mxu0 %v2987
  %v3129 = vpop.f32.mrf.mxu0
  %v3130 = vadd.f32 %v3060, %v3129
  %v3131 = vpop.f32.mrf.mxu0
  %3132 = vdwg.mxu0
  %v3133 = vadd.f32 %v2918, %v3130
  %v3134 = vld [vmem:[%s1223] sm:$0xff]
  %v3135 = vld [vmem:[%s1223 + $0x8] sm:$0xff]
  %v3136 = vld [vmem:[%s1223 + $0x10] sm:$0xff]
  %v3137 = vld [vmem:[%s1223 + $0x18] sm:$0xff]
  %v3138 = vld [vmem:[%s1223 + $0x20] sm:$0xff]
  %v3139 = vld [vmem:[%s1223 + $0x28] sm:$0xff]
  %v3140 = vld [vmem:[%s1223 + $0x30] sm:$0xff]
  %v3141 = vld [vmem:[%s1223 + $0x38] sm:$0xff]
  %v3142 = vld [vmem:[%s1223 + $0x40] sm:$0xff]
  %v3143 = vld [vmem:[%s1223 + $0x48] sm:$0xff]
  %v3144 = vld [vmem:[%s1223 + $0x50] sm:$0xff]
  %v3145 = vld [vmem:[%s1223 + $0x58] sm:$0xff]
  %v3146 = vld [vmem:[%s1223 + $0x60] sm:$0xff]
  %v3147 = vld [vmem:[%s1223 + $0x68] sm:$0xff]
  %v3148 = vld [vmem:[%s1223 + $0x70] sm:$0xff]
  %v3149 = vld [vmem:[%s1223 + $0x78] sm:$0xff]
  %v3150 = vld [vmem:[%s1223 + $0x80] sm:$0xff]
  %v3151 = vld [vmem:[%s1223 + $0x88] sm:$0xff]
  %v3152 = vld [vmem:[%s1223 + $0x90] sm:$0xff]
  %v3153 = vld [vmem:[%s1223 + $0x98] sm:$0xff]
  %v3154 = vld [vmem:[%s1223 + $0xa0] sm:$0xff]
  %v3155 = vld [vmem:[%s1223 + $0xa8] sm:$0xff]
  %v3156 = vld [vmem:[%s1223 + $0xb0] sm:$0xff]
  %v3157 = vld [vmem:[%s1223 + $0xb8] sm:$0xff]
  %v3158 = vld [vmem:[%s1223 + $0xc0] sm:$0xff]
  %v3159 = vld [vmem:[%s1223 + $0xc8] sm:$0xff]
  %v3160 = vld [vmem:[%s1223 + $0xd0] sm:$0xff]
  %v3161 = vld [vmem:[%s1223 + $0xd8] sm:$0xff]
  %v3162 = vld [vmem:[%s1223 + $0xe0] sm:$0xff]
  %v3163 = vld [vmem:[%s1223 + $0xe8] sm:$0xff]
  %v3164 = vld [vmem:[%s1223 + $0xf0] sm:$0xff]
  %v3165 = vld [vmem:[%s1223 + $0xf8] sm:$0xff]
  %v3166 = vld [vmem:[%s1223 + $0x100] sm:$0xff]
  %v3167 = vld [vmem:[%s1223 + $0x108] sm:$0xff]
  %v3168 = vld [vmem:[%s1223 + $0x110] sm:$0xff]
  %v3169 = vld [vmem:[%s1223 + $0x118] sm:$0xff]
  %v3170 = vld [vmem:[%s1223 + $0x120] sm:$0xff]
  %v3171 = vld [vmem:[%s1223 + $0x128] sm:$0xff]
  %v3172 = vld [vmem:[%s1223 + $0x130] sm:$0xff]
  %v3173 = vld [vmem:[%s1223 + $0x138] sm:$0xff]
  %v3174 = vld [vmem:[%s1223 + $0x140] sm:$0xff]
  %v3175 = vld [vmem:[%s1223 + $0x148] sm:$0xff]
  %v3176 = vld [vmem:[%s1223 + $0x150] sm:$0xff]
  %v3177 = vld [vmem:[%s1223 + $0x158] sm:$0xff]
  %v3178 = vld [vmem:[%s1223 + $0x160] sm:$0xff]
  %v3179 = vld [vmem:[%s1223 + $0x168] sm:$0xff]
  %v3180 = vld [vmem:[%s1223 + $0x170] sm:$0xff]
  %v3181 = vld [vmem:[%s1223 + $0x178] sm:$0xff]
  %v3182 = vld [vmem:[%s1223 + $0x180] sm:$0xff]
  %v3183 = vld [vmem:[%s1223 + $0x188] sm:$0xff]
  %v3184 = vld [vmem:[%s1223 + $0x190] sm:$0xff]
  %v3185 = vld [vmem:[%s1223 + $0x198] sm:$0xff]
  %v3186 = vld [vmem:[%s1223 + $0x1a0] sm:$0xff]
  %v3187 = vld [vmem:[%s1223 + $0x1a8] sm:$0xff]
  %v3188 = vld [vmem:[%s1223 + $0x1b0] sm:$0xff]
  %v3189 = vld [vmem:[%s1223 + $0x1b8] sm:$0xff]
  %v3190 = vld [vmem:[%s1223 + $0x1c0] sm:$0xff]
  %v3191 = vld [vmem:[%s1223 + $0x1c8] sm:$0xff]
  %v3192 = vld [vmem:[%s1223 + $0x1d0] sm:$0xff]
  %v3193 = vld [vmem:[%s1223 + $0x1d8] sm:$0xff]
  %v3194 = vld [vmem:[%s1223 + $0x1e0] sm:$0xff]
  %v3195 = vld [vmem:[%s1223 + $0x1e8] sm:$0xff]
  %v3196 = vld [vmem:[%s1223 + $0x1f0] sm:$0xff]
  %v3197 = vld [vmem:[%s1223 + $0x1f8] sm:$0xff]
  %v3198 = vrot.slane %v537, 3
  %v3199 = vrot.slane %v539, 3
  %v3200 = vrot.slane %v580, 3
  %v3201 = vrot.slane %v582, 3
  %3206 = vmatprep.subr.mxu0 0.0
  %3207 = vmatpush1.msra.mxu0 %v3149
  %3208 = vmatprep.subr.mxu0 0.0
  %3209 = vmatpush1.msra.mxu0 %v3148
  %3210 = vmatprep.subr.mxu0 0.0
  %3211 = vmatpush1.msra.mxu0 %v3147
  %3212 = vmatprep.subr.mxu0 0.0
  %3213 = vmatpush1.msra.mxu0 %v3146
  %3214 = vmatprep.subr.mxu0 0.0
  %3215 = vmatpush1.msra.mxu0 %v3145
  %3216 = vmatprep.subr.mxu0 0.0
  %3217 = vmatpush1.msra.mxu0 %v3144
  %3218 = vmatprep.subr.mxu0 0.0
  %3219 = vmatpush1.msra.mxu0 %v3143
  %3220 = vmatprep.subr.mxu0 0.0
  %3221 = vmatpush1.msra.mxu0 %v3142
  %3222 = vmatprep.subr.mxu0 0.0
  %3223 = vmatpush1.msra.mxu0 %v3141
  %3224 = vmatprep.subr.mxu0 0.0
  %3225 = vmatpush1.msra.mxu0 %v3140
  %3226 = vmatprep.subr.mxu0 0.0
  %3227 = vmatpush1.msra.mxu0 %v3139
  %3228 = vmatprep.subr.mxu0 0.0
  %3229 = vmatpush1.msra.mxu0 %v3138
  %3230 = vmatprep.subr.mxu0 0.0
  %3231 = vmatpush1.msra.mxu0 %v3137
  %3232 = vmatprep.subr.mxu0 0.0
  %3233 = vmatpush1.msra.mxu0 %v3136
  %3234 = vmatprep.subr.mxu0 0.0
  %3235 = vmatpush1.msra.mxu0 %v3135
  %3236 = vmatprep.subr.mxu0 0.0
  %3237 = vmatpush1.msra.mxu0 %v3134
  %3238 = vmatprep.subr.mxu0 0.0
  %3239 = vmatpush2.msra.mxu0 %v3165
  %3240 = vmatprep.subr.mxu0 0.0
  %3241 = vmatpush2.msra.mxu0 %v3164
  %3242 = vmatprep.subr.mxu0 0.0
  %3243 = vmatpush2.msra.mxu0 %v3163
  %3244 = vmatprep.subr.mxu0 0.0
  %3245 = vmatpush2.msra.mxu0 %v3162
  %3246 = vmatprep.subr.mxu0 0.0
  %3247 = vmatpush2.msra.mxu0 %v3161
  %3248 = vmatprep.subr.mxu0 0.0
  %3249 = vmatpush2.msra.mxu0 %v3160
  %3250 = vmatprep.subr.mxu0 0.0
  %3251 = vmatpush2.msra.mxu0 %v3159
  %3252 = vmatprep.subr.mxu0 0.0
  %3253 = vmatpush2.msra.mxu0 %v3158
  %3254 = vmatprep.subr.mxu0 0.0
  %3255 = vmatpush2.msra.mxu0 %v3157
  %3256 = vmatprep.subr.mxu0 0.0
  %3257 = vmatpush2.msra.mxu0 %v3156
  %3258 = vmatprep.subr.mxu0 0.0
  %3259 = vmatpush2.msra.mxu0 %v3155
  %3260 = vmatprep.subr.mxu0 0.0
  %3261 = vmatpush2.msra.mxu0 %v3154
  %3262 = vmatprep.subr.mxu0 0.0
  %3263 = vmatpush2.msra.mxu0 %v3153
  %3264 = vmatprep.subr.mxu0 0.0
  %3265 = vmatpush2.msra.mxu0 %v3152
  %3266 = vmatprep.subr.mxu0 0.0
  %3267 = vmatpush2.msra.mxu0 %v3151
  %3268 = vmatprep.subr.mxu0 0.0
  %3269 = vmatpush2.msra.mxu0 %v3150
  %3270 = vmatprep.mubr.f32.mxu0 %v3199
  %3271 = vmatmul.mubr.f32.gmra.mxu0 %v3198
  %v3272 = vpop.f32.mrf.mxu0
  %v3273 = vadd.f32 0.0, %v3272
  %v3274 = vpop.f32.mrf.mxu0
  %3275 = vdwg.mxu0
  %3276 = vmatprep.subr.mxu0 0.0
  %3277 = vmatpush1.msra.mxu0 %v3181
  %3278 = vmatprep.subr.mxu0 0.0
  %3279 = vmatpush1.msra.mxu0 %v3180
  %3280 = vmatprep.subr.mxu0 0.0
  %3281 = vmatpush1.msra.mxu0 %v3179
  %3282 = vmatprep.subr.mxu0 0.0
  %3283 = vmatpush1.msra.mxu0 %v3178
  %3284 = vmatprep.subr.mxu0 0.0
  %3285 = vmatpush1.msra.mxu0 %v3177
  %3286 = vmatprep.subr.mxu0 0.0
  %3287 = vmatpush1.msra.mxu0 %v3176
  %3288 = vmatprep.subr.mxu0 0.0
  %3289 = vmatpush1.msra.mxu0 %v3175
  %3290 = vmatprep.subr.mxu0 0.0
  %3291 = vmatpush1.msra.mxu0 %v3174
  %3292 = vmatprep.subr.mxu0 0.0
  %3293 = vmatpush1.msra.mxu0 %v3173
  %3294 = vmatprep.subr.mxu0 0.0
  %3295 = vmatpush1.msra.mxu0 %v3172
  %3296 = vmatprep.subr.mxu0 0.0
  %3297 = vmatpush1.msra.mxu0 %v3171
  %3298 = vmatprep.subr.mxu0 0.0
  %3299 = vmatpush1.msra.mxu0 %v3170
  %3300 = vmatprep.subr.mxu0 0.0
  %3301 = vmatpush1.msra.mxu0 %v3169
  %3302 = vmatprep.subr.mxu0 0.0
  %3303 = vmatpush1.msra.mxu0 %v3168
  %3304 = vmatprep.subr.mxu0 0.0
  %3305 = vmatpush1.msra.mxu0 %v3167
  %3306 = vmatprep.subr.mxu0 0.0
  %3307 = vmatpush1.msra.mxu0 %v3166
  %3308 = vmatprep.subr.mxu0 0.0
  %3309 = vmatpush2.msra.mxu0 %v3197
  %3310 = vmatprep.subr.mxu0 0.0
  %3311 = vmatpush2.msra.mxu0 %v3196
  %3312 = vmatprep.subr.mxu0 0.0
  %3313 = vmatpush2.msra.mxu0 %v3195
  %3314 = vmatprep.subr.mxu0 0.0
  %3315 = vmatpush2.msra.mxu0 %v3194
  %3316 = vmatprep.subr.mxu0 0.0
  %3317 = vmatpush2.msra.mxu0 %v3193
  %3318 = vmatprep.subr.mxu0 0.0
  %3319 = vmatpush2.msra.mxu0 %v3192
  %3320 = vmatprep.subr.mxu0 0.0
  %3321 = vmatpush2.msra.mxu0 %v3191
  %3322 = vmatprep.subr.mxu0 0.0
  %3323 = vmatpush2.msra.mxu0 %v3190
  %3324 = vmatprep.subr.mxu0 0.0
  %3325 = vmatpush2.msra.mxu0 %v3189
  %3326 = vmatprep.subr.mxu0 0.0
  %3327 = vmatpush2.msra.mxu0 %v3188
  %3328 = vmatprep.subr.mxu0 0.0
  %3329 = vmatpush2.msra.mxu0 %v3187
  %3330 = vmatprep.subr.mxu0 0.0
  %3331 = vmatpush2.msra.mxu0 %v3186
  %3332 = vmatprep.subr.mxu0 0.0
  %3333 = vmatpush2.msra.mxu0 %v3185
  %3334 = vmatprep.subr.mxu0 0.0
  %3335 = vmatpush2.msra.mxu0 %v3184
  %3336 = vmatprep.subr.mxu0 0.0
  %3337 = vmatpush2.msra.mxu0 %v3183
  %3338 = vmatprep.subr.mxu0 0.0
  %3339 = vmatpush2.msra.mxu0 %v3182
  %3340 = vmatprep.mubr.f32.mxu0 %v3201
  %3341 = vmatmul.mubr.f32.gmra.mxu0 %v3200
  %v3342 = vpop.f32.mrf.mxu0
  %v3343 = vadd.f32 %v3273, %v3342
  %v3344 = vpop.f32.mrf.mxu0
  %3345 = vdwg.mxu0
  %v3346 = vadd.f32 %v3133, %v3343
  %v3347 = vld [vmem:[%s1437] sm:$0xff]
  %v3348 = vld [vmem:[%s1437 + $0x8] sm:$0xff]
  %v3349 = vld [vmem:[%s1437 + $0x10] sm:$0xff]
  %v3350 = vld [vmem:[%s1437 + $0x18] sm:$0xff]
  %v3351 = vld [vmem:[%s1437 + $0x20] sm:$0xff]
  %v3352 = vld [vmem:[%s1437 + $0x28] sm:$0xff]
  %v3353 = vld [vmem:[%s1437 + $0x30] sm:$0xff]
  %v3354 = vld [vmem:[%s1437 + $0x38] sm:$0xff]
  %v3355 = vld [vmem:[%s1437 + $0x40] sm:$0xff]
  %v3356 = vld [vmem:[%s1437 + $0x48] sm:$0xff]
  %v3357 = vld [vmem:[%s1437 + $0x50] sm:$0xff]
  %v3358 = vld [vmem:[%s1437 + $0x58] sm:$0xff]
  %v3359 = vld [vmem:[%s1437 + $0x60] sm:$0xff]
  %v3360 = vld [vmem:[%s1437 + $0x68] sm:$0xff]
  %v3361 = vld [vmem:[%s1437 + $0x70] sm:$0xff]
  %v3362 = vld [vmem:[%s1437 + $0x78] sm:$0xff]
  %v3363 = vld [vmem:[%s1437 + $0x80] sm:$0xff]
  %v3364 = vld [vmem:[%s1437 + $0x88] sm:$0xff]
  %v3365 = vld [vmem:[%s1437 + $0x90] sm:$0xff]
  %v3366 = vld [vmem:[%s1437 + $0x98] sm:$0xff]
  %v3367 = vld [vmem:[%s1437 + $0xa0] sm:$0xff]
  %v3368 = vld [vmem:[%s1437 + $0xa8] sm:$0xff]
  %v3369 = vld [vmem:[%s1437 + $0xb0] sm:$0xff]
  %v3370 = vld [vmem:[%s1437 + $0xb8] sm:$0xff]
  %v3371 = vld [vmem:[%s1437 + $0xc0] sm:$0xff]
  %v3372 = vld [vmem:[%s1437 + $0xc8] sm:$0xff]
  %v3373 = vld [vmem:[%s1437 + $0xd0] sm:$0xff]
  %v3374 = vld [vmem:[%s1437 + $0xd8] sm:$0xff]
  %v3375 = vld [vmem:[%s1437 + $0xe0] sm:$0xff]
  %v3376 = vld [vmem:[%s1437 + $0xe8] sm:$0xff]
  %v3377 = vld [vmem:[%s1437 + $0xf0] sm:$0xff]
  %v3378 = vld [vmem:[%s1437 + $0xf8] sm:$0xff]
  %v3379 = vld [vmem:[%s1437 + $0x100] sm:$0xff]
  %v3380 = vld [vmem:[%s1437 + $0x108] sm:$0xff]
  %v3381 = vld [vmem:[%s1437 + $0x110] sm:$0xff]
  %v3382 = vld [vmem:[%s1437 + $0x118] sm:$0xff]
  %v3383 = vld [vmem:[%s1437 + $0x120] sm:$0xff]
  %v3384 = vld [vmem:[%s1437 + $0x128] sm:$0xff]
  %v3385 = vld [vmem:[%s1437 + $0x130] sm:$0xff]
  %v3386 = vld [vmem:[%s1437 + $0x138] sm:$0xff]
  %v3387 = vld [vmem:[%s1437 + $0x140] sm:$0xff]
  %v3388 = vld [vmem:[%s1437 + $0x148] sm:$0xff]
  %v3389 = vld [vmem:[%s1437 + $0x150] sm:$0xff]
  %v3390 = vld [vmem:[%s1437 + $0x158] sm:$0xff]
  %v3391 = vld [vmem:[%s1437 + $0x160] sm:$0xff]
  %v3392 = vld [vmem:[%s1437 + $0x168] sm:$0xff]
  %v3393 = vld [vmem:[%s1437 + $0x170] sm:$0xff]
  %v3394 = vld [vmem:[%s1437 + $0x178] sm:$0xff]
  %v3395 = vld [vmem:[%s1437 + $0x180] sm:$0xff]
  %v3396 = vld [vmem:[%s1437 + $0x188] sm:$0xff]
  %v3397 = vld [vmem:[%s1437 + $0x190] sm:$0xff]
  %v3398 = vld [vmem:[%s1437 + $0x198] sm:$0xff]
  %v3399 = vld [vmem:[%s1437 + $0x1a0] sm:$0xff]
  %v3400 = vld [vmem:[%s1437 + $0x1a8] sm:$0xff]
  %v3401 = vld [vmem:[%s1437 + $0x1b0] sm:$0xff]
  %v3402 = vld [vmem:[%s1437 + $0x1b8] sm:$0xff]
  %v3403 = vld [vmem:[%s1437 + $0x1c0] sm:$0xff]
  %v3404 = vld [vmem:[%s1437 + $0x1c8] sm:$0xff]
  %v3405 = vld [vmem:[%s1437 + $0x1d0] sm:$0xff]
  %v3406 = vld [vmem:[%s1437 + $0x1d8] sm:$0xff]
  %v3407 = vld [vmem:[%s1437 + $0x1e0] sm:$0xff]
  %v3408 = vld [vmem:[%s1437 + $0x1e8] sm:$0xff]
  %v3409 = vld [vmem:[%s1437 + $0x1f0] sm:$0xff]
  %v3410 = vld [vmem:[%s1437 + $0x1f8] sm:$0xff]
  %v3411 = vrot.slane %v537, 4
  %v3412 = vrot.slane %v539, 4
  %v3413 = vrot.slane %v580, 4
  %v3414 = vrot.slane %v582, 4
  %3419 = vmatprep.subr.mxu0 0.0
  %3420 = vmatpush1.msra.mxu0 %v3362
  %3421 = vmatprep.subr.mxu0 0.0
  %3422 = vmatpush1.msra.mxu0 %v3361
  %3423 = vmatprep.subr.mxu0 0.0
  %3424 = vmatpush1.msra.mxu0 %v3360
  %3425 = vmatprep.subr.mxu0 0.0
  %3426 = vmatpush1.msra.mxu0 %v3359
  %3427 = vmatprep.subr.mxu0 0.0
  %3428 = vmatpush1.msra.mxu0 %v3358
  %3429 = vmatprep.subr.mxu0 0.0
  %3430 = vmatpush1.msra.mxu0 %v3357
  %3431 = vmatprep.subr.mxu0 0.0
  %3432 = vmatpush1.msra.mxu0 %v3356
  %3433 = vmatprep.subr.mxu0 0.0
  %3434 = vmatpush1.msra.mxu0 %v3355
  %3435 = vmatprep.subr.mxu0 0.0
  %3436 = vmatpush1.msra.mxu0 %v3354
  %3437 = vmatprep.subr.mxu0 0.0
  %3438 = vmatpush1.msra.mxu0 %v3353
  %3439 = vmatprep.subr.mxu0 0.0
  %3440 = vmatpush1.msra.mxu0 %v3352
  %3441 = vmatprep.subr.mxu0 0.0
  %3442 = vmatpush1.msra.mxu0 %v3351
  %3443 = vmatprep.subr.mxu0 0.0
  %3444 = vmatpush1.msra.mxu0 %v3350
  %3445 = vmatprep.subr.mxu0 0.0
  %3446 = vmatpush1.msra.mxu0 %v3349
  %3447 = vmatprep.subr.mxu0 0.0
  %3448 = vmatpush1.msra.mxu0 %v3348
  %3449 = vmatprep.subr.mxu0 0.0
  %3450 = vmatpush1.msra.mxu0 %v3347
  %3451 = vmatprep.subr.mxu0 0.0
  %3452 = vmatpush2.msra.mxu0 %v3378
  %3453 = vmatprep.subr.mxu0 0.0
  %3454 = vmatpush2.msra.mxu0 %v3377
  %3455 = vmatprep.subr.mxu0 0.0
  %3456 = vmatpush2.msra.mxu0 %v3376
  %3457 = vmatprep.subr.mxu0 0.0
  %3458 = vmatpush2.msra.mxu0 %v3375
  %3459 = vmatprep.subr.mxu0 0.0
  %3460 = vmatpush2.msra.mxu0 %v3374
  %3461 = vmatprep.subr.mxu0 0.0
  %3462 = vmatpush2.msra.mxu0 %v3373
  %3463 = vmatprep.subr.mxu0 0.0
  %3464 = vmatpush2.msra.mxu0 %v3372
  %3465 = vmatprep.subr.mxu0 0.0
  %3466 = vmatpush2.msra.mxu0 %v3371
  %3467 = vmatprep.subr.mxu0 0.0
  %3468 = vmatpush2.msra.mxu0 %v3370
  %3469 = vmatprep.subr.mxu0 0.0
  %3470 = vmatpush2.msra.mxu0 %v3369
  %3471 = vmatprep.subr.mxu0 0.0
  %3472 = vmatpush2.msra.mxu0 %v3368
  %3473 = vmatprep.subr.mxu0 0.0
  %3474 = vmatpush2.msra.mxu0 %v3367
  %3475 = vmatprep.subr.mxu0 0.0
  %3476 = vmatpush2.msra.mxu0 %v3366
  %3477 = vmatprep.subr.mxu0 0.0
  %3478 = vmatpush2.msra.mxu0 %v3365
  %3479 = vmatprep.subr.mxu0 0.0
  %3480 = vmatpush2.msra.mxu0 %v3364
  %3481 = vmatprep.subr.mxu0 0.0
  %3482 = vmatpush2.msra.mxu0 %v3363
  %3483 = vmatprep.mubr.f32.mxu0 %v3412
  %3484 = vmatmul.mubr.f32.gmra.mxu0 %v3411
  %v3485 = vpop.f32.mrf.mxu0
  %v3486 = vadd.f32 0.0, %v3485
  %v3487 = vpop.f32.mrf.mxu0
  %3488 = vdwg.mxu0
  %3489 = vmatprep.subr.mxu0 0.0
  %3490 = vmatpush1.msra.mxu0 %v3394
  %3491 = vmatprep.subr.mxu0 0.0
  %3492 = vmatpush1.msra.mxu0 %v3393
  %3493 = vmatprep.subr.mxu0 0.0
  %3494 = vmatpush1.msra.mxu0 %v3392
  %3495 = vmatprep.subr.mxu0 0.0
  %3496 = vmatpush1.msra.mxu0 %v3391
  %3497 = vmatprep.subr.mxu0 0.0
  %3498 = vmatpush1.msra.mxu0 %v3390
  %3499 = vmatprep.subr.mxu0 0.0
  %3500 = vmatpush1.msra.mxu0 %v3389
  %3501 = vmatprep.subr.mxu0 0.0
  %3502 = vmatpush1.msra.mxu0 %v3388
  %3503 = vmatprep.subr.mxu0 0.0
  %3504 = vmatpush1.msra.mxu0 %v3387
  %3505 = vmatprep.subr.mxu0 0.0
  %3506 = vmatpush1.msra.mxu0 %v3386
  %3507 = vmatprep.subr.mxu0 0.0
  %3508 = vmatpush1.msra.mxu0 %v3385
  %3509 = vmatprep.subr.mxu0 0.0
  %3510 = vmatpush1.msra.mxu0 %v3384
  %3511 = vmatprep.subr.mxu0 0.0
  %3512 = vmatpush1.msra.mxu0 %v3383
  %3513 = vmatprep.subr.mxu0 0.0
  %3514 = vmatpush1.msra.mxu0 %v3382
  %3515 = vmatprep.subr.mxu0 0.0
  %3516 = vmatpush1.msra.mxu0 %v3381
  %3517 = vmatprep.subr.mxu0 0.0
  %3518 = vmatpush1.msra.mxu0 %v3380
  %3519 = vmatprep.subr.mxu0 0.0
  %3520 = vmatpush1.msra.mxu0 %v3379
  %3521 = vmatprep.subr.mxu0 0.0
  %3522 = vmatpush2.msra.mxu0 %v3410
  %3523 = vmatprep.subr.mxu0 0.0
  %3524 = vmatpush2.msra.mxu0 %v3409
  %3525 = vmatprep.subr.mxu0 0.0
  %3526 = vmatpush2.msra.mxu0 %v3408
  %3527 = vmatprep.subr.mxu0 0.0
  %3528 = vmatpush2.msra.mxu0 %v3407
  %3529 = vmatprep.subr.mxu0 0.0
  %3530 = vmatpush2.msra.mxu0 %v3406
  %3531 = vmatprep.subr.mxu0 0.0
  %3532 = vmatpush2.msra.mxu0 %v3405
  %3533 = vmatprep.subr.mxu0 0.0
  %3534 = vmatpush2.msra.mxu0 %v3404
  %3535 = vmatprep.subr.mxu0 0.0
  %3536 = vmatpush2.msra.mxu0 %v3403
  %3537 = vmatprep.subr.mxu0 0.0
  %3538 = vmatpush2.msra.mxu0 %v3402
  %3539 = vmatprep.subr.mxu0 0.0
  %3540 = vmatpush2.msra.mxu0 %v3401
  %3541 = vmatprep.subr.mxu0 0.0
  %3542 = vmatpush2.msra.mxu0 %v3400
  %3543 = vmatprep.subr.mxu0 0.0
  %3544 = vmatpush2.msra.mxu0 %v3399
  %3545 = vmatprep.subr.mxu0 0.0
  %3546 = vmatpush2.msra.mxu0 %v3398
  %3547 = vmatprep.subr.mxu0 0.0
  %3548 = vmatpush2.msra.mxu0 %v3397
  %3549 = vmatprep.subr.mxu0 0.0
  %3550 = vmatpush2.msra.mxu0 %v3396
  %3551 = vmatprep.subr.mxu0 0.0
  %3552 = vmatpush2.msra.mxu0 %v3395
  %3553 = vmatprep.mubr.f32.mxu0 %v3414
  %3554 = vmatmul.mubr.f32.gmra.mxu0 %v3413
  %v3555 = vpop.f32.mrf.mxu0
  %v3556 = vadd.f32 %v3486, %v3555
  %v3557 = vpop.f32.mrf.mxu0
  %3558 = vdwg.mxu0
  %v3559 = vadd.f32 %v3346, %v3556
  %v3560 = vld [vmem:[%s1651] sm:$0xff]
  %v3561 = vld [vmem:[%s1651 + $0x8] sm:$0xff]
  %v3562 = vld [vmem:[%s1651 + $0x10] sm:$0xff]
  %v3563 = vld [vmem:[%s1651 + $0x18] sm:$0xff]
  %v3564 = vld [vmem:[%s1651 + $0x20] sm:$0xff]
  %v3565 = vld [vmem:[%s1651 + $0x28] sm:$0xff]
  %v3566 = vld [vmem:[%s1651 + $0x30] sm:$0xff]
  %v3567 = vld [vmem:[%s1651 + $0x38] sm:$0xff]
  %v3568 = vld [vmem:[%s1651 + $0x40] sm:$0xff]
  %v3569 = vld [vmem:[%s1651 + $0x48] sm:$0xff]
  %v3570 = vld [vmem:[%s1651 + $0x50] sm:$0xff]
  %v3571 = vld [vmem:[%s1651 + $0x58] sm:$0xff]
  %v3572 = vld [vmem:[%s1651 + $0x60] sm:$0xff]
  %v3573 = vld [vmem:[%s1651 + $0x68] sm:$0xff]
  %v3574 = vld [vmem:[%s1651 + $0x70] sm:$0xff]
  %v3575 = vld [vmem:[%s1651 + $0x78] sm:$0xff]
  %v3576 = vld [vmem:[%s1651 + $0x80] sm:$0xff]
  %v3577 = vld [vmem:[%s1651 + $0x88] sm:$0xff]
  %v3578 = vld [vmem:[%s1651 + $0x90] sm:$0xff]
  %v3579 = vld [vmem:[%s1651 + $0x98] sm:$0xff]
  %v3580 = vld [vmem:[%s1651 + $0xa0] sm:$0xff]
  %v3581 = vld [vmem:[%s1651 + $0xa8] sm:$0xff]
  %v3582 = vld [vmem:[%s1651 + $0xb0] sm:$0xff]
  %v3583 = vld [vmem:[%s1651 + $0xb8] sm:$0xff]
  %v3584 = vld [vmem:[%s1651 + $0xc0] sm:$0xff]
  %v3585 = vld [vmem:[%s1651 + $0xc8] sm:$0xff]
  %v3586 = vld [vmem:[%s1651 + $0xd0] sm:$0xff]
  %v3587 = vld [vmem:[%s1651 + $0xd8] sm:$0xff]
  %v3588 = vld [vmem:[%s1651 + $0xe0] sm:$0xff]
  %v3589 = vld [vmem:[%s1651 + $0xe8] sm:$0xff]
  %v3590 = vld [vmem:[%s1651 + $0xf0] sm:$0xff]
  %v3591 = vld [vmem:[%s1651 + $0xf8] sm:$0xff]
  %v3592 = vld [vmem:[%s1651 + $0x100] sm:$0xff]
  %v3593 = vld [vmem:[%s1651 + $0x108] sm:$0xff]
  %v3594 = vld [vmem:[%s1651 + $0x110] sm:$0xff]
  %v3595 = vld [vmem:[%s1651 + $0x118] sm:$0xff]
  %v3596 = vld [vmem:[%s1651 + $0x120] sm:$0xff]
  %v3597 = vld [vmem:[%s1651 + $0x128] sm:$0xff]
  %v3598 = vld [vmem:[%s1651 + $0x130] sm:$0xff]
  %v3599 = vld [vmem:[%s1651 + $0x138] sm:$0xff]
  %v3600 = vld [vmem:[%s1651 + $0x140] sm:$0xff]
  %v3601 = vld [vmem:[%s1651 + $0x148] sm:$0xff]
  %v3602 = vld [vmem:[%s1651 + $0x150] sm:$0xff]
  %v3603 = vld [vmem:[%s1651 + $0x158] sm:$0xff]
  %v3604 = vld [vmem:[%s1651 + $0x160] sm:$0xff]
  %v3605 = vld [vmem:[%s1651 + $0x168] sm:$0xff]
  %v3606 = vld [vmem:[%s1651 + $0x170] sm:$0xff]
  %v3607 = vld [vmem:[%s1651 + $0x178] sm:$0xff]
  %v3608 = vld [vmem:[%s1651 + $0x180] sm:$0xff]
  %v3609 = vld [vmem:[%s1651 + $0x188] sm:$0xff]
  %v3610 = vld [vmem:[%s1651 + $0x190] sm:$0xff]
  %v3611 = vld [vmem:[%s1651 + $0x198] sm:$0xff]
  %v3612 = vld [vmem:[%s1651 + $0x1a0] sm:$0xff]
  %v3613 = vld [vmem:[%s1651 + $0x1a8] sm:$0xff]
  %v3614 = vld [vmem:[%s1651 + $0x1b0] sm:$0xff]
  %v3615 = vld [vmem:[%s1651 + $0x1b8] sm:$0xff]
  %v3616 = vld [vmem:[%s1651 + $0x1c0] sm:$0xff]
  %v3617 = vld [vmem:[%s1651 + $0x1c8] sm:$0xff]
  %v3618 = vld [vmem:[%s1651 + $0x1d0] sm:$0xff]
  %v3619 = vld [vmem:[%s1651 + $0x1d8] sm:$0xff]
  %v3620 = vld [vmem:[%s1651 + $0x1e0] sm:$0xff]
  %v3621 = vld [vmem:[%s1651 + $0x1e8] sm:$0xff]
  %v3622 = vld [vmem:[%s1651 + $0x1f0] sm:$0xff]
  %v3623 = vld [vmem:[%s1651 + $0x1f8] sm:$0xff]
  %v3624 = vrot.slane %v537, 5
  %v3625 = vrot.slane %v539, 5
  %v3626 = vrot.slane %v580, 5
  %v3627 = vrot.slane %v582, 5
  %3632 = vmatprep.subr.mxu0 0.0
  %3633 = vmatpush1.msra.mxu0 %v3575
  %3634 = vmatprep.subr.mxu0 0.0
  %3635 = vmatpush1.msra.mxu0 %v3574
  %3636 = vmatprep.subr.mxu0 0.0
  %3637 = vmatpush1.msra.mxu0 %v3573
  %3638 = vmatprep.subr.mxu0 0.0
  %3639 = vmatpush1.msra.mxu0 %v3572
  %3640 = vmatprep.subr.mxu0 0.0
  %3641 = vmatpush1.msra.mxu0 %v3571
  %3642 = vmatprep.subr.mxu0 0.0
  %3643 = vmatpush1.msra.mxu0 %v3570
  %3644 = vmatprep.subr.mxu0 0.0
  %3645 = vmatpush1.msra.mxu0 %v3569
  %3646 = vmatprep.subr.mxu0 0.0
  %3647 = vmatpush1.msra.mxu0 %v3568
  %3648 = vmatprep.subr.mxu0 0.0
  %3649 = vmatpush1.msra.mxu0 %v3567
  %3650 = vmatprep.subr.mxu0 0.0
  %3651 = vmatpush1.msra.mxu0 %v3566
  %3652 = vmatprep.subr.mxu0 0.0
  %3653 = vmatpush1.msra.mxu0 %v3565
  %3654 = vmatprep.subr.mxu0 0.0
  %3655 = vmatpush1.msra.mxu0 %v3564
  %3656 = vmatprep.subr.mxu0 0.0
  %3657 = vmatpush1.msra.mxu0 %v3563
  %3658 = vmatprep.subr.mxu0 0.0
  %3659 = vmatpush1.msra.mxu0 %v3562
  %3660 = vmatprep.subr.mxu0 0.0
  %3661 = vmatpush1.msra.mxu0 %v3561
  %3662 = vmatprep.subr.mxu0 0.0
  %3663 = vmatpush1.msra.mxu0 %v3560
  %3664 = vmatprep.subr.mxu0 0.0
  %3665 = vmatpush2.msra.mxu0 %v3591
  %3666 = vmatprep.subr.mxu0 0.0
  %3667 = vmatpush2.msra.mxu0 %v3590
  %3668 = vmatprep.subr.mxu0 0.0
  %3669 = vmatpush2.msra.mxu0 %v3589
  %3670 = vmatprep.subr.mxu0 0.0
  %3671 = vmatpush2.msra.mxu0 %v3588
  %3672 = vmatprep.subr.mxu0 0.0
  %3673 = vmatpush2.msra.mxu0 %v3587
  %3674 = vmatprep.subr.mxu0 0.0
  %3675 = vmatpush2.msra.mxu0 %v3586
  %3676 = vmatprep.subr.mxu0 0.0
  %3677 = vmatpush2.msra.mxu0 %v3585
  %3678 = vmatprep.subr.mxu0 0.0
  %3679 = vmatpush2.msra.mxu0 %v3584
  %3680 = vmatprep.subr.mxu0 0.0
  %3681 = vmatpush2.msra.mxu0 %v3583
  %3682 = vmatprep.subr.mxu0 0.0
  %3683 = vmatpush2.msra.mxu0 %v3582
  %3684 = vmatprep.subr.mxu0 0.0
  %3685 = vmatpush2.msra.mxu0 %v3581
  %3686 = vmatprep.subr.mxu0 0.0
  %3687 = vmatpush2.msra.mxu0 %v3580
  %3688 = vmatprep.subr.mxu0 0.0
  %3689 = vmatpush2.msra.mxu0 %v3579
  %3690 = vmatprep.subr.mxu0 0.0
  %3691 = vmatpush2.msra.mxu0 %v3578
  %3692 = vmatprep.subr.mxu0 0.0
  %3693 = vmatpush2.msra.mxu0 %v3577
  %3694 = vmatprep.subr.mxu0 0.0
  %3695 = vmatpush2.msra.mxu0 %v3576
  %3696 = vmatprep.mubr.f32.mxu0 %v3625
  %3697 = vmatmul.mubr.f32.gmra.mxu0 %v3624
  %v3698 = vpop.f32.mrf.mxu0
  %v3699 = vadd.f32 0.0, %v3698
  %v3700 = vpop.f32.mrf.mxu0
  %3701 = vdwg.mxu0
  %3702 = vmatprep.subr.mxu0 0.0
  %3703 = vmatpush1.msra.mxu0 %v3607
  %3704 = vmatprep.subr.mxu0 0.0
  %3705 = vmatpush1.msra.mxu0 %v3606
  %3706 = vmatprep.subr.mxu0 0.0
  %3707 = vmatpush1.msra.mxu0 %v3605
  %3708 = vmatprep.subr.mxu0 0.0
  %3709 = vmatpush1.msra.mxu0 %v3604
  %3710 = vmatprep.subr.mxu0 0.0
  %3711 = vmatpush1.msra.mxu0 %v3603
  %3712 = vmatprep.subr.mxu0 0.0
  %3713 = vmatpush1.msra.mxu0 %v3602
  %3714 = vmatprep.subr.mxu0 0.0
  %3715 = vmatpush1.msra.mxu0 %v3601
  %3716 = vmatprep.subr.mxu0 0.0
  %3717 = vmatpush1.msra.mxu0 %v3600
  %3718 = vmatprep.subr.mxu0 0.0
  %3719 = vmatpush1.msra.mxu0 %v3599
  %3720 = vmatprep.subr.mxu0 0.0
  %3721 = vmatpush1.msra.mxu0 %v3598
  %3722 = vmatprep.subr.mxu0 0.0
  %3723 = vmatpush1.msra.mxu0 %v3597
  %3724 = vmatprep.subr.mxu0 0.0
  %3725 = vmatpush1.msra.mxu0 %v3596
  %3726 = vmatprep.subr.mxu0 0.0
  %3727 = vmatpush1.msra.mxu0 %v3595
  %3728 = vmatprep.subr.mxu0 0.0
  %3729 = vmatpush1.msra.mxu0 %v3594
  %3730 = vmatprep.subr.mxu0 0.0
  %3731 = vmatpush1.msra.mxu0 %v3593
  %3732 = vmatprep.subr.mxu0 0.0
  %3733 = vmatpush1.msra.mxu0 %v3592
  %3734 = vmatprep.subr.mxu0 0.0
  %3735 = vmatpush2.msra.mxu0 %v3623
  %3736 = vmatprep.subr.mxu0 0.0
  %3737 = vmatpush2.msra.mxu0 %v3622
  %3738 = vmatprep.subr.mxu0 0.0
  %3739 = vmatpush2.msra.mxu0 %v3621
  %3740 = vmatprep.subr.mxu0 0.0
  %3741 = vmatpush2.msra.mxu0 %v3620
  %3742 = vmatprep.subr.mxu0 0.0
  %3743 = vmatpush2.msra.mxu0 %v3619
  %3744 = vmatprep.subr.mxu0 0.0
  %3745 = vmatpush2.msra.mxu0 %v3618
  %3746 = vmatprep.subr.mxu0 0.0
  %3747 = vmatpush2.msra.mxu0 %v3617
  %3748 = vmatprep.subr.mxu0 0.0
  %3749 = vmatpush2.msra.mxu0 %v3616
  %3750 = vmatprep.subr.mxu0 0.0
  %3751 = vmatpush2.msra.mxu0 %v3615
  %3752 = vmatprep.subr.mxu0 0.0
  %3753 = vmatpush2.msra.mxu0 %v3614
  %3754 = vmatprep.subr.mxu0 0.0
  %3755 = vmatpush2.msra.mxu0 %v3613
  %3756 = vmatprep.subr.mxu0 0.0
  %3757 = vmatpush2.msra.mxu0 %v3612
  %3758 = vmatprep.subr.mxu0 0.0
  %3759 = vmatpush2.msra.mxu0 %v3611
  %3760 = vmatprep.subr.mxu0 0.0
  %3761 = vmatpush2.msra.mxu0 %v3610
  %3762 = vmatprep.subr.mxu0 0.0
  %3763 = vmatpush2.msra.mxu0 %v3609
  %3764 = vmatprep.subr.mxu0 0.0
  %3765 = vmatpush2.msra.mxu0 %v3608
  %3766 = vmatprep.mubr.f32.mxu0 %v3627
  %3767 = vmatmul.mubr.f32.gmra.mxu0 %v3626
  %v3768 = vpop.f32.mrf.mxu0
  %v3769 = vadd.f32 %v3699, %v3768
  %v3770 = vpop.f32.mrf.mxu0
  %3771 = vdwg.mxu0
  %v3772 = vadd.f32 %v3559, %v3769
  %v3773 = vld [vmem:[%s1865] sm:$0xff]
  %v3774 = vld [vmem:[%s1865 + $0x8] sm:$0xff]
  %v3775 = vld [vmem:[%s1865 + $0x10] sm:$0xff]
  %v3776 = vld [vmem:[%s1865 + $0x18] sm:$0xff]
  %v3777 = vld [vmem:[%s1865 + $0x20] sm:$0xff]
  %v3778 = vld [vmem:[%s1865 + $0x28] sm:$0xff]
  %v3779 = vld [vmem:[%s1865 + $0x30] sm:$0xff]
  %v3780 = vld [vmem:[%s1865 + $0x38] sm:$0xff]
  %v3781 = vld [vmem:[%s1865 + $0x40] sm:$0xff]
  %v3782 = vld [vmem:[%s1865 + $0x48] sm:$0xff]
  %v3783 = vld [vmem:[%s1865 + $0x50] sm:$0xff]
  %v3784 = vld [vmem:[%s1865 + $0x58] sm:$0xff]
  %v3785 = vld [vmem:[%s1865 + $0x60] sm:$0xff]
  %v3786 = vld [vmem:[%s1865 + $0x68] sm:$0xff]
  %v3787 = vld [vmem:[%s1865 + $0x70] sm:$0xff]
  %v3788 = vld [vmem:[%s1865 + $0x78] sm:$0xff]
  %v3789 = vld [vmem:[%s1865 + $0x80] sm:$0xff]
  %v3790 = vld [vmem:[%s1865 + $0x88] sm:$0xff]
  %v3791 = vld [vmem:[%s1865 + $0x90] sm:$0xff]
  %v3792 = vld [vmem:[%s1865 + $0x98] sm:$0xff]
  %v3793 = vld [vmem:[%s1865 + $0xa0] sm:$0xff]
  %v3794 = vld [vmem:[%s1865 + $0xa8] sm:$0xff]
  %v3795 = vld [vmem:[%s1865 + $0xb0] sm:$0xff]
  %v3796 = vld [vmem:[%s1865 + $0xb8] sm:$0xff]
  %v3797 = vld [vmem:[%s1865 + $0xc0] sm:$0xff]
  %v3798 = vld [vmem:[%s1865 + $0xc8] sm:$0xff]
  %v3799 = vld [vmem:[%s1865 + $0xd0] sm:$0xff]
  %v3800 = vld [vmem:[%s1865 + $0xd8] sm:$0xff]
  %v3801 = vld [vmem:[%s1865 + $0xe0] sm:$0xff]
  %v3802 = vld [vmem:[%s1865 + $0xe8] sm:$0xff]
  %v3803 = vld [vmem:[%s1865 + $0xf0] sm:$0xff]
  %v3804 = vld [vmem:[%s1865 + $0xf8] sm:$0xff]
  %v3805 = vld [vmem:[%s1865 + $0x100] sm:$0xff]
  %v3806 = vld [vmem:[%s1865 + $0x108] sm:$0xff]
  %v3807 = vld [vmem:[%s1865 + $0x110] sm:$0xff]
  %v3808 = vld [vmem:[%s1865 + $0x118] sm:$0xff]
  %v3809 = vld [vmem:[%s1865 + $0x120] sm:$0xff]
  %v3810 = vld [vmem:[%s1865 + $0x128] sm:$0xff]
  %v3811 = vld [vmem:[%s1865 + $0x130] sm:$0xff]
  %v3812 = vld [vmem:[%s1865 + $0x138] sm:$0xff]
  %v3813 = vld [vmem:[%s1865 + $0x140] sm:$0xff]
  %v3814 = vld [vmem:[%s1865 + $0x148] sm:$0xff]
  %v3815 = vld [vmem:[%s1865 + $0x150] sm:$0xff]
  %v3816 = vld [vmem:[%s1865 + $0x158] sm:$0xff]
  %v3817 = vld [vmem:[%s1865 + $0x160] sm:$0xff]
  %v3818 = vld [vmem:[%s1865 + $0x168] sm:$0xff]
  %v3819 = vld [vmem:[%s1865 + $0x170] sm:$0xff]
  %v3820 = vld [vmem:[%s1865 + $0x178] sm:$0xff]
  %v3821 = vld [vmem:[%s1865 + $0x180] sm:$0xff]
  %v3822 = vld [vmem:[%s1865 + $0x188] sm:$0xff]
  %v3823 = vld [vmem:[%s1865 + $0x190] sm:$0xff]
  %v3824 = vld [vmem:[%s1865 + $0x198] sm:$0xff]
  %v3825 = vld [vmem:[%s1865 + $0x1a0] sm:$0xff]
  %v3826 = vld [vmem:[%s1865 + $0x1a8] sm:$0xff]
  %v3827 = vld [vmem:[%s1865 + $0x1b0] sm:$0xff]
  %v3828 = vld [vmem:[%s1865 + $0x1b8] sm:$0xff]
  %v3829 = vld [vmem:[%s1865 + $0x1c0] sm:$0xff]
  %v3830 = vld [vmem:[%s1865 + $0x1c8] sm:$0xff]
  %v3831 = vld [vmem:[%s1865 + $0x1d0] sm:$0xff]
  %v3832 = vld [vmem:[%s1865 + $0x1d8] sm:$0xff]
  %v3833 = vld [vmem:[%s1865 + $0x1e0] sm:$0xff]
  %v3834 = vld [vmem:[%s1865 + $0x1e8] sm:$0xff]
  %v3835 = vld [vmem:[%s1865 + $0x1f0] sm:$0xff]
  %v3836 = vld [vmem:[%s1865 + $0x1f8] sm:$0xff]
  %v3837 = vrot.slane %v537, 6
  %v3838 = vrot.slane %v539, 6
  %v3839 = vrot.slane %v580, 6
  %v3840 = vrot.slane %v582, 6
  %3845 = vmatprep.subr.mxu0 0.0
  %3846 = vmatpush1.msra.mxu0 %v3788
  %3847 = vmatprep.subr.mxu0 0.0
  %3848 = vmatpush1.msra.mxu0 %v3787
  %3849 = vmatprep.subr.mxu0 0.0
  %3850 = vmatpush1.msra.mxu0 %v3786
  %3851 = vmatprep.subr.mxu0 0.0
  %3852 = vmatpush1.msra.mxu0 %v3785
  %3853 = vmatprep.subr.mxu0 0.0
  %3854 = vmatpush1.msra.mxu0 %v3784
  %3855 = vmatprep.subr.mxu0 0.0
  %3856 = vmatpush1.msra.mxu0 %v3783
  %3857 = vmatprep.subr.mxu0 0.0
  %3858 = vmatpush1.msra.mxu0 %v3782
  %3859 = vmatprep.subr.mxu0 0.0
  %3860 = vmatpush1.msra.mxu0 %v3781
  %3861 = vmatprep.subr.mxu0 0.0
  %3862 = vmatpush1.msra.mxu0 %v3780
  %3863 = vmatprep.subr.mxu0 0.0
  %3864 = vmatpush1.msra.mxu0 %v3779
  %3865 = vmatprep.subr.mxu0 0.0
  %3866 = vmatpush1.msra.mxu0 %v3778
  %3867 = vmatprep.subr.mxu0 0.0
  %3868 = vmatpush1.msra.mxu0 %v3777
  %3869 = vmatprep.subr.mxu0 0.0
  %3870 = vmatpush1.msra.mxu0 %v3776
  %3871 = vmatprep.subr.mxu0 0.0
  %3872 = vmatpush1.msra.mxu0 %v3775
  %3873 = vmatprep.subr.mxu0 0.0
  %3874 = vmatpush1.msra.mxu0 %v3774
  %3875 = vmatprep.subr.mxu0 0.0
  %3876 = vmatpush1.msra.mxu0 %v3773
  %3877 = vmatprep.subr.mxu0 0.0
  %3878 = vmatpush2.msra.mxu0 %v3804
  %3879 = vmatprep.subr.mxu0 0.0
  %3880 = vmatpush2.msra.mxu0 %v3803
  %3881 = vmatprep.subr.mxu0 0.0
  %3882 = vmatpush2.msra.mxu0 %v3802
  %3883 = vmatprep.subr.mxu0 0.0
  %3884 = vmatpush2.msra.mxu0 %v3801
  %3885 = vmatprep.subr.mxu0 0.0
  %3886 = vmatpush2.msra.mxu0 %v3800
  %3887 = vmatprep.subr.mxu0 0.0
  %3888 = vmatpush2.msra.mxu0 %v3799
  %3889 = vmatprep.subr.mxu0 0.0
  %3890 = vmatpush2.msra.mxu0 %v3798
  %3891 = vmatprep.subr.mxu0 0.0
  %3892 = vmatpush2.msra.mxu0 %v3797
  %3893 = vmatprep.subr.mxu0 0.0
  %3894 = vmatpush2.msra.mxu0 %v3796
  %3895 = vmatprep.subr.mxu0 0.0
  %3896 = vmatpush2.msra.mxu0 %v3795
  %3897 = vmatprep.subr.mxu0 0.0
  %3898 = vmatpush2.msra.mxu0 %v3794
  %3899 = vmatprep.subr.mxu0 0.0
  %3900 = vmatpush2.msra.mxu0 %v3793
  %3901 = vmatprep.subr.mxu0 0.0
  %3902 = vmatpush2.msra.mxu0 %v3792
  %3903 = vmatprep.subr.mxu0 0.0
  %3904 = vmatpush2.msra.mxu0 %v3791
  %3905 = vmatprep.subr.mxu0 0.0
  %3906 = vmatpush2.msra.mxu0 %v3790
  %3907 = vmatprep.subr.mxu0 0.0
  %3908 = vmatpush2.msra.mxu0 %v3789
  %3909 = vmatprep.mubr.f32.mxu0 %v3838
  %3910 = vmatmul.mubr.f32.gmra.mxu0 %v3837
  %v3911 = vpop.f32.mrf.mxu0
  %v3912 = vadd.f32 0.0, %v3911
  %v3913 = vpop.f32.mrf.mxu0
  %3914 = vdwg.mxu0
  %3915 = vmatprep.subr.mxu0 0.0
  %3916 = vmatpush1.msra.mxu0 %v3820
  %3917 = vmatprep.subr.mxu0 0.0
  %3918 = vmatpush1.msra.mxu0 %v3819
  %3919 = vmatprep.subr.mxu0 0.0
  %3920 = vmatpush1.msra.mxu0 %v3818
  %3921 = vmatprep.subr.mxu0 0.0
  %3922 = vmatpush1.msra.mxu0 %v3817
  %3923 = vmatprep.subr.mxu0 0.0
  %3924 = vmatpush1.msra.mxu0 %v3816
  %3925 = vmatprep.subr.mxu0 0.0
  %3926 = vmatpush1.msra.mxu0 %v3815
  %3927 = vmatprep.subr.mxu0 0.0
  %3928 = vmatpush1.msra.mxu0 %v3814
  %3929 = vmatprep.subr.mxu0 0.0
  %3930 = vmatpush1.msra.mxu0 %v3813
  %3931 = vmatprep.subr.mxu0 0.0
  %3932 = vmatpush1.msra.mxu0 %v3812
  %3933 = vmatprep.subr.mxu0 0.0
  %3934 = vmatpush1.msra.mxu0 %v3811
  %3935 = vmatprep.subr.mxu0 0.0
  %3936 = vmatpush1.msra.mxu0 %v3810
  %3937 = vmatprep.subr.mxu0 0.0
  %3938 = vmatpush1.msra.mxu0 %v3809
  %3939 = vmatprep.subr.mxu0 0.0
  %3940 = vmatpush1.msra.mxu0 %v3808
  %3941 = vmatprep.subr.mxu0 0.0
  %3942 = vmatpush1.msra.mxu0 %v3807
  %3943 = vmatprep.subr.mxu0 0.0
  %3944 = vmatpush1.msra.mxu0 %v3806
  %3945 = vmatprep.subr.mxu0 0.0
  %3946 = vmatpush1.msra.mxu0 %v3805
  %3947 = vmatprep.subr.mxu0 0.0
  %3948 = vmatpush2.msra.mxu0 %v3836
  %3949 = vmatprep.subr.mxu0 0.0
  %3950 = vmatpush2.msra.mxu0 %v3835
  %3951 = vmatprep.subr.mxu0 0.0
  %3952 = vmatpush2.msra.mxu0 %v3834
  %3953 = vmatprep.subr.mxu0 0.0
  %3954 = vmatpush2.msra.mxu0 %v3833
  %3955 = vmatprep.subr.mxu0 0.0
  %3956 = vmatpush2.msra.mxu0 %v3832
  %3957 = vmatprep.subr.mxu0 0.0
  %3958 = vmatpush2.msra.mxu0 %v3831
  %3959 = vmatprep.subr.mxu0 0.0
  %3960 = vmatpush2.msra.mxu0 %v3830
  %3961 = vmatprep.subr.mxu0 0.0
  %3962 = vmatpush2.msra.mxu0 %v3829
  %3963 = vmatprep.subr.mxu0 0.0
  %3964 = vmatpush2.msra.mxu0 %v3828
  %3965 = vmatprep.subr.mxu0 0.0
  %3966 = vmatpush2.msra.mxu0 %v3827
  %3967 = vmatprep.subr.mxu0 0.0
  %3968 = vmatpush2.msra.mxu0 %v3826
  %3969 = vmatprep.subr.mxu0 0.0
  %3970 = vmatpush2.msra.mxu0 %v3825
  %3971 = vmatprep.subr.mxu0 0.0
  %3972 = vmatpush2.msra.mxu0 %v3824
  %3973 = vmatprep.subr.mxu0 0.0
  %3974 = vmatpush2.msra.mxu0 %v3823
  %3975 = vmatprep.subr.mxu0 0.0
  %3976 = vmatpush2.msra.mxu0 %v3822
  %3977 = vmatprep.subr.mxu0 0.0
  %3978 = vmatpush2.msra.mxu0 %v3821
  %3979 = vmatprep.mubr.f32.mxu0 %v3840
  %3980 = vmatmul.mubr.f32.gmra.mxu0 %v3839
  %v3981 = vpop.f32.mrf.mxu0
  %v3982 = vadd.f32 %v3912, %v3981
  %v3983 = vpop.f32.mrf.mxu0
  %3984 = vdwg.mxu0
  %v3985 = vadd.f32 %v3772, %v3982
  %v3986 = vld [vmem:[%s2079] sm:$0xff]
  %v3987 = vld [vmem:[%s2079 + $0x8] sm:$0xff]
  %v3988 = vld [vmem:[%s2079 + $0x10] sm:$0xff]
  %v3989 = vld [vmem:[%s2079 + $0x18] sm:$0xff]
  %v3990 = vld [vmem:[%s2079 + $0x20] sm:$0xff]
  %v3991 = vld [vmem:[%s2079 + $0x28] sm:$0xff]
  %v3992 = vld [vmem:[%s2079 + $0x30] sm:$0xff]
  %v3993 = vld [vmem:[%s2079 + $0x38] sm:$0xff]
  %v3994 = vld [vmem:[%s2079 + $0x40] sm:$0xff]
  %v3995 = vld [vmem:[%s2079 + $0x48] sm:$0xff]
  %v3996 = vld [vmem:[%s2079 + $0x50] sm:$0xff]
  %v3997 = vld [vmem:[%s2079 + $0x58] sm:$0xff]
  %v3998 = vld [vmem:[%s2079 + $0x60] sm:$0xff]
  %v3999 = vld [vmem:[%s2079 + $0x68] sm:$0xff]
  %v4000 = vld [vmem:[%s2079 + $0x70] sm:$0xff]
  %v4001 = vld [vmem:[%s2079 + $0x78] sm:$0xff]
  %v4002 = vld [vmem:[%s2079 + $0x80] sm:$0xff]
  %v4003 = vld [vmem:[%s2079 + $0x88] sm:$0xff]
  %v4004 = vld [vmem:[%s2079 + $0x90] sm:$0xff]
  %v4005 = vld [vmem:[%s2079 + $0x98] sm:$0xff]
  %v4006 = vld [vmem:[%s2079 + $0xa0] sm:$0xff]
  %v4007 = vld [vmem:[%s2079 + $0xa8] sm:$0xff]
  %v4008 = vld [vmem:[%s2079 + $0xb0] sm:$0xff]
  %v4009 = vld [vmem:[%s2079 + $0xb8] sm:$0xff]
  %v4010 = vld [vmem:[%s2079 + $0xc0] sm:$0xff]
  %v4011 = vld [vmem:[%s2079 + $0xc8] sm:$0xff]
  %v4012 = vld [vmem:[%s2079 + $0xd0] sm:$0xff]
  %v4013 = vld [vmem:[%s2079 + $0xd8] sm:$0xff]
  %v4014 = vld [vmem:[%s2079 + $0xe0] sm:$0xff]
  %v4015 = vld [vmem:[%s2079 + $0xe8] sm:$0xff]
  %v4016 = vld [vmem:[%s2079 + $0xf0] sm:$0xff]
  %v4017 = vld [vmem:[%s2079 + $0xf8] sm:$0xff]
  %v4018 = vld [vmem:[%s2079 + $0x100] sm:$0xff]
  %v4019 = vld [vmem:[%s2079 + $0x108] sm:$0xff]
  %v4020 = vld [vmem:[%s2079 + $0x110] sm:$0xff]
  %v4021 = vld [vmem:[%s2079 + $0x118] sm:$0xff]
  %v4022 = vld [vmem:[%s2079 + $0x120] sm:$0xff]
  %v4023 = vld [vmem:[%s2079 + $0x128] sm:$0xff]
  %v4024 = vld [vmem:[%s2079 + $0x130] sm:$0xff]
  %v4025 = vld [vmem:[%s2079 + $0x138] sm:$0xff]
  %v4026 = vld [vmem:[%s2079 + $0x140] sm:$0xff]
  %v4027 = vld [vmem:[%s2079 + $0x148] sm:$0xff]
  %v4028 = vld [vmem:[%s2079 + $0x150] sm:$0xff]
  %v4029 = vld [vmem:[%s2079 + $0x158] sm:$0xff]
  %v4030 = vld [vmem:[%s2079 + $0x160] sm:$0xff]
  %v4031 = vld [vmem:[%s2079 + $0x168] sm:$0xff]
  %v4032 = vld [vmem:[%s2079 + $0x170] sm:$0xff]
  %v4033 = vld [vmem:[%s2079 + $0x178] sm:$0xff]
  %v4034 = vld [vmem:[%s2079 + $0x180] sm:$0xff]
  %v4035 = vld [vmem:[%s2079 + $0x188] sm:$0xff]
  %v4036 = vld [vmem:[%s2079 + $0x190] sm:$0xff]
  %v4037 = vld [vmem:[%s2079 + $0x198] sm:$0xff]
  %v4038 = vld [vmem:[%s2079 + $0x1a0] sm:$0xff]
  %v4039 = vld [vmem:[%s2079 + $0x1a8] sm:$0xff]
  %v4040 = vld [vmem:[%s2079 + $0x1b0] sm:$0xff]
  %v4041 = vld [vmem:[%s2079 + $0x1b8] sm:$0xff]
  %v4042 = vld [vmem:[%s2079 + $0x1c0] sm:$0xff]
  %v4043 = vld [vmem:[%s2079 + $0x1c8] sm:$0xff]
  %v4044 = vld [vmem:[%s2079 + $0x1d0] sm:$0xff]
  %v4045 = vld [vmem:[%s2079 + $0x1d8] sm:$0xff]
  %v4046 = vld [vmem:[%s2079 + $0x1e0] sm:$0xff]
  %v4047 = vld [vmem:[%s2079 + $0x1e8] sm:$0xff]
  %v4048 = vld [vmem:[%s2079 + $0x1f0] sm:$0xff]
  %v4049 = vld [vmem:[%s2079 + $0x1f8] sm:$0xff]
  %v4050 = vrot.slane %v537, 7
  %v4051 = vrot.slane %v539, 7
  %v4052 = vrot.slane %v580, 7
  %v4053 = vrot.slane %v582, 7
  %4058 = vmatprep.subr.mxu0 0.0
  %4059 = vmatpush1.msra.mxu0 %v4001
  %4060 = vmatprep.subr.mxu0 0.0
  %4061 = vmatpush1.msra.mxu0 %v4000
  %4062 = vmatprep.subr.mxu0 0.0
  %4063 = vmatpush1.msra.mxu0 %v3999
  %4064 = vmatprep.subr.mxu0 0.0
  %4065 = vmatpush1.msra.mxu0 %v3998
  %4066 = vmatprep.subr.mxu0 0.0
  %4067 = vmatpush1.msra.mxu0 %v3997
  %4068 = vmatprep.subr.mxu0 0.0
  %4069 = vmatpush1.msra.mxu0 %v3996
  %4070 = vmatprep.subr.mxu0 0.0
  %4071 = vmatpush1.msra.mxu0 %v3995
  %4072 = vmatprep.subr.mxu0 0.0
  %4073 = vmatpush1.msra.mxu0 %v3994
  %4074 = vmatprep.subr.mxu0 0.0
  %4075 = vmatpush1.msra.mxu0 %v3993
  %4076 = vmatprep.subr.mxu0 0.0
  %4077 = vmatpush1.msra.mxu0 %v3992
  %4078 = vmatprep.subr.mxu0 0.0
  %4079 = vmatpush1.msra.mxu0 %v3991
  %4080 = vmatprep.subr.mxu0 0.0
  %4081 = vmatpush1.msra.mxu0 %v3990
  %4082 = vmatprep.subr.mxu0 0.0
  %4083 = vmatpush1.msra.mxu0 %v3989
  %4084 = vmatprep.subr.mxu0 0.0
  %4085 = vmatpush1.msra.mxu0 %v3988
  %4086 = vmatprep.subr.mxu0 0.0
  %4087 = vmatpush1.msra.mxu0 %v3987
  %4088 = vmatprep.subr.mxu0 0.0
  %4089 = vmatpush1.msra.mxu0 %v3986
  %4090 = vmatprep.subr.mxu0 0.0
  %4091 = vmatpush2.msra.mxu0 %v4017
  %4092 = vmatprep.subr.mxu0 0.0
  %4093 = vmatpush2.msra.mxu0 %v4016
  %4094 = vmatprep.subr.mxu0 0.0
  %4095 = vmatpush2.msra.mxu0 %v4015
  %4096 = vmatprep.subr.mxu0 0.0
  %4097 = vmatpush2.msra.mxu0 %v4014
  %4098 = vmatprep.subr.mxu0 0.0
  %4099 = vmatpush2.msra.mxu0 %v4013
  %4100 = vmatprep.subr.mxu0 0.0
  %4101 = vmatpush2.msra.mxu0 %v4012
  %4102 = vmatprep.subr.mxu0 0.0
  %4103 = vmatpush2.msra.mxu0 %v4011
  %4104 = vmatprep.subr.mxu0 0.0
  %4105 = vmatpush2.msra.mxu0 %v4010
  %4106 = vmatprep.subr.mxu0 0.0
  %4107 = vmatpush2.msra.mxu0 %v4009
  %4108 = vmatprep.subr.mxu0 0.0
  %4109 = vmatpush2.msra.mxu0 %v4008
  %4110 = vmatprep.subr.mxu0 0.0
  %4111 = vmatpush2.msra.mxu0 %v4007
  %4112 = vmatprep.subr.mxu0 0.0
  %4113 = vmatpush2.msra.mxu0 %v4006
  %4114 = vmatprep.subr.mxu0 0.0
  %4115 = vmatpush2.msra.mxu0 %v4005
  %4116 = vmatprep.subr.mxu0 0.0
  %4117 = vmatpush2.msra.mxu0 %v4004
  %4118 = vmatprep.subr.mxu0 0.0
  %4119 = vmatpush2.msra.mxu0 %v4003
  %4120 = vmatprep.subr.mxu0 0.0
  %4121 = vmatpush2.msra.mxu0 %v4002
  %4122 = vmatprep.mubr.f32.mxu0 %v4051
  %4123 = vmatmul.mubr.f32.gmra.mxu0 %v4050
  %v4124 = vpop.f32.mrf.mxu0
  %v4125 = vadd.f32 0.0, %v4124
  %v4126 = vpop.f32.mrf.mxu0
  %4127 = vdwg.mxu0
  %4128 = vmatprep.subr.mxu0 0.0
  %4129 = vmatpush1.msra.mxu0 %v4033
  %4130 = vmatprep.subr.mxu0 0.0
  %4131 = vmatpush1.msra.mxu0 %v4032
  %4132 = vmatprep.subr.mxu0 0.0
  %4133 = vmatpush1.msra.mxu0 %v4031
  %4134 = vmatprep.subr.mxu0 0.0
  %4135 = vmatpush1.msra.mxu0 %v4030
  %4136 = vmatprep.subr.mxu0 0.0
  %4137 = vmatpush1.msra.mxu0 %v4029
  %4138 = vmatprep.subr.mxu0 0.0
  %4139 = vmatpush1.msra.mxu0 %v4028
  %4140 = vmatprep.subr.mxu0 0.0
  %4141 = vmatpush1.msra.mxu0 %v4027
  %4142 = vmatprep.subr.mxu0 0.0
  %4143 = vmatpush1.msra.mxu0 %v4026
  %4144 = vmatprep.subr.mxu0 0.0
  %4145 = vmatpush1.msra.mxu0 %v4025
  %4146 = vmatprep.subr.mxu0 0.0
  %4147 = vmatpush1.msra.mxu0 %v4024
  %4148 = vmatprep.subr.mxu0 0.0
  %4149 = vmatpush1.msra.mxu0 %v4023
  %4150 = vmatprep.subr.mxu0 0.0
  %4151 = vmatpush1.msra.mxu0 %v4022
  %4152 = vmatprep.subr.mxu0 0.0
  %4153 = vmatpush1.msra.mxu0 %v4021
  %4154 = vmatprep.subr.mxu0 0.0
  %4155 = vmatpush1.msra.mxu0 %v4020
  %4156 = vmatprep.subr.mxu0 0.0
  %4157 = vmatpush1.msra.mxu0 %v4019
  %4158 = vmatprep.subr.mxu0 0.0
  %4159 = vmatpush1.msra.mxu0 %v4018
  %4160 = vmatprep.subr.mxu0 0.0
  %4161 = vmatpush2.msra.mxu0 %v4049
  %4162 = vmatprep.subr.mxu0 0.0
  %4163 = vmatpush2.msra.mxu0 %v4048
  %4164 = vmatprep.subr.mxu0 0.0
  %4165 = vmatpush2.msra.mxu0 %v4047
  %4166 = vmatprep.subr.mxu0 0.0
  %4167 = vmatpush2.msra.mxu0 %v4046
  %4168 = vmatprep.subr.mxu0 0.0
  %4169 = vmatpush2.msra.mxu0 %v4045
  %4170 = vmatprep.subr.mxu0 0.0
  %4171 = vmatpush2.msra.mxu0 %v4044
  %4172 = vmatprep.subr.mxu0 0.0
  %4173 = vmatpush2.msra.mxu0 %v4043
  %4174 = vmatprep.subr.mxu0 0.0
  %4175 = vmatpush2.msra.mxu0 %v4042
  %4176 = vmatprep.subr.mxu0 0.0
  %4177 = vmatpush2.msra.mxu0 %v4041
  %4178 = vmatprep.subr.mxu0 0.0
  %4179 = vmatpush2.msra.mxu0 %v4040
  %4180 = vmatprep.subr.mxu0 0.0
  %4181 = vmatpush2.msra.mxu0 %v4039
  %4182 = vmatprep.subr.mxu0 0.0
  %4183 = vmatpush2.msra.mxu0 %v4038
  %4184 = vmatprep.subr.mxu0 0.0
  %4185 = vmatpush2.msra.mxu0 %v4037
  %4186 = vmatprep.subr.mxu0 0.0
  %4187 = vmatpush2.msra.mxu0 %v4036
  %4188 = vmatprep.subr.mxu0 0.0
  %4189 = vmatpush2.msra.mxu0 %v4035
  %4190 = vmatprep.subr.mxu0 0.0
  %4191 = vmatpush2.msra.mxu0 %v4034
  %4192 = vmatprep.mubr.f32.mxu0 %v4053
  %4193 = vmatmul.mubr.f32.gmra.mxu0 %v4052
  %v4194 = vpop.f32.mrf.mxu0
  %v4195 = vadd.f32 %v4125, %v4194
  %v4196 = vpop.f32.mrf.mxu0
  %4197 = vdwg.mxu0
  %v4198 = vadd.f32 %v3985, %v4195
  %v4199 = vld [vmem:[%s2293] sm:$0xff]
  %v4200 = vld [vmem:[%s2293 + $0x8] sm:$0xff]
  %v4201 = vld [vmem:[%s2293 + $0x10] sm:$0xff]
  %v4202 = vld [vmem:[%s2293 + $0x18] sm:$0xff]
  %v4203 = vld [vmem:[%s2293 + $0x20] sm:$0xff]
  %v4204 = vld [vmem:[%s2293 + $0x28] sm:$0xff]
  %v4205 = vld [vmem:[%s2293 + $0x30] sm:$0xff]
  %v4206 = vld [vmem:[%s2293 + $0x38] sm:$0xff]
  %v4207 = vld [vmem:[%s2293 + $0x40] sm:$0xff]
  %v4208 = vld [vmem:[%s2293 + $0x48] sm:$0xff]
  %v4209 = vld [vmem:[%s2293 + $0x50] sm:$0xff]
  %v4210 = vld [vmem:[%s2293 + $0x58] sm:$0xff]
  %v4211 = vld [vmem:[%s2293 + $0x60] sm:$0xff]
  %v4212 = vld [vmem:[%s2293 + $0x68] sm:$0xff]
  %v4213 = vld [vmem:[%s2293 + $0x70] sm:$0xff]
  %v4214 = vld [vmem:[%s2293 + $0x78] sm:$0xff]
  %v4215 = vld [vmem:[%s2293 + $0x80] sm:$0xff]
  %v4216 = vld [vmem:[%s2293 + $0x88] sm:$0xff]
  %v4217 = vld [vmem:[%s2293 + $0x90] sm:$0xff]
  %v4218 = vld [vmem:[%s2293 + $0x98] sm:$0xff]
  %v4219 = vld [vmem:[%s2293 + $0xa0] sm:$0xff]
  %v4220 = vld [vmem:[%s2293 + $0xa8] sm:$0xff]
  %v4221 = vld [vmem:[%s2293 + $0xb0] sm:$0xff]
  %v4222 = vld [vmem:[%s2293 + $0xb8] sm:$0xff]
  %v4223 = vld [vmem:[%s2293 + $0xc0] sm:$0xff]
  %v4224 = vld [vmem:[%s2293 + $0xc8] sm:$0xff]
  %v4225 = vld [vmem:[%s2293 + $0xd0] sm:$0xff]
  %v4226 = vld [vmem:[%s2293 + $0xd8] sm:$0xff]
  %v4227 = vld [vmem:[%s2293 + $0xe0] sm:$0xff]
  %v4228 = vld [vmem:[%s2293 + $0xe8] sm:$0xff]
  %v4229 = vld [vmem:[%s2293 + $0xf0] sm:$0xff]
  %v4230 = vld [vmem:[%s2293 + $0xf8] sm:$0xff]
  %v4231 = vld [vmem:[%s2293 + $0x100] sm:$0xff]
  %v4232 = vld [vmem:[%s2293 + $0x108] sm:$0xff]
  %v4233 = vld [vmem:[%s2293 + $0x110] sm:$0xff]
  %v4234 = vld [vmem:[%s2293 + $0x118] sm:$0xff]
  %v4235 = vld [vmem:[%s2293 + $0x120] sm:$0xff]
  %v4236 = vld [vmem:[%s2293 + $0x128] sm:$0xff]
  %v4237 = vld [vmem:[%s2293 + $0x130] sm:$0xff]
  %v4238 = vld [vmem:[%s2293 + $0x138] sm:$0xff]
  %v4239 = vld [vmem:[%s2293 + $0x140] sm:$0xff]
  %v4240 = vld [vmem:[%s2293 + $0x148] sm:$0xff]
  %v4241 = vld [vmem:[%s2293 + $0x150] sm:$0xff]
  %v4242 = vld [vmem:[%s2293 + $0x158] sm:$0xff]
  %v4243 = vld [vmem:[%s2293 + $0x160] sm:$0xff]
  %v4244 = vld [vmem:[%s2293 + $0x168] sm:$0xff]
  %v4245 = vld [vmem:[%s2293 + $0x170] sm:$0xff]
  %v4246 = vld [vmem:[%s2293 + $0x178] sm:$0xff]
  %v4247 = vld [vmem:[%s2293 + $0x180] sm:$0xff]
  %v4248 = vld [vmem:[%s2293 + $0x188] sm:$0xff]
  %v4249 = vld [vmem:[%s2293 + $0x190] sm:$0xff]
  %v4250 = vld [vmem:[%s2293 + $0x198] sm:$0xff]
  %v4251 = vld [vmem:[%s2293 + $0x1a0] sm:$0xff]
  %v4252 = vld [vmem:[%s2293 + $0x1a8] sm:$0xff]
  %v4253 = vld [vmem:[%s2293 + $0x1b0] sm:$0xff]
  %v4254 = vld [vmem:[%s2293 + $0x1b8] sm:$0xff]
  %v4255 = vld [vmem:[%s2293 + $0x1c0] sm:$0xff]
  %v4256 = vld [vmem:[%s2293 + $0x1c8] sm:$0xff]
  %v4257 = vld [vmem:[%s2293 + $0x1d0] sm:$0xff]
  %v4258 = vld [vmem:[%s2293 + $0x1d8] sm:$0xff]
  %v4259 = vld [vmem:[%s2293 + $0x1e0] sm:$0xff]
  %v4260 = vld [vmem:[%s2293 + $0x1e8] sm:$0xff]
  %v4261 = vld [vmem:[%s2293 + $0x1f0] sm:$0xff]
  %v4262 = vld [vmem:[%s2293 + $0x1f8] sm:$0xff]
  %4263 = vmatprep.subr.mxu0 0.0
  %4264 = vmatpush1.msra.mxu0 %v4214
  %4265 = vmatprep.subr.mxu0 0.0
  %4266 = vmatpush1.msra.mxu0 %v4213
  %4267 = vmatprep.subr.mxu0 0.0
  %4268 = vmatpush1.msra.mxu0 %v4212
  %4269 = vmatprep.subr.mxu0 0.0
  %4270 = vmatpush1.msra.mxu0 %v4211
  %4271 = vmatprep.subr.mxu0 0.0
  %4272 = vmatpush1.msra.mxu0 %v4210
  %4273 = vmatprep.subr.mxu0 0.0
  %4274 = vmatpush1.msra.mxu0 %v4209
  %4275 = vmatprep.subr.mxu0 0.0
  %4276 = vmatpush1.msra.mxu0 %v4208
  %4277 = vmatprep.subr.mxu0 0.0
  %4278 = vmatpush1.msra.mxu0 %v4207
  %4279 = vmatprep.subr.mxu0 0.0
  %4280 = vmatpush1.msra.mxu0 %v4206
  %4281 = vmatprep.subr.mxu0 0.0
  %4282 = vmatpush1.msra.mxu0 %v4205
  %4283 = vmatprep.subr.mxu0 0.0
  %4284 = vmatpush1.msra.mxu0 %v4204
  %4285 = vmatprep.subr.mxu0 0.0
  %4286 = vmatpush1.msra.mxu0 %v4203
  %4287 = vmatprep.subr.mxu0 0.0
  %4288 = vmatpush1.msra.mxu0 %v4202
  %4289 = vmatprep.subr.mxu0 0.0
  %4290 = vmatpush1.msra.mxu0 %v4201
  %4291 = vmatprep.subr.mxu0 0.0
  %4292 = vmatpush1.msra.mxu0 %v4200
  %4293 = vmatprep.subr.mxu0 0.0
  %4294 = vmatpush1.msra.mxu0 %v4199
  %4295 = vmatprep.subr.mxu0 0.0
  %4296 = vmatpush2.msra.mxu0 %v4230
  %4297 = vmatprep.subr.mxu0 0.0
  %4298 = vmatpush2.msra.mxu0 %v4229
  %4299 = vmatprep.subr.mxu0 0.0
  %4300 = vmatpush2.msra.mxu0 %v4228
  %4301 = vmatprep.subr.mxu0 0.0
  %4302 = vmatpush2.msra.mxu0 %v4227
  %4303 = vmatprep.subr.mxu0 0.0
  %4304 = vmatpush2.msra.mxu0 %v4226
  %4305 = vmatprep.subr.mxu0 0.0
  %4306 = vmatpush2.msra.mxu0 %v4225
  %4307 = vmatprep.subr.mxu0 0.0
  %4308 = vmatpush2.msra.mxu0 %v4224
  %4309 = vmatprep.subr.mxu0 0.0
  %4310 = vmatpush2.msra.mxu0 %v4223
  %4311 = vmatprep.subr.mxu0 0.0
  %4312 = vmatpush2.msra.mxu0 %v4222
  %4313 = vmatprep.subr.mxu0 0.0
  %4314 = vmatpush2.msra.mxu0 %v4221
  %4315 = vmatprep.subr.mxu0 0.0
  %4316 = vmatpush2.msra.mxu0 %v4220
  %4317 = vmatprep.subr.mxu0 0.0
  %4318 = vmatpush2.msra.mxu0 %v4219
  %4319 = vmatprep.subr.mxu0 0.0
  %4320 = vmatpush2.msra.mxu0 %v4218
  %4321 = vmatprep.subr.mxu0 0.0
  %4322 = vmatpush2.msra.mxu0 %v4217
  %4323 = vmatprep.subr.mxu0 0.0
  %4324 = vmatpush2.msra.mxu0 %v4216
  %4325 = vmatprep.subr.mxu0 0.0
  %4326 = vmatpush2.msra.mxu0 %v4215
  %4327 = vmatprep.mubr.f32.mxu0 %v543
  %4328 = vmatmul.mubr.f32.gmra.mxu0 %v541
  %v4329 = vpop.f32.mrf.mxu0
  %v4330 = vadd.f32 0.0, %v4329
  %v4331 = vpop.f32.mrf.mxu0
  %4332 = vdwg.mxu0
  %4333 = vmatprep.subr.mxu0 0.0
  %4334 = vmatpush1.msra.mxu0 %v4246
  %4335 = vmatprep.subr.mxu0 0.0
  %4336 = vmatpush1.msra.mxu0 %v4245
  %4337 = vmatprep.subr.mxu0 0.0
  %4338 = vmatpush1.msra.mxu0 %v4244
  %4339 = vmatprep.subr.mxu0 0.0
  %4340 = vmatpush1.msra.mxu0 %v4243
  %4341 = vmatprep.subr.mxu0 0.0
  %4342 = vmatpush1.msra.mxu0 %v4242
  %4343 = vmatprep.subr.mxu0 0.0
  %4344 = vmatpush1.msra.mxu0 %v4241
  %4345 = vmatprep.subr.mxu0 0.0
  %4346 = vmatpush1.msra.mxu0 %v4240
  %4347 = vmatprep.subr.mxu0 0.0
  %4348 = vmatpush1.msra.mxu0 %v4239
  %4349 = vmatprep.subr.mxu0 0.0
  %4350 = vmatpush1.msra.mxu0 %v4238
  %4351 = vmatprep.subr.mxu0 0.0
  %4352 = vmatpush1.msra.mxu0 %v4237
  %4353 = vmatprep.subr.mxu0 0.0
  %4354 = vmatpush1.msra.mxu0 %v4236
  %4355 = vmatprep.subr.mxu0 0.0
  %4356 = vmatpush1.msra.mxu0 %v4235
  %4357 = vmatprep.subr.mxu0 0.0
  %4358 = vmatpush1.msra.mxu0 %v4234
  %4359 = vmatprep.subr.mxu0 0.0
  %4360 = vmatpush1.msra.mxu0 %v4233
  %4361 = vmatprep.subr.mxu0 0.0
  %4362 = vmatpush1.msra.mxu0 %v4232
  %4363 = vmatprep.subr.mxu0 0.0
  %4364 = vmatpush1.msra.mxu0 %v4231
  %4365 = vmatprep.subr.mxu0 0.0
  %4366 = vmatpush2.msra.mxu0 %v4262
  %4367 = vmatprep.subr.mxu0 0.0
  %4368 = vmatpush2.msra.mxu0 %v4261
  %4369 = vmatprep.subr.mxu0 0.0
  %4370 = vmatpush2.msra.mxu0 %v4260
  %4371 = vmatprep.subr.mxu0 0.0
  %4372 = vmatpush2.msra.mxu0 %v4259
  %4373 = vmatprep.subr.mxu0 0.0
  %4374 = vmatpush2.msra.mxu0 %v4258
  %4375 = vmatprep.subr.mxu0 0.0
  %4376 = vmatpush2.msra.mxu0 %v4257
  %4377 = vmatprep.subr.mxu0 0.0
  %4378 = vmatpush2.msra.mxu0 %v4256
  %4379 = vmatprep.subr.mxu0 0.0
  %4380 = vmatpush2.msra.mxu0 %v4255
  %4381 = vmatprep.subr.mxu0 0.0
  %4382 = vmatpush2.msra.mxu0 %v4254
  %4383 = vmatprep.subr.mxu0 0.0
  %4384 = vmatpush2.msra.mxu0 %v4253
  %4385 = vmatprep.subr.mxu0 0.0
  %4386 = vmatpush2.msra.mxu0 %v4252
  %4387 = vmatprep.subr.mxu0 0.0
  %4388 = vmatpush2.msra.mxu0 %v4251
  %4389 = vmatprep.subr.mxu0 0.0
  %4390 = vmatpush2.msra.mxu0 %v4250
  %4391 = vmatprep.subr.mxu0 0.0
  %4392 = vmatpush2.msra.mxu0 %v4249
  %4393 = vmatprep.subr.mxu0 0.0
  %4394 = vmatpush2.msra.mxu0 %v4248
  %4395 = vmatprep.subr.mxu0 0.0
  %4396 = vmatpush2.msra.mxu0 %v4247
  %4397 = vmatprep.mubr.f32.mxu0 %v586
  %4398 = vmatmul.mubr.f32.gmra.mxu0 %v584
  %v4399 = vpop.f32.mrf.mxu0
  %v4400 = vadd.f32 %v4330, %v4399
  %v4401 = vpop.f32.mrf.mxu0
  %4402 = vdwg.mxu0
  %v4403 = vadd.f32 %v4198, %v4400
  %4404 = vst.msk [vmem:[#allocation2 + $0x1] sm:$0x1] %vm2499, %v4403
  %v4405 = vld [vmem:[#allocation2] sm:$0x3]
  %v4406 = vld [vmem:[%s3] sm:$0xff]
  %v4407 = vld [vmem:[%s3 + $0x8] sm:$0xff]
  %v4408 = vld [vmem:[%s3 + $0x10] sm:$0xff]
  %v4409 = vld [vmem:[%s3 + $0x18] sm:$0xff]
  %v4410 = vld [vmem:[%s3 + $0x20] sm:$0xff]
  %v4411 = vld [vmem:[%s3 + $0x28] sm:$0xff]
  %v4412 = vld [vmem:[%s3 + $0x30] sm:$0xff]
  %v4413 = vld [vmem:[%s3 + $0x38] sm:$0xff]
  %v4414 = vld [vmem:[%s3 + $0x40] sm:$0xff]
  %v4415 = vld [vmem:[%s3 + $0x48] sm:$0xff]
  %v4416 = vld [vmem:[%s3 + $0x50] sm:$0xff]
  %v4417 = vld [vmem:[%s3 + $0x58] sm:$0xff]
  %v4418 = vld [vmem:[%s3 + $0x60] sm:$0xff]
  %v4419 = vld [vmem:[%s3 + $0x68] sm:$0xff]
  %v4420 = vld [vmem:[%s3 + $0x70] sm:$0xff]
  %v4421 = vld [vmem:[%s3 + $0x78] sm:$0xff]
  %v4422 = vld [vmem:[%s3 + $0x80] sm:$0xff]
  %v4423 = vld [vmem:[%s3 + $0x88] sm:$0xff]
  %v4424 = vld [vmem:[%s3 + $0x90] sm:$0xff]
  %v4425 = vld [vmem:[%s3 + $0x98] sm:$0xff]
  %v4426 = vld [vmem:[%s3 + $0xa0] sm:$0xff]
  %v4427 = vld [vmem:[%s3 + $0xa8] sm:$0xff]
  %v4428 = vld [vmem:[%s3 + $0xb0] sm:$0xff]
  %v4429 = vld [vmem:[%s3 + $0xb8] sm:$0xff]
  %v4430 = vld [vmem:[%s3 + $0xc0] sm:$0xff]
  %v4431 = vld [vmem:[%s3 + $0xc8] sm:$0xff]
  %v4432 = vld [vmem:[%s3 + $0xd0] sm:$0xff]
  %v4433 = vld [vmem:[%s3 + $0xd8] sm:$0xff]
  %v4434 = vld [vmem:[%s3 + $0xe0] sm:$0xff]
  %v4435 = vld [vmem:[%s3 + $0xe8] sm:$0xff]
  %v4436 = vld [vmem:[%s3 + $0xf0] sm:$0xff]
  %v4437 = vld [vmem:[%s3 + $0xf8] sm:$0xff]
  %v4438 = vld [vmem:[%s3 + $0x100] sm:$0xff]
  %v4439 = vld [vmem:[%s3 + $0x108] sm:$0xff]
  %v4440 = vld [vmem:[%s3 + $0x110] sm:$0xff]
  %v4441 = vld [vmem:[%s3 + $0x118] sm:$0xff]
  %v4442 = vld [vmem:[%s3 + $0x120] sm:$0xff]
  %v4443 = vld [vmem:[%s3 + $0x128] sm:$0xff]
  %v4444 = vld [vmem:[%s3 + $0x130] sm:$0xff]
  %v4445 = vld [vmem:[%s3 + $0x138] sm:$0xff]
  %v4446 = vld [vmem:[%s3 + $0x140] sm:$0xff]
  %v4447 = vld [vmem:[%s3 + $0x148] sm:$0xff]
  %v4448 = vld [vmem:[%s3 + $0x150] sm:$0xff]
  %v4449 = vld [vmem:[%s3 + $0x158] sm:$0xff]
  %v4450 = vld [vmem:[%s3 + $0x160] sm:$0xff]
  %v4451 = vld [vmem:[%s3 + $0x168] sm:$0xff]
  %v4452 = vld [vmem:[%s3 + $0x170] sm:$0xff]
  %v4453 = vld [vmem:[%s3 + $0x178] sm:$0xff]
  %v4454 = vld [vmem:[%s3 + $0x180] sm:$0xff]
  %v4455 = vld [vmem:[%s3 + $0x188] sm:$0xff]
  %v4456 = vld [vmem:[%s3 + $0x190] sm:$0xff]
  %v4457 = vld [vmem:[%s3 + $0x198] sm:$0xff]
  %v4458 = vld [vmem:[%s3 + $0x1a0] sm:$0xff]
  %v4459 = vld [vmem:[%s3 + $0x1a8] sm:$0xff]
  %v4460 = vld [vmem:[%s3 + $0x1b0] sm:$0xff]
  %v4461 = vld [vmem:[%s3 + $0x1b8] sm:$0xff]
  %v4462 = vld [vmem:[%s3 + $0x1c0] sm:$0xff]
  %v4463 = vld [vmem:[%s3 + $0x1c8] sm:$0xff]
  %v4464 = vld [vmem:[%s3 + $0x1d0] sm:$0xff]
  %v4465 = vld [vmem:[%s3 + $0x1d8] sm:$0xff]
  %v4466 = vld [vmem:[%s3 + $0x1e0] sm:$0xff]
  %v4467 = vld [vmem:[%s3 + $0x1e8] sm:$0xff]
  %v4468 = vld [vmem:[%s3 + $0x1f0] sm:$0xff]
  %v4469 = vld [vmem:[%s3 + $0x1f8] sm:$0xff]
  %v4470 = vld [vmem:[%s3 + $0x200] sm:$0xff]
  %v4471 = vld [vmem:[%s3 + $0x208] sm:$0xff]
  %v4472 = vld [vmem:[%s3 + $0x210] sm:$0xff]
  %v4473 = vld [vmem:[%s3 + $0x218] sm:$0xff]
  %v4474 = vld [vmem:[%s3 + $0x220] sm:$0xff]
  %v4475 = vld [vmem:[%s3 + $0x228] sm:$0xff]
  %v4476 = vld [vmem:[%s3 + $0x230] sm:$0xff]
  %v4477 = vld [vmem:[%s3 + $0x238] sm:$0xff]
  %v4478 = vld [vmem:[%s3 + $0x240] sm:$0xff]
  %v4479 = vld [vmem:[%s3 + $0x248] sm:$0xff]
  %v4480 = vld [vmem:[%s3 + $0x250] sm:$0xff]
  %v4481 = vld [vmem:[%s3 + $0x258] sm:$0xff]
  %v4482 = vld [vmem:[%s3 + $0x260] sm:$0xff]
  %v4483 = vld [vmem:[%s3 + $0x268] sm:$0xff]
  %v4484 = vld [vmem:[%s3 + $0x270] sm:$0xff]
  %v4485 = vld [vmem:[%s3 + $0x278] sm:$0xff]
  %v4486 = vld [vmem:[%s3 + $0x280] sm:$0xff]
  %v4487 = vld [vmem:[%s3 + $0x288] sm:$0xff]
  %v4488 = vld [vmem:[%s3 + $0x290] sm:$0xff]
  %v4489 = vld [vmem:[%s3 + $0x298] sm:$0xff]
  %v4490 = vld [vmem:[%s3 + $0x2a0] sm:$0xff]
  %v4491 = vld [vmem:[%s3 + $0x2a8] sm:$0xff]
  %v4492 = vld [vmem:[%s3 + $0x2b0] sm:$0xff]
  %v4493 = vld [vmem:[%s3 + $0x2b8] sm:$0xff]
  %v4494 = vld [vmem:[%s3 + $0x2c0] sm:$0xff]
  %v4495 = vld [vmem:[%s3 + $0x2c8] sm:$0xff]
  %v4496 = vld [vmem:[%s3 + $0x2d0] sm:$0xff]
  %v4497 = vld [vmem:[%s3 + $0x2d8] sm:$0xff]
  %v4498 = vld [vmem:[%s3 + $0x2e0] sm:$0xff]
  %v4499 = vld [vmem:[%s3 + $0x2e8] sm:$0xff]
  %v4500 = vld [vmem:[%s3 + $0x2f0] sm:$0xff]
  %v4501 = vld [vmem:[%s3 + $0x2f8] sm:$0xff]
  %v4502 = vld [vmem:[%s3 + $0x300] sm:$0xff]
  %v4503 = vld [vmem:[%s3 + $0x308] sm:$0xff]
  %v4504 = vld [vmem:[%s3 + $0x310] sm:$0xff]
  %v4505 = vld [vmem:[%s3 + $0x318] sm:$0xff]
  %v4506 = vld [vmem:[%s3 + $0x320] sm:$0xff]
  %v4507 = vld [vmem:[%s3 + $0x328] sm:$0xff]
  %v4508 = vld [vmem:[%s3 + $0x330] sm:$0xff]
  %v4509 = vld [vmem:[%s3 + $0x338] sm:$0xff]
  %v4510 = vld [vmem:[%s3 + $0x340] sm:$0xff]
  %v4511 = vld [vmem:[%s3 + $0x348] sm:$0xff]
  %v4512 = vld [vmem:[%s3 + $0x350] sm:$0xff]
  %v4513 = vld [vmem:[%s3 + $0x358] sm:$0xff]
  %v4514 = vld [vmem:[%s3 + $0x360] sm:$0xff]
  %v4515 = vld [vmem:[%s3 + $0x368] sm:$0xff]
  %v4516 = vld [vmem:[%s3 + $0x370] sm:$0xff]
  %v4517 = vld [vmem:[%s3 + $0x378] sm:$0xff]
  %v4518 = vld [vmem:[%s3 + $0x380] sm:$0xff]
  %v4519 = vld [vmem:[%s3 + $0x388] sm:$0xff]
  %v4520 = vld [vmem:[%s3 + $0x390] sm:$0xff]
  %v4521 = vld [vmem:[%s3 + $0x398] sm:$0xff]
  %v4522 = vld [vmem:[%s3 + $0x3a0] sm:$0xff]
  %v4523 = vld [vmem:[%s3 + $0x3a8] sm:$0xff]
  %v4524 = vld [vmem:[%s3 + $0x3b0] sm:$0xff]
  %v4525 = vld [vmem:[%s3 + $0x3b8] sm:$0xff]
  %v4526 = vld [vmem:[%s3 + $0x3c0] sm:$0xff]
  %v4527 = vld [vmem:[%s3 + $0x3c8] sm:$0xff]
  %v4528 = vld [vmem:[%s3 + $0x3d0] sm:$0xff]
  %v4529 = vld [vmem:[%s3 + $0x3d8] sm:$0xff]
  %v4530 = vld [vmem:[%s3 + $0x3e0] sm:$0xff]
  %v4531 = vld [vmem:[%s3 + $0x3e8] sm:$0xff]
  %v4532 = vld [vmem:[%s3 + $0x3f0] sm:$0xff]
  %v4533 = vld [vmem:[%s3 + $0x3f8] sm:$0xff]
  %v4534 = vld [vmem:[%s3 + $0x400] sm:$0xff]
  %v4535 = vld [vmem:[%s3 + $0x408] sm:$0xff]
  %v4536 = vld [vmem:[%s3 + $0x410] sm:$0xff]
  %v4537 = vld [vmem:[%s3 + $0x418] sm:$0xff]
  %v4538 = vld [vmem:[%s3 + $0x420] sm:$0xff]
  %v4539 = vld [vmem:[%s3 + $0x428] sm:$0xff]
  %v4540 = vld [vmem:[%s3 + $0x430] sm:$0xff]
  %v4541 = vld [vmem:[%s3 + $0x438] sm:$0xff]
  %v4542 = vld [vmem:[%s3 + $0x440] sm:$0xff]
  %v4543 = vld [vmem:[%s3 + $0x448] sm:$0xff]
  %v4544 = vld [vmem:[%s3 + $0x450] sm:$0xff]
  %v4545 = vld [vmem:[%s3 + $0x458] sm:$0xff]
  %v4546 = vld [vmem:[%s3 + $0x460] sm:$0xff]
  %v4547 = vld [vmem:[%s3 + $0x468] sm:$0xff]
  %v4548 = vld [vmem:[%s3 + $0x470] sm:$0xff]
  %v4549 = vld [vmem:[%s3 + $0x478] sm:$0xff]
  %v4550 = vld [vmem:[%s3 + $0x480] sm:$0xff]
  %v4551 = vld [vmem:[%s3 + $0x488] sm:$0xff]
  %v4552 = vld [vmem:[%s3 + $0x490] sm:$0xff]
  %v4553 = vld [vmem:[%s3 + $0x498] sm:$0xff]
  %v4554 = vld [vmem:[%s3 + $0x4a0] sm:$0xff]
  %v4555 = vld [vmem:[%s3 + $0x4a8] sm:$0xff]
  %v4556 = vld [vmem:[%s3 + $0x4b0] sm:$0xff]
  %v4557 = vld [vmem:[%s3 + $0x4b8] sm:$0xff]
  %v4558 = vld [vmem:[%s3 + $0x4c0] sm:$0xff]
  %v4559 = vld [vmem:[%s3 + $0x4c8] sm:$0xff]
  %v4560 = vld [vmem:[%s3 + $0x4d0] sm:$0xff]
  %v4561 = vld [vmem:[%s3 + $0x4d8] sm:$0xff]
  %v4562 = vld [vmem:[%s3 + $0x4e0] sm:$0xff]
  %v4563 = vld [vmem:[%s3 + $0x4e8] sm:$0xff]
  %v4564 = vld [vmem:[%s3 + $0x4f0] sm:$0xff]
  %v4565 = vld [vmem:[%s3 + $0x4f8] sm:$0xff]
  %v4566 = vld [vmem:[%s3 + $0x500] sm:$0xff]
  %v4567 = vld [vmem:[%s3 + $0x508] sm:$0xff]
  %v4568 = vld [vmem:[%s3 + $0x510] sm:$0xff]
  %v4569 = vld [vmem:[%s3 + $0x518] sm:$0xff]
  %v4570 = vld [vmem:[%s3 + $0x520] sm:$0xff]
  %v4571 = vld [vmem:[%s3 + $0x528] sm:$0xff]
  %v4572 = vld [vmem:[%s3 + $0x530] sm:$0xff]
  %v4573 = vld [vmem:[%s3 + $0x538] sm:$0xff]
  %v4574 = vld [vmem:[%s3 + $0x540] sm:$0xff]
  %v4575 = vld [vmem:[%s3 + $0x548] sm:$0xff]
  %v4576 = vld [vmem:[%s3 + $0x550] sm:$0xff]
  %v4577 = vld [vmem:[%s3 + $0x558] sm:$0xff]
  %v4578 = vld [vmem:[%s3 + $0x560] sm:$0xff]
  %v4579 = vld [vmem:[%s3 + $0x568] sm:$0xff]
  %v4580 = vld [vmem:[%s3 + $0x570] sm:$0xff]
  %v4581 = vld [vmem:[%s3 + $0x578] sm:$0xff]
  %v4582 = vld [vmem:[%s3 + $0x580] sm:$0xff]
  %v4583 = vld [vmem:[%s3 + $0x588] sm:$0xff]
  %v4584 = vld [vmem:[%s3 + $0x590] sm:$0xff]
  %v4585 = vld [vmem:[%s3 + $0x598] sm:$0xff]
  %v4586 = vld [vmem:[%s3 + $0x5a0] sm:$0xff]
  %v4587 = vld [vmem:[%s3 + $0x5a8] sm:$0xff]
  %v4588 = vld [vmem:[%s3 + $0x5b0] sm:$0xff]
  %v4589 = vld [vmem:[%s3 + $0x5b8] sm:$0xff]
  %v4590 = vld [vmem:[%s3 + $0x5c0] sm:$0xff]
  %v4591 = vld [vmem:[%s3 + $0x5c8] sm:$0xff]
  %v4592 = vld [vmem:[%s3 + $0x5d0] sm:$0xff]
  %v4593 = vld [vmem:[%s3 + $0x5d8] sm:$0xff]
  %v4594 = vld [vmem:[%s3 + $0x5e0] sm:$0xff]
  %v4595 = vld [vmem:[%s3 + $0x5e8] sm:$0xff]
  %v4596 = vld [vmem:[%s3 + $0x5f0] sm:$0xff]
  %v4597 = vld [vmem:[%s3 + $0x5f8] sm:$0xff]
  %v4598 = vld [vmem:[%s3 + $0x600] sm:$0xff]
  %v4599 = vld [vmem:[%s3 + $0x608] sm:$0xff]
  %v4600 = vld [vmem:[%s3 + $0x610] sm:$0xff]
  %v4601 = vld [vmem:[%s3 + $0x618] sm:$0xff]
  %v4602 = vld [vmem:[%s3 + $0x620] sm:$0xff]
  %v4603 = vld [vmem:[%s3 + $0x628] sm:$0xff]
  %v4604 = vld [vmem:[%s3 + $0x630] sm:$0xff]
  %v4605 = vld [vmem:[%s3 + $0x638] sm:$0xff]
  %v4606 = vld [vmem:[%s3 + $0x640] sm:$0xff]
  %v4607 = vld [vmem:[%s3 + $0x648] sm:$0xff]
  %v4608 = vld [vmem:[%s3 + $0x650] sm:$0xff]
  %v4609 = vld [vmem:[%s3 + $0x658] sm:$0xff]
  %v4610 = vld [vmem:[%s3 + $0x660] sm:$0xff]
  %v4611 = vld [vmem:[%s3 + $0x668] sm:$0xff]
  %v4612 = vld [vmem:[%s3 + $0x670] sm:$0xff]
  %v4613 = vld [vmem:[%s3 + $0x678] sm:$0xff]
  %v4614 = vld [vmem:[%s3 + $0x680] sm:$0xff]
  %v4615 = vld [vmem:[%s3 + $0x688] sm:$0xff]
  %v4616 = vld [vmem:[%s3 + $0x690] sm:$0xff]
  %v4617 = vld [vmem:[%s3 + $0x698] sm:$0xff]
  %v4618 = vld [vmem:[%s3 + $0x6a0] sm:$0xff]
  %v4619 = vld [vmem:[%s3 + $0x6a8] sm:$0xff]
  %v4620 = vld [vmem:[%s3 + $0x6b0] sm:$0xff]
  %v4621 = vld [vmem:[%s3 + $0x6b8] sm:$0xff]
  %v4622 = vld [vmem:[%s3 + $0x6c0] sm:$0xff]
  %v4623 = vld [vmem:[%s3 + $0x6c8] sm:$0xff]
  %v4624 = vld [vmem:[%s3 + $0x6d0] sm:$0xff]
  %v4625 = vld [vmem:[%s3 + $0x6d8] sm:$0xff]
  %v4626 = vld [vmem:[%s3 + $0x6e0] sm:$0xff]
  %v4627 = vld [vmem:[%s3 + $0x6e8] sm:$0xff]
  %v4628 = vld [vmem:[%s3 + $0x6f0] sm:$0xff]
  %v4629 = vld [vmem:[%s3 + $0x6f8] sm:$0xff]
  %v4630 = vld [vmem:[%s3 + $0x700] sm:$0xff]
  %v4631 = vld [vmem:[%s3 + $0x708] sm:$0xff]
  %v4632 = vld [vmem:[%s3 + $0x710] sm:$0xff]
  %v4633 = vld [vmem:[%s3 + $0x718] sm:$0xff]
  %v4634 = vld [vmem:[%s3 + $0x720] sm:$0xff]
  %v4635 = vld [vmem:[%s3 + $0x728] sm:$0xff]
  %v4636 = vld [vmem:[%s3 + $0x730] sm:$0xff]
  %v4637 = vld [vmem:[%s3 + $0x738] sm:$0xff]
  %v4638 = vld [vmem:[%s3 + $0x740] sm:$0xff]
  %v4639 = vld [vmem:[%s3 + $0x748] sm:$0xff]
  %v4640 = vld [vmem:[%s3 + $0x750] sm:$0xff]
  %v4641 = vld [vmem:[%s3 + $0x758] sm:$0xff]
  %v4642 = vld [vmem:[%s3 + $0x760] sm:$0xff]
  %v4643 = vld [vmem:[%s3 + $0x768] sm:$0xff]
  %v4644 = vld [vmem:[%s3 + $0x770] sm:$0xff]
  %v4645 = vld [vmem:[%s3 + $0x778] sm:$0xff]
  %v4646 = vld [vmem:[%s3 + $0x780] sm:$0xff]
  %v4647 = vld [vmem:[%s3 + $0x788] sm:$0xff]
  %v4648 = vld [vmem:[%s3 + $0x790] sm:$0xff]
  %v4649 = vld [vmem:[%s3 + $0x798] sm:$0xff]
  %v4650 = vld [vmem:[%s3 + $0x7a0] sm:$0xff]
  %v4651 = vld [vmem:[%s3 + $0x7a8] sm:$0xff]
  %v4652 = vld [vmem:[%s3 + $0x7b0] sm:$0xff]
  %v4653 = vld [vmem:[%s3 + $0x7b8] sm:$0xff]
  %v4654 = vld [vmem:[%s3 + $0x7c0] sm:$0xff]
  %v4655 = vld [vmem:[%s3 + $0x7c8] sm:$0xff]
  %v4656 = vld [vmem:[%s3 + $0x7d0] sm:$0xff]
  %v4657 = vld [vmem:[%s3 + $0x7d8] sm:$0xff]
  %v4658 = vld [vmem:[%s3 + $0x7e0] sm:$0xff]
  %v4659 = vld [vmem:[%s3 + $0x7e8] sm:$0xff]
  %v4660 = vld [vmem:[%s3 + $0x7f0] sm:$0xff]
  %v4661 = vld [vmem:[%s3 + $0x7f8] sm:$0xff]
  %v4662 = vld [vmem:[%s3 + $0x800] sm:$0xff]
  %v4663 = vld [vmem:[%s3 + $0x808] sm:$0xff]
  %v4664 = vld [vmem:[%s3 + $0x810] sm:$0xff]
  %v4665 = vld [vmem:[%s3 + $0x818] sm:$0xff]
  %v4666 = vld [vmem:[%s3 + $0x820] sm:$0xff]
  %v4667 = vld [vmem:[%s3 + $0x828] sm:$0xff]
  %v4668 = vld [vmem:[%s3 + $0x830] sm:$0xff]
  %v4669 = vld [vmem:[%s3 + $0x838] sm:$0xff]
  %v4670 = vld [vmem:[%s3 + $0x840] sm:$0xff]
  %v4671 = vld [vmem:[%s3 + $0x848] sm:$0xff]
  %v4672 = vld [vmem:[%s3 + $0x850] sm:$0xff]
  %v4673 = vld [vmem:[%s3 + $0x858] sm:$0xff]
  %v4674 = vld [vmem:[%s3 + $0x860] sm:$0xff]
  %v4675 = vld [vmem:[%s3 + $0x868] sm:$0xff]
  %v4676 = vld [vmem:[%s3 + $0x870] sm:$0xff]
  %v4677 = vld [vmem:[%s3 + $0x878] sm:$0xff]
  %v4678 = vld [vmem:[%s3 + $0x880] sm:$0xff]
  %v4679 = vld [vmem:[%s3 + $0x888] sm:$0xff]
  %v4680 = vld [vmem:[%s3 + $0x890] sm:$0xff]
  %v4681 = vld [vmem:[%s3 + $0x898] sm:$0xff]
  %v4682 = vld [vmem:[%s3 + $0x8a0] sm:$0xff]
  %v4683 = vld [vmem:[%s3 + $0x8a8] sm:$0xff]
  %v4684 = vld [vmem:[%s3 + $0x8b0] sm:$0xff]
  %v4685 = vld [vmem:[%s3 + $0x8b8] sm:$0xff]
  %v4686 = vld [vmem:[%s3 + $0x8c0] sm:$0xff]
  %v4687 = vld [vmem:[%s3 + $0x8c8] sm:$0xff]
  %v4688 = vld [vmem:[%s3 + $0x8d0] sm:$0xff]
  %v4689 = vld [vmem:[%s3 + $0x8d8] sm:$0xff]
  %v4690 = vld [vmem:[%s3 + $0x8e0] sm:$0xff]
  %v4691 = vld [vmem:[%s3 + $0x8e8] sm:$0xff]
  %v4692 = vld [vmem:[%s3 + $0x8f0] sm:$0xff]
  %v4693 = vld [vmem:[%s3 + $0x8f8] sm:$0xff]
  %v4694 = vld [vmem:[%s4] sm:$0xff]
  %v4695 = vld [vmem:[%s4 + $0x8] sm:$0xff]
  %v4696 = vld [vmem:[%s4 + $0x10] sm:$0xff]
  %v4697 = vld [vmem:[%s4 + $0x18] sm:$0xff]
  %v4698 = vld [vmem:[%s4 + $0x20] sm:$0xff]
  %v4699 = vld [vmem:[%s4 + $0x28] sm:$0xff]
  %v4700 = vld [vmem:[%s4 + $0x30] sm:$0xff]
  %v4701 = vld [vmem:[%s4 + $0x38] sm:$0xff]
  %v4702 = vld [vmem:[%s4 + $0x40] sm:$0xff]
  %v4712 = vlaneseq
  %v4713 = vshrl.u32 %v4712, 7
  %v4714 = vsub.s32 0, %v4713
  %v4715 = vrot.slane %v4694, %v4714
  %v4716 = vlaneseq
  %v4717 = vshrl.u32 %v4716, 7
  %v4718 = vsub.s32 1, %v4717
  %v4719 = vrot.slane %v4694, %v4718
  %v4720 = vlaneseq
  %v4721 = vshrl.u32 %v4720, 7
  %v4722 = vsub.s32 2, %v4721
  %v4723 = vrot.slane %v4694, %v4722
  %v4724 = vlaneseq
  %v4725 = vshrl.u32 %v4724, 7
  %v4726 = vsub.s32 3, %v4725
  %v4727 = vrot.slane %v4694, %v4726
  %v4728 = vlaneseq
  %v4729 = vshrl.u32 %v4728, 7
  %v4730 = vsub.s32 4, %v4729
  %v4731 = vrot.slane %v4694, %v4730
  %v4732 = vlaneseq
  %v4733 = vshrl.u32 %v4732, 7
  %v4734 = vsub.s32 5, %v4733
  %v4735 = vrot.slane %v4694, %v4734
  %v4736 = vlaneseq
  %v4737 = vshrl.u32 %v4736, 7
  %v4738 = vsub.s32 6, %v4737
  %v4739 = vrot.slane %v4694, %v4738
  %v4740 = vlaneseq
  %v4741 = vshrl.u32 %v4740, 7
  %v4742 = vsub.s32 7, %v4741
  %v4743 = vrot.slane %v4694, %v4742
  %v4744 = vlaneseq
  %v4745 = vshrl.u32 %v4744, 7
  %v4746 = vsub.s32 0, %v4745
  %v4747 = vrot.slane %v4695, %v4746
  %v4748 = vlaneseq
  %v4749 = vshrl.u32 %v4748, 7
  %v4750 = vsub.s32 1, %v4749
  %v4751 = vrot.slane %v4695, %v4750
  %v4752 = vlaneseq
  %v4753 = vshrl.u32 %v4752, 7
  %v4754 = vsub.s32 2, %v4753
  %v4755 = vrot.slane %v4695, %v4754
  %v4756 = vlaneseq
  %v4757 = vshrl.u32 %v4756, 7
  %v4758 = vsub.s32 3, %v4757
  %v4759 = vrot.slane %v4695, %v4758
  %v4760 = vlaneseq
  %v4761 = vshrl.u32 %v4760, 7
  %v4762 = vsub.s32 4, %v4761
  %v4763 = vrot.slane %v4695, %v4762
  %v4764 = vlaneseq
  %v4765 = vshrl.u32 %v4764, 7
  %v4766 = vsub.s32 5, %v4765
  %v4767 = vrot.slane %v4695, %v4766
  %v4768 = vlaneseq
  %v4769 = vshrl.u32 %v4768, 7
  %v4770 = vsub.s32 6, %v4769
  %v4771 = vrot.slane %v4695, %v4770
  %v4772 = vlaneseq
  %v4773 = vshrl.u32 %v4772, 7
  %v4774 = vsub.s32 7, %v4773
  %v4775 = vrot.slane %v4695, %v4774
  %v4776 = vlaneseq
  %v4777 = vshrl.u32 %v4776, 7
  %v4778 = vsub.s32 0, %v4777
  %v4779 = vrot.slane %v4696, %v4778
  %v4780 = vlaneseq
  %v4781 = vshrl.u32 %v4780, 7
  %v4782 = vsub.s32 1, %v4781
  %v4783 = vrot.slane %v4696, %v4782
  %v4784 = vlaneseq
  %v4785 = vshrl.u32 %v4784, 7
  %v4786 = vsub.s32 2, %v4785
  %v4787 = vrot.slane %v4696, %v4786
  %v4788 = vlaneseq
  %v4789 = vshrl.u32 %v4788, 7
  %v4790 = vsub.s32 3, %v4789
  %v4791 = vrot.slane %v4696, %v4790
  %v4792 = vlaneseq
  %v4793 = vshrl.u32 %v4792, 7
  %v4794 = vsub.s32 4, %v4793
  %v4795 = vrot.slane %v4696, %v4794
  %v4796 = vlaneseq
  %v4797 = vshrl.u32 %v4796, 7
  %v4798 = vsub.s32 5, %v4797
  %v4799 = vrot.slane %v4696, %v4798
  %v4800 = vlaneseq
  %v4801 = vshrl.u32 %v4800, 7
  %v4802 = vsub.s32 6, %v4801
  %v4803 = vrot.slane %v4696, %v4802
  %v4804 = vlaneseq
  %v4805 = vshrl.u32 %v4804, 7
  %v4806 = vsub.s32 7, %v4805
  %v4807 = vrot.slane %v4696, %v4806
  %v4808 = vlaneseq
  %v4809 = vshrl.u32 %v4808, 7
  %v4810 = vsub.s32 0, %v4809
  %v4811 = vrot.slane %v4697, %v4810
  %v4812 = vlaneseq
  %v4813 = vshrl.u32 %v4812, 7
  %v4814 = vsub.s32 1, %v4813
  %v4815 = vrot.slane %v4697, %v4814
  %v4816 = vlaneseq
  %v4817 = vshrl.u32 %v4816, 7
  %v4818 = vsub.s32 2, %v4817
  %v4819 = vrot.slane %v4697, %v4818
  %v4820 = vlaneseq
  %v4821 = vshrl.u32 %v4820, 7
  %v4822 = vsub.s32 3, %v4821
  %v4823 = vrot.slane %v4697, %v4822
  %v4824 = vlaneseq
  %v4825 = vshrl.u32 %v4824, 7
  %v4826 = vsub.s32 4, %v4825
  %v4827 = vrot.slane %v4697, %v4826
  %v4828 = vlaneseq
  %v4829 = vshrl.u32 %v4828, 7
  %v4830 = vsub.s32 5, %v4829
  %v4831 = vrot.slane %v4697, %v4830
  %v4832 = vlaneseq
  %v4833 = vshrl.u32 %v4832, 7
  %v4834 = vsub.s32 6, %v4833
  %v4835 = vrot.slane %v4697, %v4834
  %v4836 = vlaneseq
  %v4837 = vshrl.u32 %v4836, 7
  %v4838 = vsub.s32 7, %v4837
  %v4839 = vrot.slane %v4697, %v4838
  %v4840 = vlaneseq
  %v4841 = vshrl.u32 %v4840, 7
  %v4842 = vsub.s32 0, %v4841
  %v4843 = vrot.slane %v4698, %v4842
  %v4844 = vlaneseq
  %v4845 = vshrl.u32 %v4844, 7
  %v4846 = vsub.s32 1, %v4845
  %v4847 = vrot.slane %v4698, %v4846
  %v4848 = vlaneseq
  %v4849 = vshrl.u32 %v4848, 7
  %v4850 = vsub.s32 2, %v4849
  %v4851 = vrot.slane %v4698, %v4850
  %v4852 = vlaneseq
  %v4853 = vshrl.u32 %v4852, 7
  %v4854 = vsub.s32 3, %v4853
  %v4855 = vrot.slane %v4698, %v4854
  %v4856 = vlaneseq
  %v4857 = vshrl.u32 %v4856, 7
  %v4858 = vsub.s32 4, %v4857
  %v4859 = vrot.slane %v4698, %v4858
  %v4860 = vlaneseq
  %v4861 = vshrl.u32 %v4860, 7
  %v4862 = vsub.s32 5, %v4861
  %v4863 = vrot.slane %v4698, %v4862
  %v4864 = vlaneseq
  %v4865 = vshrl.u32 %v4864, 7
  %v4866 = vsub.s32 6, %v4865
  %v4867 = vrot.slane %v4698, %v4866
  %v4868 = vlaneseq
  %v4869 = vshrl.u32 %v4868, 7
  %v4870 = vsub.s32 7, %v4869
  %v4871 = vrot.slane %v4698, %v4870
  %v4872 = vlaneseq
  %v4873 = vshrl.u32 %v4872, 7
  %v4874 = vsub.s32 0, %v4873
  %v4875 = vrot.slane %v4699, %v4874
  %v4876 = vlaneseq
  %v4877 = vshrl.u32 %v4876, 7
  %v4878 = vsub.s32 1, %v4877
  %v4879 = vrot.slane %v4699, %v4878
  %v4880 = vlaneseq
  %v4881 = vshrl.u32 %v4880, 7
  %v4882 = vsub.s32 2, %v4881
  %v4883 = vrot.slane %v4699, %v4882
  %v4884 = vlaneseq
  %v4885 = vshrl.u32 %v4884, 7
  %v4886 = vsub.s32 3, %v4885
  %v4887 = vrot.slane %v4699, %v4886
  %v4888 = vlaneseq
  %v4889 = vshrl.u32 %v4888, 7
  %v4890 = vsub.s32 4, %v4889
  %v4891 = vrot.slane %v4699, %v4890
  %v4892 = vlaneseq
  %v4893 = vshrl.u32 %v4892, 7
  %v4894 = vsub.s32 5, %v4893
  %v4895 = vrot.slane %v4699, %v4894
  %v4896 = vlaneseq
  %v4897 = vshrl.u32 %v4896, 7
  %v4898 = vsub.s32 6, %v4897
  %v4899 = vrot.slane %v4699, %v4898
  %v4900 = vlaneseq
  %v4901 = vshrl.u32 %v4900, 7
  %v4902 = vsub.s32 7, %v4901
  %v4903 = vrot.slane %v4699, %v4902
  %v4904 = vlaneseq
  %v4905 = vshrl.u32 %v4904, 7
  %v4906 = vsub.s32 0, %v4905
  %v4907 = vrot.slane %v4700, %v4906
  %v4908 = vlaneseq
  %v4909 = vshrl.u32 %v4908, 7
  %v4910 = vsub.s32 1, %v4909
  %v4911 = vrot.slane %v4700, %v4910
  %v4912 = vlaneseq
  %v4913 = vshrl.u32 %v4912, 7
  %v4914 = vsub.s32 2, %v4913
  %v4915 = vrot.slane %v4700, %v4914
  %v4916 = vlaneseq
  %v4917 = vshrl.u32 %v4916, 7
  %v4918 = vsub.s32 3, %v4917
  %v4919 = vrot.slane %v4700, %v4918
  %v4920 = vlaneseq
  %v4921 = vshrl.u32 %v4920, 7
  %v4922 = vsub.s32 4, %v4921
  %v4923 = vrot.slane %v4700, %v4922
  %v4924 = vlaneseq
  %v4925 = vshrl.u32 %v4924, 7
  %v4926 = vsub.s32 5, %v4925
  %v4927 = vrot.slane %v4700, %v4926
  %v4928 = vlaneseq
  %v4929 = vshrl.u32 %v4928, 7
  %v4930 = vsub.s32 6, %v4929
  %v4931 = vrot.slane %v4700, %v4930
  %v4932 = vlaneseq
  %v4933 = vshrl.u32 %v4932, 7
  %v4934 = vsub.s32 7, %v4933
  %v4935 = vrot.slane %v4700, %v4934
  %v4936 = vlaneseq
  %v4937 = vshrl.u32 %v4936, 7
  %v4938 = vsub.s32 0, %v4937
  %v4939 = vrot.slane %v4701, %v4938
  %v4940 = vlaneseq
  %v4941 = vshrl.u32 %v4940, 7
  %v4942 = vsub.s32 1, %v4941
  %v4943 = vrot.slane %v4701, %v4942
  %v4944 = vlaneseq
  %v4945 = vshrl.u32 %v4944, 7
  %v4946 = vsub.s32 2, %v4945
  %v4947 = vrot.slane %v4701, %v4946
  %v4948 = vlaneseq
  %v4949 = vshrl.u32 %v4948, 7
  %v4950 = vsub.s32 3, %v4949
  %v4951 = vrot.slane %v4701, %v4950
  %v4952 = vlaneseq
  %v4953 = vshrl.u32 %v4952, 7
  %v4954 = vsub.s32 4, %v4953
  %v4955 = vrot.slane %v4701, %v4954
  %v4956 = vlaneseq
  %v4957 = vshrl.u32 %v4956, 7
  %v4958 = vsub.s32 5, %v4957
  %v4959 = vrot.slane %v4701, %v4958
  %v4960 = vlaneseq
  %v4961 = vshrl.u32 %v4960, 7
  %v4962 = vsub.s32 6, %v4961
  %v4963 = vrot.slane %v4701, %v4962
  %v4964 = vlaneseq
  %v4965 = vshrl.u32 %v4964, 7
  %v4966 = vsub.s32 7, %v4965
  %v4967 = vrot.slane %v4701, %v4966
  %v4968 = vlaneseq
  %v4969 = vshrl.u32 %v4968, 7
  %v4970 = vsub.s32 0, %v4969
  %v4971 = vrot.slane %v4702, %v4970
  %v4972 = vlaneseq
  %v4973 = vshrl.u32 %v4972, 7
  %v4974 = vsub.s32 1, %v4973
  %v4975 = vrot.slane %v4702, %v4974
  %v4976 = vlaneseq
  %v4977 = vshrl.u32 %v4976, 7
  %v4978 = vsub.s32 2, %v4977
  %v4979 = vrot.slane %v4702, %v4978
  %v4980 = vlaneseq
  %v4981 = vshrl.u32 %v4980, 7
  %v4982 = vsub.s32 3, %v4981
  %v4983 = vrot.slane %v4702, %v4982
  %v4984 = vlaneseq
  %v4985 = vshrl.u32 %v4984, 7
  %v4986 = vsub.s32 4, %v4985
  %v4987 = vrot.slane %v4702, %v4986
  %v4988 = vlaneseq
  %v4989 = vshrl.u32 %v4988, 7
  %v4990 = vsub.s32 5, %v4989
  %v4991 = vrot.slane %v4702, %v4990
  %v4992 = vlaneseq
  %v4993 = vshrl.u32 %v4992, 7
  %v4994 = vsub.s32 6, %v4993
  %v4995 = vrot.slane %v4702, %v4994
  %v4996 = vlaneseq
  %v4997 = vshrl.u32 %v4996, 7
  %v4998 = vsub.s32 7, %v4997
  %v4999 = vrot.slane %v4702, %v4998
  %vm5072 = vcmask 261120
  %v5074 = vsel %vm5072, %v4405, 0
  %5076 = vmatprep.subr.mxu0 0.0
  %5077 = vmatpush1.msra.mxu0 0.0
  %5078 = vmatprep.subr.mxu0 0.0
  %5079 = vmatpush1.msra.mxu0 0.0
  %5080 = vmatprep.subr.mxu0 0.0
  %5081 = vmatpush1.msra.mxu0 0.0
  %5082 = vmatprep.subr.mxu0 0.0
  %5083 = vmatpush1.msra.mxu0 0.0
  %5084 = vmatprep.subr.mxu0 0.0
  %5085 = vmatpush1.msra.mxu0 0.0
  %5086 = vmatprep.subr.mxu0 0.0
  %5087 = vmatpush1.msra.mxu0 0.0
  %5088 = vmatprep.subr.mxu0 0.0
  %5089 = vmatpush1.msra.mxu0 0.0
  %5090 = vmatprep.subr.mxu0 0.0
  %5091 = vmatpush1.msra.mxu0 0.0
  %5092 = vmatprep.subr.mxu0 0.0
  %5093 = vmatpush1.msra.mxu0 0.0
  %5094 = vmatprep.subr.mxu0 0.0
  %5095 = vmatpush1.msra.mxu0 0.0
  %5096 = vmatprep.subr.mxu0 0.0
  %5097 = vmatpush1.msra.mxu0 0.0
  %5098 = vmatprep.subr.mxu0 0.0
  %5099 = vmatpush1.msra.mxu0 0.0
  %5100 = vmatprep.subr.mxu0 %v4623
  %5101 = vmatpush1.msra.mxu0 %v4622
  %5102 = vmatprep.subr.mxu0 %v4551
  %5103 = vmatpush1.msra.mxu0 %v4550
  %5104 = vmatprep.subr.mxu0 %v4479
  %5105 = vmatpush1.msra.mxu0 %v4478
  %5106 = vmatprep.subr.mxu0 %v4407
  %5107 = vmatpush1.msra.mxu0 %v4406
  %5108 = vmatprep.subr.mxu0 0.0
  %5109 = vmatpush2.msra.mxu0 0.0
  %5110 = vmatprep.subr.mxu0 0.0
  %5111 = vmatpush2.msra.mxu0 0.0
  %5112 = vmatprep.subr.mxu0 0.0
  %5113 = vmatpush2.msra.mxu0 0.0
  %5114 = vmatprep.subr.mxu0 0.0
  %5115 = vmatpush2.msra.mxu0 0.0
  %5116 = vmatprep.subr.mxu0 0.0
  %5117 = vmatpush2.msra.mxu0 0.0
  %5118 = vmatprep.subr.mxu0 0.0
  %5119 = vmatpush2.msra.mxu0 0.0
  %5120 = vmatprep.subr.mxu0 0.0
  %5121 = vmatpush2.msra.mxu0 0.0
  %5122 = vmatprep.subr.mxu0 0.0
  %5123 = vmatpush2.msra.mxu0 0.0
  %5124 = vmatprep.subr.mxu0 0.0
  %5125 = vmatpush2.msra.mxu0 0.0
  %5126 = vmatprep.subr.mxu0 0.0
  %5127 = vmatpush2.msra.mxu0 0.0
  %5128 = vmatprep.subr.mxu0 0.0
  %5129 = vmatpush2.msra.mxu0 0.0
  %5130 = vmatprep.subr.mxu0 0.0
  %5131 = vmatpush2.msra.mxu0 0.0
  %5132 = vmatprep.subr.mxu0 0.0
  %5133 = vmatpush2.msra.mxu0 0.0
  %5134 = vmatprep.subr.mxu0 0.0
  %5135 = vmatpush2.msra.mxu0 0.0
  %5136 = vmatprep.subr.mxu0 0.0
  %5137 = vmatpush2.msra.mxu0 0.0
  %5138 = vmatprep.subr.mxu0 0.0
  %5139 = vmatpush2.msra.mxu0 0.0
  %5140 = vmatprep.mubr.f32.mxu0 0.0
  %5141 = vmatmul.mubr.f32.gmra.mxu0 %v5074
  %v5142 = vpop.f32.mrf.mxu0
  %v5143 = vadd.f32 %v4715, %v5142
  %v5144 = vpop.f32.mrf.mxu0
  %v5145 = vadd.f32 %v4719, %v5144
  %5146 = vdwg.mxu0
  %5147 = vmatprep.subr.mxu0 0.0
  %5148 = vmatpush1.msra.mxu0 0.0
  %5149 = vmatprep.subr.mxu0 0.0
  %5150 = vmatpush1.msra.mxu0 0.0
  %5151 = vmatprep.subr.mxu0 0.0
  %5152 = vmatpush1.msra.mxu0 0.0
  %5153 = vmatprep.subr.mxu0 0.0
  %5154 = vmatpush1.msra.mxu0 0.0
  %5155 = vmatprep.subr.mxu0 0.0
  %5156 = vmatpush1.msra.mxu0 0.0
  %5157 = vmatprep.subr.mxu0 0.0
  %5158 = vmatpush1.msra.mxu0 0.0
  %5159 = vmatprep.subr.mxu0 0.0
  %5160 = vmatpush1.msra.mxu0 0.0
  %5161 = vmatprep.subr.mxu0 0.0
  %5162 = vmatpush1.msra.mxu0 0.0
  %5163 = vmatprep.subr.mxu0 0.0
  %5164 = vmatpush1.msra.mxu0 0.0
  %5165 = vmatprep.subr.mxu0 0.0
  %5166 = vmatpush1.msra.mxu0 0.0
  %5167 = vmatprep.subr.mxu0 0.0
  %5168 = vmatpush1.msra.mxu0 0.0
  %5169 = vmatprep.subr.mxu0 0.0
  %5170 = vmatpush1.msra.mxu0 0.0
  %5171 = vmatprep.subr.mxu0 %v4625
  %5172 = vmatpush1.msra.mxu0 %v4624
  %5173 = vmatprep.subr.mxu0 %v4553
  %5174 = vmatpush1.msra.mxu0 %v4552
  %5175 = vmatprep.subr.mxu0 %v4481
  %5176 = vmatpush1.msra.mxu0 %v4480
  %5177 = vmatprep.subr.mxu0 %v4409
  %5178 = vmatpush1.msra.mxu0 %v4408
  %5179 = vmatprep.subr.mxu0 0.0
  %5180 = vmatpush2.msra.mxu0 0.0
  %5181 = vmatprep.subr.mxu0 0.0
  %5182 = vmatpush2.msra.mxu0 0.0
  %5183 = vmatprep.subr.mxu0 0.0
  %5184 = vmatpush2.msra.mxu0 0.0
  %5185 = vmatprep.subr.mxu0 0.0
  %5186 = vmatpush2.msra.mxu0 0.0
  %5187 = vmatprep.subr.mxu0 0.0
  %5188 = vmatpush2.msra.mxu0 0.0
  %5189 = vmatprep.subr.mxu0 0.0
  %5190 = vmatpush2.msra.mxu0 0.0
  %5191 = vmatprep.subr.mxu0 0.0
  %5192 = vmatpush2.msra.mxu0 0.0
  %5193 = vmatprep.subr.mxu0 0.0
  %5194 = vmatpush2.msra.mxu0 0.0
  %5195 = vmatprep.subr.mxu0 0.0
  %5196 = vmatpush2.msra.mxu0 0.0
  %5197 = vmatprep.subr.mxu0 0.0
  %5198 = vmatpush2.msra.mxu0 0.0
  %5199 = vmatprep.subr.mxu0 0.0
  %5200 = vmatpush2.msra.mxu0 0.0
  %5201 = vmatprep.subr.mxu0 0.0
  %5202 = vmatpush2.msra.mxu0 0.0
  %5203 = vmatprep.subr.mxu0 0.0
  %5204 = vmatpush2.msra.mxu0 0.0
  %5205 = vmatprep.subr.mxu0 0.0
  %5206 = vmatpush2.msra.mxu0 0.0
  %5207 = vmatprep.subr.mxu0 0.0
  %5208 = vmatpush2.msra.mxu0 0.0
  %5209 = vmatprep.subr.mxu0 0.0
  %5210 = vmatpush2.msra.mxu0 0.0
  %5211 = vmatprep.mubr.f32.mxu0 0.0
  %5212 = vmatmul.mubr.f32.gmra.mxu0 %v5074
  %v5213 = vpop.f32.mrf.mxu0
  %v5214 = vadd.f32 %v4723, %v5213
  %v5215 = vpop.f32.mrf.mxu0
  %v5216 = vadd.f32 %v4727, %v5215
  %5217 = vdwg.mxu0
  %5218 = vmatprep.subr.mxu0 0.0
  %5219 = vmatpush1.msra.mxu0 0.0
  %5220 = vmatprep.subr.mxu0 0.0
  %5221 = vmatpush1.msra.mxu0 0.0
  %5222 = vmatprep.subr.mxu0 0.0
  %5223 = vmatpush1.msra.mxu0 0.0
  %5224 = vmatprep.subr.mxu0 0.0
  %5225 = vmatpush1.msra.mxu0 0.0
  %5226 = vmatprep.subr.mxu0 0.0
  %5227 = vmatpush1.msra.mxu0 0.0
  %5228 = vmatprep.subr.mxu0 0.0
  %5229 = vmatpush1.msra.mxu0 0.0
  %5230 = vmatprep.subr.mxu0 0.0
  %5231 = vmatpush1.msra.mxu0 0.0
  %5232 = vmatprep.subr.mxu0 0.0
  %5233 = vmatpush1.msra.mxu0 0.0
  %5234 = vmatprep.subr.mxu0 0.0
  %5235 = vmatpush1.msra.mxu0 0.0
  %5236 = vmatprep.subr.mxu0 0.0
  %5237 = vmatpush1.msra.mxu0 0.0
  %5238 = vmatprep.subr.mxu0 0.0
  %5239 = vmatpush1.msra.mxu0 0.0
  %5240 = vmatprep.subr.mxu0 0.0
  %5241 = vmatpush1.msra.mxu0 0.0
  %5242 = vmatprep.subr.mxu0 %v4627
  %5243 = vmatpush1.msra.mxu0 %v4626
  %5244 = vmatprep.subr.mxu0 %v4555
  %5245 = vmatpush1.msra.mxu0 %v4554
  %5246 = vmatprep.subr.mxu0 %v4483
  %5247 = vmatpush1.msra.mxu0 %v4482
  %5248 = vmatprep.subr.mxu0 %v4411
  %5249 = vmatpush1.msra.mxu0 %v4410
  %5250 = vmatprep.subr.mxu0 0.0
  %5251 = vmatpush2.msra.mxu0 0.0
  %5252 = vmatprep.subr.mxu0 0.0
  %5253 = vmatpush2.msra.mxu0 0.0
  %5254 = vmatprep.subr.mxu0 0.0
  %5255 = vmatpush2.msra.mxu0 0.0
  %5256 = vmatprep.subr.mxu0 0.0
  %5257 = vmatpush2.msra.mxu0 0.0
  %5258 = vmatprep.subr.mxu0 0.0
  %5259 = vmatpush2.msra.mxu0 0.0
  %5260 = vmatprep.subr.mxu0 0.0
  %5261 = vmatpush2.msra.mxu0 0.0
  %5262 = vmatprep.subr.mxu0 0.0
  %5263 = vmatpush2.msra.mxu0 0.0
  %5264 = vmatprep.subr.mxu0 0.0
  %5265 = vmatpush2.msra.mxu0 0.0
  %5266 = vmatprep.subr.mxu0 0.0
  %5267 = vmatpush2.msra.mxu0 0.0
  %5268 = vmatprep.subr.mxu0 0.0
  %5269 = vmatpush2.msra.mxu0 0.0
  %5270 = vmatprep.subr.mxu0 0.0
  %5271 = vmatpush2.msra.mxu0 0.0
  %5272 = vmatprep.subr.mxu0 0.0
  %5273 = vmatpush2.msra.mxu0 0.0
  %5274 = vmatprep.subr.mxu0 0.0
  %5275 = vmatpush2.msra.mxu0 0.0
  %5276 = vmatprep.subr.mxu0 0.0
  %5277 = vmatpush2.msra.mxu0 0.0
  %5278 = vmatprep.subr.mxu0 0.0
  %5279 = vmatpush2.msra.mxu0 0.0
  %5280 = vmatprep.subr.mxu0 0.0
  %5281 = vmatpush2.msra.mxu0 0.0
  %5282 = vmatprep.mubr.f32.mxu0 0.0
  %5283 = vmatmul.mubr.f32.gmra.mxu0 %v5074
  %v5284 = vpop.f32.mrf.mxu0
  %v5285 = vadd.f32 %v4731, %v5284
  %v5286 = vpop.f32.mrf.mxu0
  %v5287 = vadd.f32 %v4735, %v5286
  %5288 = vdwg.mxu0
  %5289 = vmatprep.subr.mxu0 0.0
  %5290 = vmatpush1.msra.mxu0 0.0
  %5291 = vmatprep.subr.mxu0 0.0
  %5292 = vmatpush1.msra.mxu0 0.0
  %5293 = vmatprep.subr.mxu0 0.0
  %5294 = vmatpush1.msra.mxu0 0.0
  %5295 = vmatprep.subr.mxu0 0.0
  %5296 = vmatpush1.msra.mxu0 0.0
  %5297 = vmatprep.subr.mxu0 0.0
  %5298 = vmatpush1.msra.mxu0 0.0
  %5299 = vmatprep.subr.mxu0 0.0
  %5300 = vmatpush1.msra.mxu0 0.0
  %5301 = vmatprep.subr.mxu0 0.0
  %5302 = vmatpush1.msra.mxu0 0.0
  %5303 = vmatprep.subr.mxu0 0.0
  %5304 = vmatpush1.msra.mxu0 0.0
  %5305 = vmatprep.subr.mxu0 0.0
  %5306 = vmatpush1.msra.mxu0 0.0
  %5307 = vmatprep.subr.mxu0 0.0
  %5308 = vmatpush1.msra.mxu0 0.0
  %5309 = vmatprep.subr.mxu0 0.0
  %5310 = vmatpush1.msra.mxu0 0.0
  %5311 = vmatprep.subr.mxu0 0.0
  %5312 = vmatpush1.msra.mxu0 0.0
  %5313 = vmatprep.subr.mxu0 %v4629
  %5314 = vmatpush1.msra.mxu0 %v4628
  %5315 = vmatprep.subr.mxu0 %v4557
  %5316 = vmatpush1.msra.mxu0 %v4556
  %5317 = vmatprep.subr.mxu0 %v4485
  %5318 = vmatpush1.msra.mxu0 %v4484
  %5319 = vmatprep.subr.mxu0 %v4413
  %5320 = vmatpush1.msra.mxu0 %v4412
  %5321 = vmatprep.subr.mxu0 0.0
  %5322 = vmatpush2.msra.mxu0 0.0
  %5323 = vmatprep.subr.mxu0 0.0
  %5324 = vmatpush2.msra.mxu0 0.0
  %5325 = vmatprep.subr.mxu0 0.0
  %5326 = vmatpush2.msra.mxu0 0.0
  %5327 = vmatprep.subr.mxu0 0.0
  %5328 = vmatpush2.msra.mxu0 0.0
  %5329 = vmatprep.subr.mxu0 0.0
  %5330 = vmatpush2.msra.mxu0 0.0
  %5331 = vmatprep.subr.mxu0 0.0
  %5332 = vmatpush2.msra.mxu0 0.0
  %5333 = vmatprep.subr.mxu0 0.0
  %5334 = vmatpush2.msra.mxu0 0.0
  %5335 = vmatprep.subr.mxu0 0.0
  %5336 = vmatpush2.msra.mxu0 0.0
  %5337 = vmatprep.subr.mxu0 0.0
  %5338 = vmatpush2.msra.mxu0 0.0
  %5339 = vmatprep.subr.mxu0 0.0
  %5340 = vmatpush2.msra.mxu0 0.0
  %5341 = vmatprep.subr.mxu0 0.0
  %5342 = vmatpush2.msra.mxu0 0.0
  %5343 = vmatprep.subr.mxu0 0.0
  %5344 = vmatpush2.msra.mxu0 0.0
  %5345 = vmatprep.subr.mxu0 0.0
  %5346 = vmatpush2.msra.mxu0 0.0
  %5347 = vmatprep.subr.mxu0 0.0
  %5348 = vmatpush2.msra.mxu0 0.0
  %5349 = vmatprep.subr.mxu0 0.0
  %5350 = vmatpush2.msra.mxu0 0.0
  %5351 = vmatprep.subr.mxu0 0.0
  %5352 = vmatpush2.msra.mxu0 0.0
  %5353 = vmatprep.mubr.f32.mxu0 0.0
  %5354 = vmatmul.mubr.f32.gmra.mxu0 %v5074
  %v5355 = vpop.f32.mrf.mxu0
  %v5356 = vadd.f32 %v4739, %v5355
  %v5357 = vpop.f32.mrf.mxu0
  %v5358 = vadd.f32 %v4743, %v5357
  %5359 = vdwg.mxu0
  %5360 = vmatprep.subr.mxu0 0.0
  %5361 = vmatpush1.msra.mxu0 0.0
  %5362 = vmatprep.subr.mxu0 0.0
  %5363 = vmatpush1.msra.mxu0 0.0
  %5364 = vmatprep.subr.mxu0 0.0
  %5365 = vmatpush1.msra.mxu0 0.0
  %5366 = vmatprep.subr.mxu0 0.0
  %5367 = vmatpush1.msra.mxu0 0.0
  %5368 = vmatprep.subr.mxu0 0.0
  %5369 = vmatpush1.msra.mxu0 0.0
  %5370 = vmatprep.subr.mxu0 0.0
  %5371 = vmatpush1.msra.mxu0 0.0
  %5372 = vmatprep.subr.mxu0 0.0
  %5373 = vmatpush1.msra.mxu0 0.0
  %5374 = vmatprep.subr.mxu0 0.0
  %5375 = vmatpush1.msra.mxu0 0.0
  %5376 = vmatprep.subr.mxu0 0.0
  %5377 = vmatpush1.msra.mxu0 0.0
  %5378 = vmatprep.subr.mxu0 0.0
  %5379 = vmatpush1.msra.mxu0 0.0
  %5380 = vmatprep.subr.mxu0 0.0
  %5381 = vmatpush1.msra.mxu0 0.0
  %5382 = vmatprep.subr.mxu0 0.0
  %5383 = vmatpush1.msra.mxu0 0.0
  %5384 = vmatprep.subr.mxu0 %v4631
  %5385 = vmatpush1.msra.mxu0 %v4630
  %5386 = vmatprep.subr.mxu0 %v4559
  %5387 = vmatpush1.msra.mxu0 %v4558
  %5388 = vmatprep.subr.mxu0 %v4487
  %5389 = vmatpush1.msra.mxu0 %v4486
  %5390 = vmatprep.subr.mxu0 %v4415
  %5391 = vmatpush1.msra.mxu0 %v4414
  %5392 = vmatprep.subr.mxu0 0.0
  %5393 = vmatpush2.msra.mxu0 0.0
  %5394 = vmatprep.subr.mxu0 0.0
  %5395 = vmatpush2.msra.mxu0 0.0
  %5396 = vmatprep.subr.mxu0 0.0
  %5397 = vmatpush2.msra.mxu0 0.0
  %5398 = vmatprep.subr.mxu0 0.0
  %5399 = vmatpush2.msra.mxu0 0.0
  %5400 = vmatprep.subr.mxu0 0.0
  %5401 = vmatpush2.msra.mxu0 0.0
  %5402 = vmatprep.subr.mxu0 0.0
  %5403 = vmatpush2.msra.mxu0 0.0
  %5404 = vmatprep.subr.mxu0 0.0
  %5405 = vmatpush2.msra.mxu0 0.0
  %5406 = vmatprep.subr.mxu0 0.0
  %5407 = vmatpush2.msra.mxu0 0.0
  %5408 = vmatprep.subr.mxu0 0.0
  %5409 = vmatpush2.msra.mxu0 0.0
  %5410 = vmatprep.subr.mxu0 0.0
  %5411 = vmatpush2.msra.mxu0 0.0
  %5412 = vmatprep.subr.mxu0 0.0
  %5413 = vmatpush2.msra.mxu0 0.0
  %5414 = vmatprep.subr.mxu0 0.0
  %5415 = vmatpush2.msra.mxu0 0.0
  %5416 = vmatprep.subr.mxu0 0.0
  %5417 = vmatpush2.msra.mxu0 0.0
  %5418 = vmatprep.subr.mxu0 0.0
  %5419 = vmatpush2.msra.mxu0 0.0
  %5420 = vmatprep.subr.mxu0 0.0
  %5421 = vmatpush2.msra.mxu0 0.0
  %5422 = vmatprep.subr.mxu0 0.0
  %5423 = vmatpush2.msra.mxu0 0.0
  %5424 = vmatprep.mubr.f32.mxu0 0.0
  %5425 = vmatmul.mubr.f32.gmra.mxu0 %v5074
  %v5426 = vpop.f32.mrf.mxu0
  %v5427 = vadd.f32 %v4747, %v5426
  %v5428 = vpop.f32.mrf.mxu0
  %v5429 = vadd.f32 %v4751, %v5428
  %5430 = vdwg.mxu0
  %5431 = vmatprep.subr.mxu0 0.0
  %5432 = vmatpush1.msra.mxu0 0.0
  %5433 = vmatprep.subr.mxu0 0.0
  %5434 = vmatpush1.msra.mxu0 0.0
  %5435 = vmatprep.subr.mxu0 0.0
  %5436 = vmatpush1.msra.mxu0 0.0
  %5437 = vmatprep.subr.mxu0 0.0
  %5438 = vmatpush1.msra.mxu0 0.0
  %5439 = vmatprep.subr.mxu0 0.0
  %5440 = vmatpush1.msra.mxu0 0.0
  %5441 = vmatprep.subr.mxu0 0.0
  %5442 = vmatpush1.msra.mxu0 0.0
  %5443 = vmatprep.subr.mxu0 0.0
  %5444 = vmatpush1.msra.mxu0 0.0
  %5445 = vmatprep.subr.mxu0 0.0
  %5446 = vmatpush1.msra.mxu0 0.0
  %5447 = vmatprep.subr.mxu0 0.0
  %5448 = vmatpush1.msra.mxu0 0.0
  %5449 = vmatprep.subr.mxu0 0.0
  %5450 = vmatpush1.msra.mxu0 0.0
  %5451 = vmatprep.subr.mxu0 0.0
  %5452 = vmatpush1.msra.mxu0 0.0
  %5453 = vmatprep.subr.mxu0 0.0
  %5454 = vmatpush1.msra.mxu0 0.0
  %5455 = vmatprep.subr.mxu0 %v4633
  %5456 = vmatpush1.msra.mxu0 %v4632
  %5457 = vmatprep.subr.mxu0 %v4561
  %5458 = vmatpush1.msra.mxu0 %v4560
  %5459 = vmatprep.subr.mxu0 %v4489
  %5460 = vmatpush1.msra.mxu0 %v4488
  %5461 = vmatprep.subr.mxu0 %v4417
  %5462 = vmatpush1.msra.mxu0 %v4416
  %5463 = vmatprep.subr.mxu0 0.0
  %5464 = vmatpush2.msra.mxu0 0.0
  %5465 = vmatprep.subr.mxu0 0.0
  %5466 = vmatpush2.msra.mxu0 0.0
  %5467 = vmatprep.subr.mxu0 0.0
  %5468 = vmatpush2.msra.mxu0 0.0
  %5469 = vmatprep.subr.mxu0 0.0
  %5470 = vmatpush2.msra.mxu0 0.0
  %5471 = vmatprep.subr.mxu0 0.0
  %5472 = vmatpush2.msra.mxu0 0.0
  %5473 = vmatprep.subr.mxu0 0.0
  %5474 = vmatpush2.msra.mxu0 0.0
  %5475 = vmatprep.subr.mxu0 0.0
  %5476 = vmatpush2.msra.mxu0 0.0
  %5477 = vmatprep.subr.mxu0 0.0
  %5478 = vmatpush2.msra.mxu0 0.0
  %5479 = vmatprep.subr.mxu0 0.0
  %5480 = vmatpush2.msra.mxu0 0.0
  %5481 = vmatprep.subr.mxu0 0.0
  %5482 = vmatpush2.msra.mxu0 0.0
  %5483 = vmatprep.subr.mxu0 0.0
  %5484 = vmatpush2.msra.mxu0 0.0
  %5485 = vmatprep.subr.mxu0 0.0
  %5486 = vmatpush2.msra.mxu0 0.0
  %5487 = vmatprep.subr.mxu0 0.0
  %5488 = vmatpush2.msra.mxu0 0.0
  %5489 = vmatprep.subr.mxu0 0.0
  %5490 = vmatpush2.msra.mxu0 0.0
  %5491 = vmatprep.subr.mxu0 0.0
  %5492 = vmatpush2.msra.mxu0 0.0
  %5493 = vmatprep.subr.mxu0 0.0
  %5494 = vmatpush2.msra.mxu0 0.0
  %5495 = vmatprep.mubr.f32.mxu0 0.0
  %5496 = vmatmul.mubr.f32.gmra.mxu0 %v5074
  %v5497 = vpop.f32.mrf.mxu0
  %v5498 = vadd.f32 %v4755, %v5497
  %v5499 = vpop.f32.mrf.mxu0
  %v5500 = vadd.f32 %v4759, %v5499
  %5501 = vdwg.mxu0
  %5502 = vmatprep.subr.mxu0 0.0
  %5503 = vmatpush1.msra.mxu0 0.0
  %5504 = vmatprep.subr.mxu0 0.0
  %5505 = vmatpush1.msra.mxu0 0.0
  %5506 = vmatprep.subr.mxu0 0.0
  %5507 = vmatpush1.msra.mxu0 0.0
  %5508 = vmatprep.subr.mxu0 0.0
  %5509 = vmatpush1.msra.mxu0 0.0
  %5510 = vmatprep.subr.mxu0 0.0
  %5511 = vmatpush1.msra.mxu0 0.0
  %5512 = vmatprep.subr.mxu0 0.0
  %5513 = vmatpush1.msra.mxu0 0.0
  %5514 = vmatprep.subr.mxu0 0.0
  %5515 = vmatpush1.msra.mxu0 0.0
  %5516 = vmatprep.subr.mxu0 0.0
  %5517 = vmatpush1.msra.mxu0 0.0
  %5518 = vmatprep.subr.mxu0 0.0
  %5519 = vmatpush1.msra.mxu0 0.0
  %5520 = vmatprep.subr.mxu0 0.0
  %5521 = vmatpush1.msra.mxu0 0.0
  %5522 = vmatprep.subr.mxu0 0.0
  %5523 = vmatpush1.msra.mxu0 0.0
  %5524 = vmatprep.subr.mxu0 0.0
  %5525 = vmatpush1.msra.mxu0 0.0
  %5526 = vmatprep.subr.mxu0 %v4635
  %5527 = vmatpush1.msra.mxu0 %v4634
  %5528 = vmatprep.subr.mxu0 %v4563
  %5529 = vmatpush1.msra.mxu0 %v4562
  %5530 = vmatprep.subr.mxu0 %v4491
  %5531 = vmatpush1.msra.mxu0 %v4490
  %5532 = vmatprep.subr.mxu0 %v4419
  %5533 = vmatpush1.msra.mxu0 %v4418
  %5534 = vmatprep.subr.mxu0 0.0
  %5535 = vmatpush2.msra.mxu0 0.0
  %5536 = vmatprep.subr.mxu0 0.0
  %5537 = vmatpush2.msra.mxu0 0.0
  %5538 = vmatprep.subr.mxu0 0.0
  %5539 = vmatpush2.msra.mxu0 0.0
  %5540 = vmatprep.subr.mxu0 0.0
  %5541 = vmatpush2.msra.mxu0 0.0
  %5542 = vmatprep.subr.mxu0 0.0
  %5543 = vmatpush2.msra.mxu0 0.0
  %5544 = vmatprep.subr.mxu0 0.0
  %5545 = vmatpush2.msra.mxu0 0.0
  %5546 = vmatprep.subr.mxu0 0.0
  %5547 = vmatpush2.msra.mxu0 0.0
  %5548 = vmatprep.subr.mxu0 0.0
  %5549 = vmatpush2.msra.mxu0 0.0
  %5550 = vmatprep.subr.mxu0 0.0
  %5551 = vmatpush2.msra.mxu0 0.0
  %5552 = vmatprep.subr.mxu0 0.0
  %5553 = vmatpush2.msra.mxu0 0.0
  %5554 = vmatprep.subr.mxu0 0.0
  %5555 = vmatpush2.msra.mxu0 0.0
  %5556 = vmatprep.subr.mxu0 0.0
  %5557 = vmatpush2.msra.mxu0 0.0
  %5558 = vmatprep.subr.mxu0 0.0
  %5559 = vmatpush2.msra.mxu0 0.0
  %5560 = vmatprep.subr.mxu0 0.0
  %5561 = vmatpush2.msra.mxu0 0.0
  %5562 = vmatprep.subr.mxu0 0.0
  %5563 = vmatpush2.msra.mxu0 0.0
  %5564 = vmatprep.subr.mxu0 0.0
  %5565 = vmatpush2.msra.mxu0 0.0
  %5566 = vmatprep.mubr.f32.mxu0 0.0
  %5567 = vmatmul.mubr.f32.gmra.mxu0 %v5074
  %v5568 = vpop.f32.mrf.mxu0
  %v5569 = vadd.f32 %v4763, %v5568
  %v5570 = vpop.f32.mrf.mxu0
  %v5571 = vadd.f32 %v4767, %v5570
  %5572 = vdwg.mxu0
  %5573 = vmatprep.subr.mxu0 0.0
  %5574 = vmatpush1.msra.mxu0 0.0
  %5575 = vmatprep.subr.mxu0 0.0
  %5576 = vmatpush1.msra.mxu0 0.0
  %5577 = vmatprep.subr.mxu0 0.0
  %5578 = vmatpush1.msra.mxu0 0.0
  %5579 = vmatprep.subr.mxu0 0.0
  %5580 = vmatpush1.msra.mxu0 0.0
  %5581 = vmatprep.subr.mxu0 0.0
  %5582 = vmatpush1.msra.mxu0 0.0
  %5583 = vmatprep.subr.mxu0 0.0
  %5584 = vmatpush1.msra.mxu0 0.0
  %5585 = vmatprep.subr.mxu0 0.0
  %5586 = vmatpush1.msra.mxu0 0.0
  %5587 = vmatprep.subr.mxu0 0.0
  %5588 = vmatpush1.msra.mxu0 0.0
  %5589 = vmatprep.subr.mxu0 0.0
  %5590 = vmatpush1.msra.mxu0 0.0
  %5591 = vmatprep.subr.mxu0 0.0
  %5592 = vmatpush1.msra.mxu0 0.0
  %5593 = vmatprep.subr.mxu0 0.0
  %5594 = vmatpush1.msra.mxu0 0.0
  %5595 = vmatprep.subr.mxu0 0.0
  %5596 = vmatpush1.msra.mxu0 0.0
  %5597 = vmatprep.subr.mxu0 %v4637
  %5598 = vmatpush1.msra.mxu0 %v4636
  %5599 = vmatprep.subr.mxu0 %v4565
  %5600 = vmatpush1.msra.mxu0 %v4564
  %5601 = vmatprep.subr.mxu0 %v4493
  %5602 = vmatpush1.msra.mxu0 %v4492
  %5603 = vmatprep.subr.mxu0 %v4421
  %5604 = vmatpush1.msra.mxu0 %v4420
  %5605 = vmatprep.subr.mxu0 0.0
  %5606 = vmatpush2.msra.mxu0 0.0
  %5607 = vmatprep.subr.mxu0 0.0
  %5608 = vmatpush2.msra.mxu0 0.0
  %5609 = vmatprep.subr.mxu0 0.0
  %5610 = vmatpush2.msra.mxu0 0.0
  %5611 = vmatprep.subr.mxu0 0.0
  %5612 = vmatpush2.msra.mxu0 0.0
  %5613 = vmatprep.subr.mxu0 0.0
  %5614 = vmatpush2.msra.mxu0 0.0
  %5615 = vmatprep.subr.mxu0 0.0
  %5616 = vmatpush2.msra.mxu0 0.0
  %5617 = vmatprep.subr.mxu0 0.0
  %5618 = vmatpush2.msra.mxu0 0.0
  %5619 = vmatprep.subr.mxu0 0.0
  %5620 = vmatpush2.msra.mxu0 0.0
  %5621 = vmatprep.subr.mxu0 0.0
  %5622 = vmatpush2.msra.mxu0 0.0
  %5623 = vmatprep.subr.mxu0 0.0
  %5624 = vmatpush2.msra.mxu0 0.0
  %5625 = vmatprep.subr.mxu0 0.0
  %5626 = vmatpush2.msra.mxu0 0.0
  %5627 = vmatprep.subr.mxu0 0.0
  %5628 = vmatpush2.msra.mxu0 0.0
  %5629 = vmatprep.subr.mxu0 0.0
  %5630 = vmatpush2.msra.mxu0 0.0
  %5631 = vmatprep.subr.mxu0 0.0
  %5632 = vmatpush2.msra.mxu0 0.0
  %5633 = vmatprep.subr.mxu0 0.0
  %5634 = vmatpush2.msra.mxu0 0.0
  %5635 = vmatprep.subr.mxu0 0.0
  %5636 = vmatpush2.msra.mxu0 0.0
  %5637 = vmatprep.mubr.f32.mxu0 0.0
  %5638 = vmatmul.mubr.f32.gmra.mxu0 %v5074
  %v5639 = vpop.f32.mrf.mxu0
  %v5640 = vadd.f32 %v4771, %v5639
  %v5641 = vpop.f32.mrf.mxu0
  %v5642 = vadd.f32 %v4775, %v5641
  %5643 = vdwg.mxu0
  %5644 = vmatprep.subr.mxu0 0.0
  %5645 = vmatpush1.msra.mxu0 0.0
  %5646 = vmatprep.subr.mxu0 0.0
  %5647 = vmatpush1.msra.mxu0 0.0
  %5648 = vmatprep.subr.mxu0 0.0
  %5649 = vmatpush1.msra.mxu0 0.0
  %5650 = vmatprep.subr.mxu0 0.0
  %5651 = vmatpush1.msra.mxu0 0.0
  %5652 = vmatprep.subr.mxu0 0.0
  %5653 = vmatpush1.msra.mxu0 0.0
  %5654 = vmatprep.subr.mxu0 0.0
  %5655 = vmatpush1.msra.mxu0 0.0
  %5656 = vmatprep.subr.mxu0 0.0
  %5657 = vmatpush1.msra.mxu0 0.0
  %5658 = vmatprep.subr.mxu0 0.0
  %5659 = vmatpush1.msra.mxu0 0.0
  %5660 = vmatprep.subr.mxu0 0.0
  %5661 = vmatpush1.msra.mxu0 0.0
  %5662 = vmatprep.subr.mxu0 0.0
  %5663 = vmatpush1.msra.mxu0 0.0
  %5664 = vmatprep.subr.mxu0 0.0
  %5665 = vmatpush1.msra.mxu0 0.0
  %5666 = vmatprep.subr.mxu0 0.0
  %5667 = vmatpush1.msra.mxu0 0.0
  %5668 = vmatprep.subr.mxu0 %v4639
  %5669 = vmatpush1.msra.mxu0 %v4638
  %5670 = vmatprep.subr.mxu0 %v4567
  %5671 = vmatpush1.msra.mxu0 %v4566
  %5672 = vmatprep.subr.mxu0 %v4495
  %5673 = vmatpush1.msra.mxu0 %v4494
  %5674 = vmatprep.subr.mxu0 %v4423
  %5675 = vmatpush1.msra.mxu0 %v4422
  %5676 = vmatprep.subr.mxu0 0.0
  %5677 = vmatpush2.msra.mxu0 0.0
  %5678 = vmatprep.subr.mxu0 0.0
  %5679 = vmatpush2.msra.mxu0 0.0
  %5680 = vmatprep.subr.mxu0 0.0
  %5681 = vmatpush2.msra.mxu0 0.0
  %5682 = vmatprep.subr.mxu0 0.0
  %5683 = vmatpush2.msra.mxu0 0.0
  %5684 = vmatprep.subr.mxu0 0.0
  %5685 = vmatpush2.msra.mxu0 0.0
  %5686 = vmatprep.subr.mxu0 0.0
  %5687 = vmatpush2.msra.mxu0 0.0
  %5688 = vmatprep.subr.mxu0 0.0
  %5689 = vmatpush2.msra.mxu0 0.0
  %5690 = vmatprep.subr.mxu0 0.0
  %5691 = vmatpush2.msra.mxu0 0.0
  %5692 = vmatprep.subr.mxu0 0.0
  %5693 = vmatpush2.msra.mxu0 0.0
  %5694 = vmatprep.subr.mxu0 0.0
  %5695 = vmatpush2.msra.mxu0 0.0
  %5696 = vmatprep.subr.mxu0 0.0
  %5697 = vmatpush2.msra.mxu0 0.0
  %5698 = vmatprep.subr.mxu0 0.0
  %5699 = vmatpush2.msra.mxu0 0.0
  %5700 = vmatprep.subr.mxu0 0.0
  %5701 = vmatpush2.msra.mxu0 0.0
  %5702 = vmatprep.subr.mxu0 0.0
  %5703 = vmatpush2.msra.mxu0 0.0
  %5704 = vmatprep.subr.mxu0 0.0
  %5705 = vmatpush2.msra.mxu0 0.0
  %5706 = vmatprep.subr.mxu0 0.0
  %5707 = vmatpush2.msra.mxu0 0.0
  %5708 = vmatprep.mubr.f32.mxu0 0.0
  %5709 = vmatmul.mubr.f32.gmra.mxu0 %v5074
  %v5710 = vpop.f32.mrf.mxu0
  %v5711 = vadd.f32 %v4779, %v5710
  %v5712 = vpop.f32.mrf.mxu0
  %v5713 = vadd.f32 %v4783, %v5712
  %5714 = vdwg.mxu0
  %5715 = vmatprep.subr.mxu0 0.0
  %5716 = vmatpush1.msra.mxu0 0.0
  %5717 = vmatprep.subr.mxu0 0.0
  %5718 = vmatpush1.msra.mxu0 0.0
  %5719 = vmatprep.subr.mxu0 0.0
  %5720 = vmatpush1.msra.mxu0 0.0
  %5721 = vmatprep.subr.mxu0 0.0
  %5722 = vmatpush1.msra.mxu0 0.0
  %5723 = vmatprep.subr.mxu0 0.0
  %5724 = vmatpush1.msra.mxu0 0.0
  %5725 = vmatprep.subr.mxu0 0.0
  %5726 = vmatpush1.msra.mxu0 0.0
  %5727 = vmatprep.subr.mxu0 0.0
  %5728 = vmatpush1.msra.mxu0 0.0
  %5729 = vmatprep.subr.mxu0 0.0
  %5730 = vmatpush1.msra.mxu0 0.0
  %5731 = vmatprep.subr.mxu0 0.0
  %5732 = vmatpush1.msra.mxu0 0.0
  %5733 = vmatprep.subr.mxu0 0.0
  %5734 = vmatpush1.msra.mxu0 0.0
  %5735 = vmatprep.subr.mxu0 0.0
  %5736 = vmatpush1.msra.mxu0 0.0
  %5737 = vmatprep.subr.mxu0 0.0
  %5738 = vmatpush1.msra.mxu0 0.0
  %5739 = vmatprep.subr.mxu0 %v4641
  %5740 = vmatpush1.msra.mxu0 %v4640
  %5741 = vmatprep.subr.mxu0 %v4569
  %5742 = vmatpush1.msra.mxu0 %v4568
  %5743 = vmatprep.subr.mxu0 %v4497
  %5744 = vmatpush1.msra.mxu0 %v4496
  %5745 = vmatprep.subr.mxu0 %v4425
  %5746 = vmatpush1.msra.mxu0 %v4424
  %5747 = vmatprep.subr.mxu0 0.0
  %5748 = vmatpush2.msra.mxu0 0.0
  %5749 = vmatprep.subr.mxu0 0.0
  %5750 = vmatpush2.msra.mxu0 0.0
  %5751 = vmatprep.subr.mxu0 0.0
  %5752 = vmatpush2.msra.mxu0 0.0
  %5753 = vmatprep.subr.mxu0 0.0
  %5754 = vmatpush2.msra.mxu0 0.0
  %5755 = vmatprep.subr.mxu0 0.0
  %5756 = vmatpush2.msra.mxu0 0.0
  %5757 = vmatprep.subr.mxu0 0.0
  %5758 = vmatpush2.msra.mxu0 0.0
  %5759 = vmatprep.subr.mxu0 0.0
  %5760 = vmatpush2.msra.mxu0 0.0
  %5761 = vmatprep.subr.mxu0 0.0
  %5762 = vmatpush2.msra.mxu0 0.0
  %5763 = vmatprep.subr.mxu0 0.0
  %5764 = vmatpush2.msra.mxu0 0.0
  %5765 = vmatprep.subr.mxu0 0.0
  %5766 = vmatpush2.msra.mxu0 0.0
  %5767 = vmatprep.subr.mxu0 0.0
  %5768 = vmatpush2.msra.mxu0 0.0
  %5769 = vmatprep.subr.mxu0 0.0
  %5770 = vmatpush2.msra.mxu0 0.0
  %5771 = vmatprep.subr.mxu0 0.0
  %5772 = vmatpush2.msra.mxu0 0.0
  %5773 = vmatprep.subr.mxu0 0.0
  %5774 = vmatpush2.msra.mxu0 0.0
  %5775 = vmatprep.subr.mxu0 0.0
  %5776 = vmatpush2.msra.mxu0 0.0
  %5777 = vmatprep.subr.mxu0 0.0
  %5778 = vmatpush2.msra.mxu0 0.0
  %5779 = vmatprep.mubr.f32.mxu0 0.0
  %5780 = vmatmul.mubr.f32.gmra.mxu0 %v5074
  %v5781 = vpop.f32.mrf.mxu0
  %v5782 = vadd.f32 %v4787, %v5781
  %v5783 = vpop.f32.mrf.mxu0
  %v5784 = vadd.f32 %v4791, %v5783
  %5785 = vdwg.mxu0
  %5786 = vmatprep.subr.mxu0 0.0
  %5787 = vmatpush1.msra.mxu0 0.0
  %5788 = vmatprep.subr.mxu0 0.0
  %5789 = vmatpush1.msra.mxu0 0.0
  %5790 = vmatprep.subr.mxu0 0.0
  %5791 = vmatpush1.msra.mxu0 0.0
  %5792 = vmatprep.subr.mxu0 0.0
  %5793 = vmatpush1.msra.mxu0 0.0
  %5794 = vmatprep.subr.mxu0 0.0
  %5795 = vmatpush1.msra.mxu0 0.0
  %5796 = vmatprep.subr.mxu0 0.0
  %5797 = vmatpush1.msra.mxu0 0.0
  %5798 = vmatprep.subr.mxu0 0.0
  %5799 = vmatpush1.msra.mxu0 0.0
  %5800 = vmatprep.subr.mxu0 0.0
  %5801 = vmatpush1.msra.mxu0 0.0
  %5802 = vmatprep.subr.mxu0 0.0
  %5803 = vmatpush1.msra.mxu0 0.0
  %5804 = vmatprep.subr.mxu0 0.0
  %5805 = vmatpush1.msra.mxu0 0.0
  %5806 = vmatprep.subr.mxu0 0.0
  %5807 = vmatpush1.msra.mxu0 0.0
  %5808 = vmatprep.subr.mxu0 0.0
  %5809 = vmatpush1.msra.mxu0 0.0
  %5810 = vmatprep.subr.mxu0 %v4643
  %5811 = vmatpush1.msra.mxu0 %v4642
  %5812 = vmatprep.subr.mxu0 %v4571
  %5813 = vmatpush1.msra.mxu0 %v4570
  %5814 = vmatprep.subr.mxu0 %v4499
  %5815 = vmatpush1.msra.mxu0 %v4498
  %5816 = vmatprep.subr.mxu0 %v4427
  %5817 = vmatpush1.msra.mxu0 %v4426
  %5818 = vmatprep.subr.mxu0 0.0
  %5819 = vmatpush2.msra.mxu0 0.0
  %5820 = vmatprep.subr.mxu0 0.0
  %5821 = vmatpush2.msra.mxu0 0.0
  %5822 = vmatprep.subr.mxu0 0.0
  %5823 = vmatpush2.msra.mxu0 0.0
  %5824 = vmatprep.subr.mxu0 0.0
  %5825 = vmatpush2.msra.mxu0 0.0
  %5826 = vmatprep.subr.mxu0 0.0
  %5827 = vmatpush2.msra.mxu0 0.0
  %5828 = vmatprep.subr.mxu0 0.0
  %5829 = vmatpush2.msra.mxu0 0.0
  %5830 = vmatprep.subr.mxu0 0.0
  %5831 = vmatpush2.msra.mxu0 0.0
  %5832 = vmatprep.subr.mxu0 0.0
  %5833 = vmatpush2.msra.mxu0 0.0
  %5834 = vmatprep.subr.mxu0 0.0
  %5835 = vmatpush2.msra.mxu0 0.0
  %5836 = vmatprep.subr.mxu0 0.0
  %5837 = vmatpush2.msra.mxu0 0.0
  %5838 = vmatprep.subr.mxu0 0.0
  %5839 = vmatpush2.msra.mxu0 0.0
  %5840 = vmatprep.subr.mxu0 0.0
  %5841 = vmatpush2.msra.mxu0 0.0
  %5842 = vmatprep.subr.mxu0 0.0
  %5843 = vmatpush2.msra.mxu0 0.0
  %5844 = vmatprep.subr.mxu0 0.0
  %5845 = vmatpush2.msra.mxu0 0.0
  %5846 = vmatprep.subr.mxu0 0.0
  %5847 = vmatpush2.msra.mxu0 0.0
  %5848 = vmatprep.subr.mxu0 0.0
  %5849 = vmatpush2.msra.mxu0 0.0
  %5850 = vmatprep.mubr.f32.mxu0 0.0
  %5851 = vmatmul.mubr.f32.gmra.mxu0 %v5074
  %v5852 = vpop.f32.mrf.mxu0
  %v5853 = vadd.f32 %v4795, %v5852
  %v5854 = vpop.f32.mrf.mxu0
  %v5855 = vadd.f32 %v4799, %v5854
  %5856 = vdwg.mxu0
  %5857 = vmatprep.subr.mxu0 0.0
  %5858 = vmatpush1.msra.mxu0 0.0
  %5859 = vmatprep.subr.mxu0 0.0
  %5860 = vmatpush1.msra.mxu0 0.0
  %5861 = vmatprep.subr.mxu0 0.0
  %5862 = vmatpush1.msra.mxu0 0.0
  %5863 = vmatprep.subr.mxu0 0.0
  %5864 = vmatpush1.msra.mxu0 0.0
  %5865 = vmatprep.subr.mxu0 0.0
  %5866 = vmatpush1.msra.mxu0 0.0
  %5867 = vmatprep.subr.mxu0 0.0
  %5868 = vmatpush1.msra.mxu0 0.0
  %5869 = vmatprep.subr.mxu0 0.0
  %5870 = vmatpush1.msra.mxu0 0.0
  %5871 = vmatprep.subr.mxu0 0.0
  %5872 = vmatpush1.msra.mxu0 0.0
  %5873 = vmatprep.subr.mxu0 0.0
  %5874 = vmatpush1.msra.mxu0 0.0
  %5875 = vmatprep.subr.mxu0 0.0
  %5876 = vmatpush1.msra.mxu0 0.0
  %5877 = vmatprep.subr.mxu0 0.0
  %5878 = vmatpush1.msra.mxu0 0.0
  %5879 = vmatprep.subr.mxu0 0.0
  %5880 = vmatpush1.msra.mxu0 0.0
  %5881 = vmatprep.subr.mxu0 %v4645
  %5882 = vmatpush1.msra.mxu0 %v4644
  %5883 = vmatprep.subr.mxu0 %v4573
  %5884 = vmatpush1.msra.mxu0 %v4572
  %5885 = vmatprep.subr.mxu0 %v4501
  %5886 = vmatpush1.msra.mxu0 %v4500
  %5887 = vmatprep.subr.mxu0 %v4429
  %5888 = vmatpush1.msra.mxu0 %v4428
  %5889 = vmatprep.subr.mxu0 0.0
  %5890 = vmatpush2.msra.mxu0 0.0
  %5891 = vmatprep.subr.mxu0 0.0
  %5892 = vmatpush2.msra.mxu0 0.0
  %5893 = vmatprep.subr.mxu0 0.0
  %5894 = vmatpush2.msra.mxu0 0.0
  %5895 = vmatprep.subr.mxu0 0.0
  %5896 = vmatpush2.msra.mxu0 0.0
  %5897 = vmatprep.subr.mxu0 0.0
  %5898 = vmatpush2.msra.mxu0 0.0
  %5899 = vmatprep.subr.mxu0 0.0
  %5900 = vmatpush2.msra.mxu0 0.0
  %5901 = vmatprep.subr.mxu0 0.0
  %5902 = vmatpush2.msra.mxu0 0.0
  %5903 = vmatprep.subr.mxu0 0.0
  %5904 = vmatpush2.msra.mxu0 0.0
  %5905 = vmatprep.subr.mxu0 0.0
  %5906 = vmatpush2.msra.mxu0 0.0
  %5907 = vmatprep.subr.mxu0 0.0
  %5908 = vmatpush2.msra.mxu0 0.0
  %5909 = vmatprep.subr.mxu0 0.0
  %5910 = vmatpush2.msra.mxu0 0.0
  %5911 = vmatprep.subr.mxu0 0.0
  %5912 = vmatpush2.msra.mxu0 0.0
  %5913 = vmatprep.subr.mxu0 0.0
  %5914 = vmatpush2.msra.mxu0 0.0
  %5915 = vmatprep.subr.mxu0 0.0
  %5916 = vmatpush2.msra.mxu0 0.0
  %5917 = vmatprep.subr.mxu0 0.0
  %5918 = vmatpush2.msra.mxu0 0.0
  %5919 = vmatprep.subr.mxu0 0.0
  %5920 = vmatpush2.msra.mxu0 0.0
  %5921 = vmatprep.mubr.f32.mxu0 0.0
  %5922 = vmatmul.mubr.f32.gmra.mxu0 %v5074
  %v5923 = vpop.f32.mrf.mxu0
  %v5924 = vadd.f32 %v4803, %v5923
  %v5925 = vpop.f32.mrf.mxu0
  %v5926 = vadd.f32 %v4807, %v5925
  %5927 = vdwg.mxu0
  %5928 = vmatprep.subr.mxu0 0.0
  %5929 = vmatpush1.msra.mxu0 0.0
  %5930 = vmatprep.subr.mxu0 0.0
  %5931 = vmatpush1.msra.mxu0 0.0
  %5932 = vmatprep.subr.mxu0 0.0
  %5933 = vmatpush1.msra.mxu0 0.0
  %5934 = vmatprep.subr.mxu0 0.0
  %5935 = vmatpush1.msra.mxu0 0.0
  %5936 = vmatprep.subr.mxu0 0.0
  %5937 = vmatpush1.msra.mxu0 0.0
  %5938 = vmatprep.subr.mxu0 0.0
  %5939 = vmatpush1.msra.mxu0 0.0
  %5940 = vmatprep.subr.mxu0 0.0
  %5941 = vmatpush1.msra.mxu0 0.0
  %5942 = vmatprep.subr.mxu0 0.0
  %5943 = vmatpush1.msra.mxu0 0.0
  %5944 = vmatprep.subr.mxu0 0.0
  %5945 = vmatpush1.msra.mxu0 0.0
  %5946 = vmatprep.subr.mxu0 0.0
  %5947 = vmatpush1.msra.mxu0 0.0
  %5948 = vmatprep.subr.mxu0 0.0
  %5949 = vmatpush1.msra.mxu0 0.0
  %5950 = vmatprep.subr.mxu0 0.0
  %5951 = vmatpush1.msra.mxu0 0.0
  %5952 = vmatprep.subr.mxu0 %v4647
  %5953 = vmatpush1.msra.mxu0 %v4646
  %5954 = vmatprep.subr.mxu0 %v4575
  %5955 = vmatpush1.msra.mxu0 %v4574
  %5956 = vmatprep.subr.mxu0 %v4503
  %5957 = vmatpush1.msra.mxu0 %v4502
  %5958 = vmatprep.subr.mxu0 %v4431
  %5959 = vmatpush1.msra.mxu0 %v4430
  %5960 = vmatprep.subr.mxu0 0.0
  %5961 = vmatpush2.msra.mxu0 0.0
  %5962 = vmatprep.subr.mxu0 0.0
  %5963 = vmatpush2.msra.mxu0 0.0
  %5964 = vmatprep.subr.mxu0 0.0
  %5965 = vmatpush2.msra.mxu0 0.0
  %5966 = vmatprep.subr.mxu0 0.0
  %5967 = vmatpush2.msra.mxu0 0.0
  %5968 = vmatprep.subr.mxu0 0.0
  %5969 = vmatpush2.msra.mxu0 0.0
  %5970 = vmatprep.subr.mxu0 0.0
  %5971 = vmatpush2.msra.mxu0 0.0
  %5972 = vmatprep.subr.mxu0 0.0
  %5973 = vmatpush2.msra.mxu0 0.0
  %5974 = vmatprep.subr.mxu0 0.0
  %5975 = vmatpush2.msra.mxu0 0.0
  %5976 = vmatprep.subr.mxu0 0.0
  %5977 = vmatpush2.msra.mxu0 0.0
  %5978 = vmatprep.subr.mxu0 0.0
  %5979 = vmatpush2.msra.mxu0 0.0
  %5980 = vmatprep.subr.mxu0 0.0
  %5981 = vmatpush2.msra.mxu0 0.0
  %5982 = vmatprep.subr.mxu0 0.0
  %5983 = vmatpush2.msra.mxu0 0.0
  %5984 = vmatprep.subr.mxu0 0.0
  %5985 = vmatpush2.msra.mxu0 0.0
  %5986 = vmatprep.subr.mxu0 0.0
  %5987 = vmatpush2.msra.mxu0 0.0
  %5988 = vmatprep.subr.mxu0 0.0
  %5989 = vmatpush2.msra.mxu0 0.0
  %5990 = vmatprep.subr.mxu0 0.0
  %5991 = vmatpush2.msra.mxu0 0.0
  %5992 = vmatprep.mubr.f32.mxu0 0.0
  %5993 = vmatmul.mubr.f32.gmra.mxu0 %v5074
  %v5994 = vpop.f32.mrf.mxu0
  %v5995 = vadd.f32 %v4811, %v5994
  %v5996 = vpop.f32.mrf.mxu0
  %v5997 = vadd.f32 %v4815, %v5996
  %5998 = vdwg.mxu0
  %5999 = vmatprep.subr.mxu0 0.0
  %6000 = vmatpush1.msra.mxu0 0.0
  %6001 = vmatprep.subr.mxu0 0.0
  %6002 = vmatpush1.msra.mxu0 0.0
  %6003 = vmatprep.subr.mxu0 0.0
  %6004 = vmatpush1.msra.mxu0 0.0
  %6005 = vmatprep.subr.mxu0 0.0
  %6006 = vmatpush1.msra.mxu0 0.0
  %6007 = vmatprep.subr.mxu0 0.0
  %6008 = vmatpush1.msra.mxu0 0.0
  %6009 = vmatprep.subr.mxu0 0.0
  %6010 = vmatpush1.msra.mxu0 0.0
  %6011 = vmatprep.subr.mxu0 0.0
  %6012 = vmatpush1.msra.mxu0 0.0
  %6013 = vmatprep.subr.mxu0 0.0
  %6014 = vmatpush1.msra.mxu0 0.0
  %6015 = vmatprep.subr.mxu0 0.0
  %6016 = vmatpush1.msra.mxu0 0.0
  %6017 = vmatprep.subr.mxu0 0.0
  %6018 = vmatpush1.msra.mxu0 0.0
  %6019 = vmatprep.subr.mxu0 0.0
  %6020 = vmatpush1.msra.mxu0 0.0
  %6021 = vmatprep.subr.mxu0 0.0
  %6022 = vmatpush1.msra.mxu0 0.0
  %6023 = vmatprep.subr.mxu0 %v4649
  %6024 = vmatpush1.msra.mxu0 %v4648
  %6025 = vmatprep.subr.mxu0 %v4577
  %6026 = vmatpush1.msra.mxu0 %v4576
  %6027 = vmatprep.subr.mxu0 %v4505
  %6028 = vmatpush1.msra.mxu0 %v4504
  %6029 = vmatprep.subr.mxu0 %v4433
  %6030 = vmatpush1.msra.mxu0 %v4432
  %6031 = vmatprep.subr.mxu0 0.0
  %6032 = vmatpush2.msra.mxu0 0.0
  %6033 = vmatprep.subr.mxu0 0.0
  %6034 = vmatpush2.msra.mxu0 0.0
  %6035 = vmatprep.subr.mxu0 0.0
  %6036 = vmatpush2.msra.mxu0 0.0
  %6037 = vmatprep.subr.mxu0 0.0
  %6038 = vmatpush2.msra.mxu0 0.0
  %6039 = vmatprep.subr.mxu0 0.0
  %6040 = vmatpush2.msra.mxu0 0.0
  %6041 = vmatprep.subr.mxu0 0.0
  %6042 = vmatpush2.msra.mxu0 0.0
  %6043 = vmatprep.subr.mxu0 0.0
  %6044 = vmatpush2.msra.mxu0 0.0
  %6045 = vmatprep.subr.mxu0 0.0
  %6046 = vmatpush2.msra.mxu0 0.0
  %6047 = vmatprep.subr.mxu0 0.0
  %6048 = vmatpush2.msra.mxu0 0.0
  %6049 = vmatprep.subr.mxu0 0.0
  %6050 = vmatpush2.msra.mxu0 0.0
  %6051 = vmatprep.subr.mxu0 0.0
  %6052 = vmatpush2.msra.mxu0 0.0
  %6053 = vmatprep.subr.mxu0 0.0
  %6054 = vmatpush2.msra.mxu0 0.0
  %6055 = vmatprep.subr.mxu0 0.0
  %6056 = vmatpush2.msra.mxu0 0.0
  %6057 = vmatprep.subr.mxu0 0.0
  %6058 = vmatpush2.msra.mxu0 0.0
  %6059 = vmatprep.subr.mxu0 0.0
  %6060 = vmatpush2.msra.mxu0 0.0
  %6061 = vmatprep.subr.mxu0 0.0
  %6062 = vmatpush2.msra.mxu0 0.0
  %6063 = vmatprep.mubr.f32.mxu0 0.0
  %6064 = vmatmul.mubr.f32.gmra.mxu0 %v5074
  %v6065 = vpop.f32.mrf.mxu0
  %v6066 = vadd.f32 %v4819, %v6065
  %v6067 = vpop.f32.mrf.mxu0
  %v6068 = vadd.f32 %v4823, %v6067
  %6069 = vdwg.mxu0
  %6070 = vmatprep.subr.mxu0 0.0
  %6071 = vmatpush1.msra.mxu0 0.0
  %6072 = vmatprep.subr.mxu0 0.0
  %6073 = vmatpush1.msra.mxu0 0.0
  %6074 = vmatprep.subr.mxu0 0.0
  %6075 = vmatpush1.msra.mxu0 0.0
  %6076 = vmatprep.subr.mxu0 0.0
  %6077 = vmatpush1.msra.mxu0 0.0
  %6078 = vmatprep.subr.mxu0 0.0
  %6079 = vmatpush1.msra.mxu0 0.0
  %6080 = vmatprep.subr.mxu0 0.0
  %6081 = vmatpush1.msra.mxu0 0.0
  %6082 = vmatprep.subr.mxu0 0.0
  %6083 = vmatpush1.msra.mxu0 0.0
  %6084 = vmatprep.subr.mxu0 0.0
  %6085 = vmatpush1.msra.mxu0 0.0
  %6086 = vmatprep.subr.mxu0 0.0
  %6087 = vmatpush1.msra.mxu0 0.0
  %6088 = vmatprep.subr.mxu0 0.0
  %6089 = vmatpush1.msra.mxu0 0.0
  %6090 = vmatprep.subr.mxu0 0.0
  %6091 = vmatpush1.msra.mxu0 0.0
  %6092 = vmatprep.subr.mxu0 0.0
  %6093 = vmatpush1.msra.mxu0 0.0
  %6094 = vmatprep.subr.mxu0 %v4651
  %6095 = vmatpush1.msra.mxu0 %v4650
  %6096 = vmatprep.subr.mxu0 %v4579
  %6097 = vmatpush1.msra.mxu0 %v4578
  %6098 = vmatprep.subr.mxu0 %v4507
  %6099 = vmatpush1.msra.mxu0 %v4506
  %6100 = vmatprep.subr.mxu0 %v4435
  %6101 = vmatpush1.msra.mxu0 %v4434
  %6102 = vmatprep.subr.mxu0 0.0
  %6103 = vmatpush2.msra.mxu0 0.0
  %6104 = vmatprep.subr.mxu0 0.0
  %6105 = vmatpush2.msra.mxu0 0.0
  %6106 = vmatprep.subr.mxu0 0.0
  %6107 = vmatpush2.msra.mxu0 0.0
  %6108 = vmatprep.subr.mxu0 0.0
  %6109 = vmatpush2.msra.mxu0 0.0
  %6110 = vmatprep.subr.mxu0 0.0
  %6111 = vmatpush2.msra.mxu0 0.0
  %6112 = vmatprep.subr.mxu0 0.0
  %6113 = vmatpush2.msra.mxu0 0.0
  %6114 = vmatprep.subr.mxu0 0.0
  %6115 = vmatpush2.msra.mxu0 0.0
  %6116 = vmatprep.subr.mxu0 0.0
  %6117 = vmatpush2.msra.mxu0 0.0
  %6118 = vmatprep.subr.mxu0 0.0
  %6119 = vmatpush2.msra.mxu0 0.0
  %6120 = vmatprep.subr.mxu0 0.0
  %6121 = vmatpush2.msra.mxu0 0.0
  %6122 = vmatprep.subr.mxu0 0.0
  %6123 = vmatpush2.msra.mxu0 0.0
  %6124 = vmatprep.subr.mxu0 0.0
  %6125 = vmatpush2.msra.mxu0 0.0
  %6126 = vmatprep.subr.mxu0 0.0
  %6127 = vmatpush2.msra.mxu0 0.0
  %6128 = vmatprep.subr.mxu0 0.0
  %6129 = vmatpush2.msra.mxu0 0.0
  %6130 = vmatprep.subr.mxu0 0.0
  %6131 = vmatpush2.msra.mxu0 0.0
  %6132 = vmatprep.subr.mxu0 0.0
  %6133 = vmatpush2.msra.mxu0 0.0
  %6134 = vmatprep.mubr.f32.mxu0 0.0
  %6135 = vmatmul.mubr.f32.gmra.mxu0 %v5074
  %v6136 = vpop.f32.mrf.mxu0
  %v6137 = vadd.f32 %v4827, %v6136
  %v6138 = vpop.f32.mrf.mxu0
  %v6139 = vadd.f32 %v4831, %v6138
  %6140 = vdwg.mxu0
  %6141 = vmatprep.subr.mxu0 0.0
  %6142 = vmatpush1.msra.mxu0 0.0
  %6143 = vmatprep.subr.mxu0 0.0
  %6144 = vmatpush1.msra.mxu0 0.0
  %6145 = vmatprep.subr.mxu0 0.0
  %6146 = vmatpush1.msra.mxu0 0.0
  %6147 = vmatprep.subr.mxu0 0.0
  %6148 = vmatpush1.msra.mxu0 0.0
  %6149 = vmatprep.subr.mxu0 0.0
  %6150 = vmatpush1.msra.mxu0 0.0
  %6151 = vmatprep.subr.mxu0 0.0
  %6152 = vmatpush1.msra.mxu0 0.0
  %6153 = vmatprep.subr.mxu0 0.0
  %6154 = vmatpush1.msra.mxu0 0.0
  %6155 = vmatprep.subr.mxu0 0.0
  %6156 = vmatpush1.msra.mxu0 0.0
  %6157 = vmatprep.subr.mxu0 0.0
  %6158 = vmatpush1.msra.mxu0 0.0
  %6159 = vmatprep.subr.mxu0 0.0
  %6160 = vmatpush1.msra.mxu0 0.0
  %6161 = vmatprep.subr.mxu0 0.0
  %6162 = vmatpush1.msra.mxu0 0.0
  %6163 = vmatprep.subr.mxu0 0.0
  %6164 = vmatpush1.msra.mxu0 0.0
  %6165 = vmatprep.subr.mxu0 %v4653
  %6166 = vmatpush1.msra.mxu0 %v4652
  %6167 = vmatprep.subr.mxu0 %v4581
  %6168 = vmatpush1.msra.mxu0 %v4580
  %6169 = vmatprep.subr.mxu0 %v4509
  %6170 = vmatpush1.msra.mxu0 %v4508
  %6171 = vmatprep.subr.mxu0 %v4437
  %6172 = vmatpush1.msra.mxu0 %v4436
  %6173 = vmatprep.subr.mxu0 0.0
  %6174 = vmatpush2.msra.mxu0 0.0
  %6175 = vmatprep.subr.mxu0 0.0
  %6176 = vmatpush2.msra.mxu0 0.0
  %6177 = vmatprep.subr.mxu0 0.0
  %6178 = vmatpush2.msra.mxu0 0.0
  %6179 = vmatprep.subr.mxu0 0.0
  %6180 = vmatpush2.msra.mxu0 0.0
  %6181 = vmatprep.subr.mxu0 0.0
  %6182 = vmatpush2.msra.mxu0 0.0
  %6183 = vmatprep.subr.mxu0 0.0
  %6184 = vmatpush2.msra.mxu0 0.0
  %6185 = vmatprep.subr.mxu0 0.0
  %6186 = vmatpush2.msra.mxu0 0.0
  %6187 = vmatprep.subr.mxu0 0.0
  %6188 = vmatpush2.msra.mxu0 0.0
  %6189 = vmatprep.subr.mxu0 0.0
  %6190 = vmatpush2.msra.mxu0 0.0
  %6191 = vmatprep.subr.mxu0 0.0
  %6192 = vmatpush2.msra.mxu0 0.0
  %6193 = vmatprep.subr.mxu0 0.0
  %6194 = vmatpush2.msra.mxu0 0.0
  %6195 = vmatprep.subr.mxu0 0.0
  %6196 = vmatpush2.msra.mxu0 0.0
  %6197 = vmatprep.subr.mxu0 0.0
  %6198 = vmatpush2.msra.mxu0 0.0
  %6199 = vmatprep.subr.mxu0 0.0
  %6200 = vmatpush2.msra.mxu0 0.0
  %6201 = vmatprep.subr.mxu0 0.0
  %6202 = vmatpush2.msra.mxu0 0.0
  %6203 = vmatprep.subr.mxu0 0.0
  %6204 = vmatpush2.msra.mxu0 0.0
  %6205 = vmatprep.mubr.f32.mxu0 0.0
  %6206 = vmatmul.mubr.f32.gmra.mxu0 %v5074
  %v6207 = vpop.f32.mrf.mxu0
  %v6208 = vadd.f32 %v4835, %v6207
  %v6209 = vpop.f32.mrf.mxu0
  %v6210 = vadd.f32 %v4839, %v6209
  %6211 = vdwg.mxu0
  %6212 = vmatprep.subr.mxu0 0.0
  %6213 = vmatpush1.msra.mxu0 0.0
  %6214 = vmatprep.subr.mxu0 0.0
  %6215 = vmatpush1.msra.mxu0 0.0
  %6216 = vmatprep.subr.mxu0 0.0
  %6217 = vmatpush1.msra.mxu0 0.0
  %6218 = vmatprep.subr.mxu0 0.0
  %6219 = vmatpush1.msra.mxu0 0.0
  %6220 = vmatprep.subr.mxu0 0.0
  %6221 = vmatpush1.msra.mxu0 0.0
  %6222 = vmatprep.subr.mxu0 0.0
  %6223 = vmatpush1.msra.mxu0 0.0
  %6224 = vmatprep.subr.mxu0 0.0
  %6225 = vmatpush1.msra.mxu0 0.0
  %6226 = vmatprep.subr.mxu0 0.0
  %6227 = vmatpush1.msra.mxu0 0.0
  %6228 = vmatprep.subr.mxu0 0.0
  %6229 = vmatpush1.msra.mxu0 0.0
  %6230 = vmatprep.subr.mxu0 0.0
  %6231 = vmatpush1.msra.mxu0 0.0
  %6232 = vmatprep.subr.mxu0 0.0
  %6233 = vmatpush1.msra.mxu0 0.0
  %6234 = vmatprep.subr.mxu0 0.0
  %6235 = vmatpush1.msra.mxu0 0.0
  %6236 = vmatprep.subr.mxu0 %v4655
  %6237 = vmatpush1.msra.mxu0 %v4654
  %6238 = vmatprep.subr.mxu0 %v4583
  %6239 = vmatpush1.msra.mxu0 %v4582
  %6240 = vmatprep.subr.mxu0 %v4511
  %6241 = vmatpush1.msra.mxu0 %v4510
  %6242 = vmatprep.subr.mxu0 %v4439
  %6243 = vmatpush1.msra.mxu0 %v4438
  %6244 = vmatprep.subr.mxu0 0.0
  %6245 = vmatpush2.msra.mxu0 0.0
  %6246 = vmatprep.subr.mxu0 0.0
  %6247 = vmatpush2.msra.mxu0 0.0
  %6248 = vmatprep.subr.mxu0 0.0
  %6249 = vmatpush2.msra.mxu0 0.0
  %6250 = vmatprep.subr.mxu0 0.0
  %6251 = vmatpush2.msra.mxu0 0.0
  %6252 = vmatprep.subr.mxu0 0.0
  %6253 = vmatpush2.msra.mxu0 0.0
  %6254 = vmatprep.subr.mxu0 0.0
  %6255 = vmatpush2.msra.mxu0 0.0
  %6256 = vmatprep.subr.mxu0 0.0
  %6257 = vmatpush2.msra.mxu0 0.0
  %6258 = vmatprep.subr.mxu0 0.0
  %6259 = vmatpush2.msra.mxu0 0.0
  %6260 = vmatprep.subr.mxu0 0.0
  %6261 = vmatpush2.msra.mxu0 0.0
  %6262 = vmatprep.subr.mxu0 0.0
  %6263 = vmatpush2.msra.mxu0 0.0
  %6264 = vmatprep.subr.mxu0 0.0
  %6265 = vmatpush2.msra.mxu0 0.0
  %6266 = vmatprep.subr.mxu0 0.0
  %6267 = vmatpush2.msra.mxu0 0.0
  %6268 = vmatprep.subr.mxu0 0.0
  %6269 = vmatpush2.msra.mxu0 0.0
  %6270 = vmatprep.subr.mxu0 0.0
  %6271 = vmatpush2.msra.mxu0 0.0
  %6272 = vmatprep.subr.mxu0 0.0
  %6273 = vmatpush2.msra.mxu0 0.0
  %6274 = vmatprep.subr.mxu0 0.0
  %6275 = vmatpush2.msra.mxu0 0.0
  %6276 = vmatprep.mubr.f32.mxu0 0.0
  %6277 = vmatmul.mubr.f32.gmra.mxu0 %v5074
  %v6278 = vpop.f32.mrf.mxu0
  %v6279 = vadd.f32 %v4843, %v6278
  %v6280 = vpop.f32.mrf.mxu0
  %v6281 = vadd.f32 %v4847, %v6280
  %6282 = vdwg.mxu0
  %6283 = vmatprep.subr.mxu0 0.0
  %6284 = vmatpush1.msra.mxu0 0.0
  %6285 = vmatprep.subr.mxu0 0.0
  %6286 = vmatpush1.msra.mxu0 0.0
  %6287 = vmatprep.subr.mxu0 0.0
  %6288 = vmatpush1.msra.mxu0 0.0
  %6289 = vmatprep.subr.mxu0 0.0
  %6290 = vmatpush1.msra.mxu0 0.0
  %6291 = vmatprep.subr.mxu0 0.0
  %6292 = vmatpush1.msra.mxu0 0.0
  %6293 = vmatprep.subr.mxu0 0.0
  %6294 = vmatpush1.msra.mxu0 0.0
  %6295 = vmatprep.subr.mxu0 0.0
  %6296 = vmatpush1.msra.mxu0 0.0
  %6297 = vmatprep.subr.mxu0 0.0
  %6298 = vmatpush1.msra.mxu0 0.0
  %6299 = vmatprep.subr.mxu0 0.0
  %6300 = vmatpush1.msra.mxu0 0.0
  %6301 = vmatprep.subr.mxu0 0.0
  %6302 = vmatpush1.msra.mxu0 0.0
  %6303 = vmatprep.subr.mxu0 0.0
  %6304 = vmatpush1.msra.mxu0 0.0
  %6305 = vmatprep.subr.mxu0 0.0
  %6306 = vmatpush1.msra.mxu0 0.0
  %6307 = vmatprep.subr.mxu0 %v4657
  %6308 = vmatpush1.msra.mxu0 %v4656
  %6309 = vmatprep.subr.mxu0 %v4585
  %6310 = vmatpush1.msra.mxu0 %v4584
  %6311 = vmatprep.subr.mxu0 %v4513
  %6312 = vmatpush1.msra.mxu0 %v4512
  %6313 = vmatprep.subr.mxu0 %v4441
  %6314 = vmatpush1.msra.mxu0 %v4440
  %6315 = vmatprep.subr.mxu0 0.0
  %6316 = vmatpush2.msra.mxu0 0.0
  %6317 = vmatprep.subr.mxu0 0.0
  %6318 = vmatpush2.msra.mxu0 0.0
  %6319 = vmatprep.subr.mxu0 0.0
  %6320 = vmatpush2.msra.mxu0 0.0
  %6321 = vmatprep.subr.mxu0 0.0
  %6322 = vmatpush2.msra.mxu0 0.0
  %6323 = vmatprep.subr.mxu0 0.0
  %6324 = vmatpush2.msra.mxu0 0.0
  %6325 = vmatprep.subr.mxu0 0.0
  %6326 = vmatpush2.msra.mxu0 0.0
  %6327 = vmatprep.subr.mxu0 0.0
  %6328 = vmatpush2.msra.mxu0 0.0
  %6329 = vmatprep.subr.mxu0 0.0
  %6330 = vmatpush2.msra.mxu0 0.0
  %6331 = vmatprep.subr.mxu0 0.0
  %6332 = vmatpush2.msra.mxu0 0.0
  %6333 = vmatprep.subr.mxu0 0.0
  %6334 = vmatpush2.msra.mxu0 0.0
  %6335 = vmatprep.subr.mxu0 0.0
  %6336 = vmatpush2.msra.mxu0 0.0
  %6337 = vmatprep.subr.mxu0 0.0
  %6338 = vmatpush2.msra.mxu0 0.0
  %6339 = vmatprep.subr.mxu0 0.0
  %6340 = vmatpush2.msra.mxu0 0.0
  %6341 = vmatprep.subr.mxu0 0.0
  %6342 = vmatpush2.msra.mxu0 0.0
  %6343 = vmatprep.subr.mxu0 0.0
  %6344 = vmatpush2.msra.mxu0 0.0
  %6345 = vmatprep.subr.mxu0 0.0
  %6346 = vmatpush2.msra.mxu0 0.0
  %6347 = vmatprep.mubr.f32.mxu0 0.0
  %6348 = vmatmul.mubr.f32.gmra.mxu0 %v5074
  %v6349 = vpop.f32.mrf.mxu0
  %v6350 = vadd.f32 %v4851, %v6349
  %v6351 = vpop.f32.mrf.mxu0
  %v6352 = vadd.f32 %v4855, %v6351
  %6353 = vdwg.mxu0
  %6354 = vmatprep.subr.mxu0 0.0
  %6355 = vmatpush1.msra.mxu0 0.0
  %6356 = vmatprep.subr.mxu0 0.0
  %6357 = vmatpush1.msra.mxu0 0.0
  %6358 = vmatprep.subr.mxu0 0.0
  %6359 = vmatpush1.msra.mxu0 0.0
  %6360 = vmatprep.subr.mxu0 0.0
  %6361 = vmatpush1.msra.mxu0 0.0
  %6362 = vmatprep.subr.mxu0 0.0
  %6363 = vmatpush1.msra.mxu0 0.0
  %6364 = vmatprep.subr.mxu0 0.0
  %6365 = vmatpush1.msra.mxu0 0.0
  %6366 = vmatprep.subr.mxu0 0.0
  %6367 = vmatpush1.msra.mxu0 0.0
  %6368 = vmatprep.subr.mxu0 0.0
  %6369 = vmatpush1.msra.mxu0 0.0
  %6370 = vmatprep.subr.mxu0 0.0
  %6371 = vmatpush1.msra.mxu0 0.0
  %6372 = vmatprep.subr.mxu0 0.0
  %6373 = vmatpush1.msra.mxu0 0.0
  %6374 = vmatprep.subr.mxu0 0.0
  %6375 = vmatpush1.msra.mxu0 0.0
  %6376 = vmatprep.subr.mxu0 0.0
  %6377 = vmatpush1.msra.mxu0 0.0
  %6378 = vmatprep.subr.mxu0 %v4659
  %6379 = vmatpush1.msra.mxu0 %v4658
  %6380 = vmatprep.subr.mxu0 %v4587
  %6381 = vmatpush1.msra.mxu0 %v4586
  %6382 = vmatprep.subr.mxu0 %v4515
  %6383 = vmatpush1.msra.mxu0 %v4514
  %6384 = vmatprep.subr.mxu0 %v4443
  %6385 = vmatpush1.msra.mxu0 %v4442
  %6386 = vmatprep.subr.mxu0 0.0
  %6387 = vmatpush2.msra.mxu0 0.0
  %6388 = vmatprep.subr.mxu0 0.0
  %6389 = vmatpush2.msra.mxu0 0.0
  %6390 = vmatprep.subr.mxu0 0.0
  %6391 = vmatpush2.msra.mxu0 0.0
  %6392 = vmatprep.subr.mxu0 0.0
  %6393 = vmatpush2.msra.mxu0 0.0
  %6394 = vmatprep.subr.mxu0 0.0
  %6395 = vmatpush2.msra.mxu0 0.0
  %6396 = vmatprep.subr.mxu0 0.0
  %6397 = vmatpush2.msra.mxu0 0.0
  %6398 = vmatprep.subr.mxu0 0.0
  %6399 = vmatpush2.msra.mxu0 0.0
  %6400 = vmatprep.subr.mxu0 0.0
  %6401 = vmatpush2.msra.mxu0 0.0
  %6402 = vmatprep.subr.mxu0 0.0
  %6403 = vmatpush2.msra.mxu0 0.0
  %6404 = vmatprep.subr.mxu0 0.0
  %6405 = vmatpush2.msra.mxu0 0.0
  %6406 = vmatprep.subr.mxu0 0.0
  %6407 = vmatpush2.msra.mxu0 0.0
  %6408 = vmatprep.subr.mxu0 0.0
  %6409 = vmatpush2.msra.mxu0 0.0
  %6410 = vmatprep.subr.mxu0 0.0
  %6411 = vmatpush2.msra.mxu0 0.0
  %6412 = vmatprep.subr.mxu0 0.0
  %6413 = vmatpush2.msra.mxu0 0.0
  %6414 = vmatprep.subr.mxu0 0.0
  %6415 = vmatpush2.msra.mxu0 0.0
  %6416 = vmatprep.subr.mxu0 0.0
  %6417 = vmatpush2.msra.mxu0 0.0
  %6418 = vmatprep.mubr.f32.mxu0 0.0
  %6419 = vmatmul.mubr.f32.gmra.mxu0 %v5074
  %v6420 = vpop.f32.mrf.mxu0
  %v6421 = vadd.f32 %v4859, %v6420
  %v6422 = vpop.f32.mrf.mxu0
  %v6423 = vadd.f32 %v4863, %v6422
  %6424 = vdwg.mxu0
  %6425 = vmatprep.subr.mxu0 0.0
  %6426 = vmatpush1.msra.mxu0 0.0
  %6427 = vmatprep.subr.mxu0 0.0
  %6428 = vmatpush1.msra.mxu0 0.0
  %6429 = vmatprep.subr.mxu0 0.0
  %6430 = vmatpush1.msra.mxu0 0.0
  %6431 = vmatprep.subr.mxu0 0.0
  %6432 = vmatpush1.msra.mxu0 0.0
  %6433 = vmatprep.subr.mxu0 0.0
  %6434 = vmatpush1.msra.mxu0 0.0
  %6435 = vmatprep.subr.mxu0 0.0
  %6436 = vmatpush1.msra.mxu0 0.0
  %6437 = vmatprep.subr.mxu0 0.0
  %6438 = vmatpush1.msra.mxu0 0.0
  %6439 = vmatprep.subr.mxu0 0.0
  %6440 = vmatpush1.msra.mxu0 0.0
  %6441 = vmatprep.subr.mxu0 0.0
  %6442 = vmatpush1.msra.mxu0 0.0
  %6443 = vmatprep.subr.mxu0 0.0
  %6444 = vmatpush1.msra.mxu0 0.0
  %6445 = vmatprep.subr.mxu0 0.0
  %6446 = vmatpush1.msra.mxu0 0.0
  %6447 = vmatprep.subr.mxu0 0.0
  %6448 = vmatpush1.msra.mxu0 0.0
  %6449 = vmatprep.subr.mxu0 %v4661
  %6450 = vmatpush1.msra.mxu0 %v4660
  %6451 = vmatprep.subr.mxu0 %v4589
  %6452 = vmatpush1.msra.mxu0 %v4588
  %6453 = vmatprep.subr.mxu0 %v4517
  %6454 = vmatpush1.msra.mxu0 %v4516
  %6455 = vmatprep.subr.mxu0 %v4445
  %6456 = vmatpush1.msra.mxu0 %v4444
  %6457 = vmatprep.subr.mxu0 0.0
  %6458 = vmatpush2.msra.mxu0 0.0
  %6459 = vmatprep.subr.mxu0 0.0
  %6460 = vmatpush2.msra.mxu0 0.0
  %6461 = vmatprep.subr.mxu0 0.0
  %6462 = vmatpush2.msra.mxu0 0.0
  %6463 = vmatprep.subr.mxu0 0.0
  %6464 = vmatpush2.msra.mxu0 0.0
  %6465 = vmatprep.subr.mxu0 0.0
  %6466 = vmatpush2.msra.mxu0 0.0
  %6467 = vmatprep.subr.mxu0 0.0
  %6468 = vmatpush2.msra.mxu0 0.0
  %6469 = vmatprep.subr.mxu0 0.0
  %6470 = vmatpush2.msra.mxu0 0.0
  %6471 = vmatprep.subr.mxu0 0.0
  %6472 = vmatpush2.msra.mxu0 0.0
  %6473 = vmatprep.subr.mxu0 0.0
  %6474 = vmatpush2.msra.mxu0 0.0
  %6475 = vmatprep.subr.mxu0 0.0
  %6476 = vmatpush2.msra.mxu0 0.0
  %6477 = vmatprep.subr.mxu0 0.0
  %6478 = vmatpush2.msra.mxu0 0.0
  %6479 = vmatprep.subr.mxu0 0.0
  %6480 = vmatpush2.msra.mxu0 0.0
  %6481 = vmatprep.subr.mxu0 0.0
  %6482 = vmatpush2.msra.mxu0 0.0
  %6483 = vmatprep.subr.mxu0 0.0
  %6484 = vmatpush2.msra.mxu0 0.0
  %6485 = vmatprep.subr.mxu0 0.0
  %6486 = vmatpush2.msra.mxu0 0.0
  %6487 = vmatprep.subr.mxu0 0.0
  %6488 = vmatpush2.msra.mxu0 0.0
  %6489 = vmatprep.mubr.f32.mxu0 0.0
  %6490 = vmatmul.mubr.f32.gmra.mxu0 %v5074
  %v6491 = vpop.f32.mrf.mxu0
  %v6492 = vadd.f32 %v4867, %v6491
  %v6493 = vpop.f32.mrf.mxu0
  %v6494 = vadd.f32 %v4871, %v6493
  %6495 = vdwg.mxu0
  %6496 = vmatprep.subr.mxu0 0.0
  %6497 = vmatpush1.msra.mxu0 0.0
  %6498 = vmatprep.subr.mxu0 0.0
  %6499 = vmatpush1.msra.mxu0 0.0
  %6500 = vmatprep.subr.mxu0 0.0
  %6501 = vmatpush1.msra.mxu0 0.0
  %6502 = vmatprep.subr.mxu0 0.0
  %6503 = vmatpush1.msra.mxu0 0.0
  %6504 = vmatprep.subr.mxu0 0.0
  %6505 = vmatpush1.msra.mxu0 0.0
  %6506 = vmatprep.subr.mxu0 0.0
  %6507 = vmatpush1.msra.mxu0 0.0
  %6508 = vmatprep.subr.mxu0 0.0
  %6509 = vmatpush1.msra.mxu0 0.0
  %6510 = vmatprep.subr.mxu0 0.0
  %6511 = vmatpush1.msra.mxu0 0.0
  %6512 = vmatprep.subr.mxu0 0.0
  %6513 = vmatpush1.msra.mxu0 0.0
  %6514 = vmatprep.subr.mxu0 0.0
  %6515 = vmatpush1.msra.mxu0 0.0
  %6516 = vmatprep.subr.mxu0 0.0
  %6517 = vmatpush1.msra.mxu0 0.0
  %6518 = vmatprep.subr.mxu0 0.0
  %6519 = vmatpush1.msra.mxu0 0.0
  %6520 = vmatprep.subr.mxu0 %v4663
  %6521 = vmatpush1.msra.mxu0 %v4662
  %6522 = vmatprep.subr.mxu0 %v4591
  %6523 = vmatpush1.msra.mxu0 %v4590
  %6524 = vmatprep.subr.mxu0 %v4519
  %6525 = vmatpush1.msra.mxu0 %v4518
  %6526 = vmatprep.subr.mxu0 %v4447
  %6527 = vmatpush1.msra.mxu0 %v4446
  %6528 = vmatprep.subr.mxu0 0.0
  %6529 = vmatpush2.msra.mxu0 0.0
  %6530 = vmatprep.subr.mxu0 0.0
  %6531 = vmatpush2.msra.mxu0 0.0
  %6532 = vmatprep.subr.mxu0 0.0
  %6533 = vmatpush2.msra.mxu0 0.0
  %6534 = vmatprep.subr.mxu0 0.0
  %6535 = vmatpush2.msra.mxu0 0.0
  %6536 = vmatprep.subr.mxu0 0.0
  %6537 = vmatpush2.msra.mxu0 0.0
  %6538 = vmatprep.subr.mxu0 0.0
  %6539 = vmatpush2.msra.mxu0 0.0
  %6540 = vmatprep.subr.mxu0 0.0
  %6541 = vmatpush2.msra.mxu0 0.0
  %6542 = vmatprep.subr.mxu0 0.0
  %6543 = vmatpush2.msra.mxu0 0.0
  %6544 = vmatprep.subr.mxu0 0.0
  %6545 = vmatpush2.msra.mxu0 0.0
  %6546 = vmatprep.subr.mxu0 0.0
  %6547 = vmatpush2.msra.mxu0 0.0
  %6548 = vmatprep.subr.mxu0 0.0
  %6549 = vmatpush2.msra.mxu0 0.0
  %6550 = vmatprep.subr.mxu0 0.0
  %6551 = vmatpush2.msra.mxu0 0.0
  %6552 = vmatprep.subr.mxu0 0.0
  %6553 = vmatpush2.msra.mxu0 0.0
  %6554 = vmatprep.subr.mxu0 0.0
  %6555 = vmatpush2.msra.mxu0 0.0
  %6556 = vmatprep.subr.mxu0 0.0
  %6557 = vmatpush2.msra.mxu0 0.0
  %6558 = vmatprep.subr.mxu0 0.0
  %6559 = vmatpush2.msra.mxu0 0.0
  %6560 = vmatprep.mubr.f32.mxu0 0.0
  %6561 = vmatmul.mubr.f32.gmra.mxu0 %v5074
  %v6562 = vpop.f32.mrf.mxu0
  %v6563 = vadd.f32 %v4875, %v6562
  %v6564 = vpop.f32.mrf.mxu0
  %v6565 = vadd.f32 %v4879, %v6564
  %6566 = vdwg.mxu0
  %6567 = vmatprep.subr.mxu0 0.0
  %6568 = vmatpush1.msra.mxu0 0.0
  %6569 = vmatprep.subr.mxu0 0.0
  %6570 = vmatpush1.msra.mxu0 0.0
  %6571 = vmatprep.subr.mxu0 0.0
  %6572 = vmatpush1.msra.mxu0 0.0
  %6573 = vmatprep.subr.mxu0 0.0
  %6574 = vmatpush1.msra.mxu0 0.0
  %6575 = vmatprep.subr.mxu0 0.0
  %6576 = vmatpush1.msra.mxu0 0.0
  %6577 = vmatprep.subr.mxu0 0.0
  %6578 = vmatpush1.msra.mxu0 0.0
  %6579 = vmatprep.subr.mxu0 0.0
  %6580 = vmatpush1.msra.mxu0 0.0
  %6581 = vmatprep.subr.mxu0 0.0
  %6582 = vmatpush1.msra.mxu0 0.0
  %6583 = vmatprep.subr.mxu0 0.0
  %6584 = vmatpush1.msra.mxu0 0.0
  %6585 = vmatprep.subr.mxu0 0.0
  %6586 = vmatpush1.msra.mxu0 0.0
  %6587 = vmatprep.subr.mxu0 0.0
  %6588 = vmatpush1.msra.mxu0 0.0
  %6589 = vmatprep.subr.mxu0 0.0
  %6590 = vmatpush1.msra.mxu0 0.0
  %6591 = vmatprep.subr.mxu0 %v4665
  %6592 = vmatpush1.msra.mxu0 %v4664
  %6593 = vmatprep.subr.mxu0 %v4593
  %6594 = vmatpush1.msra.mxu0 %v4592
  %6595 = vmatprep.subr.mxu0 %v4521
  %6596 = vmatpush1.msra.mxu0 %v4520
  %6597 = vmatprep.subr.mxu0 %v4449
  %6598 = vmatpush1.msra.mxu0 %v4448
  %6599 = vmatprep.subr.mxu0 0.0
  %6600 = vmatpush2.msra.mxu0 0.0
  %6601 = vmatprep.subr.mxu0 0.0
  %6602 = vmatpush2.msra.mxu0 0.0
  %6603 = vmatprep.subr.mxu0 0.0
  %6604 = vmatpush2.msra.mxu0 0.0
  %6605 = vmatprep.subr.mxu0 0.0
  %6606 = vmatpush2.msra.mxu0 0.0
  %6607 = vmatprep.subr.mxu0 0.0
  %6608 = vmatpush2.msra.mxu0 0.0
  %6609 = vmatprep.subr.mxu0 0.0
  %6610 = vmatpush2.msra.mxu0 0.0
  %6611 = vmatprep.subr.mxu0 0.0
  %6612 = vmatpush2.msra.mxu0 0.0
  %6613 = vmatprep.subr.mxu0 0.0
  %6614 = vmatpush2.msra.mxu0 0.0
  %6615 = vmatprep.subr.mxu0 0.0
  %6616 = vmatpush2.msra.mxu0 0.0
  %6617 = vmatprep.subr.mxu0 0.0
  %6618 = vmatpush2.msra.mxu0 0.0
  %6619 = vmatprep.subr.mxu0 0.0
  %6620 = vmatpush2.msra.mxu0 0.0
  %6621 = vmatprep.subr.mxu0 0.0
  %6622 = vmatpush2.msra.mxu0 0.0
  %6623 = vmatprep.subr.mxu0 0.0
  %6624 = vmatpush2.msra.mxu0 0.0
  %6625 = vmatprep.subr.mxu0 0.0
  %6626 = vmatpush2.msra.mxu0 0.0
  %6627 = vmatprep.subr.mxu0 0.0
  %6628 = vmatpush2.msra.mxu0 0.0
  %6629 = vmatprep.subr.mxu0 0.0
  %6630 = vmatpush2.msra.mxu0 0.0
  %6631 = vmatprep.mubr.f32.mxu0 0.0
  %6632 = vmatmul.mubr.f32.gmra.mxu0 %v5074
  %v6633 = vpop.f32.mrf.mxu0
  %v6634 = vadd.f32 %v4883, %v6633
  %v6635 = vpop.f32.mrf.mxu0
  %v6636 = vadd.f32 %v4887, %v6635
  %6637 = vdwg.mxu0
  %6638 = vmatprep.subr.mxu0 0.0
  %6639 = vmatpush1.msra.mxu0 0.0
  %6640 = vmatprep.subr.mxu0 0.0
  %6641 = vmatpush1.msra.mxu0 0.0
  %6642 = vmatprep.subr.mxu0 0.0
  %6643 = vmatpush1.msra.mxu0 0.0
  %6644 = vmatprep.subr.mxu0 0.0
  %6645 = vmatpush1.msra.mxu0 0.0
  %6646 = vmatprep.subr.mxu0 0.0
  %6647 = vmatpush1.msra.mxu0 0.0
  %6648 = vmatprep.subr.mxu0 0.0
  %6649 = vmatpush1.msra.mxu0 0.0
  %6650 = vmatprep.subr.mxu0 0.0
  %6651 = vmatpush1.msra.mxu0 0.0
  %6652 = vmatprep.subr.mxu0 0.0
  %6653 = vmatpush1.msra.mxu0 0.0
  %6654 = vmatprep.subr.mxu0 0.0
  %6655 = vmatpush1.msra.mxu0 0.0
  %6656 = vmatprep.subr.mxu0 0.0
  %6657 = vmatpush1.msra.mxu0 0.0
  %6658 = vmatprep.subr.mxu0 0.0
  %6659 = vmatpush1.msra.mxu0 0.0
  %6660 = vmatprep.subr.mxu0 0.0
  %6661 = vmatpush1.msra.mxu0 0.0
  %6662 = vmatprep.subr.mxu0 %v4667
  %6663 = vmatpush1.msra.mxu0 %v4666
  %6664 = vmatprep.subr.mxu0 %v4595
  %6665 = vmatpush1.msra.mxu0 %v4594
  %6666 = vmatprep.subr.mxu0 %v4523
  %6667 = vmatpush1.msra.mxu0 %v4522
  %6668 = vmatprep.subr.mxu0 %v4451
  %6669 = vmatpush1.msra.mxu0 %v4450
  %6670 = vmatprep.subr.mxu0 0.0
  %6671 = vmatpush2.msra.mxu0 0.0
  %6672 = vmatprep.subr.mxu0 0.0
  %6673 = vmatpush2.msra.mxu0 0.0
  %6674 = vmatprep.subr.mxu0 0.0
  %6675 = vmatpush2.msra.mxu0 0.0
  %6676 = vmatprep.subr.mxu0 0.0
  %6677 = vmatpush2.msra.mxu0 0.0
  %6678 = vmatprep.subr.mxu0 0.0
  %6679 = vmatpush2.msra.mxu0 0.0
  %6680 = vmatprep.subr.mxu0 0.0
  %6681 = vmatpush2.msra.mxu0 0.0
  %6682 = vmatprep.subr.mxu0 0.0
  %6683 = vmatpush2.msra.mxu0 0.0
  %6684 = vmatprep.subr.mxu0 0.0
  %6685 = vmatpush2.msra.mxu0 0.0
  %6686 = vmatprep.subr.mxu0 0.0
  %6687 = vmatpush2.msra.mxu0 0.0
  %6688 = vmatprep.subr.mxu0 0.0
  %6689 = vmatpush2.msra.mxu0 0.0
  %6690 = vmatprep.subr.mxu0 0.0
  %6691 = vmatpush2.msra.mxu0 0.0
  %6692 = vmatprep.subr.mxu0 0.0
  %6693 = vmatpush2.msra.mxu0 0.0
  %6694 = vmatprep.subr.mxu0 0.0
  %6695 = vmatpush2.msra.mxu0 0.0
  %6696 = vmatprep.subr.mxu0 0.0
  %6697 = vmatpush2.msra.mxu0 0.0
  %6698 = vmatprep.subr.mxu0 0.0
  %6699 = vmatpush2.msra.mxu0 0.0
  %6700 = vmatprep.subr.mxu0 0.0
  %6701 = vmatpush2.msra.mxu0 0.0
  %6702 = vmatprep.mubr.f32.mxu0 0.0
  %6703 = vmatmul.mubr.f32.gmra.mxu0 %v5074
  %v6704 = vpop.f32.mrf.mxu0
  %v6705 = vadd.f32 %v4891, %v6704
  %v6706 = vpop.f32.mrf.mxu0
  %v6707 = vadd.f32 %v4895, %v6706
  %6708 = vdwg.mxu0
  %6709 = vmatprep.subr.mxu0 0.0
  %6710 = vmatpush1.msra.mxu0 0.0
  %6711 = vmatprep.subr.mxu0 0.0
  %6712 = vmatpush1.msra.mxu0 0.0
  %6713 = vmatprep.subr.mxu0 0.0
  %6714 = vmatpush1.msra.mxu0 0.0
  %6715 = vmatprep.subr.mxu0 0.0
  %6716 = vmatpush1.msra.mxu0 0.0
  %6717 = vmatprep.subr.mxu0 0.0
  %6718 = vmatpush1.msra.mxu0 0.0
  %6719 = vmatprep.subr.mxu0 0.0
  %6720 = vmatpush1.msra.mxu0 0.0
  %6721 = vmatprep.subr.mxu0 0.0
  %6722 = vmatpush1.msra.mxu0 0.0
  %6723 = vmatprep.subr.mxu0 0.0
  %6724 = vmatpush1.msra.mxu0 0.0
  %6725 = vmatprep.subr.mxu0 0.0
  %6726 = vmatpush1.msra.mxu0 0.0
  %6727 = vmatprep.subr.mxu0 0.0
  %6728 = vmatpush1.msra.mxu0 0.0
  %6729 = vmatprep.subr.mxu0 0.0
  %6730 = vmatpush1.msra.mxu0 0.0
  %6731 = vmatprep.subr.mxu0 0.0
  %6732 = vmatpush1.msra.mxu0 0.0
  %6733 = vmatprep.subr.mxu0 %v4669
  %6734 = vmatpush1.msra.mxu0 %v4668
  %6735 = vmatprep.subr.mxu0 %v4597
  %6736 = vmatpush1.msra.mxu0 %v4596
  %6737 = vmatprep.subr.mxu0 %v4525
  %6738 = vmatpush1.msra.mxu0 %v4524
  %6739 = vmatprep.subr.mxu0 %v4453
  %6740 = vmatpush1.msra.mxu0 %v4452
  %6741 = vmatprep.subr.mxu0 0.0
  %6742 = vmatpush2.msra.mxu0 0.0
  %6743 = vmatprep.subr.mxu0 0.0
  %6744 = vmatpush2.msra.mxu0 0.0
  %6745 = vmatprep.subr.mxu0 0.0
  %6746 = vmatpush2.msra.mxu0 0.0
  %6747 = vmatprep.subr.mxu0 0.0
  %6748 = vmatpush2.msra.mxu0 0.0
  %6749 = vmatprep.subr.mxu0 0.0
  %6750 = vmatpush2.msra.mxu0 0.0
  %6751 = vmatprep.subr.mxu0 0.0
  %6752 = vmatpush2.msra.mxu0 0.0
  %6753 = vmatprep.subr.mxu0 0.0
  %6754 = vmatpush2.msra.mxu0 0.0
  %6755 = vmatprep.subr.mxu0 0.0
  %6756 = vmatpush2.msra.mxu0 0.0
  %6757 = vmatprep.subr.mxu0 0.0
  %6758 = vmatpush2.msra.mxu0 0.0
  %6759 = vmatprep.subr.mxu0 0.0
  %6760 = vmatpush2.msra.mxu0 0.0
  %6761 = vmatprep.subr.mxu0 0.0
  %6762 = vmatpush2.msra.mxu0 0.0
  %6763 = vmatprep.subr.mxu0 0.0
  %6764 = vmatpush2.msra.mxu0 0.0
  %6765 = vmatprep.subr.mxu0 0.0
  %6766 = vmatpush2.msra.mxu0 0.0
  %6767 = vmatprep.subr.mxu0 0.0
  %6768 = vmatpush2.msra.mxu0 0.0
  %6769 = vmatprep.subr.mxu0 0.0
  %6770 = vmatpush2.msra.mxu0 0.0
  %6771 = vmatprep.subr.mxu0 0.0
  %6772 = vmatpush2.msra.mxu0 0.0
  %6773 = vmatprep.mubr.f32.mxu0 0.0
  %6774 = vmatmul.mubr.f32.gmra.mxu0 %v5074
  %v6775 = vpop.f32.mrf.mxu0
  %v6776 = vadd.f32 %v4899, %v6775
  %v6777 = vpop.f32.mrf.mxu0
  %v6778 = vadd.f32 %v4903, %v6777
  %6779 = vdwg.mxu0
  %6780 = vmatprep.subr.mxu0 0.0
  %6781 = vmatpush1.msra.mxu0 0.0
  %6782 = vmatprep.subr.mxu0 0.0
  %6783 = vmatpush1.msra.mxu0 0.0
  %6784 = vmatprep.subr.mxu0 0.0
  %6785 = vmatpush1.msra.mxu0 0.0
  %6786 = vmatprep.subr.mxu0 0.0
  %6787 = vmatpush1.msra.mxu0 0.0
  %6788 = vmatprep.subr.mxu0 0.0
  %6789 = vmatpush1.msra.mxu0 0.0
  %6790 = vmatprep.subr.mxu0 0.0
  %6791 = vmatpush1.msra.mxu0 0.0
  %6792 = vmatprep.subr.mxu0 0.0
  %6793 = vmatpush1.msra.mxu0 0.0
  %6794 = vmatprep.subr.mxu0 0.0
  %6795 = vmatpush1.msra.mxu0 0.0
  %6796 = vmatprep.subr.mxu0 0.0
  %6797 = vmatpush1.msra.mxu0 0.0
  %6798 = vmatprep.subr.mxu0 0.0
  %6799 = vmatpush1.msra.mxu0 0.0
  %6800 = vmatprep.subr.mxu0 0.0
  %6801 = vmatpush1.msra.mxu0 0.0
  %6802 = vmatprep.subr.mxu0 0.0
  %6803 = vmatpush1.msra.mxu0 0.0
  %6804 = vmatprep.subr.mxu0 %v4671
  %6805 = vmatpush1.msra.mxu0 %v4670
  %6806 = vmatprep.subr.mxu0 %v4599
  %6807 = vmatpush1.msra.mxu0 %v4598
  %6808 = vmatprep.subr.mxu0 %v4527
  %6809 = vmatpush1.msra.mxu0 %v4526
  %6810 = vmatprep.subr.mxu0 %v4455
  %6811 = vmatpush1.msra.mxu0 %v4454
  %6812 = vmatprep.subr.mxu0 0.0
  %6813 = vmatpush2.msra.mxu0 0.0
  %6814 = vmatprep.subr.mxu0 0.0
  %6815 = vmatpush2.msra.mxu0 0.0
  %6816 = vmatprep.subr.mxu0 0.0
  %6817 = vmatpush2.msra.mxu0 0.0
  %6818 = vmatprep.subr.mxu0 0.0
  %6819 = vmatpush2.msra.mxu0 0.0
  %6820 = vmatprep.subr.mxu0 0.0
  %6821 = vmatpush2.msra.mxu0 0.0
  %6822 = vmatprep.subr.mxu0 0.0
  %6823 = vmatpush2.msra.mxu0 0.0
  %6824 = vmatprep.subr.mxu0 0.0
  %6825 = vmatpush2.msra.mxu0 0.0
  %6826 = vmatprep.subr.mxu0 0.0
  %6827 = vmatpush2.msra.mxu0 0.0
  %6828 = vmatprep.subr.mxu0 0.0
  %6829 = vmatpush2.msra.mxu0 0.0
  %6830 = vmatprep.subr.mxu0 0.0
  %6831 = vmatpush2.msra.mxu0 0.0
  %6832 = vmatprep.subr.mxu0 0.0
  %6833 = vmatpush2.msra.mxu0 0.0
  %6834 = vmatprep.subr.mxu0 0.0
  %6835 = vmatpush2.msra.mxu0 0.0
  %6836 = vmatprep.subr.mxu0 0.0
  %6837 = vmatpush2.msra.mxu0 0.0
  %6838 = vmatprep.subr.mxu0 0.0
  %6839 = vmatpush2.msra.mxu0 0.0
  %6840 = vmatprep.subr.mxu0 0.0
  %6841 = vmatpush2.msra.mxu0 0.0
  %6842 = vmatprep.subr.mxu0 0.0
  %6843 = vmatpush2.msra.mxu0 0.0
  %6844 = vmatprep.mubr.f32.mxu0 0.0
  %6845 = vmatmul.mubr.f32.gmra.mxu0 %v5074
  %v6846 = vpop.f32.mrf.mxu0
  %v6847 = vadd.f32 %v4907, %v6846
  %v6848 = vpop.f32.mrf.mxu0
  %v6849 = vadd.f32 %v4911, %v6848
  %6850 = vdwg.mxu0
  %6851 = vmatprep.subr.mxu0 0.0
  %6852 = vmatpush1.msra.mxu0 0.0
  %6853 = vmatprep.subr.mxu0 0.0
  %6854 = vmatpush1.msra.mxu0 0.0
  %6855 = vmatprep.subr.mxu0 0.0
  %6856 = vmatpush1.msra.mxu0 0.0
  %6857 = vmatprep.subr.mxu0 0.0
  %6858 = vmatpush1.msra.mxu0 0.0
  %6859 = vmatprep.subr.mxu0 0.0
  %6860 = vmatpush1.msra.mxu0 0.0
  %6861 = vmatprep.subr.mxu0 0.0
  %6862 = vmatpush1.msra.mxu0 0.0
  %6863 = vmatprep.subr.mxu0 0.0
  %6864 = vmatpush1.msra.mxu0 0.0
  %6865 = vmatprep.subr.mxu0 0.0
  %6866 = vmatpush1.msra.mxu0 0.0
  %6867 = vmatprep.subr.mxu0 0.0
  %6868 = vmatpush1.msra.mxu0 0.0
  %6869 = vmatprep.subr.mxu0 0.0
  %6870 = vmatpush1.msra.mxu0 0.0
  %6871 = vmatprep.subr.mxu0 0.0
  %6872 = vmatpush1.msra.mxu0 0.0
  %6873 = vmatprep.subr.mxu0 0.0
  %6874 = vmatpush1.msra.mxu0 0.0
  %6875 = vmatprep.subr.mxu0 %v4673
  %6876 = vmatpush1.msra.mxu0 %v4672
  %6877 = vmatprep.subr.mxu0 %v4601
  %6878 = vmatpush1.msra.mxu0 %v4600
  %6879 = vmatprep.subr.mxu0 %v4529
  %6880 = vmatpush1.msra.mxu0 %v4528
  %6881 = vmatprep.subr.mxu0 %v4457
  %6882 = vmatpush1.msra.mxu0 %v4456
  %6883 = vmatprep.subr.mxu0 0.0
  %6884 = vmatpush2.msra.mxu0 0.0
  %6885 = vmatprep.subr.mxu0 0.0
  %6886 = vmatpush2.msra.mxu0 0.0
  %6887 = vmatprep.subr.mxu0 0.0
  %6888 = vmatpush2.msra.mxu0 0.0
  %6889 = vmatprep.subr.mxu0 0.0
  %6890 = vmatpush2.msra.mxu0 0.0
  %6891 = vmatprep.subr.mxu0 0.0
  %6892 = vmatpush2.msra.mxu0 0.0
  %6893 = vmatprep.subr.mxu0 0.0
  %6894 = vmatpush2.msra.mxu0 0.0
  %6895 = vmatprep.subr.mxu0 0.0
  %6896 = vmatpush2.msra.mxu0 0.0
  %6897 = vmatprep.subr.mxu0 0.0
  %6898 = vmatpush2.msra.mxu0 0.0
  %6899 = vmatprep.subr.mxu0 0.0
  %6900 = vmatpush2.msra.mxu0 0.0
  %6901 = vmatprep.subr.mxu0 0.0
  %6902 = vmatpush2.msra.mxu0 0.0
  %6903 = vmatprep.subr.mxu0 0.0
  %6904 = vmatpush2.msra.mxu0 0.0
  %6905 = vmatprep.subr.mxu0 0.0
  %6906 = vmatpush2.msra.mxu0 0.0
  %6907 = vmatprep.subr.mxu0 0.0
  %6908 = vmatpush2.msra.mxu0 0.0
  %6909 = vmatprep.subr.mxu0 0.0
  %6910 = vmatpush2.msra.mxu0 0.0
  %6911 = vmatprep.subr.mxu0 0.0
  %6912 = vmatpush2.msra.mxu0 0.0
  %6913 = vmatprep.subr.mxu0 0.0
  %6914 = vmatpush2.msra.mxu0 0.0
  %6915 = vmatprep.mubr.f32.mxu0 0.0
  %6916 = vmatmul.mubr.f32.gmra.mxu0 %v5074
  %v6917 = vpop.f32.mrf.mxu0
  %v6918 = vadd.f32 %v4915, %v6917
  %v6919 = vpop.f32.mrf.mxu0
  %v6920 = vadd.f32 %v4919, %v6919
  %6921 = vdwg.mxu0
  %6922 = vmatprep.subr.mxu0 0.0
  %6923 = vmatpush1.msra.mxu0 0.0
  %6924 = vmatprep.subr.mxu0 0.0
  %6925 = vmatpush1.msra.mxu0 0.0
  %6926 = vmatprep.subr.mxu0 0.0
  %6927 = vmatpush1.msra.mxu0 0.0
  %6928 = vmatprep.subr.mxu0 0.0
  %6929 = vmatpush1.msra.mxu0 0.0
  %6930 = vmatprep.subr.mxu0 0.0
  %6931 = vmatpush1.msra.mxu0 0.0
  %6932 = vmatprep.subr.mxu0 0.0
  %6933 = vmatpush1.msra.mxu0 0.0
  %6934 = vmatprep.subr.mxu0 0.0
  %6935 = vmatpush1.msra.mxu0 0.0
  %6936 = vmatprep.subr.mxu0 0.0
  %6937 = vmatpush1.msra.mxu0 0.0
  %6938 = vmatprep.subr.mxu0 0.0
  %6939 = vmatpush1.msra.mxu0 0.0
  %6940 = vmatprep.subr.mxu0 0.0
  %6941 = vmatpush1.msra.mxu0 0.0
  %6942 = vmatprep.subr.mxu0 0.0
  %6943 = vmatpush1.msra.mxu0 0.0
  %6944 = vmatprep.subr.mxu0 0.0
  %6945 = vmatpush1.msra.mxu0 0.0
  %6946 = vmatprep.subr.mxu0 %v4675
  %6947 = vmatpush1.msra.mxu0 %v4674
  %6948 = vmatprep.subr.mxu0 %v4603
  %6949 = vmatpush1.msra.mxu0 %v4602
  %6950 = vmatprep.subr.mxu0 %v4531
  %6951 = vmatpush1.msra.mxu0 %v4530
  %6952 = vmatprep.subr.mxu0 %v4459
  %6953 = vmatpush1.msra.mxu0 %v4458
  %6954 = vmatprep.subr.mxu0 0.0
  %6955 = vmatpush2.msra.mxu0 0.0
  %6956 = vmatprep.subr.mxu0 0.0
  %6957 = vmatpush2.msra.mxu0 0.0
  %6958 = vmatprep.subr.mxu0 0.0
  %6959 = vmatpush2.msra.mxu0 0.0
  %6960 = vmatprep.subr.mxu0 0.0
  %6961 = vmatpush2.msra.mxu0 0.0
  %6962 = vmatprep.subr.mxu0 0.0
  %6963 = vmatpush2.msra.mxu0 0.0
  %6964 = vmatprep.subr.mxu0 0.0
  %6965 = vmatpush2.msra.mxu0 0.0
  %6966 = vmatprep.subr.mxu0 0.0
  %6967 = vmatpush2.msra.mxu0 0.0
  %6968 = vmatprep.subr.mxu0 0.0
  %6969 = vmatpush2.msra.mxu0 0.0
  %6970 = vmatprep.subr.mxu0 0.0
  %6971 = vmatpush2.msra.mxu0 0.0
  %6972 = vmatprep.subr.mxu0 0.0
  %6973 = vmatpush2.msra.mxu0 0.0
  %6974 = vmatprep.subr.mxu0 0.0
  %6975 = vmatpush2.msra.mxu0 0.0
  %6976 = vmatprep.subr.mxu0 0.0
  %6977 = vmatpush2.msra.mxu0 0.0
  %6978 = vmatprep.subr.mxu0 0.0
  %6979 = vmatpush2.msra.mxu0 0.0
  %6980 = vmatprep.subr.mxu0 0.0
  %6981 = vmatpush2.msra.mxu0 0.0
  %6982 = vmatprep.subr.mxu0 0.0
  %6983 = vmatpush2.msra.mxu0 0.0
  %6984 = vmatprep.subr.mxu0 0.0
  %6985 = vmatpush2.msra.mxu0 0.0
  %6986 = vmatprep.mubr.f32.mxu0 0.0
  %6987 = vmatmul.mubr.f32.gmra.mxu0 %v5074
  %v6988 = vpop.f32.mrf.mxu0
  %v6989 = vadd.f32 %v4923, %v6988
  %v6990 = vpop.f32.mrf.mxu0
  %v6991 = vadd.f32 %v4927, %v6990
  %6992 = vdwg.mxu0
  %6993 = vmatprep.subr.mxu0 0.0
  %6994 = vmatpush1.msra.mxu0 0.0
  %6995 = vmatprep.subr.mxu0 0.0
  %6996 = vmatpush1.msra.mxu0 0.0
  %6997 = vmatprep.subr.mxu0 0.0
  %6998 = vmatpush1.msra.mxu0 0.0
  %6999 = vmatprep.subr.mxu0 0.0
  %7000 = vmatpush1.msra.mxu0 0.0
  %7001 = vmatprep.subr.mxu0 0.0
  %7002 = vmatpush1.msra.mxu0 0.0
  %7003 = vmatprep.subr.mxu0 0.0
  %7004 = vmatpush1.msra.mxu0 0.0
  %7005 = vmatprep.subr.mxu0 0.0
  %7006 = vmatpush1.msra.mxu0 0.0
  %7007 = vmatprep.subr.mxu0 0.0
  %7008 = vmatpush1.msra.mxu0 0.0
  %7009 = vmatprep.subr.mxu0 0.0
  %7010 = vmatpush1.msra.mxu0 0.0
  %7011 = vmatprep.subr.mxu0 0.0
  %7012 = vmatpush1.msra.mxu0 0.0
  %7013 = vmatprep.subr.mxu0 0.0
  %7014 = vmatpush1.msra.mxu0 0.0
  %7015 = vmatprep.subr.mxu0 0.0
  %7016 = vmatpush1.msra.mxu0 0.0
  %7017 = vmatprep.subr.mxu0 %v4677
  %7018 = vmatpush1.msra.mxu0 %v4676
  %7019 = vmatprep.subr.mxu0 %v4605
  %7020 = vmatpush1.msra.mxu0 %v4604
  %7021 = vmatprep.subr.mxu0 %v4533
  %7022 = vmatpush1.msra.mxu0 %v4532
  %7023 = vmatprep.subr.mxu0 %v4461
  %7024 = vmatpush1.msra.mxu0 %v4460
  %7025 = vmatprep.subr.mxu0 0.0
  %7026 = vmatpush2.msra.mxu0 0.0
  %7027 = vmatprep.subr.mxu0 0.0
  %7028 = vmatpush2.msra.mxu0 0.0
  %7029 = vmatprep.subr.mxu0 0.0
  %7030 = vmatpush2.msra.mxu0 0.0
  %7031 = vmatprep.subr.mxu0 0.0
  %7032 = vmatpush2.msra.mxu0 0.0
  %7033 = vmatprep.subr.mxu0 0.0
  %7034 = vmatpush2.msra.mxu0 0.0
  %7035 = vmatprep.subr.mxu0 0.0
  %7036 = vmatpush2.msra.mxu0 0.0
  %7037 = vmatprep.subr.mxu0 0.0
  %7038 = vmatpush2.msra.mxu0 0.0
  %7039 = vmatprep.subr.mxu0 0.0
  %7040 = vmatpush2.msra.mxu0 0.0
  %7041 = vmatprep.subr.mxu0 0.0
  %7042 = vmatpush2.msra.mxu0 0.0
  %7043 = vmatprep.subr.mxu0 0.0
  %7044 = vmatpush2.msra.mxu0 0.0
  %7045 = vmatprep.subr.mxu0 0.0
  %7046 = vmatpush2.msra.mxu0 0.0
  %7047 = vmatprep.subr.mxu0 0.0
  %7048 = vmatpush2.msra.mxu0 0.0
  %7049 = vmatprep.subr.mxu0 0.0
  %7050 = vmatpush2.msra.mxu0 0.0
  %7051 = vmatprep.subr.mxu0 0.0
  %7052 = vmatpush2.msra.mxu0 0.0
  %7053 = vmatprep.subr.mxu0 0.0
  %7054 = vmatpush2.msra.mxu0 0.0
  %7055 = vmatprep.subr.mxu0 0.0
  %7056 = vmatpush2.msra.mxu0 0.0
  %7057 = vmatprep.mubr.f32.mxu0 0.0
  %7058 = vmatmul.mubr.f32.gmra.mxu0 %v5074
  %v7059 = vpop.f32.mrf.mxu0
  %v7060 = vadd.f32 %v4931, %v7059
  %v7061 = vpop.f32.mrf.mxu0
  %v7062 = vadd.f32 %v4935, %v7061
  %7063 = vdwg.mxu0
  %7064 = vmatprep.subr.mxu0 0.0
  %7065 = vmatpush1.msra.mxu0 0.0
  %7066 = vmatprep.subr.mxu0 0.0
  %7067 = vmatpush1.msra.mxu0 0.0
  %7068 = vmatprep.subr.mxu0 0.0
  %7069 = vmatpush1.msra.mxu0 0.0
  %7070 = vmatprep.subr.mxu0 0.0
  %7071 = vmatpush1.msra.mxu0 0.0
  %7072 = vmatprep.subr.mxu0 0.0
  %7073 = vmatpush1.msra.mxu0 0.0
  %7074 = vmatprep.subr.mxu0 0.0
  %7075 = vmatpush1.msra.mxu0 0.0
  %7076 = vmatprep.subr.mxu0 0.0
  %7077 = vmatpush1.msra.mxu0 0.0
  %7078 = vmatprep.subr.mxu0 0.0
  %7079 = vmatpush1.msra.mxu0 0.0
  %7080 = vmatprep.subr.mxu0 0.0
  %7081 = vmatpush1.msra.mxu0 0.0
  %7082 = vmatprep.subr.mxu0 0.0
  %7083 = vmatpush1.msra.mxu0 0.0
  %7084 = vmatprep.subr.mxu0 0.0
  %7085 = vmatpush1.msra.mxu0 0.0
  %7086 = vmatprep.subr.mxu0 0.0
  %7087 = vmatpush1.msra.mxu0 0.0
  %7088 = vmatprep.subr.mxu0 %v4679
  %7089 = vmatpush1.msra.mxu0 %v4678
  %7090 = vmatprep.subr.mxu0 %v4607
  %7091 = vmatpush1.msra.mxu0 %v4606
  %7092 = vmatprep.subr.mxu0 %v4535
  %7093 = vmatpush1.msra.mxu0 %v4534
  %7094 = vmatprep.subr.mxu0 %v4463
  %7095 = vmatpush1.msra.mxu0 %v4462
  %7096 = vmatprep.subr.mxu0 0.0
  %7097 = vmatpush2.msra.mxu0 0.0
  %7098 = vmatprep.subr.mxu0 0.0
  %7099 = vmatpush2.msra.mxu0 0.0
  %7100 = vmatprep.subr.mxu0 0.0
  %7101 = vmatpush2.msra.mxu0 0.0
  %7102 = vmatprep.subr.mxu0 0.0
  %7103 = vmatpush2.msra.mxu0 0.0
  %7104 = vmatprep.subr.mxu0 0.0
  %7105 = vmatpush2.msra.mxu0 0.0
  %7106 = vmatprep.subr.mxu0 0.0
  %7107 = vmatpush2.msra.mxu0 0.0
  %7108 = vmatprep.subr.mxu0 0.0
  %7109 = vmatpush2.msra.mxu0 0.0
  %7110 = vmatprep.subr.mxu0 0.0
  %7111 = vmatpush2.msra.mxu0 0.0
  %7112 = vmatprep.subr.mxu0 0.0
  %7113 = vmatpush2.msra.mxu0 0.0
  %7114 = vmatprep.subr.mxu0 0.0
  %7115 = vmatpush2.msra.mxu0 0.0
  %7116 = vmatprep.subr.mxu0 0.0
  %7117 = vmatpush2.msra.mxu0 0.0
  %7118 = vmatprep.subr.mxu0 0.0
  %7119 = vmatpush2.msra.mxu0 0.0
  %7120 = vmatprep.subr.mxu0 0.0
  %7121 = vmatpush2.msra.mxu0 0.0
  %7122 = vmatprep.subr.mxu0 0.0
  %7123 = vmatpush2.msra.mxu0 0.0
  %7124 = vmatprep.subr.mxu0 0.0
  %7125 = vmatpush2.msra.mxu0 0.0
  %7126 = vmatprep.subr.mxu0 0.0
  %7127 = vmatpush2.msra.mxu0 0.0
  %7128 = vmatprep.mubr.f32.mxu0 0.0
  %7129 = vmatmul.mubr.f32.gmra.mxu0 %v5074
  %v7130 = vpop.f32.mrf.mxu0
  %v7131 = vadd.f32 %v4939, %v7130
  %v7132 = vpop.f32.mrf.mxu0
  %v7133 = vadd.f32 %v4943, %v7132
  %7134 = vdwg.mxu0
  %7135 = vmatprep.subr.mxu0 0.0
  %7136 = vmatpush1.msra.mxu0 0.0
  %7137 = vmatprep.subr.mxu0 0.0
  %7138 = vmatpush1.msra.mxu0 0.0
  %7139 = vmatprep.subr.mxu0 0.0
  %7140 = vmatpush1.msra.mxu0 0.0
  %7141 = vmatprep.subr.mxu0 0.0
  %7142 = vmatpush1.msra.mxu0 0.0
  %7143 = vmatprep.subr.mxu0 0.0
  %7144 = vmatpush1.msra.mxu0 0.0
  %7145 = vmatprep.subr.mxu0 0.0
  %7146 = vmatpush1.msra.mxu0 0.0
  %7147 = vmatprep.subr.mxu0 0.0
  %7148 = vmatpush1.msra.mxu0 0.0
  %7149 = vmatprep.subr.mxu0 0.0
  %7150 = vmatpush1.msra.mxu0 0.0
  %7151 = vmatprep.subr.mxu0 0.0
  %7152 = vmatpush1.msra.mxu0 0.0
  %7153 = vmatprep.subr.mxu0 0.0
  %7154 = vmatpush1.msra.mxu0 0.0
  %7155 = vmatprep.subr.mxu0 0.0
  %7156 = vmatpush1.msra.mxu0 0.0
  %7157 = vmatprep.subr.mxu0 0.0
  %7158 = vmatpush1.msra.mxu0 0.0
  %7159 = vmatprep.subr.mxu0 %v4681
  %7160 = vmatpush1.msra.mxu0 %v4680
  %7161 = vmatprep.subr.mxu0 %v4609
  %7162 = vmatpush1.msra.mxu0 %v4608
  %7163 = vmatprep.subr.mxu0 %v4537
  %7164 = vmatpush1.msra.mxu0 %v4536
  %7165 = vmatprep.subr.mxu0 %v4465
  %7166 = vmatpush1.msra.mxu0 %v4464
  %7167 = vmatprep.subr.mxu0 0.0
  %7168 = vmatpush2.msra.mxu0 0.0
  %7169 = vmatprep.subr.mxu0 0.0
  %7170 = vmatpush2.msra.mxu0 0.0
  %7171 = vmatprep.subr.mxu0 0.0
  %7172 = vmatpush2.msra.mxu0 0.0
  %7173 = vmatprep.subr.mxu0 0.0
  %7174 = vmatpush2.msra.mxu0 0.0
  %7175 = vmatprep.subr.mxu0 0.0
  %7176 = vmatpush2.msra.mxu0 0.0
  %7177 = vmatprep.subr.mxu0 0.0
  %7178 = vmatpush2.msra.mxu0 0.0
  %7179 = vmatprep.subr.mxu0 0.0
  %7180 = vmatpush2.msra.mxu0 0.0
  %7181 = vmatprep.subr.mxu0 0.0
  %7182 = vmatpush2.msra.mxu0 0.0
  %7183 = vmatprep.subr.mxu0 0.0
  %7184 = vmatpush2.msra.mxu0 0.0
  %7185 = vmatprep.subr.mxu0 0.0
  %7186 = vmatpush2.msra.mxu0 0.0
  %7187 = vmatprep.subr.mxu0 0.0
  %7188 = vmatpush2.msra.mxu0 0.0
  %7189 = vmatprep.subr.mxu0 0.0
  %7190 = vmatpush2.msra.mxu0 0.0
  %7191 = vmatprep.subr.mxu0 0.0
  %7192 = vmatpush2.msra.mxu0 0.0
  %7193 = vmatprep.subr.mxu0 0.0
  %7194 = vmatpush2.msra.mxu0 0.0
  %7195 = vmatprep.subr.mxu0 0.0
  %7196 = vmatpush2.msra.mxu0 0.0
  %7197 = vmatprep.subr.mxu0 0.0
  %7198 = vmatpush2.msra.mxu0 0.0
  %7199 = vmatprep.mubr.f32.mxu0 0.0
  %7200 = vmatmul.mubr.f32.gmra.mxu0 %v5074
  %v7201 = vpop.f32.mrf.mxu0
  %v7202 = vadd.f32 %v4947, %v7201
  %v7203 = vpop.f32.mrf.mxu0
  %v7204 = vadd.f32 %v4951, %v7203
  %7205 = vdwg.mxu0
  %7206 = vmatprep.subr.mxu0 0.0
  %7207 = vmatpush1.msra.mxu0 0.0
  %7208 = vmatprep.subr.mxu0 0.0
  %7209 = vmatpush1.msra.mxu0 0.0
  %7210 = vmatprep.subr.mxu0 0.0
  %7211 = vmatpush1.msra.mxu0 0.0
  %7212 = vmatprep.subr.mxu0 0.0
  %7213 = vmatpush1.msra.mxu0 0.0
  %7214 = vmatprep.subr.mxu0 0.0
  %7215 = vmatpush1.msra.mxu0 0.0
  %7216 = vmatprep.subr.mxu0 0.0
  %7217 = vmatpush1.msra.mxu0 0.0
  %7218 = vmatprep.subr.mxu0 0.0
  %7219 = vmatpush1.msra.mxu0 0.0
  %7220 = vmatprep.subr.mxu0 0.0
  %7221 = vmatpush1.msra.mxu0 0.0
  %7222 = vmatprep.subr.mxu0 0.0
  %7223 = vmatpush1.msra.mxu0 0.0
  %7224 = vmatprep.subr.mxu0 0.0
  %7225 = vmatpush1.msra.mxu0 0.0
  %7226 = vmatprep.subr.mxu0 0.0
  %7227 = vmatpush1.msra.mxu0 0.0
  %7228 = vmatprep.subr.mxu0 0.0
  %7229 = vmatpush1.msra.mxu0 0.0
  %7230 = vmatprep.subr.mxu0 %v4683
  %7231 = vmatpush1.msra.mxu0 %v4682
  %7232 = vmatprep.subr.mxu0 %v4611
  %7233 = vmatpush1.msra.mxu0 %v4610
  %7234 = vmatprep.subr.mxu0 %v4539
  %7235 = vmatpush1.msra.mxu0 %v4538
  %7236 = vmatprep.subr.mxu0 %v4467
  %7237 = vmatpush1.msra.mxu0 %v4466
  %7238 = vmatprep.subr.mxu0 0.0
  %7239 = vmatpush2.msra.mxu0 0.0
  %7240 = vmatprep.subr.mxu0 0.0
  %7241 = vmatpush2.msra.mxu0 0.0
  %7242 = vmatprep.subr.mxu0 0.0
  %7243 = vmatpush2.msra.mxu0 0.0
  %7244 = vmatprep.subr.mxu0 0.0
  %7245 = vmatpush2.msra.mxu0 0.0
  %7246 = vmatprep.subr.mxu0 0.0
  %7247 = vmatpush2.msra.mxu0 0.0
  %7248 = vmatprep.subr.mxu0 0.0
  %7249 = vmatpush2.msra.mxu0 0.0
  %7250 = vmatprep.subr.mxu0 0.0
  %7251 = vmatpush2.msra.mxu0 0.0
  %7252 = vmatprep.subr.mxu0 0.0
  %7253 = vmatpush2.msra.mxu0 0.0
  %7254 = vmatprep.subr.mxu0 0.0
  %7255 = vmatpush2.msra.mxu0 0.0
  %7256 = vmatprep.subr.mxu0 0.0
  %7257 = vmatpush2.msra.mxu0 0.0
  %7258 = vmatprep.subr.mxu0 0.0
  %7259 = vmatpush2.msra.mxu0 0.0
  %7260 = vmatprep.subr.mxu0 0.0
  %7261 = vmatpush2.msra.mxu0 0.0
  %7262 = vmatprep.subr.mxu0 0.0
  %7263 = vmatpush2.msra.mxu0 0.0
  %7264 = vmatprep.subr.mxu0 0.0
  %7265 = vmatpush2.msra.mxu0 0.0
  %7266 = vmatprep.subr.mxu0 0.0
  %7267 = vmatpush2.msra.mxu0 0.0
  %7268 = vmatprep.subr.mxu0 0.0
  %7269 = vmatpush2.msra.mxu0 0.0
  %7270 = vmatprep.mubr.f32.mxu0 0.0
  %7271 = vmatmul.mubr.f32.gmra.mxu0 %v5074
  %v7272 = vpop.f32.mrf.mxu0
  %v7273 = vadd.f32 %v4955, %v7272
  %v7274 = vpop.f32.mrf.mxu0
  %v7275 = vadd.f32 %v4959, %v7274
  %7276 = vdwg.mxu0
  %7277 = vmatprep.subr.mxu0 0.0
  %7278 = vmatpush1.msra.mxu0 0.0
  %7279 = vmatprep.subr.mxu0 0.0
  %7280 = vmatpush1.msra.mxu0 0.0
  %7281 = vmatprep.subr.mxu0 0.0
  %7282 = vmatpush1.msra.mxu0 0.0
  %7283 = vmatprep.subr.mxu0 0.0
  %7284 = vmatpush1.msra.mxu0 0.0
  %7285 = vmatprep.subr.mxu0 0.0
  %7286 = vmatpush1.msra.mxu0 0.0
  %7287 = vmatprep.subr.mxu0 0.0
  %7288 = vmatpush1.msra.mxu0 0.0
  %7289 = vmatprep.subr.mxu0 0.0
  %7290 = vmatpush1.msra.mxu0 0.0
  %7291 = vmatprep.subr.mxu0 0.0
  %7292 = vmatpush1.msra.mxu0 0.0
  %7293 = vmatprep.subr.mxu0 0.0
  %7294 = vmatpush1.msra.mxu0 0.0
  %7295 = vmatprep.subr.mxu0 0.0
  %7296 = vmatpush1.msra.mxu0 0.0
  %7297 = vmatprep.subr.mxu0 0.0
  %7298 = vmatpush1.msra.mxu0 0.0
  %7299 = vmatprep.subr.mxu0 0.0
  %7300 = vmatpush1.msra.mxu0 0.0
  %7301 = vmatprep.subr.mxu0 %v4685
  %7302 = vmatpush1.msra.mxu0 %v4684
  %7303 = vmatprep.subr.mxu0 %v4613
  %7304 = vmatpush1.msra.mxu0 %v4612
  %7305 = vmatprep.subr.mxu0 %v4541
  %7306 = vmatpush1.msra.mxu0 %v4540
  %7307 = vmatprep.subr.mxu0 %v4469
  %7308 = vmatpush1.msra.mxu0 %v4468
  %7309 = vmatprep.subr.mxu0 0.0
  %7310 = vmatpush2.msra.mxu0 0.0
  %7311 = vmatprep.subr.mxu0 0.0
  %7312 = vmatpush2.msra.mxu0 0.0
  %7313 = vmatprep.subr.mxu0 0.0
  %7314 = vmatpush2.msra.mxu0 0.0
  %7315 = vmatprep.subr.mxu0 0.0
  %7316 = vmatpush2.msra.mxu0 0.0
  %7317 = vmatprep.subr.mxu0 0.0
  %7318 = vmatpush2.msra.mxu0 0.0
  %7319 = vmatprep.subr.mxu0 0.0
  %7320 = vmatpush2.msra.mxu0 0.0
  %7321 = vmatprep.subr.mxu0 0.0
  %7322 = vmatpush2.msra.mxu0 0.0
  %7323 = vmatprep.subr.mxu0 0.0
  %7324 = vmatpush2.msra.mxu0 0.0
  %7325 = vmatprep.subr.mxu0 0.0
  %7326 = vmatpush2.msra.mxu0 0.0
  %7327 = vmatprep.subr.mxu0 0.0
  %7328 = vmatpush2.msra.mxu0 0.0
  %7329 = vmatprep.subr.mxu0 0.0
  %7330 = vmatpush2.msra.mxu0 0.0
  %7331 = vmatprep.subr.mxu0 0.0
  %7332 = vmatpush2.msra.mxu0 0.0
  %7333 = vmatprep.subr.mxu0 0.0
  %7334 = vmatpush2.msra.mxu0 0.0
  %7335 = vmatprep.subr.mxu0 0.0
  %7336 = vmatpush2.msra.mxu0 0.0
  %7337 = vmatprep.subr.mxu0 0.0
  %7338 = vmatpush2.msra.mxu0 0.0
  %7339 = vmatprep.subr.mxu0 0.0
  %7340 = vmatpush2.msra.mxu0 0.0
  %7341 = vmatprep.mubr.f32.mxu0 0.0
  %7342 = vmatmul.mubr.f32.gmra.mxu0 %v5074
  %v7343 = vpop.f32.mrf.mxu0
  %v7344 = vadd.f32 %v4963, %v7343
  %v7345 = vpop.f32.mrf.mxu0
  %v7346 = vadd.f32 %v4967, %v7345
  %7347 = vdwg.mxu0
  %7348 = vmatprep.subr.mxu0 0.0
  %7349 = vmatpush1.msra.mxu0 0.0
  %7350 = vmatprep.subr.mxu0 0.0
  %7351 = vmatpush1.msra.mxu0 0.0
  %7352 = vmatprep.subr.mxu0 0.0
  %7353 = vmatpush1.msra.mxu0 0.0
  %7354 = vmatprep.subr.mxu0 0.0
  %7355 = vmatpush1.msra.mxu0 0.0
  %7356 = vmatprep.subr.mxu0 0.0
  %7357 = vmatpush1.msra.mxu0 0.0
  %7358 = vmatprep.subr.mxu0 0.0
  %7359 = vmatpush1.msra.mxu0 0.0
  %7360 = vmatprep.subr.mxu0 0.0
  %7361 = vmatpush1.msra.mxu0 0.0
  %7362 = vmatprep.subr.mxu0 0.0
  %7363 = vmatpush1.msra.mxu0 0.0
  %7364 = vmatprep.subr.mxu0 0.0
  %7365 = vmatpush1.msra.mxu0 0.0
  %7366 = vmatprep.subr.mxu0 0.0
  %7367 = vmatpush1.msra.mxu0 0.0
  %7368 = vmatprep.subr.mxu0 0.0
  %7369 = vmatpush1.msra.mxu0 0.0
  %7370 = vmatprep.subr.mxu0 0.0
  %7371 = vmatpush1.msra.mxu0 0.0
  %7372 = vmatprep.subr.mxu0 %v4687
  %7373 = vmatpush1.msra.mxu0 %v4686
  %7374 = vmatprep.subr.mxu0 %v4615
  %7375 = vmatpush1.msra.mxu0 %v4614
  %7376 = vmatprep.subr.mxu0 %v4543
  %7377 = vmatpush1.msra.mxu0 %v4542
  %7378 = vmatprep.subr.mxu0 %v4471
  %7379 = vmatpush1.msra.mxu0 %v4470
  %7380 = vmatprep.subr.mxu0 0.0
  %7381 = vmatpush2.msra.mxu0 0.0
  %7382 = vmatprep.subr.mxu0 0.0
  %7383 = vmatpush2.msra.mxu0 0.0
  %7384 = vmatprep.subr.mxu0 0.0
  %7385 = vmatpush2.msra.mxu0 0.0
  %7386 = vmatprep.subr.mxu0 0.0
  %7387 = vmatpush2.msra.mxu0 0.0
  %7388 = vmatprep.subr.mxu0 0.0
  %7389 = vmatpush2.msra.mxu0 0.0
  %7390 = vmatprep.subr.mxu0 0.0
  %7391 = vmatpush2.msra.mxu0 0.0
  %7392 = vmatprep.subr.mxu0 0.0
  %7393 = vmatpush2.msra.mxu0 0.0
  %7394 = vmatprep.subr.mxu0 0.0
  %7395 = vmatpush2.msra.mxu0 0.0
  %7396 = vmatprep.subr.mxu0 0.0
  %7397 = vmatpush2.msra.mxu0 0.0
  %7398 = vmatprep.subr.mxu0 0.0
  %7399 = vmatpush2.msra.mxu0 0.0
  %7400 = vmatprep.subr.mxu0 0.0
  %7401 = vmatpush2.msra.mxu0 0.0
  %7402 = vmatprep.subr.mxu0 0.0
  %7403 = vmatpush2.msra.mxu0 0.0
  %7404 = vmatprep.subr.mxu0 0.0
  %7405 = vmatpush2.msra.mxu0 0.0
  %7406 = vmatprep.subr.mxu0 0.0
  %7407 = vmatpush2.msra.mxu0 0.0
  %7408 = vmatprep.subr.mxu0 0.0
  %7409 = vmatpush2.msra.mxu0 0.0
  %7410 = vmatprep.subr.mxu0 0.0
  %7411 = vmatpush2.msra.mxu0 0.0
  %7412 = vmatprep.mubr.f32.mxu0 0.0
  %7413 = vmatmul.mubr.f32.gmra.mxu0 %v5074
  %v7414 = vpop.f32.mrf.mxu0
  %v7415 = vadd.f32 %v4971, %v7414
  %v7416 = vpop.f32.mrf.mxu0
  %v7417 = vadd.f32 %v4975, %v7416
  %7418 = vdwg.mxu0
  %7419 = vmatprep.subr.mxu0 0.0
  %7420 = vmatpush1.msra.mxu0 0.0
  %7421 = vmatprep.subr.mxu0 0.0
  %7422 = vmatpush1.msra.mxu0 0.0
  %7423 = vmatprep.subr.mxu0 0.0
  %7424 = vmatpush1.msra.mxu0 0.0
  %7425 = vmatprep.subr.mxu0 0.0
  %7426 = vmatpush1.msra.mxu0 0.0
  %7427 = vmatprep.subr.mxu0 0.0
  %7428 = vmatpush1.msra.mxu0 0.0
  %7429 = vmatprep.subr.mxu0 0.0
  %7430 = vmatpush1.msra.mxu0 0.0
  %7431 = vmatprep.subr.mxu0 0.0
  %7432 = vmatpush1.msra.mxu0 0.0
  %7433 = vmatprep.subr.mxu0 0.0
  %7434 = vmatpush1.msra.mxu0 0.0
  %7435 = vmatprep.subr.mxu0 0.0
  %7436 = vmatpush1.msra.mxu0 0.0
  %7437 = vmatprep.subr.mxu0 0.0
  %7438 = vmatpush1.msra.mxu0 0.0
  %7439 = vmatprep.subr.mxu0 0.0
  %7440 = vmatpush1.msra.mxu0 0.0
  %7441 = vmatprep.subr.mxu0 0.0
  %7442 = vmatpush1.msra.mxu0 0.0
  %7443 = vmatprep.subr.mxu0 %v4689
  %7444 = vmatpush1.msra.mxu0 %v4688
  %7445 = vmatprep.subr.mxu0 %v4617
  %7446 = vmatpush1.msra.mxu0 %v4616
  %7447 = vmatprep.subr.mxu0 %v4545
  %7448 = vmatpush1.msra.mxu0 %v4544
  %7449 = vmatprep.subr.mxu0 %v4473
  %7450 = vmatpush1.msra.mxu0 %v4472
  %7451 = vmatprep.subr.mxu0 0.0
  %7452 = vmatpush2.msra.mxu0 0.0
  %7453 = vmatprep.subr.mxu0 0.0
  %7454 = vmatpush2.msra.mxu0 0.0
  %7455 = vmatprep.subr.mxu0 0.0
  %7456 = vmatpush2.msra.mxu0 0.0
  %7457 = vmatprep.subr.mxu0 0.0
  %7458 = vmatpush2.msra.mxu0 0.0
  %7459 = vmatprep.subr.mxu0 0.0
  %7460 = vmatpush2.msra.mxu0 0.0
  %7461 = vmatprep.subr.mxu0 0.0
  %7462 = vmatpush2.msra.mxu0 0.0
  %7463 = vmatprep.subr.mxu0 0.0
  %7464 = vmatpush2.msra.mxu0 0.0
  %7465 = vmatprep.subr.mxu0 0.0
  %7466 = vmatpush2.msra.mxu0 0.0
  %7467 = vmatprep.subr.mxu0 0.0
  %7468 = vmatpush2.msra.mxu0 0.0
  %7469 = vmatprep.subr.mxu0 0.0
  %7470 = vmatpush2.msra.mxu0 0.0
  %7471 = vmatprep.subr.mxu0 0.0
  %7472 = vmatpush2.msra.mxu0 0.0
  %7473 = vmatprep.subr.mxu0 0.0
  %7474 = vmatpush2.msra.mxu0 0.0
  %7475 = vmatprep.subr.mxu0 0.0
  %7476 = vmatpush2.msra.mxu0 0.0
  %7477 = vmatprep.subr.mxu0 0.0
  %7478 = vmatpush2.msra.mxu0 0.0
  %7479 = vmatprep.subr.mxu0 0.0
  %7480 = vmatpush2.msra.mxu0 0.0
  %7481 = vmatprep.subr.mxu0 0.0
  %7482 = vmatpush2.msra.mxu0 0.0
  %7483 = vmatprep.mubr.f32.mxu0 0.0
  %7484 = vmatmul.mubr.f32.gmra.mxu0 %v5074
  %v7485 = vpop.f32.mrf.mxu0
  %v7486 = vadd.f32 %v4979, %v7485
  %v7487 = vpop.f32.mrf.mxu0
  %v7488 = vadd.f32 %v4983, %v7487
  %7489 = vdwg.mxu0
  %7490 = vmatprep.subr.mxu0 0.0
  %7491 = vmatpush1.msra.mxu0 0.0
  %7492 = vmatprep.subr.mxu0 0.0
  %7493 = vmatpush1.msra.mxu0 0.0
  %7494 = vmatprep.subr.mxu0 0.0
  %7495 = vmatpush1.msra.mxu0 0.0
  %7496 = vmatprep.subr.mxu0 0.0
  %7497 = vmatpush1.msra.mxu0 0.0
  %7498 = vmatprep.subr.mxu0 0.0
  %7499 = vmatpush1.msra.mxu0 0.0
  %7500 = vmatprep.subr.mxu0 0.0
  %7501 = vmatpush1.msra.mxu0 0.0
  %7502 = vmatprep.subr.mxu0 0.0
  %7503 = vmatpush1.msra.mxu0 0.0
  %7504 = vmatprep.subr.mxu0 0.0
  %7505 = vmatpush1.msra.mxu0 0.0
  %7506 = vmatprep.subr.mxu0 0.0
  %7507 = vmatpush1.msra.mxu0 0.0
  %7508 = vmatprep.subr.mxu0 0.0
  %7509 = vmatpush1.msra.mxu0 0.0
  %7510 = vmatprep.subr.mxu0 0.0
  %7511 = vmatpush1.msra.mxu0 0.0
  %7512 = vmatprep.subr.mxu0 0.0
  %7513 = vmatpush1.msra.mxu0 0.0
  %7514 = vmatprep.subr.mxu0 %v4691
  %7515 = vmatpush1.msra.mxu0 %v4690
  %7516 = vmatprep.subr.mxu0 %v4619
  %7517 = vmatpush1.msra.mxu0 %v4618
  %7518 = vmatprep.subr.mxu0 %v4547
  %7519 = vmatpush1.msra.mxu0 %v4546
  %7520 = vmatprep.subr.mxu0 %v4475
  %7521 = vmatpush1.msra.mxu0 %v4474
  %7522 = vmatprep.subr.mxu0 0.0
  %7523 = vmatpush2.msra.mxu0 0.0
  %7524 = vmatprep.subr.mxu0 0.0
  %7525 = vmatpush2.msra.mxu0 0.0
  %7526 = vmatprep.subr.mxu0 0.0
  %7527 = vmatpush2.msra.mxu0 0.0
  %7528 = vmatprep.subr.mxu0 0.0
  %7529 = vmatpush2.msra.mxu0 0.0
  %7530 = vmatprep.subr.mxu0 0.0
  %7531 = vmatpush2.msra.mxu0 0.0
  %7532 = vmatprep.subr.mxu0 0.0
  %7533 = vmatpush2.msra.mxu0 0.0
  %7534 = vmatprep.subr.mxu0 0.0
  %7535 = vmatpush2.msra.mxu0 0.0
  %7536 = vmatprep.subr.mxu0 0.0
  %7537 = vmatpush2.msra.mxu0 0.0
  %7538 = vmatprep.subr.mxu0 0.0
  %7539 = vmatpush2.msra.mxu0 0.0
  %7540 = vmatprep.subr.mxu0 0.0
  %7541 = vmatpush2.msra.mxu0 0.0
  %7542 = vmatprep.subr.mxu0 0.0
  %7543 = vmatpush2.msra.mxu0 0.0
  %7544 = vmatprep.subr.mxu0 0.0
  %7545 = vmatpush2.msra.mxu0 0.0
  %7546 = vmatprep.subr.mxu0 0.0
  %7547 = vmatpush2.msra.mxu0 0.0
  %7548 = vmatprep.subr.mxu0 0.0
  %7549 = vmatpush2.msra.mxu0 0.0
  %7550 = vmatprep.subr.mxu0 0.0
  %7551 = vmatpush2.msra.mxu0 0.0
  %7552 = vmatprep.subr.mxu0 0.0
  %7553 = vmatpush2.msra.mxu0 0.0
  %7554 = vmatprep.mubr.f32.mxu0 0.0
  %7555 = vmatmul.mubr.f32.gmra.mxu0 %v5074
  %v7556 = vpop.f32.mrf.mxu0
  %v7557 = vadd.f32 %v4987, %v7556
  %v7558 = vpop.f32.mrf.mxu0
  %v7559 = vadd.f32 %v4991, %v7558
  %7560 = vdwg.mxu0
  %7561 = vmatprep.subr.mxu0 0.0
  %7562 = vmatpush1.msra.mxu0 0.0
  %7563 = vmatprep.subr.mxu0 0.0
  %7564 = vmatpush1.msra.mxu0 0.0
  %7565 = vmatprep.subr.mxu0 0.0
  %7566 = vmatpush1.msra.mxu0 0.0
  %7567 = vmatprep.subr.mxu0 0.0
  %7568 = vmatpush1.msra.mxu0 0.0
  %7569 = vmatprep.subr.mxu0 0.0
  %7570 = vmatpush1.msra.mxu0 0.0
  %7571 = vmatprep.subr.mxu0 0.0
  %7572 = vmatpush1.msra.mxu0 0.0
  %7573 = vmatprep.subr.mxu0 0.0
  %7574 = vmatpush1.msra.mxu0 0.0
  %7575 = vmatprep.subr.mxu0 0.0
  %7576 = vmatpush1.msra.mxu0 0.0
  %7577 = vmatprep.subr.mxu0 0.0
  %7578 = vmatpush1.msra.mxu0 0.0
  %7579 = vmatprep.subr.mxu0 0.0
  %7580 = vmatpush1.msra.mxu0 0.0
  %7581 = vmatprep.subr.mxu0 0.0
  %7582 = vmatpush1.msra.mxu0 0.0
  %7583 = vmatprep.subr.mxu0 0.0
  %7584 = vmatpush1.msra.mxu0 0.0
  %7585 = vmatprep.subr.mxu0 %v4693
  %7586 = vmatpush1.msra.mxu0 %v4692
  %7587 = vmatprep.subr.mxu0 %v4621
  %7588 = vmatpush1.msra.mxu0 %v4620
  %7589 = vmatprep.subr.mxu0 %v4549
  %7590 = vmatpush1.msra.mxu0 %v4548
  %7591 = vmatprep.subr.mxu0 %v4477
  %7592 = vmatpush1.msra.mxu0 %v4476
  %7593 = vmatprep.subr.mxu0 0.0
  %7594 = vmatpush2.msra.mxu0 0.0
  %7595 = vmatprep.subr.mxu0 0.0
  %7596 = vmatpush2.msra.mxu0 0.0
  %7597 = vmatprep.subr.mxu0 0.0
  %7598 = vmatpush2.msra.mxu0 0.0
  %7599 = vmatprep.subr.mxu0 0.0
  %7600 = vmatpush2.msra.mxu0 0.0
  %7601 = vmatprep.subr.mxu0 0.0
  %7602 = vmatpush2.msra.mxu0 0.0
  %7603 = vmatprep.subr.mxu0 0.0
  %7604 = vmatpush2.msra.mxu0 0.0
  %7605 = vmatprep.subr.mxu0 0.0
  %7606 = vmatpush2.msra.mxu0 0.0
  %7607 = vmatprep.subr.mxu0 0.0
  %7608 = vmatpush2.msra.mxu0 0.0
  %7609 = vmatprep.subr.mxu0 0.0
  %7610 = vmatpush2.msra.mxu0 0.0
  %7611 = vmatprep.subr.mxu0 0.0
  %7612 = vmatpush2.msra.mxu0 0.0
  %7613 = vmatprep.subr.mxu0 0.0
  %7614 = vmatpush2.msra.mxu0 0.0
  %7615 = vmatprep.subr.mxu0 0.0
  %7616 = vmatpush2.msra.mxu0 0.0
  %7617 = vmatprep.subr.mxu0 0.0
  %7618 = vmatpush2.msra.mxu0 0.0
  %7619 = vmatprep.subr.mxu0 0.0
  %7620 = vmatpush2.msra.mxu0 0.0
  %7621 = vmatprep.subr.mxu0 0.0
  %7622 = vmatpush2.msra.mxu0 0.0
  %7623 = vmatprep.subr.mxu0 0.0
  %7624 = vmatpush2.msra.mxu0 0.0
  %7625 = vmatprep.mubr.f32.mxu0 0.0
  %7626 = vmatmul.mubr.f32.gmra.mxu0 %v5074
  %v7627 = vpop.f32.mrf.mxu0
  %v7628 = vadd.f32 %v4995, %v7627
  %v7629 = vpop.f32.mrf.mxu0
  %v7630 = vadd.f32 %v4999, %v7629
  %7631 = vdwg.mxu0
  %v7704 = vcombine.low %v5143, %v5145
  %v7705 = vcombine.low %v5214, %v5216
  %v7707 = vunpack.c.l.s4 1983009808
  %v7708 = vunpack.c.0.s8 %v7707
  %v7709 = vlaneseq
  %v7710 = vshrl.u32 %v7709, 7
  %v7711 = vsub.s32 %v7708, %v7710
  %v7712 = vrot.slane %v7704, %v7711
  %v7714 = vunpack.c.l.s4 1983009808
  %v7715 = vunpack.c.0.s8 %v7714
  %v7716 = vlaneseq
  %v7717 = vshrl.u32 %v7716, 7
  %v7718 = vsub.s32 %v7715, %v7717
  %v7719 = vrot.slane %v7705, %v7718
  %v7720 = vcombine.low %v7712, %v7719
  %v7721 = vcombine.low %v5285, %v5287
  %v7722 = vcombine.low %v5356, %v5358
  %v7724 = vunpack.c.l.s4 1983009808
  %v7725 = vunpack.c.0.s8 %v7724
  %v7726 = vlaneseq
  %v7727 = vshrl.u32 %v7726, 7
  %v7728 = vsub.s32 %v7725, %v7727
  %v7729 = vrot.slane %v7721, %v7728
  %v7731 = vunpack.c.l.s4 1983009808
  %v7732 = vunpack.c.0.s8 %v7731
  %v7733 = vlaneseq
  %v7734 = vshrl.u32 %v7733, 7
  %v7735 = vsub.s32 %v7732, %v7734
  %v7736 = vrot.slane %v7722, %v7735
  %v7737 = vcombine.low %v7729, %v7736
  %v7738 = vcombine.low %v5427, %v5429
  %v7739 = vcombine.low %v5498, %v5500
  %v7741 = vunpack.c.l.s4 1983009808
  %v7742 = vunpack.c.0.s8 %v7741
  %v7743 = vlaneseq
  %v7744 = vshrl.u32 %v7743, 7
  %v7745 = vsub.s32 %v7742, %v7744
  %v7746 = vrot.slane %v7738, %v7745
  %v7748 = vunpack.c.l.s4 1983009808
  %v7749 = vunpack.c.0.s8 %v7748
  %v7750 = vlaneseq
  %v7751 = vshrl.u32 %v7750, 7
  %v7752 = vsub.s32 %v7749, %v7751
  %v7753 = vrot.slane %v7739, %v7752
  %v7754 = vcombine.low %v7746, %v7753
  %v7755 = vcombine.low %v5569, %v5571
  %v7756 = vcombine.low %v5640, %v5642
  %v7758 = vunpack.c.l.s4 1983009808
  %v7759 = vunpack.c.0.s8 %v7758
  %v7760 = vlaneseq
  %v7761 = vshrl.u32 %v7760, 7
  %v7762 = vsub.s32 %v7759, %v7761
  %v7763 = vrot.slane %v7755, %v7762
  %v7765 = vunpack.c.l.s4 1983009808
  %v7766 = vunpack.c.0.s8 %v7765
  %v7767 = vlaneseq
  %v7768 = vshrl.u32 %v7767, 7
  %v7769 = vsub.s32 %v7766, %v7768
  %v7770 = vrot.slane %v7756, %v7769
  %v7771 = vcombine.low %v7763, %v7770
  %v7772 = vcombine.low %v5711, %v5713
  %v7773 = vcombine.low %v5782, %v5784
  %v7775 = vunpack.c.l.s4 1983009808
  %v7776 = vunpack.c.0.s8 %v7775
  %v7777 = vlaneseq
  %v7778 = vshrl.u32 %v7777, 7
  %v7779 = vsub.s32 %v7776, %v7778
  %v7780 = vrot.slane %v7772, %v7779
  %v7782 = vunpack.c.l.s4 1983009808
  %v7783 = vunpack.c.0.s8 %v7782
  %v7784 = vlaneseq
  %v7785 = vshrl.u32 %v7784, 7
  %v7786 = vsub.s32 %v7783, %v7785
  %v7787 = vrot.slane %v7773, %v7786
  %v7788 = vcombine.low %v7780, %v7787
  %v7789 = vcombine.low %v5853, %v5855
  %v7790 = vcombine.low %v5924, %v5926
  %v7792 = vunpack.c.l.s4 1983009808
  %v7793 = vunpack.c.0.s8 %v7792
  %v7794 = vlaneseq
  %v7795 = vshrl.u32 %v7794, 7
  %v7796 = vsub.s32 %v7793, %v7795
  %v7797 = vrot.slane %v7789, %v7796
  %v7799 = vunpack.c.l.s4 1983009808
  %v7800 = vunpack.c.0.s8 %v7799
  %v7801 = vlaneseq
  %v7802 = vshrl.u32 %v7801, 7
  %v7803 = vsub.s32 %v7800, %v7802
  %v7804 = vrot.slane %v7790, %v7803
  %v7805 = vcombine.low %v7797, %v7804
  %v7806 = vcombine.low %v5995, %v5997
  %v7807 = vcombine.low %v6066, %v6068
  %v7809 = vunpack.c.l.s4 1983009808
  %v7810 = vunpack.c.0.s8 %v7809
  %v7811 = vlaneseq
  %v7812 = vshrl.u32 %v7811, 7
  %v7813 = vsub.s32 %v7810, %v7812
  %v7814 = vrot.slane %v7806, %v7813
  %v7816 = vunpack.c.l.s4 1983009808
  %v7817 = vunpack.c.0.s8 %v7816
  %v7818 = vlaneseq
  %v7819 = vshrl.u32 %v7818, 7
  %v7820 = vsub.s32 %v7817, %v7819
  %v7821 = vrot.slane %v7807, %v7820
  %v7822 = vcombine.low %v7814, %v7821
  %v7823 = vcombine.low %v6137, %v6139
  %v7824 = vcombine.low %v6208, %v6210
  %v7826 = vunpack.c.l.s4 1983009808
  %v7827 = vunpack.c.0.s8 %v7826
  %v7828 = vlaneseq
  %v7829 = vshrl.u32 %v7828, 7
  %v7830 = vsub.s32 %v7827, %v7829
  %v7831 = vrot.slane %v7823, %v7830
  %v7833 = vunpack.c.l.s4 1983009808
  %v7834 = vunpack.c.0.s8 %v7833
  %v7835 = vlaneseq
  %v7836 = vshrl.u32 %v7835, 7
  %v7837 = vsub.s32 %v7834, %v7836
  %v7838 = vrot.slane %v7824, %v7837
  %v7839 = vcombine.low %v7831, %v7838
  %v7840 = vcombine.low %v6279, %v6281
  %v7841 = vcombine.low %v6350, %v6352
  %v7843 = vunpack.c.l.s4 1983009808
  %v7844 = vunpack.c.0.s8 %v7843
  %v7845 = vlaneseq
  %v7846 = vshrl.u32 %v7845, 7
  %v7847 = vsub.s32 %v7844, %v7846
  %v7848 = vrot.slane %v7840, %v7847
  %v7850 = vunpack.c.l.s4 1983009808
  %v7851 = vunpack.c.0.s8 %v7850
  %v7852 = vlaneseq
  %v7853 = vshrl.u32 %v7852, 7
  %v7854 = vsub.s32 %v7851, %v7853
  %v7855 = vrot.slane %v7841, %v7854
  %v7856 = vcombine.low %v7848, %v7855
  %v7857 = vcombine.low %v6421, %v6423
  %v7858 = vcombine.low %v6492, %v6494
  %v7860 = vunpack.c.l.s4 1983009808
  %v7861 = vunpack.c.0.s8 %v7860
  %v7862 = vlaneseq
  %v7863 = vshrl.u32 %v7862, 7
  %v7864 = vsub.s32 %v7861, %v7863
  %v7865 = vrot.slane %v7857, %v7864
  %v7867 = vunpack.c.l.s4 1983009808
  %v7868 = vunpack.c.0.s8 %v7867
  %v7869 = vlaneseq
  %v7870 = vshrl.u32 %v7869, 7
  %v7871 = vsub.s32 %v7868, %v7870
  %v7872 = vrot.slane %v7858, %v7871
  %v7873 = vcombine.low %v7865, %v7872
  %v7874 = vcombine.low %v6563, %v6565
  %v7875 = vcombine.low %v6634, %v6636
  %v7877 = vunpack.c.l.s4 1983009808
  %v7878 = vunpack.c.0.s8 %v7877
  %v7879 = vlaneseq
  %v7880 = vshrl.u32 %v7879, 7
  %v7881 = vsub.s32 %v7878, %v7880
  %v7882 = vrot.slane %v7874, %v7881
  %v7884 = vunpack.c.l.s4 1983009808
  %v7885 = vunpack.c.0.s8 %v7884
  %v7886 = vlaneseq
  %v7887 = vshrl.u32 %v7886, 7
  %v7888 = vsub.s32 %v7885, %v7887
  %v7889 = vrot.slane %v7875, %v7888
  %v7890 = vcombine.low %v7882, %v7889
  %v7891 = vcombine.low %v6705, %v6707
  %v7892 = vcombine.low %v6776, %v6778
  %v7894 = vunpack.c.l.s4 1983009808
  %v7895 = vunpack.c.0.s8 %v7894
  %v7896 = vlaneseq
  %v7897 = vshrl.u32 %v7896, 7
  %v7898 = vsub.s32 %v7895, %v7897
  %v7899 = vrot.slane %v7891, %v7898
  %v7901 = vunpack.c.l.s4 1983009808
  %v7902 = vunpack.c.0.s8 %v7901
  %v7903 = vlaneseq
  %v7904 = vshrl.u32 %v7903, 7
  %v7905 = vsub.s32 %v7902, %v7904
  %v7906 = vrot.slane %v7892, %v7905
  %v7907 = vcombine.low %v7899, %v7906
  %v7908 = vcombine.low %v6847, %v6849
  %v7909 = vcombine.low %v6918, %v6920
  %v7911 = vunpack.c.l.s4 1983009808
  %v7912 = vunpack.c.0.s8 %v7911
  %v7913 = vlaneseq
  %v7914 = vshrl.u32 %v7913, 7
  %v7915 = vsub.s32 %v7912, %v7914
  %v7916 = vrot.slane %v7908, %v7915
  %v7918 = vunpack.c.l.s4 1983009808
  %v7919 = vunpack.c.0.s8 %v7918
  %v7920 = vlaneseq
  %v7921 = vshrl.u32 %v7920, 7
  %v7922 = vsub.s32 %v7919, %v7921
  %v7923 = vrot.slane %v7909, %v7922
  %v7924 = vcombine.low %v7916, %v7923
  %v7925 = vcombine.low %v6989, %v6991
  %v7926 = vcombine.low %v7060, %v7062
  %v7928 = vunpack.c.l.s4 1983009808
  %v7929 = vunpack.c.0.s8 %v7928
  %v7930 = vlaneseq
  %v7931 = vshrl.u32 %v7930, 7
  %v7932 = vsub.s32 %v7929, %v7931
  %v7933 = vrot.slane %v7925, %v7932
  %v7935 = vunpack.c.l.s4 1983009808
  %v7936 = vunpack.c.0.s8 %v7935
  %v7937 = vlaneseq
  %v7938 = vshrl.u32 %v7937, 7
  %v7939 = vsub.s32 %v7936, %v7938
  %v7940 = vrot.slane %v7926, %v7939
  %v7941 = vcombine.low %v7933, %v7940
  %v7942 = vcombine.low %v7131, %v7133
  %v7943 = vcombine.low %v7202, %v7204
  %v7945 = vunpack.c.l.s4 1983009808
  %v7946 = vunpack.c.0.s8 %v7945
  %v7947 = vlaneseq
  %v7948 = vshrl.u32 %v7947, 7
  %v7949 = vsub.s32 %v7946, %v7948
  %v7950 = vrot.slane %v7942, %v7949
  %v7952 = vunpack.c.l.s4 1983009808
  %v7953 = vunpack.c.0.s8 %v7952
  %v7954 = vlaneseq
  %v7955 = vshrl.u32 %v7954, 7
  %v7956 = vsub.s32 %v7953, %v7955
  %v7957 = vrot.slane %v7943, %v7956
  %v7958 = vcombine.low %v7950, %v7957
  %v7959 = vcombine.low %v7273, %v7275
  %v7960 = vcombine.low %v7344, %v7346
  %v7962 = vunpack.c.l.s4 1983009808
  %v7963 = vunpack.c.0.s8 %v7962
  %v7964 = vlaneseq
  %v7965 = vshrl.u32 %v7964, 7
  %v7966 = vsub.s32 %v7963, %v7965
  %v7967 = vrot.slane %v7959, %v7966
  %v7969 = vunpack.c.l.s4 1983009808
  %v7970 = vunpack.c.0.s8 %v7969
  %v7971 = vlaneseq
  %v7972 = vshrl.u32 %v7971, 7
  %v7973 = vsub.s32 %v7970, %v7972
  %v7974 = vrot.slane %v7960, %v7973
  %v7975 = vcombine.low %v7967, %v7974
  %v7976 = vcombine.low %v7415, %v7417
  %v7977 = vcombine.low %v7486, %v7488
  %v7979 = vunpack.c.l.s4 1983009808
  %v7980 = vunpack.c.0.s8 %v7979
  %v7981 = vlaneseq
  %v7982 = vshrl.u32 %v7981, 7
  %v7983 = vsub.s32 %v7980, %v7982
  %v7984 = vrot.slane %v7976, %v7983
  %v7986 = vunpack.c.l.s4 1983009808
  %v7987 = vunpack.c.0.s8 %v7986
  %v7988 = vlaneseq
  %v7989 = vshrl.u32 %v7988, 7
  %v7990 = vsub.s32 %v7987, %v7989
  %v7991 = vrot.slane %v7977, %v7990
  %v7992 = vcombine.low %v7984, %v7991
  %v7993 = vcombine.low %v7557, %v7559
  %v7994 = vcombine.low %v7628, %v7630
  %v7996 = vunpack.c.l.s4 1983009808
  %v7997 = vunpack.c.0.s8 %v7996
  %v7998 = vlaneseq
  %v7999 = vshrl.u32 %v7998, 7
  %v8000 = vsub.s32 %v7997, %v7999
  %v8001 = vrot.slane %v7993, %v8000
  %v8003 = vunpack.c.l.s4 1983009808
  %v8004 = vunpack.c.0.s8 %v8003
  %v8005 = vlaneseq
  %v8006 = vshrl.u32 %v8005, 7
  %v8007 = vsub.s32 %v8004, %v8006
  %v8008 = vrot.slane %v7994, %v8007
  %v8009 = vcombine.low %v8001, %v8008
  %8028 = vst [vmem:[%s5] sm:$0xff] %v7720
  %8029 = vst [vmem:[%s5 + $0x8] sm:$0xff] %v7737
  %8030 = vst [vmem:[%s5 + $0x10] sm:$0xff] %v7754
  %8031 = vst [vmem:[%s5 + $0x18] sm:$0xff] %v7771
  %8032 = vst [vmem:[%s5 + $0x20] sm:$0xff] %v7788
  %8033 = vst [vmem:[%s5 + $0x28] sm:$0xff] %v7805
  %8034 = vst [vmem:[%s5 + $0x30] sm:$0xff] %v7822
  %8035 = vst [vmem:[%s5 + $0x38] sm:$0xff] %v7839
  %8036 = vst [vmem:[%s5 + $0x40] sm:$0xff] %v7856
  %8037 = vst [vmem:[%s5 + $0x48] sm:$0xff] %v7873
  %8038 = vst [vmem:[%s5 + $0x50] sm:$0xff] %v7890
  %8039 = vst [vmem:[%s5 + $0x58] sm:$0xff] %v7907
  %8040 = vst [vmem:[%s5 + $0x60] sm:$0xff] %v7924
  %8041 = vst [vmem:[%s5 + $0x68] sm:$0xff] %v7941
  %8042 = vst [vmem:[%s5 + $0x70] sm:$0xff] %v7958
  %8043 = vst [vmem:[%s5 + $0x78] sm:$0xff] %v7975
  %8044 = vst [vmem:[%s5 + $0x80] sm:$0xff] %v7992
  %8045 = vst [vmem:[%s5 + $0x88] sm:$0xff] %v8009
  // Predicated region
  $region22: #{filter_predictor_forward.1} parent=0 // pred_check
    _
  $region23: #{filter_predictor_forward.1} parent=0 // pred_check_branch
    %8047 = sbr.rel (0) target = $region25
  $region24: #{filter_predictor_forward.1} parent=0 // pred_region
    _
  $region25: #{filter_predictor_forward.1} parent=0 // pred_fallthru
    _
  // Predicated region
  $region26: #{filter_predictor_forward.1} parent=0 // pred_check
    _
  $region27: #{filter_predictor_forward.1} parent=0 // pred_check_branch
    %8049 = sbr.rel (0) target = $region29
  $region28: #{filter_predictor_forward.1} parent=0 // pred_region
    _
  $region29: #{filter_predictor_forward.1} parent=0 // pred_fallthru
    _

</llo_original>
